<compile_context>
chip_gen: v6e
topology: v6e:2x2x1
jax: 0.10.0
libtpu: 0.0.40
codegen_flags: <defaults>
</compile_context>

<pallas_src>
import functools
import numpy as np

import jax
import jax.numpy as jnp
from jax.experimental import pallas as pl
from jax.experimental.pallas import tpu as pltpu

# ---- model dims (small, consistent with the module's forward) ----
B = 2                  # batch
IMG = 32               # input image H = W
PATCH = 4              # backbone stride / patch size
FEAT_SZ = 8            # box_head.feat_sz  (IMG // PATCH)
FEAT_LEN = FEAT_SZ * FEAT_SZ    # feat_len_s = 64
BACKBONE_C = 16        # backbone output channels
C = 32                 # transformer hidden dim
NHEAD = 4
DH = C // NHEAD
DFF = 64               # feed-forward dim
NQ = 1                 # STARK-S single query
HW_Z = 16              # template token count (4x4 template feature)
L_TOT = HW_Z + FEAT_LEN

F32 = jnp.float32


# ======================== host-side constants (built once) ========================

def _make_shift_mats(fsz):
    """R_k (HW, HW) with R_k[q, p] = 1 iff output pos p's k-th 3x3 tap reads input pos q."""
    hw = fsz * fsz
    m = np.zeros((9, hw, hw), dtype=np.float32)
    for ky in range(3):
        for kx in range(3):
            kk = ky * 3 + kx
            for y in range(fsz):
                for x in range(fsz):
                    yy, xx = y + ky - 1, x + kx - 1
                    if 0 <= yy < fsz and 0 <= xx < fsz:
                        m[kk, yy * fsz + xx, y * fsz + x] = 1.0
    return m


_SHIFT_NP = _make_shift_mats(FEAT_SZ)                                   # (9, HW, HW)
_IDX = np.arange(FEAT_LEN)
_COORD_T_NP = np.stack([(_IDX % FEAT_SZ) / FEAT_SZ,
                        (_IDX // FEAT_SZ) / FEAT_SZ], axis=1).astype(np.float32)  # (HW, 2)
_HEAD_MASK_NP = (np.arange(C)[None, :] // DH ==
                 np.arange(NHEAD)[:, None]).astype(np.float32)          # (NHEAD, C)

# Order in which the constant (grid-invariant) operands are passed to the kernel.
_CONST_ORDER = (
    "patch_w", "patch_b", "bot_w", "bot_b",
    "e_wqk", "e_bqk", "e_wv", "e_bv", "e_wo", "e_bo",
    "e_n1w", "e_n1b", "e_f1w", "e_f1b", "e_f2w", "e_f2b", "e_n2w", "e_n2b",
    "qemb",
    "sa_bv", "sa_wo", "sa_bo", "d_n1w", "d_n1b",
    "ca_wq", "ca_bq", "ca_wk", "ca_bk", "ca_wv", "ca_bv", "ca_wo", "ca_bo",
    "d_n2w", "d_n2b", "d_f1w", "d_f1b", "d_f2w", "d_f2b", "d_n3w", "d_n3b",
    "dnw", "dnb",
    "hmask", "shift", "w1m", "b1", "w2m", "b2", "coordT",
)


# ======================== in-kernel helpers (traced inside the Pallas kernel) ========================

def _mm(a, b):
    return jnp.dot(a, b, preferred_element_type=jnp.float32)


def _mm_nt(a, b):
    """a @ b^T, contracting the last dim of both operands."""
    return jax.lax.dot_general(a, b, (((1,), (1,)), ((), ())),
                               preferred_element_type=jnp.float32)


def _ln(x, wgt, bias, eps):
    """LayerNorm over the last dim.  wgt, bias are (1, C)."""
    mu = jnp.mean(x, axis=-1, keepdims=True)
    xc = x - mu
    var = jnp.mean(xc * xc, axis=-1, keepdims=True)
    return xc * jax.lax.rsqrt(var + eps) * wgt + bias


def _mha(q, k, v, bias, hmask, nhead):
    """Head-stacked multi-head attention (pre out-projection).

    q: (Lq, C); k, v: (Lk, C); bias: (1, Lk) additive key-padding bias or None;
    hmask: (nhead, C) one-hot per-head channel masks.

    Heads are stacked along the row (sublane) axis: qs[h*Lq + l] = q[l] * hmask[h].
    ONE score matmul, ONE softmax, ONE PV matmul, then a masked head-combine --
    mathematically identical to splitting heads, but with 1/nhead of the MXU
    pushes and softmax/exp passes vs. a per-head loop.
    """
    Lq, Cc = q.shape
    qs = jnp.concatenate([q * hmask[h:h + 1, :] for h in range(nhead)], axis=0)
    s = _mm_nt(qs, k)                                        # (nhead*Lq, Lk)
    if bias is not None:
        s = s + bias
    s = s - jnp.max(s, axis=-1, keepdims=True)
    p = jnp.exp(s)
    p = p * pl.reciprocal(jnp.sum(p, axis=-1, keepdims=True) + 1e-9, approx=True)
    pv = _mm(p, v)                                           # (nhead*Lq, C)
    out = pv[0:Lq, :] * hmask[0:1, :]
    for h in range(1, nhead):
        out = out + pv[h * Lq:(h + 1) * Lq, :] * hmask[h:h + 1, :]
    return out                                               # (Lq, C)


# ======================== the single fused STARK kernel ========================

def _stark_kernel(*refs, nhead, eps):
    n_const = len(_CONST_ORDER)
    assert len(refs) == 4 + n_const + 1
    x_ref, featz_ref, pos_ref, bias_ref = refs[:4]
    out_ref = refs[-1]
    w = dict(zip(_CONST_ORDER, refs[4:4 + n_const]))

    hmask = w["hmask"][...]                                    # (nhead, C)
    bias = bias_ref[0]                                         # (1, L)

    # ---- backbone stem: patchify conv (im2col rows) + ReLU, then 1x1 bottleneck ----
    h = jnp.maximum(_mm(x_ref[0], w["patch_w"][...]) + w["patch_b"][...], 0.0)
    feat_x = _mm(h, w["bot_w"][...]) + w["bot_b"][...]         # (HW, C)

    # template tokens first, search-region tokens last (STARK convention)
    src = jnp.concatenate([featz_ref[0], feat_x], axis=0)      # (L, C)
    pos = pos_ref[0]                                           # (L, C)

    # ---- encoder layer (DETR post-norm), fused ----
    qin = src + pos                                            # q = k = src + pos
    qk = _mm(qin, w["e_wqk"][...]) + w["e_bqk"][...]           # (L, 2C); scale folded into Q half
    q = qk[:, :C]
    k = qk[:, C:]
    v = _mm(src, w["e_wv"][...]) + w["e_bv"][...]              # value = src
    o = _mha(q, k, v, bias, hmask, nhead)
    x = src + _mm(o, w["e_wo"][...]) + w["e_bo"][...]
    x = _ln(x, w["e_n1w"][...], w["e_n1b"][...], eps)
    ff = jnp.maximum(_mm(x, w["e_f1w"][...]) + w["e_f1b"][...], 0.0)
    ff = _mm(ff, w["e_f2w"][...]) + w["e_f2b"][...]
    memory = _ln(x + ff, w["e_n2w"][...], w["e_n2b"][...], eps)  # (L, C)

    # ---- decoder layer (DETR post-norm, tgt = 0) + final decoder LayerNorm ----
    qp = w["qemb"][...]                                        # (NQ, C) query_pos
    # Self-attention with tgt == 0: every value row equals the value-projection
    # bias, so the attention output is that bias row for every query regardless
    # of the (identical) q/k scores -- exact algebraic reduction, no approximation.
    sa_o = jnp.broadcast_to(w["sa_bv"][...], qp.shape)         # (NQ, C)
    t = _mm(sa_o, w["sa_wo"][...]) + w["sa_bo"][...]           # tgt(=0) + out_proj(attn)
    t = _ln(t, w["d_n1w"][...], w["d_n1b"][...], eps)

    # cross-attention (q = tgt + query_pos, k = memory + pos, v = memory)
    qc = _mm(t + qp, w["ca_wq"][...]) + w["ca_bq"][...]        # scale folded into ca_wq/bq
    kc = _mm(memory + pos, w["ca_wk"][...]) + w["ca_bk"][...]
    vc = _mm(memory, w["ca_wv"][...]) + w["ca_bv"][...]
    o2 = _mha(qc, kc, vc, bias, hmask, nhead)
    t = _ln(t + _mm(o2, w["ca_wo"][...]) + w["ca_bo"][...],
            w["d_n2w"][...], w["d_n2b"][...], eps)

    ff = jnp.maximum(_mm(t, w["d_f1w"][...]) + w["d_f1b"][...], 0.0)
    ff = _mm(ff, w["d_f2w"][...]) + w["d_f2b"][...]
    t = _ln(t + ff, w["d_n3w"][...], w["d_n3b"][...], eps)
    hs = _ln(t, w["dnw"][...], w["dnb"][...], eps)             # (NQ, C)

    # ---- CORNER box head: correlation + merged 3x3 conv + merged 1x1 + soft-argmax ----
    memS_T = memory[HW_Z:, :].T                                # (C, HW) search-region tokens
    att = _mm(hs, memS_T)                                      # (NQ, HW) correlation (NQ == 1)
    feat = memS_T * att                                        # (C, HW) channel-weighted feature
    taps = [_mm(feat, w["shift"][kk]) for kk in range(9)]      # zero-padded 3x3 taps
    stack = jnp.concatenate(taps, axis=0)                      # (9C, HW)
    y = jnp.maximum(_mm(w["w1m"][...], stack) + w["b1"][...], 0.0)   # (2*BBC, HW)
    s = _mm(w["w2m"][...], y) + w["b2"][...]                   # (2, HW): rows = (tl, br)
    s = s - jnp.max(s, axis=-1, keepdims=True)
    p = jnp.exp(s)
    p = p * pl.reciprocal(jnp.sum(p, axis=-1, keepdims=True) + 1e-9, approx=True)
    out_ref[0, 0] = _mm(p, w["coordT"][...])                   # (2, 2): [[x_tl,y_tl],[x_br,y_br]]


# ======================== positional embedding (deterministic, no params) ========================
# TODO(synk): kept in XLA (parameter-free trig preprocessing); cumsum/sin/cos have no clean
# win as a Pallas kernel at this size.

def position_embedding_sine(mask_feat, num_pos_feats=C // 2, temperature=10000.0):
    not_mask = 1.0 - mask_feat.astype(F32)                 # (B, h, w)
    y_embed = jnp.cumsum(not_mask, axis=1)
    x_embed = jnp.cumsum(not_mask, axis=2)
    eps = 1e-6
    scale = 2.0 * np.pi
    y_embed = y_embed / (y_embed[:, -1:, :] + eps) * scale
    x_embed = x_embed / (x_embed[:, :, -1:] + eps) * scale
    dim_t = jnp.arange(num_pos_feats, dtype=F32)
    dim_t = temperature ** (2.0 * jnp.floor(dim_t / 2.0) / num_pos_feats)
    pos_x = x_embed[..., None] / dim_t
    pos_y = y_embed[..., None] / dim_t

    def interleave(p):
        s = jnp.sin(p[..., 0::2])
        c = jnp.cos(p[..., 1::2])
        return jnp.stack([s, c], axis=4).reshape(p.shape[0], p.shape[1], p.shape[2], -1)

    pos_x = interleave(pos_x)
    pos_y = interleave(pos_y)
    return jnp.concatenate([pos_y, pos_x], axis=3).transpose(0, 3, 1, 2)   # (B, C, h, w)


# ======================== BlockSpec helpers ========================

def _bspec(arr):
    """Per-batch block: leading (batch) dim blocked to 1, rest full."""
    nd = arr.ndim

    def imap(b):
        return (b,) + (0,) * (nd - 1)

    return pl.BlockSpec((1,) + arr.shape[1:], imap)


def _cspec(arr):
    """Grid-invariant (weight/constant) block: whole array, same block every step."""
    nd = arr.ndim

    def imap(b):
        return (0,) * nd

    return pl.BlockSpec(arr.shape, imap)


# ======================== STARK forward (single fused pallas_call) ========================

def stark_forward(pp, img, mask, feat_vec_z, mask_vec_z, pos_vec_z):
    Bn = img.shape[0]

    # ---- XLA-side preprocessing (parameter-free, cheap) ----
    # TODO(synk): the real STARK-S backbone is a ResNet-50 up to layer3; here it is a single
    # patchify conv + ReLU with the same output interface (feature map + downsampled mask).
    x = img.reshape(Bn, 3, FEAT_SZ, PATCH, FEAT_SZ, PATCH)
    x = x.transpose(0, 2, 4, 1, 3, 5).reshape(Bn, FEAT_LEN, 3 * PATCH * PATCH)

    mask_feat = mask[:, ::PATCH, ::PATCH].astype(F32)                    # nearest downsample
    pos_img = position_embedding_sine(mask_feat)                         # (B, C, 8, 8)
    pos_x = pos_img.reshape(Bn, C, FEAT_LEN).transpose(0, 2, 1)          # (B, HW, C)
    mask_x = mask_feat.reshape(Bn, FEAT_LEN)                             # (B, HW)

    feat_z = feat_vec_z.transpose(1, 0, 2)                               # (B, HWz, C)
    pos = jnp.concatenate([pos_vec_z.transpose(1, 0, 2), pos_x], axis=1) # (B, L, C)
    maskL = jnp.concatenate([mask_vec_z, mask_x], axis=1)                # (B, L)
    # additive key-padding bias (-1e9 ~ -inf for padded keys)
    bias = ((maskL > 0.5).astype(F32) * jnp.float32(-1e9)).reshape(Bn, 1, L_TOT)

    batched = [x, feat_z, pos, bias]
    consts = [pp[name] for name in _CONST_ORDER]

    e = pl.pallas_call(
        functools.partial(_stark_kernel, nhead=NHEAD, eps=1e-5),
        grid=(Bn,),
        in_specs=[_bspec(a) for a in batched] + [_cspec(a) for a in consts],
        out_specs=pl.BlockSpec((1, NQ, 2, 2), lambda b: (b, 0, 0, 0)),
        out_shape=jax.ShapeDtypeStruct((Bn, NQ, 2, 2), F32),
        compiler_params=pltpu.CompilerParams(
            dimension_semantics=("parallel",)),
    )(*batched, *consts)                                                  # (B, NQ, 2, 2)

    e = e.reshape(Bn * NQ, 2, 2)
    x_tl, y_tl = e[:, 0, 0], e[:, 0, 1]
    x_br, y_br = e[:, 1, 0], e[:, 1, 1]
    # xyxy -> cxcywh, then mean over (B * NQ) as in the reference forward
    boxes = jnp.stack([(x_tl + x_br) * 0.5, (y_tl + y_br) * 0.5,
                       x_br - x_tl, y_br - y_tl], axis=1)
    return jnp.mean(boxes, axis=0)                                        # (4,)


# ======================== deterministic parameter init + one-time prep ========================

def init_params(key):
    keys = iter(jax.random.split(key, 40))

    def rnd(shape, scale=0.02):
        return scale * jax.random.normal(next(keys), shape, dtype=F32)

    def attn_params():
        return {"wq": rnd((C, C)), "bq": jnp.zeros((1, C), F32),
                "wk": rnd((C, C)), "bk": jnp.zeros((1, C), F32),
                "wv": rnd((C, C)), "bv": jnp.zeros((1, C), F32),
                "wo": rnd((C, C)), "bo": jnp.zeros((1, C), F32)}

    def layer_params(cross):
        d = {"self_attn": attn_params(),
             "lin1_w": rnd((C, DFF)), "lin1_b": jnp.zeros((1, DFF), F32),
             "lin2_w": rnd((DFF, C)), "lin2_b": jnp.zeros((1, C), F32),
             "norm1_w": jnp.ones((1, C), F32), "norm1_b": jnp.zeros((1, C), F32),
             "norm2_w": jnp.ones((1, C), F32), "norm2_b": jnp.zeros((1, C), F32)}
        if cross:
            d["cross_attn"] = attn_params()
            d["norm3_w"] = jnp.ones((1, C), F32)
            d["norm3_b"] = jnp.zeros((1, C), F32)
        return d

    return {
        "patch_w": rnd((BACKBONE_C, 3, PATCH, PATCH)),
        "patch_b": jnp.zeros((1, BACKBONE_C), F32),
        "bot_w": rnd((BACKBONE_C, C)),
        "bot_b": jnp.zeros((1, C), F32),
        "query_embed": rnd((NQ, C), scale=1.0),
        "enc": layer_params(False),
        "dec": layer_params(True),
        "dec_norm_w": jnp.ones((1, C), F32),
        "dec_norm_b": jnp.zeros((1, C), F32),
        "box": {"tl1_w": rnd((BACKBONE_C, C, 3, 3)), "tl1_b": jnp.zeros((BACKBONE_C,), F32),
                "tl2_w": rnd((1, BACKBONE_C, 1, 1)), "tl2_b": jnp.zeros((1,), F32),
                "br1_w": rnd((BACKBONE_C, C, 3, 3)), "br1_b": jnp.zeros((BACKBONE_C,), F32),
                "br2_w": rnd((1, BACKBONE_C, 1, 1)), "br2_b": jnp.zeros((1,), F32)},
    }


def prepare_params(p):
    """One-time, host-side weight prep (hoisted out of the per-call path)."""
    scale = 1.0 / float(np.sqrt(DH))
    enc, dec, bx = p["enc"], p["dec"], p["box"]
    esa, dsa, dca = enc["self_attn"], dec["self_attn"], dec["cross_attn"]

    # ---- box head: merged TL/BR 3x3 conv (per-tap flattened) + block-diagonal 1x1 ----
    # TODO(synk): full STARK Corner_Predictor has a 5-conv tower with frozen BatchNorm per
    # branch; this synthetic head keeps 2 convs per branch (frozen default BN == identity);
    # correlation + soft-argmax semantics are exact.
    w1 = jnp.concatenate([bx["tl1_w"], bx["br1_w"]], axis=0)              # (2*BBC, C, 3, 3)
    w1m = w1.transpose(0, 2, 3, 1).reshape(2 * BACKBONE_C, 9 * C)         # cols = k*C + c
    b1 = jnp.concatenate([bx["tl1_b"], bx["br1_b"]], axis=0).reshape(2 * BACKBONE_C, 1)
    zz = jnp.zeros((1, BACKBONE_C), F32)
    w2m = jnp.concatenate(
        [jnp.concatenate([bx["tl2_w"].reshape(1, BACKBONE_C), zz], axis=1),
         jnp.concatenate([zz, bx["br2_w"].reshape(1, BACKBONE_C)], axis=1)], axis=0)  # (2, 2*BBC)
    b2 = jnp.concatenate([bx["tl2_b"], bx["br2_b"]], axis=0).reshape(2, 1)

    return {
        # backbone stem
        "patch_w": p["patch_w"].reshape(BACKBONE_C, 3 * PATCH * PATCH).T,
        "patch_b": p["patch_b"],
        "bot_w": p["bot_w"], "bot_b": p["bot_b"],
        # encoder layer (Q|K merged, attention scale folded into the Q half)
        "e_wqk": jnp.concatenate([esa["wq"] * scale, esa["wk"]], axis=1),
        "e_bqk": jnp.concatenate([esa["bq"] * scale, esa["bk"]], axis=1),
        "e_wv": esa["wv"], "e_bv": esa["bv"], "e_wo": esa["wo"], "e_bo": esa["bo"],
        "e_n1w": enc["norm1_w"], "e_n1b": enc["norm1_b"],
        "e_f1w": enc["lin1_w"], "e_f1b": enc["lin1_b"],
        "e_f2w": enc["lin2_w"], "e_f2b": enc["lin2_b"],
        "e_n2w": enc["norm2_w"], "e_n2b": enc["norm2_b"],
        # decoder layer (self-attn q/k/v-weight projections cancel exactly for tgt = 0;
        # only the value bias and out-projection survive -- see kernel comment)
        "qemb": p["query_embed"],
        "sa_bv": dsa["bv"], "sa_wo": dsa["wo"], "sa_bo": dsa["bo"],
        "d_n1w": dec["norm1_w"], "d_n1b": dec["norm1_b"],
        "ca_wq": dca["wq"] * scale, "ca_bq": dca["bq"] * scale,
        "ca_wk": dca["wk"], "ca_bk": dca["bk"],
        "ca_wv": dca["wv"], "ca_bv": dca["bv"],
        "ca_wo": dca["wo"], "ca_bo": dca["bo"],
        "d_n2w": dec["norm2_w"], "d_n2b": dec["norm2_b"],
        "d_f1w": dec["lin1_w"], "d_f1b": dec["lin1_b"],
        "d_f2w": dec["lin2_w"], "d_f2b": dec["lin2_b"],
        "d_n3w": dec["norm3_w"], "d_n3b": dec["norm3_b"],
        "dnw": p["dec_norm_w"], "dnb": p["dec_norm_b"],
        # attention head masks + box-head constants
        "hmask": jnp.asarray(_HEAD_MASK_NP),
        "shift": jnp.asarray(_SHIFT_NP),
        "w1m": w1m, "b1": b1, "w2m": w2m, "b2": b2,
        "coordT": jnp.asarray(_COORD_T_NP),
    }


# ======================== main ========================

if __name__ == "__main__":
    key = jax.random.PRNGKey(0)
    k_img, k_fz, k_pz, k_params = jax.random.split(key, 4)

    img = jax.random.normal(k_img, (B, 3, IMG, IMG), dtype=F32)
    mask = jnp.zeros((B, IMG, IMG), dtype=F32)              # 1 = padded pixel
    feat_vec_z = jax.random.normal(k_fz, (HW_Z, B, C), dtype=F32)
    mask_vec_z = jnp.zeros((B, HW_Z), dtype=F32)
    pos_vec_z = jax.random.normal(k_pz, (HW_Z, B, C), dtype=F32)

    raw_params = init_params(k_params)
    pp = prepare_params(raw_params)        # one-time weight prep, hoisted out of the forward

    fwd = jax.jit(stark_forward)
    pred_box = fwd(pp, img, mask, feat_vec_z, mask_vec_z, pos_vec_z)
    pred_box = jax.block_until_ready(pred_box)
    assert pred_box.shape == (4,)
    assert bool(jnp.all(jnp.isfinite(pred_box)))
    print("KERNEL_OK")
</pallas_src>

<mosaic_0001>
module attributes {stable_mosaic.version = 11 : i64} {
  func.func @_stark_kernel(%arg0: i32, %arg1: memref<1x64x48xf32, #tpu.memory_space<vmem>>, %arg2: memref<1x16x32xf32, #tpu.memory_space<vmem>>, %arg3: memref<1x80x32xf32, #tpu.memory_space<vmem>>, %arg4: memref<1x1x80xf32, #tpu.memory_space<vmem>>, %arg5: memref<48x16xf32, #tpu.memory_space<vmem>>, %arg6: memref<1x16xf32, #tpu.memory_space<vmem>>, %arg7: memref<16x32xf32, #tpu.memory_space<vmem>>, %arg8: memref<1x32xf32, #tpu.memory_space<vmem>>, %arg9: memref<32x64xf32, #tpu.memory_space<vmem>>, %arg10: memref<1x64xf32, #tpu.memory_space<vmem>>, %arg11: memref<32x32xf32, #tpu.memory_space<vmem>>, %arg12: memref<1x32xf32, #tpu.memory_space<vmem>>, %arg13: memref<32x32xf32, #tpu.memory_space<vmem>>, %arg14: memref<1x32xf32, #tpu.memory_space<vmem>>, %arg15: memref<1x32xf32, #tpu.memory_space<vmem>>, %arg16: memref<1x32xf32, #tpu.memory_space<vmem>>, %arg17: memref<32x64xf32, #tpu.memory_space<vmem>>, %arg18: memref<1x64xf32, #tpu.memory_space<vmem>>, %arg19: memref<64x32xf32, #tpu.memory_space<vmem>>, %arg20: memref<1x32xf32, #tpu.memory_space<vmem>>, %arg21: memref<1x32xf32, #tpu.memory_space<vmem>>, %arg22: memref<1x32xf32, #tpu.memory_space<vmem>>, %arg23: memref<1x32xf32, #tpu.memory_space<vmem>>, %arg24: memref<1x32xf32, #tpu.memory_space<vmem>>, %arg25: memref<32x32xf32, #tpu.memory_space<vmem>>, %arg26: memref<1x32xf32, #tpu.memory_space<vmem>>, %arg27: memref<1x32xf32, #tpu.memory_space<vmem>>, %arg28: memref<1x32xf32, #tpu.memory_space<vmem>>, %arg29: memref<32x32xf32, #tpu.memory_space<vmem>>, %arg30: memref<1x32xf32, #tpu.memory_space<vmem>>, %arg31: memref<32x32xf32, #tpu.memory_space<vmem>>, %arg32: memref<1x32xf32, #tpu.memory_space<vmem>>, %arg33: memref<32x32xf32, #tpu.memory_space<vmem>>, %arg34: memref<1x32xf32, #tpu.memory_space<vmem>>, %arg35: memref<32x32xf32, #tpu.memory_space<vmem>>, %arg36: memref<1x32xf32, #tpu.memory_space<vmem>>, %arg37: memref<1x32xf32, #tpu.memory_space<vmem>>, %arg38: memref<1x32xf32, #tpu.memory_space<vmem>>, %arg39: memref<32x64xf32, #tpu.memory_space<vmem>>, %arg40: memref<1x64xf32, #tpu.memory_space<vmem>>, %arg41: memref<64x32xf32, #tpu.memory_space<vmem>>, %arg42: memref<1x32xf32, #tpu.memory_space<vmem>>, %arg43: memref<1x32xf32, #tpu.memory_space<vmem>>, %arg44: memref<1x32xf32, #tpu.memory_space<vmem>>, %arg45: memref<1x32xf32, #tpu.memory_space<vmem>>, %arg46: memref<1x32xf32, #tpu.memory_space<vmem>>, %arg47: memref<4x32xf32, #tpu.memory_space<vmem>>, %arg48: memref<9x64x64xf32, #tpu.memory_space<vmem>>, %arg49: memref<32x288xf32, #tpu.memory_space<vmem>>, %arg50: memref<32x1xf32, #tpu.memory_space<vmem>>, %arg51: memref<2x32xf32, #tpu.memory_space<vmem>>, %arg52: memref<2x1xf32, #tpu.memory_space<vmem>>, %arg53: memref<64x2xf32, #tpu.memory_space<vmem>>, %arg54: memref<1x1x2x2xf32, #tpu.memory_space<vmem>>) attributes {dimension_semantics = [#tpu.dimension_semantics<parallel>], iteration_bounds = array<i64: 2>, scalar_prefetch = 0 : i64, scratch_operands = 0 : i64, tpu.core_type = #tpu.core_type<tc>, window_params = [{transform_indices = @transform_0, window_bounds = array<i64: 1, 64, 48>}, {transform_indices = @transform_1, window_bounds = array<i64: 1, 16, 32>}, {transform_indices = @transform_2, window_bounds = array<i64: 1, 80, 32>}, {transform_indices = @transform_3, window_bounds = array<i64: 1, 1, 80>}, {pipeline_mode = #tpu.pipeline_mode<synchronous>, transform_indices = @transform_4, window_bounds = array<i64: 48, 16>}, {pipeline_mode = #tpu.pipeline_mode<synchronous>, transform_indices = @transform_5, window_bounds = array<i64: 1, 16>}, {pipeline_mode = #tpu.pipeline_mode<synchronous>, transform_indices = @transform_6, window_bounds = array<i64: 16, 32>}, {pipeline_mode = #tpu.pipeline_mode<synchronous>, transform_indices = @transform_7, window_bounds = array<i64: 1, 32>}, {pipeline_mode = #tpu.pipeline_mode<synchronous>, transform_indices = @transform_8, window_bounds = array<i64: 32, 64>}, {pipeline_mode = #tpu.pipeline_mode<synchronous>, transform_indices = @transform_9, window_bounds = array<i64: 1, 64>}, {pipeline_mode = #tpu.pipeline_mode<synchronous>, transform_indices = @transform_10, window_bounds = array<i64: 32, 32>}, {pipeline_mode = #tpu.pipeline_mode<synchronous>, transform_indices = @transform_11, window_bounds = array<i64: 1, 32>}, {pipeline_mode = #tpu.pipeline_mode<synchronous>, transform_indices = @transform_12, window_bounds = array<i64: 32, 32>}, {pipeline_mode = #tpu.pipeline_mode<synchronous>, transform_indices = @transform_13, window_bounds = array<i64: 1, 32>}, {pipeline_mode = #tpu.pipeline_mode<synchronous>, transform_indices = @transform_14, window_bounds = array<i64: 1, 32>}, {pipeline_mode = #tpu.pipeline_mode<synchronous>, transform_indices = @transform_15, window_bounds = array<i64: 1, 32>}, {pipeline_mode = #tpu.pipeline_mode<synchronous>, transform_indices = @transform_16, window_bounds = array<i64: 32, 64>}, {pipeline_mode = #tpu.pipeline_mode<synchronous>, transform_indices = @transform_17, window_bounds = array<i64: 1, 64>}, {pipeline_mode = #tpu.pipeline_mode<synchronous>, transform_indices = @transform_18, window_bounds = array<i64: 64, 32>}, {pipeline_mode = #tpu.pipeline_mode<synchronous>, transform_indices = @transform_19, window_bounds = array<i64: 1, 32>}, {pipeline_mode = #tpu.pipeline_mode<synchronous>, transform_indices = @transform_20, window_bounds = array<i64: 1, 32>}, {pipeline_mode = #tpu.pipeline_mode<synchronous>, transform_indices = @transform_21, window_bounds = array<i64: 1, 32>}, {pipeline_mode = #tpu.pipeline_mode<synchronous>, transform_indices = @transform_22, window_bounds = array<i64: 1, 32>}, {pipeline_mode = #tpu.pipeline_mode<synchronous>, transform_indices = @transform_23, window_bounds = array<i64: 1, 32>}, {pipeline_mode = #tpu.pipeline_mode<synchronous>, transform_indices = @transform_24, window_bounds = array<i64: 32, 32>}, {pipeline_mode = #tpu.pipeline_mode<synchronous>, transform_indices = @transform_25, window_bounds = array<i64: 1, 32>}, {pipeline_mode = #tpu.pipeline_mode<synchronous>, transform_indices = @transform_26, window_bounds = array<i64: 1, 32>}, {pipeline_mode = #tpu.pipeline_mode<synchronous>, transform_indices = @transform_27, window_bounds = array<i64: 1, 32>}, {pipeline_mode = #tpu.pipeline_mode<synchronous>, transform_indices = @transform_28, window_bounds = array<i64: 32, 32>}, {pipeline_mode = #tpu.pipeline_mode<synchronous>, transform_indices = @transform_29, window_bounds = array<i64: 1, 32>}, {pipeline_mode = #tpu.pipeline_mode<synchronous>, transform_indices = @transform_30, window_bounds = array<i64: 32, 32>}, {pipeline_mode = #tpu.pipeline_mode<synchronous>, transform_indices = @transform_31, window_bounds = array<i64: 1, 32>}, {pipeline_mode = #tpu.pipeline_mode<synchronous>, transform_indices = @transform_32, window_bounds = array<i64: 32, 32>}, {pipeline_mode = #tpu.pipeline_mode<synchronous>, transform_indices = @transform_33, window_bounds = array<i64: 1, 32>}, {pipeline_mode = #tpu.pipeline_mode<synchronous>, transform_indices = @transform_34, window_bounds = array<i64: 32, 32>}, {pipeline_mode = #tpu.pipeline_mode<synchronous>, transform_indices = @transform_35, window_bounds = array<i64: 1, 32>}, {pipeline_mode = #tpu.pipeline_mode<synchronous>, transform_indices = @transform_36, window_bounds = array<i64: 1, 32>}, {pipeline_mode = #tpu.pipeline_mode<synchronous>, transform_indices = @transform_37, window_bounds = array<i64: 1, 32>}, {pipeline_mode = #tpu.pipeline_mode<synchronous>, transform_indices = @transform_38, window_bounds = array<i64: 32, 64>}, {pipeline_mode = #tpu.pipeline_mode<synchronous>, transform_indices = @transform_39, window_bounds = array<i64: 1, 64>}, {pipeline_mode = #tpu.pipeline_mode<synchronous>, transform_indices = @transform_40, window_bounds = array<i64: 64, 32>}, {pipeline_mode = #tpu.pipeline_mode<synchronous>, transform_indices = @transform_41, window_bounds = array<i64: 1, 32>}, {pipeline_mode = #tpu.pipeline_mode<synchronous>, transform_indices = @transform_42, window_bounds = array<i64: 1, 32>}, {pipeline_mode = #tpu.pipeline_mode<synchronous>, transform_indices = @transform_43, window_bounds = array<i64: 1, 32>}, {pipeline_mode = #tpu.pipeline_mode<synchronous>, transform_indices = @transform_44, window_bounds = array<i64: 1, 32>}, {pipeline_mode = #tpu.pipeline_mode<synchronous>, transform_indices = @transform_45, window_bounds = array<i64: 1, 32>}, {pipeline_mode = #tpu.pipeline_mode<synchronous>, transform_indices = @transform_46, window_bounds = array<i64: 4, 32>}, {pipeline_mode = #tpu.pipeline_mode<synchronous>, transform_indices = @transform_47, window_bounds = array<i64: 9, 64, 64>}, {pipeline_mode = #tpu.pipeline_mode<synchronous>, transform_indices = @transform_48, window_bounds = array<i64: 32, 288>}, {pipeline_mode = #tpu.pipeline_mode<synchronous>, transform_indices = @transform_49, window_bounds = array<i64: 32, 1>}, {pipeline_mode = #tpu.pipeline_mode<synchronous>, transform_indices = @transform_50, window_bounds = array<i64: 2, 32>}, {pipeline_mode = #tpu.pipeline_mode<synchronous>, transform_indices = @transform_51, window_bounds = array<i64: 2, 1>}, {pipeline_mode = #tpu.pipeline_mode<synchronous>, transform_indices = @transform_52, window_bounds = array<i64: 64, 2>}, {transform_indices = @transform_53, window_bounds = array<i64: 1, 1, 2, 2>}]} {
    %c0 = arith.constant 0 : index
    %c0_0 = arith.constant 0 : index
    %0 = vector.load %arg47[%c0, %c0_0] : memref<4x32xf32, #tpu.memory_space<vmem>>, vector<4x32xf32>
    %c0_1 = arith.constant 0 : index
    %c0_2 = arith.constant 0 : index
    %c0_3 = arith.constant 0 : index
    %1 = vector.load %arg4[%c0_1, %c0_2, %c0_3] : memref<1x1x80xf32, #tpu.memory_space<vmem>>, vector<1x1x80xf32>
    %2 = vector.shape_cast %1 : vector<1x1x80xf32> to vector<1x80xf32>
    %c0_4 = arith.constant 0 : index
    %c0_5 = arith.constant 0 : index
    %c0_6 = arith.constant 0 : index
    %3 = vector.load %arg1[%c0_4, %c0_5, %c0_6] : memref<1x64x48xf32, #tpu.memory_space<vmem>>, vector<1x64x48xf32>
    %4 = vector.shape_cast %3 : vector<1x64x48xf32> to vector<64x48xf32>
    %c0_7 = arith.constant 0 : index
    %c0_8 = arith.constant 0 : index
    %5 = vector.load %arg5[%c0_7, %c0_8] : memref<48x16xf32, #tpu.memory_space<vmem>>, vector<48x16xf32>
    %cst = arith.constant dense<0.000000e+00> : vector<64x16xf32>
    %6 = tpu.matmul %4, %5, %cst {dimension_numbers = #tpu.dot_dimension_numbers<[1], [0], [0], [1], [0, 0, 1, 1], [], []>} : vector<64x48xf32>, vector<48x16xf32>, vector<64x16xf32> -> vector<64x16xf32>
    %c0_9 = arith.constant 0 : index
    %c0_10 = arith.constant 0 : index
    %7 = vector.load %arg6[%c0_9, %c0_10] : memref<1x16xf32, #tpu.memory_space<vmem>>, vector<1x16xf32>
    %8 = vector.broadcast %7 : vector<1x16xf32> to vector<64x16xf32>
    %9 = arith.addf %6, %8 : vector<64x16xf32>
    %cst_11 = arith.constant 0.000000e+00 : f32
    %10 = vector.broadcast %cst_11 : f32 to vector<64x16xf32>
    %11 = arith.maximumf %9, %10 : vector<64x16xf32>
    %c0_12 = arith.constant 0 : index
    %c0_13 = arith.constant 0 : index
    %12 = vector.load %arg7[%c0_12, %c0_13] : memref<16x32xf32, #tpu.memory_space<vmem>>, vector<16x32xf32>
    %cst_14 = arith.constant dense<0.000000e+00> : vector<64x32xf32>
    %13 = tpu.matmul %11, %12, %cst_14 {dimension_numbers = #tpu.dot_dimension_numbers<[1], [0], [0], [1], [0, 0, 1, 1], [], []>} : vector<64x16xf32>, vector<16x32xf32>, vector<64x32xf32> -> vector<64x32xf32>
    %c0_15 = arith.constant 0 : index
    %c0_16 = arith.constant 0 : index
    %14 = vector.load %arg8[%c0_15, %c0_16] : memref<1x32xf32, #tpu.memory_space<vmem>>, vector<1x32xf32>
    %15 = vector.broadcast %14 : vector<1x32xf32> to vector<64x32xf32>
    %16 = arith.addf %13, %15 : vector<64x32xf32>
    %c0_17 = arith.constant 0 : index
    %c0_18 = arith.constant 0 : index
    %c0_19 = arith.constant 0 : index
    %17 = vector.load %arg2[%c0_17, %c0_18, %c0_19] : memref<1x16x32xf32, #tpu.memory_space<vmem>>, vector<1x16x32xf32>
    %18 = vector.shape_cast %17 : vector<1x16x32xf32> to vector<16x32xf32>
    %19 = tpu.concatenate %18, %16 in 0 : vector<16x32xf32>, vector<64x32xf32> -> vector<80x32xf32>
    %c0_20 = arith.constant 0 : index
    %c0_21 = arith.constant 0 : index
    %c0_22 = arith.constant 0 : index
    %20 = vector.load %arg3[%c0_20, %c0_21, %c0_22] : memref<1x80x32xf32, #tpu.memory_space<vmem>>, vector<1x80x32xf32>
    %21 = vector.shape_cast %20 : vector<1x80x32xf32> to vector<80x32xf32>
    %22 = arith.addf %19, %21 : vector<80x32xf32>
    %c0_23 = arith.constant 0 : index
    %c0_24 = arith.constant 0 : index
    %23 = vector.load %arg9[%c0_23, %c0_24] : memref<32x64xf32, #tpu.memory_space<vmem>>, vector<32x64xf32>
    %cst_25 = arith.constant dense<0.000000e+00> : vector<80x64xf32>
    %24 = tpu.matmul %22, %23, %cst_25 {dimension_numbers = #tpu.dot_dimension_numbers<[1], [0], [0], [1], [0, 0, 1, 1], [], []>} : vector<80x32xf32>, vector<32x64xf32>, vector<80x64xf32> -> vector<80x64xf32>
    %c0_26 = arith.constant 0 : index
    %c0_27 = arith.constant 0 : index
    %25 = vector.load %arg10[%c0_26, %c0_27] : memref<1x64xf32, #tpu.memory_space<vmem>>, vector<1x64xf32>
    %26 = vector.broadcast %25 : vector<1x64xf32> to vector<80x64xf32>
    %27 = arith.addf %24, %26 : vector<80x64xf32>
    %28 = vector.extract_strided_slice %27 {offsets = [0, 0], sizes = [80, 32], strides = [1, 1]} : vector<80x64xf32> to vector<80x32xf32>
    %29 = vector.extract_strided_slice %27 {offsets = [0, 32], sizes = [80, 32], strides = [1, 1]} : vector<80x64xf32> to vector<80x32xf32>
    %c0_28 = arith.constant 0 : index
    %c0_29 = arith.constant 0 : index
    %30 = vector.load %arg11[%c0_28, %c0_29] : memref<32x32xf32, #tpu.memory_space<vmem>>, vector<32x32xf32>
    %cst_30 = arith.constant dense<0.000000e+00> : vector<80x32xf32>
    %31 = tpu.matmul %19, %30, %cst_30 {dimension_numbers = #tpu.dot_dimension_numbers<[1], [0], [0], [1], [0, 0, 1, 1], [], []>} : vector<80x32xf32>, vector<32x32xf32>, vector<80x32xf32> -> vector<80x32xf32>
    %c0_31 = arith.constant 0 : index
    %c0_32 = arith.constant 0 : index
    %32 = vector.load %arg12[%c0_31, %c0_32] : memref<1x32xf32, #tpu.memory_space<vmem>>, vector<1x32xf32>
    %33 = vector.broadcast %32 : vector<1x32xf32> to vector<80x32xf32>
    %34 = arith.addf %31, %33 : vector<80x32xf32>
    %35 = vector.extract_strided_slice %0 {offsets = [0, 0], sizes = [1, 32], strides = [1, 1]} : vector<4x32xf32> to vector<1x32xf32>
    %36 = vector.broadcast %35 : vector<1x32xf32> to vector<80x32xf32>
    %37 = arith.mulf %28, %36 : vector<80x32xf32>
    %38 = vector.extract_strided_slice %0 {offsets = [1, 0], sizes = [1, 32], strides = [1, 1]} : vector<4x32xf32> to vector<1x32xf32>
    %39 = vector.broadcast %38 : vector<1x32xf32> to vector<80x32xf32>
    %40 = arith.mulf %28, %39 : vector<80x32xf32>
    %41 = vector.extract_strided_slice %0 {offsets = [2, 0], sizes = [1, 32], strides = [1, 1]} : vector<4x32xf32> to vector<1x32xf32>
    %42 = vector.broadcast %41 : vector<1x32xf32> to vector<80x32xf32>
    %43 = arith.mulf %28, %42 : vector<80x32xf32>
    %44 = vector.extract_strided_slice %0 {offsets = [3, 0], sizes = [1, 32], strides = [1, 1]} : vector<4x32xf32> to vector<1x32xf32>
    %45 = vector.broadcast %44 : vector<1x32xf32> to vector<80x32xf32>
    %46 = arith.mulf %28, %45 : vector<80x32xf32>
    %47 = tpu.concatenate %37, %40, %43, %46 in 0 : vector<80x32xf32>, vector<80x32xf32>, vector<80x32xf32>, vector<80x32xf32> -> vector<320x32xf32>
    %cst_33 = arith.constant dense<0.000000e+00> : vector<320x80xf32>
    %48 = tpu.matmul %47, %29, %cst_33 {dimension_numbers = #tpu.dot_dimension_numbers<[1], [1], [0], [0], [0, 0, 1, 0], [], []>} : vector<320x32xf32>, vector<80x32xf32>, vector<320x80xf32> -> vector<320x80xf32>
    %49 = vector.broadcast %2 : vector<1x80xf32> to vector<320x80xf32>
    %50 = arith.addf %48, %49 : vector<320x80xf32>
    %cst_34 = arith.constant dense<0xFF800000> : vector<320xf32>
    %51 = vector.multi_reduction <maximumf>, %50, %cst_34 [1] : vector<320x80xf32> to vector<320xf32>
    %52 = vector.shape_cast %51 : vector<320xf32> to vector<320x1xf32>
    %53 = vector.broadcast %52 : vector<320x1xf32> to vector<320x80xf32>
    %54 = arith.subf %50, %53 : vector<320x80xf32>
    %55 = math.exp %54 : vector<320x80xf32>
    %cst_35 = arith.constant dense<0.000000e+00> : vector<320xf32>
    %56 = vector.multi_reduction <add>, %55, %cst_35 [1] : vector<320x80xf32> to vector<320xf32>
    %57 = vector.shape_cast %56 : vector<320xf32> to vector<320x1xf32>
    %cst_36 = arith.constant 9.99999971E-10 : f32
    %58 = vector.broadcast %cst_36 : f32 to vector<320x1xf32>
    %59 = arith.addf %57, %58 : vector<320x1xf32>
    %60 = tpu.reciprocal %59 {approx = true} : vector<320x1xf32> -> vector<320x1xf32>
    %61 = vector.broadcast %60 : vector<320x1xf32> to vector<320x80xf32>
    %62 = arith.mulf %55, %61 : vector<320x80xf32>
    %cst_37 = arith.constant dense<0.000000e+00> : vector<320x32xf32>
    %63 = tpu.matmul %62, %34, %cst_37 {dimension_numbers = #tpu.dot_dimension_numbers<[1], [0], [0], [1], [0, 0, 1, 1], [], []>} : vector<320x80xf32>, vector<80x32xf32>, vector<320x32xf32> -> vector<320x32xf32>
    %64 = vector.extract_strided_slice %63 {offsets = [0, 0], sizes = [80, 32], strides = [1, 1]} : vector<320x32xf32> to vector<80x32xf32>
    %65 = vector.extract_strided_slice %0 {offsets = [0, 0], sizes = [1, 32], strides = [1, 1]} : vector<4x32xf32> to vector<1x32xf32>
    %66 = vector.broadcast %65 : vector<1x32xf32> to vector<80x32xf32>
    %67 = arith.mulf %64, %66 : vector<80x32xf32>
    %68 = vector.extract_strided_slice %63 {offsets = [80, 0], sizes = [80, 32], strides = [1, 1]} : vector<320x32xf32> to vector<80x32xf32>
    %69 = vector.extract_strided_slice %0 {offsets = [1, 0], sizes = [1, 32], strides = [1, 1]} : vector<4x32xf32> to vector<1x32xf32>
    %70 = vector.broadcast %69 : vector<1x32xf32> to vector<80x32xf32>
    %71 = arith.mulf %68, %70 : vector<80x32xf32>
    %72 = arith.addf %67, %71 : vector<80x32xf32>
    %73 = vector.extract_strided_slice %63 {offsets = [160, 0], sizes = [80, 32], strides = [1, 1]} : vector<320x32xf32> to vector<80x32xf32>
    %74 = vector.extract_strided_slice %0 {offsets = [2, 0], sizes = [1, 32], strides = [1, 1]} : vector<4x32xf32> to vector<1x32xf32>
    %75 = vector.broadcast %74 : vector<1x32xf32> to vector<80x32xf32>
    %76 = arith.mulf %73, %75 : vector<80x32xf32>
    %77 = arith.addf %72, %76 : vector<80x32xf32>
    %78 = vector.extract_strided_slice %63 {offsets = [240, 0], sizes = [80, 32], strides = [1, 1]} : vector<320x32xf32> to vector<80x32xf32>
    %79 = vector.extract_strided_slice %0 {offsets = [3, 0], sizes = [1, 32], strides = [1, 1]} : vector<4x32xf32> to vector<1x32xf32>
    %80 = vector.broadcast %79 : vector<1x32xf32> to vector<80x32xf32>
    %81 = arith.mulf %78, %80 : vector<80x32xf32>
    %82 = arith.addf %77, %81 : vector<80x32xf32>
    %c0_38 = arith.constant 0 : index
    %c0_39 = arith.constant 0 : index
    %83 = vector.load %arg13[%c0_38, %c0_39] : memref<32x32xf32, #tpu.memory_space<vmem>>, vector<32x32xf32>
    %cst_40 = arith.constant dense<0.000000e+00> : vector<80x32xf32>
    %84 = tpu.matmul %82, %83, %cst_40 {dimension_numbers = #tpu.dot_dimension_numbers<[1], [0], [0], [1], [0, 0, 1, 1], [], []>} : vector<80x32xf32>, vector<32x32xf32>, vector<80x32xf32> -> vector<80x32xf32>
    %85 = arith.addf %19, %84 : vector<80x32xf32>
    %c0_41 = arith.constant 0 : index
    %c0_42 = arith.constant 0 : index
    %86 = vector.load %arg14[%c0_41, %c0_42] : memref<1x32xf32, #tpu.memory_space<vmem>>, vector<1x32xf32>
    %87 = vector.broadcast %86 : vector<1x32xf32> to vector<80x32xf32>
    %88 = arith.addf %85, %87 : vector<80x32xf32>
    %c0_43 = arith.constant 0 : index
    %c0_44 = arith.constant 0 : index
    %89 = vector.load %arg15[%c0_43, %c0_44] : memref<1x32xf32, #tpu.memory_space<vmem>>, vector<1x32xf32>
    %c0_45 = arith.constant 0 : index
    %c0_46 = arith.constant 0 : index
    %90 = vector.load %arg16[%c0_45, %c0_46] : memref<1x32xf32, #tpu.memory_space<vmem>>, vector<1x32xf32>
    %cst_47 = arith.constant dense<0.000000e+00> : vector<80xf32>
    %91 = vector.multi_reduction <add>, %88, %cst_47 [1] : vector<80x32xf32> to vector<80xf32>
    %92 = vector.shape_cast %91 : vector<80xf32> to vector<80x1xf32>
    %cst_48 = arith.constant 3.200000e+01 : f32
    %93 = vector.broadcast %cst_48 : f32 to vector<80x1xf32>
    %94 = arith.divf %92, %93 : vector<80x1xf32>
    %95 = vector.broadcast %94 : vector<80x1xf32> to vector<80x32xf32>
    %96 = arith.subf %88, %95 : vector<80x32xf32>
    %97 = arith.mulf %96, %96 : vector<80x32xf32>
    %cst_49 = arith.constant dense<0.000000e+00> : vector<80xf32>
    %98 = vector.multi_reduction <add>, %97, %cst_49 [1] : vector<80x32xf32> to vector<80xf32>
    %99 = vector.shape_cast %98 : vector<80xf32> to vector<80x1xf32>
    %cst_50 = arith.constant 3.200000e+01 : f32
    %100 = vector.broadcast %cst_50 : f32 to vector<80x1xf32>
    %101 = arith.divf %99, %100 : vector<80x1xf32>
    %cst_51 = arith.constant 9.99999974E-6 : f32
    %102 = vector.broadcast %cst_51 : f32 to vector<80x1xf32>
    %103 = arith.addf %101, %102 : vector<80x1xf32>
    %104 = math.rsqrt %103 : vector<80x1xf32>
    %105 = vector.broadcast %104 : vector<80x1xf32> to vector<80x32xf32>
    %106 = arith.mulf %96, %105 : vector<80x32xf32>
    %107 = vector.broadcast %89 : vector<1x32xf32> to vector<80x32xf32>
    %108 = arith.mulf %106, %107 : vector<80x32xf32>
    %109 = vector.broadcast %90 : vector<1x32xf32> to vector<80x32xf32>
    %110 = arith.addf %108, %109 : vector<80x32xf32>
    %c0_52 = arith.constant 0 : index
    %c0_53 = arith.constant 0 : index
    %111 = vector.load %arg17[%c0_52, %c0_53] : memref<32x64xf32, #tpu.memory_space<vmem>>, vector<32x64xf32>
    %cst_54 = arith.constant dense<0.000000e+00> : vector<80x64xf32>
    %112 = tpu.matmul %110, %111, %cst_54 {dimension_numbers = #tpu.dot_dimension_numbers<[1], [0], [0], [1], [0, 0, 1, 1], [], []>} : vector<80x32xf32>, vector<32x64xf32>, vector<80x64xf32> -> vector<80x64xf32>
    %c0_55 = arith.constant 0 : index
    %c0_56 = arith.constant 0 : index
    %113 = vector.load %arg18[%c0_55, %c0_56] : memref<1x64xf32, #tpu.memory_space<vmem>>, vector<1x64xf32>
    %114 = vector.broadcast %113 : vector<1x64xf32> to vector<80x64xf32>
    %115 = arith.addf %112, %114 : vector<80x64xf32>
    %cst_57 = arith.constant 0.000000e+00 : f32
    %116 = vector.broadcast %cst_57 : f32 to vector<80x64xf32>
    %117 = arith.maximumf %115, %116 : vector<80x64xf32>
    %c0_58 = arith.constant 0 : index
    %c0_59 = arith.constant 0 : index
    %118 = vector.load %arg19[%c0_58, %c0_59] : memref<64x32xf32, #tpu.memory_space<vmem>>, vector<64x32xf32>
    %cst_60 = arith.constant dense<0.000000e+00> : vector<80x32xf32>
    %119 = tpu.matmul %117, %118, %cst_60 {dimension_numbers = #tpu.dot_dimension_numbers<[1], [0], [0], [1], [0, 0, 1, 1], [], []>} : vector<80x64xf32>, vector<64x32xf32>, vector<80x32xf32> -> vector<80x32xf32>
    %c0_61 = arith.constant 0 : index
    %c0_62 = arith.constant 0 : index
    %120 = vector.load %arg20[%c0_61, %c0_62] : memref<1x32xf32, #tpu.memory_space<vmem>>, vector<1x32xf32>
    %121 = vector.broadcast %120 : vector<1x32xf32> to vector<80x32xf32>
    %122 = arith.addf %119, %121 : vector<80x32xf32>
    %123 = arith.addf %110, %122 : vector<80x32xf32>
    %c0_63 = arith.constant 0 : index
    %c0_64 = arith.constant 0 : index
    %124 = vector.load %arg21[%c0_63, %c0_64] : memref<1x32xf32, #tpu.memory_space<vmem>>, vector<1x32xf32>
    %c0_65 = arith.constant 0 : index
    %c0_66 = arith.constant 0 : index
    %125 = vector.load %arg22[%c0_65, %c0_66] : memref<1x32xf32, #tpu.memory_space<vmem>>, vector<1x32xf32>
    %cst_67 = arith.constant dense<0.000000e+00> : vector<80xf32>
    %126 = vector.multi_reduction <add>, %123, %cst_67 [1] : vector<80x32xf32> to vector<80xf32>
    %127 = vector.shape_cast %126 : vector<80xf32> to vector<80x1xf32>
    %cst_68 = arith.constant 3.200000e+01 : f32
    %128 = vector.broadcast %cst_68 : f32 to vector<80x1xf32>
    %129 = arith.divf %127, %128 : vector<80x1xf32>
    %130 = vector.broadcast %129 : vector<80x1xf32> to vector<80x32xf32>
    %131 = arith.subf %123, %130 : vector<80x32xf32>
    %132 = arith.mulf %131, %131 : vector<80x32xf32>
    %cst_69 = arith.constant dense<0.000000e+00> : vector<80xf32>
    %133 = vector.multi_reduction <add>, %132, %cst_69 [1] : vector<80x32xf32> to vector<80xf32>
    %134 = vector.shape_cast %133 : vector<80xf32> to vector<80x1xf32>
    %cst_70 = arith.constant 3.200000e+01 : f32
    %135 = vector.broadcast %cst_70 : f32 to vector<80x1xf32>
    %136 = arith.divf %134, %135 : vector<80x1xf32>
    %cst_71 = arith.constant 9.99999974E-6 : f32
    %137 = vector.broadcast %cst_71 : f32 to vector<80x1xf32>
    %138 = arith.addf %136, %137 : vector<80x1xf32>
    %139 = math.rsqrt %138 : vector<80x1xf32>
    %140 = vector.broadcast %139 : vector<80x1xf32> to vector<80x32xf32>
    %141 = arith.mulf %131, %140 : vector<80x32xf32>
    %142 = vector.broadcast %124 : vector<1x32xf32> to vector<80x32xf32>
    %143 = arith.mulf %141, %142 : vector<80x32xf32>
    %144 = vector.broadcast %125 : vector<1x32xf32> to vector<80x32xf32>
    %145 = arith.addf %143, %144 : vector<80x32xf32>
    %c0_72 = arith.constant 0 : index
    %c0_73 = arith.constant 0 : index
    %146 = vector.load %arg23[%c0_72, %c0_73] : memref<1x32xf32, #tpu.memory_space<vmem>>, vector<1x32xf32>
    %c0_74 = arith.constant 0 : index
    %c0_75 = arith.constant 0 : index
    %147 = vector.load %arg24[%c0_74, %c0_75] : memref<1x32xf32, #tpu.memory_space<vmem>>, vector<1x32xf32>
    %c0_76 = arith.constant 0 : index
    %c0_77 = arith.constant 0 : index
    %148 = vector.load %arg25[%c0_76, %c0_77] : memref<32x32xf32, #tpu.memory_space<vmem>>, vector<32x32xf32>
    %cst_78 = arith.constant dense<0.000000e+00> : vector<1x32xf32>
    %149 = tpu.matmul %147, %148, %cst_78 {dimension_numbers = #tpu.dot_dimension_numbers<[1], [0], [0], [1], [0, 0, 1, 1], [], []>} : vector<1x32xf32>, vector<32x32xf32>, vector<1x32xf32> -> vector<1x32xf32>
    %c0_79 = arith.constant 0 : index
    %c0_80 = arith.constant 0 : index
    %150 = vector.load %arg26[%c0_79, %c0_80] : memref<1x32xf32, #tpu.memory_space<vmem>>, vector<1x32xf32>
    %151 = arith.addf %149, %150 : vector<1x32xf32>
    %c0_81 = arith.constant 0 : index
    %c0_82 = arith.constant 0 : index
    %152 = vector.load %arg27[%c0_81, %c0_82] : memref<1x32xf32, #tpu.memory_space<vmem>>, vector<1x32xf32>
    %c0_83 = arith.constant 0 : index
    %c0_84 = arith.constant 0 : index
    %153 = vector.load %arg28[%c0_83, %c0_84] : memref<1x32xf32, #tpu.memory_space<vmem>>, vector<1x32xf32>
    %cst_85 = arith.constant dense<0.000000e+00> : vector<1xf32>
    %154 = vector.multi_reduction <add>, %151, %cst_85 [1] : vector<1x32xf32> to vector<1xf32>
    %155 = vector.shape_cast %154 : vector<1xf32> to vector<1x1xf32>
    %cst_86 = arith.constant 3.200000e+01 : f32
    %156 = vector.broadcast %cst_86 : f32 to vector<1x1xf32>
    %157 = arith.divf %155, %156 : vector<1x1xf32>
    %158 = vector.broadcast %157 : vector<1x1xf32> to vector<1x32xf32>
    %159 = arith.subf %151, %158 : vector<1x32xf32>
    %160 = arith.mulf %159, %159 : vector<1x32xf32>
    %cst_87 = arith.constant dense<0.000000e+00> : vector<1xf32>
    %161 = vector.multi_reduction <add>, %160, %cst_87 [1] : vector<1x32xf32> to vector<1xf32>
    %162 = vector.shape_cast %161 : vector<1xf32> to vector<1x1xf32>
    %cst_88 = arith.constant 3.200000e+01 : f32
    %163 = vector.broadcast %cst_88 : f32 to vector<1x1xf32>
    %164 = arith.divf %162, %163 : vector<1x1xf32>
    %cst_89 = arith.constant 9.99999974E-6 : f32
    %165 = vector.broadcast %cst_89 : f32 to vector<1x1xf32>
    %166 = arith.addf %164, %165 : vector<1x1xf32>
    %167 = math.rsqrt %166 : vector<1x1xf32>
    %168 = vector.broadcast %167 : vector<1x1xf32> to vector<1x32xf32>
    %169 = arith.mulf %159, %168 : vector<1x32xf32>
    %170 = arith.mulf %169, %152 : vector<1x32xf32>
    %171 = arith.addf %170, %153 : vector<1x32xf32>
    %172 = arith.addf %171, %146 : vector<1x32xf32>
    %c0_90 = arith.constant 0 : index
    %c0_91 = arith.constant 0 : index
    %173 = vector.load %arg29[%c0_90, %c0_91] : memref<32x32xf32, #tpu.memory_space<vmem>>, vector<32x32xf32>
    %cst_92 = arith.constant dense<0.000000e+00> : vector<1x32xf32>
    %174 = tpu.matmul %172, %173, %cst_92 {dimension_numbers = #tpu.dot_dimension_numbers<[1], [0], [0], [1], [0, 0, 1, 1], [], []>} : vector<1x32xf32>, vector<32x32xf32>, vector<1x32xf32> -> vector<1x32xf32>
    %c0_93 = arith.constant 0 : index
    %c0_94 = arith.constant 0 : index
    %175 = vector.load %arg30[%c0_93, %c0_94] : memref<1x32xf32, #tpu.memory_space<vmem>>, vector<1x32xf32>
    %176 = arith.addf %174, %175 : vector<1x32xf32>
    %177 = arith.addf %145, %21 : vector<80x32xf32>
    %c0_95 = arith.constant 0 : index
    %c0_96 = arith.constant 0 : index
    %178 = vector.load %arg31[%c0_95, %c0_96] : memref<32x32xf32, #tpu.memory_space<vmem>>, vector<32x32xf32>
    %cst_97 = arith.constant dense<0.000000e+00> : vector<80x32xf32>
    %179 = tpu.matmul %177, %178, %cst_97 {dimension_numbers = #tpu.dot_dimension_numbers<[1], [0], [0], [1], [0, 0, 1, 1], [], []>} : vector<80x32xf32>, vector<32x32xf32>, vector<80x32xf32> -> vector<80x32xf32>
    %c0_98 = arith.constant 0 : index
    %c0_99 = arith.constant 0 : index
    %180 = vector.load %arg32[%c0_98, %c0_99] : memref<1x32xf32, #tpu.memory_space<vmem>>, vector<1x32xf32>
    %181 = vector.broadcast %180 : vector<1x32xf32> to vector<80x32xf32>
    %182 = arith.addf %179, %181 : vector<80x32xf32>
    %c0_100 = arith.constant 0 : index
    %c0_101 = arith.constant 0 : index
    %183 = vector.load %arg33[%c0_100, %c0_101] : memref<32x32xf32, #tpu.memory_space<vmem>>, vector<32x32xf32>
    %cst_102 = arith.constant dense<0.000000e+00> : vector<80x32xf32>
    %184 = tpu.matmul %145, %183, %cst_102 {dimension_numbers = #tpu.dot_dimension_numbers<[1], [0], [0], [1], [0, 0, 1, 1], [], []>} : vector<80x32xf32>, vector<32x32xf32>, vector<80x32xf32> -> vector<80x32xf32>
    %c0_103 = arith.constant 0 : index
    %c0_104 = arith.constant 0 : index
    %185 = vector.load %arg34[%c0_103, %c0_104] : memref<1x32xf32, #tpu.memory_space<vmem>>, vector<1x32xf32>
    %186 = vector.broadcast %185 : vector<1x32xf32> to vector<80x32xf32>
    %187 = arith.addf %184, %186 : vector<80x32xf32>
    %188 = vector.extract_strided_slice %0 {offsets = [0, 0], sizes = [1, 32], strides = [1, 1]} : vector<4x32xf32> to vector<1x32xf32>
    %189 = arith.mulf %176, %188 : vector<1x32xf32>
    %190 = vector.extract_strided_slice %0 {offsets = [1, 0], sizes = [1, 32], strides = [1, 1]} : vector<4x32xf32> to vector<1x32xf32>
    %191 = arith.mulf %176, %190 : vector<1x32xf32>
    %192 = vector.extract_strided_slice %0 {offsets = [2, 0], sizes = [1, 32], strides = [1, 1]} : vector<4x32xf32> to vector<1x32xf32>
    %193 = arith.mulf %176, %192 : vector<1x32xf32>
    %194 = vector.extract_strided_slice %0 {offsets = [3, 0], sizes = [1, 32], strides = [1, 1]} : vector<4x32xf32> to vector<1x32xf32>
    %195 = arith.mulf %176, %194 : vector<1x32xf32>
    %196 = tpu.concatenate %189, %191, %193, %195 in 0 : vector<1x32xf32>, vector<1x32xf32>, vector<1x32xf32>, vector<1x32xf32> -> vector<4x32xf32>
    %cst_105 = arith.constant dense<0.000000e+00> : vector<4x80xf32>
    %197 = tpu.matmul %196, %182, %cst_105 {dimension_numbers = #tpu.dot_dimension_numbers<[1], [1], [0], [0], [0, 0, 1, 0], [], []>} : vector<4x32xf32>, vector<80x32xf32>, vector<4x80xf32> -> vector<4x80xf32>
    %198 = vector.broadcast %2 : vector<1x80xf32> to vector<4x80xf32>
    %199 = arith.addf %197, %198 : vector<4x80xf32>
    %cst_106 = arith.constant dense<0xFF800000> : vector<4xf32>
    %200 = vector.multi_reduction <maximumf>, %199, %cst_106 [1] : vector<4x80xf32> to vector<4xf32>
    %201 = vector.shape_cast %200 : vector<4xf32> to vector<4x1xf32>
    %202 = vector.broadcast %201 : vector<4x1xf32> to vector<4x80xf32>
    %203 = arith.subf %199, %202 : vector<4x80xf32>
    %204 = math.exp %203 : vector<4x80xf32>
    %cst_107 = arith.constant dense<0.000000e+00> : vector<4xf32>
    %205 = vector.multi_reduction <add>, %204, %cst_107 [1] : vector<4x80xf32> to vector<4xf32>
    %206 = vector.shape_cast %205 : vector<4xf32> to vector<4x1xf32>
    %cst_108 = arith.constant 9.99999971E-10 : f32
    %207 = vector.broadcast %cst_108 : f32 to vector<4x1xf32>
    %208 = arith.addf %206, %207 : vector<4x1xf32>
    %209 = tpu.reciprocal %208 {approx = true} : vector<4x1xf32> -> vector<4x1xf32>
    %210 = vector.broadcast %209 : vector<4x1xf32> to vector<4x80xf32>
    %211 = arith.mulf %204, %210 : vector<4x80xf32>
    %cst_109 = arith.constant dense<0.000000e+00> : vector<4x32xf32>
    %212 = tpu.matmul %211, %187, %cst_109 {dimension_numbers = #tpu.dot_dimension_numbers<[1], [0], [0], [1], [0, 0, 1, 1], [], []>} : vector<4x80xf32>, vector<80x32xf32>, vector<4x32xf32> -> vector<4x32xf32>
    %213 = vector.extract_strided_slice %212 {offsets = [0, 0], sizes = [1, 32], strides = [1, 1]} : vector<4x32xf32> to vector<1x32xf32>
    %214 = vector.extract_strided_slice %0 {offsets = [0, 0], sizes = [1, 32], strides = [1, 1]} : vector<4x32xf32> to vector<1x32xf32>
    %215 = arith.mulf %213, %214 : vector<1x32xf32>
    %216 = vector.extract_strided_slice %212 {offsets = [1, 0], sizes = [1, 32], strides = [1, 1]} : vector<4x32xf32> to vector<1x32xf32>
    %217 = vector.extract_strided_slice %0 {offsets = [1, 0], sizes = [1, 32], strides = [1, 1]} : vector<4x32xf32> to vector<1x32xf32>
    %218 = arith.mulf %216, %217 : vector<1x32xf32>
    %219 = arith.addf %215, %218 : vector<1x32xf32>
    %220 = vector.extract_strided_slice %212 {offsets = [2, 0], sizes = [1, 32], strides = [1, 1]} : vector<4x32xf32> to vector<1x32xf32>
    %221 = vector.extract_strided_slice %0 {offsets = [2, 0], sizes = [1, 32], strides = [1, 1]} : vector<4x32xf32> to vector<1x32xf32>
    %222 = arith.mulf %220, %221 : vector<1x32xf32>
    %223 = arith.addf %219, %222 : vector<1x32xf32>
    %224 = vector.extract_strided_slice %212 {offsets = [3, 0], sizes = [1, 32], strides = [1, 1]} : vector<4x32xf32> to vector<1x32xf32>
    %225 = vector.extract_strided_slice %0 {offsets = [3, 0], sizes = [1, 32], strides = [1, 1]} : vector<4x32xf32> to vector<1x32xf32>
    %226 = arith.mulf %224, %225 : vector<1x32xf32>
    %227 = arith.addf %223, %226 : vector<1x32xf32>
    %c0_110 = arith.constant 0 : index
    %c0_111 = arith.constant 0 : index
    %228 = vector.load %arg35[%c0_110, %c0_111] : memref<32x32xf32, #tpu.memory_space<vmem>>, vector<32x32xf32>
    %cst_112 = arith.constant dense<0.000000e+00> : vector<1x32xf32>
    %229 = tpu.matmul %227, %228, %cst_112 {dimension_numbers = #tpu.dot_dimension_numbers<[1], [0], [0], [1], [0, 0, 1, 1], [], []>} : vector<1x32xf32>, vector<32x32xf32>, vector<1x32xf32> -> vector<1x32xf32>
    %230 = arith.addf %171, %229 : vector<1x32xf32>
    %c0_113 = arith.constant 0 : index
    %c0_114 = arith.constant 0 : index
    %231 = vector.load %arg36[%c0_113, %c0_114] : memref<1x32xf32, #tpu.memory_space<vmem>>, vector<1x32xf32>
    %232 = arith.addf %230, %231 : vector<1x32xf32>
    %c0_115 = arith.constant 0 : index
    %c0_116 = arith.constant 0 : index
    %233 = vector.load %arg37[%c0_115, %c0_116] : memref<1x32xf32, #tpu.memory_space<vmem>>, vector<1x32xf32>
    %c0_117 = arith.constant 0 : index
    %c0_118 = arith.constant 0 : index
    %234 = vector.load %arg38[%c0_117, %c0_118] : memref<1x32xf32, #tpu.memory_space<vmem>>, vector<1x32xf32>
    %cst_119 = arith.constant dense<0.000000e+00> : vector<1xf32>
    %235 = vector.multi_reduction <add>, %232, %cst_119 [1] : vector<1x32xf32> to vector<1xf32>
    %236 = vector.shape_cast %235 : vector<1xf32> to vector<1x1xf32>
    %cst_120 = arith.constant 3.200000e+01 : f32
    %237 = vector.broadcast %cst_120 : f32 to vector<1x1xf32>
    %238 = arith.divf %236, %237 : vector<1x1xf32>
    %239 = vector.broadcast %238 : vector<1x1xf32> to vector<1x32xf32>
    %240 = arith.subf %232, %239 : vector<1x32xf32>
    %241 = arith.mulf %240, %240 : vector<1x32xf32>
    %cst_121 = arith.constant dense<0.000000e+00> : vector<1xf32>
    %242 = vector.multi_reduction <add>, %241, %cst_121 [1] : vector<1x32xf32> to vector<1xf32>
    %243 = vector.shape_cast %242 : vector<1xf32> to vector<1x1xf32>
    %cst_122 = arith.constant 3.200000e+01 : f32
    %244 = vector.broadcast %cst_122 : f32 to vector<1x1xf32>
    %245 = arith.divf %243, %244 : vector<1x1xf32>
    %cst_123 = arith.constant 9.99999974E-6 : f32
    %246 = vector.broadcast %cst_123 : f32 to vector<1x1xf32>
    %247 = arith.addf %245, %246 : vector<1x1xf32>
    %248 = math.rsqrt %247 : vector<1x1xf32>
    %249 = vector.broadcast %248 : vector<1x1xf32> to vector<1x32xf32>
    %250 = arith.mulf %240, %249 : vector<1x32xf32>
    %251 = arith.mulf %250, %233 : vector<1x32xf32>
    %252 = arith.addf %251, %234 : vector<1x32xf32>
    %c0_124 = arith.constant 0 : index
    %c0_125 = arith.constant 0 : index
    %253 = vector.load %arg39[%c0_124, %c0_125] : memref<32x64xf32, #tpu.memory_space<vmem>>, vector<32x64xf32>
    %cst_126 = arith.constant dense<0.000000e+00> : vector<1x64xf32>
    %254 = tpu.matmul %252, %253, %cst_126 {dimension_numbers = #tpu.dot_dimension_numbers<[1], [0], [0], [1], [0, 0, 1, 1], [], []>} : vector<1x32xf32>, vector<32x64xf32>, vector<1x64xf32> -> vector<1x64xf32>
    %c0_127 = arith.constant 0 : index
    %c0_128 = arith.constant 0 : index
    %255 = vector.load %arg40[%c0_127, %c0_128] : memref<1x64xf32, #tpu.memory_space<vmem>>, vector<1x64xf32>
    %256 = arith.addf %254, %255 : vector<1x64xf32>
    %cst_129 = arith.constant 0.000000e+00 : f32
    %257 = vector.broadcast %cst_129 : f32 to vector<1x64xf32>
    %258 = arith.maximumf %256, %257 : vector<1x64xf32>
    %c0_130 = arith.constant 0 : index
    %c0_131 = arith.constant 0 : index
    %259 = vector.load %arg41[%c0_130, %c0_131] : memref<64x32xf32, #tpu.memory_space<vmem>>, vector<64x32xf32>
    %cst_132 = arith.constant dense<0.000000e+00> : vector<1x32xf32>
    %260 = tpu.matmul %258, %259, %cst_132 {dimension_numbers = #tpu.dot_dimension_numbers<[1], [0], [0], [1], [0, 0, 1, 1], [], []>} : vector<1x64xf32>, vector<64x32xf32>, vector<1x32xf32> -> vector<1x32xf32>
    %c0_133 = arith.constant 0 : index
    %c0_134 = arith.constant 0 : index
    %261 = vector.load %arg42[%c0_133, %c0_134] : memref<1x32xf32, #tpu.memory_space<vmem>>, vector<1x32xf32>
    %262 = arith.addf %260, %261 : vector<1x32xf32>
    %263 = arith.addf %252, %262 : vector<1x32xf32>
    %c0_135 = arith.constant 0 : index
    %c0_136 = arith.constant 0 : index
    %264 = vector.load %arg43[%c0_135, %c0_136] : memref<1x32xf32, #tpu.memory_space<vmem>>, vector<1x32xf32>
    %c0_137 = arith.constant 0 : index
    %c0_138 = arith.constant 0 : index
    %265 = vector.load %arg44[%c0_137, %c0_138] : memref<1x32xf32, #tpu.memory_space<vmem>>, vector<1x32xf32>
    %cst_139 = arith.constant dense<0.000000e+00> : vector<1xf32>
    %266 = vector.multi_reduction <add>, %263, %cst_139 [1] : vector<1x32xf32> to vector<1xf32>
    %267 = vector.shape_cast %266 : vector<1xf32> to vector<1x1xf32>
    %cst_140 = arith.constant 3.200000e+01 : f32
    %268 = vector.broadcast %cst_140 : f32 to vector<1x1xf32>
    %269 = arith.divf %267, %268 : vector<1x1xf32>
    %270 = vector.broadcast %269 : vector<1x1xf32> to vector<1x32xf32>
    %271 = arith.subf %263, %270 : vector<1x32xf32>
    %272 = arith.mulf %271, %271 : vector<1x32xf32>
    %cst_141 = arith.constant dense<0.000000e+00> : vector<1xf32>
    %273 = vector.multi_reduction <add>, %272, %cst_141 [1] : vector<1x32xf32> to vector<1xf32>
    %274 = vector.shape_cast %273 : vector<1xf32> to vector<1x1xf32>
    %cst_142 = arith.constant 3.200000e+01 : f32
    %275 = vector.broadcast %cst_142 : f32 to vector<1x1xf32>
    %276 = arith.divf %274, %275 : vector<1x1xf32>
    %cst_143 = arith.constant 9.99999974E-6 : f32
    %277 = vector.broadcast %cst_143 : f32 to vector<1x1xf32>
    %278 = arith.addf %276, %277 : vector<1x1xf32>
    %279 = math.rsqrt %278 : vector<1x1xf32>
    %280 = vector.broadcast %279 : vector<1x1xf32> to vector<1x32xf32>
    %281 = arith.mulf %271, %280 : vector<1x32xf32>
    %282 = arith.mulf %281, %264 : vector<1x32xf32>
    %283 = arith.addf %282, %265 : vector<1x32xf32>
    %c0_144 = arith.constant 0 : index
    %c0_145 = arith.constant 0 : index
    %284 = vector.load %arg45[%c0_144, %c0_145] : memref<1x32xf32, #tpu.memory_space<vmem>>, vector<1x32xf32>
    %c0_146 = arith.constant 0 : index
    %c0_147 = arith.constant 0 : index
    %285 = vector.load %arg46[%c0_146, %c0_147] : memref<1x32xf32, #tpu.memory_space<vmem>>, vector<1x32xf32>
    %cst_148 = arith.constant dense<0.000000e+00> : vector<1xf32>
    %286 = vector.multi_reduction <add>, %283, %cst_148 [1] : vector<1x32xf32> to vector<1xf32>
    %287 = vector.shape_cast %286 : vector<1xf32> to vector<1x1xf32>
    %cst_149 = arith.constant 3.200000e+01 : f32
    %288 = vector.broadcast %cst_149 : f32 to vector<1x1xf32>
    %289 = arith.divf %287, %288 : vector<1x1xf32>
    %290 = vector.broadcast %289 : vector<1x1xf32> to vector<1x32xf32>
    %291 = arith.subf %283, %290 : vector<1x32xf32>
    %292 = arith.mulf %291, %291 : vector<1x32xf32>
    %cst_150 = arith.constant dense<0.000000e+00> : vector<1xf32>
    %293 = vector.multi_reduction <add>, %292, %cst_150 [1] : vector<1x32xf32> to vector<1xf32>
    %294 = vector.shape_cast %293 : vector<1xf32> to vector<1x1xf32>
    %cst_151 = arith.constant 3.200000e+01 : f32
    %295 = vector.broadcast %cst_151 : f32 to vector<1x1xf32>
    %296 = arith.divf %294, %295 : vector<1x1xf32>
    %cst_152 = arith.constant 9.99999974E-6 : f32
    %297 = vector.broadcast %cst_152 : f32 to vector<1x1xf32>
    %298 = arith.addf %296, %297 : vector<1x1xf32>
    %299 = math.rsqrt %298 : vector<1x1xf32>
    %300 = vector.broadcast %299 : vector<1x1xf32> to vector<1x32xf32>
    %301 = arith.mulf %291, %300 : vector<1x32xf32>
    %302 = arith.mulf %301, %284 : vector<1x32xf32>
    %303 = arith.addf %302, %285 : vector<1x32xf32>
    %304 = vector.extract_strided_slice %145 {offsets = [16, 0], sizes = [64, 32], strides = [1, 1]} : vector<80x32xf32> to vector<64x32xf32>
    %305 = tpu.transpose %304, [1, 0] : vector<64x32xf32> -> vector<32x64xf32>
    %cst_153 = arith.constant dense<0.000000e+00> : vector<1x64xf32>
    %306 = tpu.matmul %303, %305, %cst_153 {dimension_numbers = #tpu.dot_dimension_numbers<[1], [0], [0], [1], [0, 0, 1, 1], [], []>} : vector<1x32xf32>, vector<32x64xf32>, vector<1x64xf32> -> vector<1x64xf32>
    %307 = vector.broadcast %306 : vector<1x64xf32> to vector<32x64xf32>
    %308 = arith.mulf %305, %307 : vector<32x64xf32>
    %c0_154 = arith.constant 0 : index
    %c0_155 = arith.constant 0 : index
    %c0_156 = arith.constant 0 : index
    %309 = vector.load %arg48[%c0_154, %c0_155, %c0_156] : memref<9x64x64xf32, #tpu.memory_space<vmem>>, vector<1x64x64xf32>
    %310 = vector.shape_cast %309 : vector<1x64x64xf32> to vector<64x64xf32>
    %cst_157 = arith.constant dense<0.000000e+00> : vector<32x64xf32>
    %311 = tpu.matmul %308, %310, %cst_157 {dimension_numbers = #tpu.dot_dimension_numbers<[1], [0], [0], [1], [0, 0, 1, 1], [], []>} : vector<32x64xf32>, vector<64x64xf32>, vector<32x64xf32> -> vector<32x64xf32>
    %c1 = arith.constant 1 : index
    %c0_158 = arith.constant 0 : index
    %c0_159 = arith.constant 0 : index
    %312 = vector.load %arg48[%c1, %c0_158, %c0_159] : memref<9x64x64xf32, #tpu.memory_space<vmem>>, vector<1x64x64xf32>
    %313 = vector.shape_cast %312 : vector<1x64x64xf32> to vector<64x64xf32>
    %cst_160 = arith.constant dense<0.000000e+00> : vector<32x64xf32>
    %314 = tpu.matmul %308, %313, %cst_160 {dimension_numbers = #tpu.dot_dimension_numbers<[1], [0], [0], [1], [0, 0, 1, 1], [], []>} : vector<32x64xf32>, vector<64x64xf32>, vector<32x64xf32> -> vector<32x64xf32>
    %c2 = arith.constant 2 : index
    %c0_161 = arith.constant 0 : index
    %c0_162 = arith.constant 0 : index
    %315 = vector.load %arg48[%c2, %c0_161, %c0_162] : memref<9x64x64xf32, #tpu.memory_space<vmem>>, vector<1x64x64xf32>
    %316 = vector.shape_cast %315 : vector<1x64x64xf32> to vector<64x64xf32>
    %cst_163 = arith.constant dense<0.000000e+00> : vector<32x64xf32>
    %317 = tpu.matmul %308, %316, %cst_163 {dimension_numbers = #tpu.dot_dimension_numbers<[1], [0], [0], [1], [0, 0, 1, 1], [], []>} : vector<32x64xf32>, vector<64x64xf32>, vector<32x64xf32> -> vector<32x64xf32>
    %c3 = arith.constant 3 : index
    %c0_164 = arith.constant 0 : index
    %c0_165 = arith.constant 0 : index
    %318 = vector.load %arg48[%c3, %c0_164, %c0_165] : memref<9x64x64xf32, #tpu.memory_space<vmem>>, vector<1x64x64xf32>
    %319 = vector.shape_cast %318 : vector<1x64x64xf32> to vector<64x64xf32>
    %cst_166 = arith.constant dense<0.000000e+00> : vector<32x64xf32>
    %320 = tpu.matmul %308, %319, %cst_166 {dimension_numbers = #tpu.dot_dimension_numbers<[1], [0], [0], [1], [0, 0, 1, 1], [], []>} : vector<32x64xf32>, vector<64x64xf32>, vector<32x64xf32> -> vector<32x64xf32>
    %c4 = arith.constant 4 : index
    %c0_167 = arith.constant 0 : index
    %c0_168 = arith.constant 0 : index
    %321 = vector.load %arg48[%c4, %c0_167, %c0_168] : memref<9x64x64xf32, #tpu.memory_space<vmem>>, vector<1x64x64xf32>
    %322 = vector.shape_cast %321 : vector<1x64x64xf32> to vector<64x64xf32>
    %cst_169 = arith.constant dense<0.000000e+00> : vector<32x64xf32>
    %323 = tpu.matmul %308, %322, %cst_169 {dimension_numbers = #tpu.dot_dimension_numbers<[1], [0], [0], [1], [0, 0, 1, 1], [], []>} : vector<32x64xf32>, vector<64x64xf32>, vector<32x64xf32> -> vector<32x64xf32>
    %c5 = arith.constant 5 : index
    %c0_170 = arith.constant 0 : index
    %c0_171 = arith.constant 0 : index
    %324 = vector.load %arg48[%c5, %c0_170, %c0_171] : memref<9x64x64xf32, #tpu.memory_space<vmem>>, vector<1x64x64xf32>
    %325 = vector.shape_cast %324 : vector<1x64x64xf32> to vector<64x64xf32>
    %cst_172 = arith.constant dense<0.000000e+00> : vector<32x64xf32>
    %326 = tpu.matmul %308, %325, %cst_172 {dimension_numbers = #tpu.dot_dimension_numbers<[1], [0], [0], [1], [0, 0, 1, 1], [], []>} : vector<32x64xf32>, vector<64x64xf32>, vector<32x64xf32> -> vector<32x64xf32>
    %c6 = arith.constant 6 : index
    %c0_173 = arith.constant 0 : index
    %c0_174 = arith.constant 0 : index
    %327 = vector.load %arg48[%c6, %c0_173, %c0_174] : memref<9x64x64xf32, #tpu.memory_space<vmem>>, vector<1x64x64xf32>
    %328 = vector.shape_cast %327 : vector<1x64x64xf32> to vector<64x64xf32>
    %cst_175 = arith.constant dense<0.000000e+00> : vector<32x64xf32>
    %329 = tpu.matmul %308, %328, %cst_175 {dimension_numbers = #tpu.dot_dimension_numbers<[1], [0], [0], [1], [0, 0, 1, 1], [], []>} : vector<32x64xf32>, vector<64x64xf32>, vector<32x64xf32> -> vector<32x64xf32>
    %c7 = arith.constant 7 : index
    %c0_176 = arith.constant 0 : index
    %c0_177 = arith.constant 0 : index
    %330 = vector.load %arg48[%c7, %c0_176, %c0_177] : memref<9x64x64xf32, #tpu.memory_space<vmem>>, vector<1x64x64xf32>
    %331 = vector.shape_cast %330 : vector<1x64x64xf32> to vector<64x64xf32>
    %cst_178 = arith.constant dense<0.000000e+00> : vector<32x64xf32>
    %332 = tpu.matmul %308, %331, %cst_178 {dimension_numbers = #tpu.dot_dimension_numbers<[1], [0], [0], [1], [0, 0, 1, 1], [], []>} : vector<32x64xf32>, vector<64x64xf32>, vector<32x64xf32> -> vector<32x64xf32>
    %c8 = arith.constant 8 : index
    %c0_179 = arith.constant 0 : index
    %c0_180 = arith.constant 0 : index
    %333 = vector.load %arg48[%c8, %c0_179, %c0_180] : memref<9x64x64xf32, #tpu.memory_space<vmem>>, vector<1x64x64xf32>
    %334 = vector.shape_cast %333 : vector<1x64x64xf32> to vector<64x64xf32>
    %cst_181 = arith.constant dense<0.000000e+00> : vector<32x64xf32>
    %335 = tpu.matmul %308, %334, %cst_181 {dimension_numbers = #tpu.dot_dimension_numbers<[1], [0], [0], [1], [0, 0, 1, 1], [], []>} : vector<32x64xf32>, vector<64x64xf32>, vector<32x64xf32> -> vector<32x64xf32>
    %336 = tpu.concatenate %311, %314, %317, %320, %323, %326, %329, %332, %335 in 0 : vector<32x64xf32>, vector<32x64xf32>, vector<32x64xf32>, vector<32x64xf32>, vector<32x64xf32>, vector<32x64xf32>, vector<32x64xf32>, vector<32x64xf32>, vector<32x64xf32> -> vector<288x64xf32>
    %c0_182 = arith.constant 0 : index
    %c0_183 = arith.constant 0 : index
    %337 = vector.load %arg49[%c0_182, %c0_183] : memref<32x288xf32, #tpu.memory_space<vmem>>, vector<32x288xf32>
    %cst_184 = arith.constant dense<0.000000e+00> : vector<32x64xf32>
    %338 = tpu.matmul %337, %336, %cst_184 {dimension_numbers = #tpu.dot_dimension_numbers<[1], [0], [0], [1], [0, 0, 1, 1], [], []>} : vector<32x288xf32>, vector<288x64xf32>, vector<32x64xf32> -> vector<32x64xf32>
    %c0_185 = arith.constant 0 : index
    %c0_186 = arith.constant 0 : index
    %339 = vector.load %arg50[%c0_185, %c0_186] : memref<32x1xf32, #tpu.memory_space<vmem>>, vector<32x1xf32>
    %340 = vector.broadcast %339 : vector<32x1xf32> to vector<32x64xf32>
    %341 = arith.addf %338, %340 : vector<32x64xf32>
    %cst_187 = arith.constant 0.000000e+00 : f32
    %342 = vector.broadcast %cst_187 : f32 to vector<32x64xf32>
    %343 = arith.maximumf %341, %342 : vector<32x64xf32>
    %c0_188 = arith.constant 0 : index
    %c0_189 = arith.constant 0 : index
    %344 = vector.load %arg51[%c0_188, %c0_189] : memref<2x32xf32, #tpu.memory_space<vmem>>, vector<2x32xf32>
    %cst_190 = arith.constant dense<0.000000e+00> : vector<2x64xf32>
    %345 = tpu.matmul %344, %343, %cst_190 {dimension_numbers = #tpu.dot_dimension_numbers<[1], [0], [0], [1], [0, 0, 1, 1], [], []>} : vector<2x32xf32>, vector<32x64xf32>, vector<2x64xf32> -> vector<2x64xf32>
    %c0_191 = arith.constant 0 : index
    %c0_192 = arith.constant 0 : index
    %346 = vector.load %arg52[%c0_191, %c0_192] : memref<2x1xf32, #tpu.memory_space<vmem>>, vector<2x1xf32>
    %347 = vector.broadcast %346 : vector<2x1xf32> to vector<2x64xf32>
    %348 = arith.addf %345, %347 : vector<2x64xf32>
    %cst_193 = arith.constant dense<0xFF800000> : vector<2xf32>
    %349 = vector.multi_reduction <maximumf>, %348, %cst_193 [1] : vector<2x64xf32> to vector<2xf32>
    %350 = vector.shape_cast %349 : vector<2xf32> to vector<2x1xf32>
    %351 = vector.broadcast %350 : vector<2x1xf32> to vector<2x64xf32>
    %352 = arith.subf %348, %351 : vector<2x64xf32>
    %353 = math.exp %352 : vector<2x64xf32>
    %cst_194 = arith.constant dense<0.000000e+00> : vector<2xf32>
    %354 = vector.multi_reduction <add>, %353, %cst_194 [1] : vector<2x64xf32> to vector<2xf32>
    %355 = vector.shape_cast %354 : vector<2xf32> to vector<2x1xf32>
    %cst_195 = arith.constant 9.99999971E-10 : f32
    %356 = vector.broadcast %cst_195 : f32 to vector<2x1xf32>
    %357 = arith.addf %355, %356 : vector<2x1xf32>
    %358 = tpu.reciprocal %357 {approx = true} : vector<2x1xf32> -> vector<2x1xf32>
    %359 = vector.broadcast %358 : vector<2x1xf32> to vector<2x64xf32>
    %360 = arith.mulf %353, %359 : vector<2x64xf32>
    %c0_196 = arith.constant 0 : index
    %c0_197 = arith.constant 0 : index
    %361 = vector.load %arg53[%c0_196, %c0_197] : memref<64x2xf32, #tpu.memory_space<vmem>>, vector<64x2xf32>
    %cst_198 = arith.constant dense<0.000000e+00> : vector<2x2xf32>
    %362 = tpu.matmul %360, %361, %cst_198 {dimension_numbers = #tpu.dot_dimension_numbers<[1], [0], [0], [1], [0, 0, 1, 1], [], []>} : vector<2x64xf32>, vector<64x2xf32>, vector<2x2xf32> -> vector<2x2xf32>
    %c0_199 = arith.constant 0 : index
    %c0_200 = arith.constant 0 : index
    %c0_201 = arith.constant 0 : index
    %c0_202 = arith.constant 0 : index
    %363 = vector.load %arg54[%c0_199, %c0_200, %c0_201, %c0_202] : memref<1x1x2x2xf32, #tpu.memory_space<vmem>>, vector<1x1x2x2xf32>
    %364 = vector.shape_cast %363 : vector<1x1x2x2xf32> to vector<2x2xf32>
    %365 = vector.shape_cast %362 : vector<2x2xf32> to vector<1x1x2x2xf32>
    tpu.vector_store %arg54[%c0_199, %c0_200, %c0_201, %c0_202], %365 {strides = array<i32>} : memref<1x1x2x2xf32, #tpu.memory_space<vmem>>, vector<1x1x2x2xf32>,
    return
  }
  func.func @transform_0(%arg0: i32) -> (i32, i32, i32) {
    %c0_i32 = arith.constant 0 : i32
    %c0_i32_0 = arith.constant 0 : i32
    %c0_i32_1 = arith.constant 0 : i32
    return %arg0, %c0_i32, %c0_i32_0 : i32, i32, i32
  }
  func.func @transform_1(%arg0: i32) -> (i32, i32, i32) {
    %c0_i32 = arith.constant 0 : i32
    %c0_i32_0 = arith.constant 0 : i32
    %c0_i32_1 = arith.constant 0 : i32
    return %arg0, %c0_i32, %c0_i32_0 : i32, i32, i32
  }
  func.func @transform_2(%arg0: i32) -> (i32, i32, i32) {
    %c0_i32 = arith.constant 0 : i32
    %c0_i32_0 = arith.constant 0 : i32
    %c0_i32_1 = arith.constant 0 : i32
    return %arg0, %c0_i32, %c0_i32_0 : i32, i32, i32
  }
  func.func @transform_3(%arg0: i32) -> (i32, i32, i32) {
    %c0_i32 = arith.constant 0 : i32
    %c0_i32_0 = arith.constant 0 : i32
    %c0_i32_1 = arith.constant 0 : i32
    return %arg0, %c0_i32, %c0_i32_0 : i32, i32, i32
  }
  func.func @transform_4(%arg0: i32) -> (i32, i32) {
    %c0_i32 = arith.constant 0 : i32
    %c0_i32_0 = arith.constant 0 : i32
    %c0_i32_1 = arith.constant 0 : i32
    return %c0_i32, %c0_i32_0 : i32, i32
  }
  func.func @transform_5(%arg0: i32) -> (i32, i32) {
    %c0_i32 = arith.constant 0 : i32
    %c0_i32_0 = arith.constant 0 : i32
    %c0_i32_1 = arith.constant 0 : i32
    return %c0_i32, %c0_i32_0 : i32, i32
  }
  func.func @transform_6(%arg0: i32) -> (i32, i32) {
    %c0_i32 = arith.constant 0 : i32
    %c0_i32_0 = arith.constant 0 : i32
    %c0_i32_1 = arith.constant 0 : i32
    return %c0_i32, %c0_i32_0 : i32, i32
  }
  func.func @transform_7(%arg0: i32) -> (i32, i32) {
    %c0_i32 = arith.constant 0 : i32
    %c0_i32_0 = arith.constant 0 : i32
    %c0_i32_1 = arith.constant 0 : i32
    return %c0_i32, %c0_i32_0 : i32, i32
  }
  func.func @transform_8(%arg0: i32) -> (i32, i32) {
    %c0_i32 = arith.constant 0 : i32
    %c0_i32_0 = arith.constant 0 : i32
    %c0_i32_1 = arith.constant 0 : i32
    return %c0_i32, %c0_i32_0 : i32, i32
  }
  func.func @transform_9(%arg0: i32) -> (i32, i32) {
    %c0_i32 = arith.constant 0 : i32
    %c0_i32_0 = arith.constant 0 : i32
    %c0_i32_1 = arith.constant 0 : i32
    return %c0_i32, %c0_i32_0 : i32, i32
  }
  func.func @transform_10(%arg0: i32) -> (i32, i32) {
    %c0_i32 = arith.constant 0 : i32
    %c0_i32_0 = arith.constant 0 : i32
    %c0_i32_1 = arith.constant 0 : i32
    return %c0_i32, %c0_i32_0 : i32, i32
  }
  func.func @transform_11(%arg0: i32) -> (i32, i32) {
    %c0_i32 = arith.constant 0 : i32
    %c0_i32_0 = arith.constant 0 : i32
    %c0_i32_1 = arith.constant 0 : i32
    return %c0_i32, %c0_i32_0 : i32, i32
  }
  func.func @transform_12(%arg0: i32) -> (i32, i32) {
    %c0_i32 = arith.constant 0 : i32
    %c0_i32_0 = arith.constant 0 : i32
    %c0_i32_1 = arith.constant 0 : i32
    return %c0_i32, %c0_i32_0 : i32, i32
  }
  func.func @transform_13(%arg0: i32) -> (i32, i32) {
    %c0_i32 = arith.constant 0 : i32
    %c0_i32_0 = arith.constant 0 : i32
    %c0_i32_1 = arith.constant 0 : i32
    return %c0_i32, %c0_i32_0 : i32, i32
  }
  func.func @transform_14(%arg0: i32) -> (i32, i32) {
    %c0_i32 = arith.constant 0 : i32
    %c0_i32_0 = arith.constant 0 : i32
    %c0_i32_1 = arith.constant 0 : i32
    return %c0_i32, %c0_i32_0 : i32, i32
  }
  func.func @transform_15(%arg0: i32) -> (i32, i32) {
    %c0_i32 = arith.constant 0 : i32
    %c0_i32_0 = arith.constant 0 : i32
    %c0_i32_1 = arith.constant 0 : i32
    return %c0_i32, %c0_i32_0 : i32, i32
  }
  func.func @transform_16(%arg0: i32) -> (i32, i32) {
    %c0_i32 = arith.constant 0 : i32
    %c0_i32_0 = arith.constant 0 : i32
    %c0_i32_1 = arith.constant 0 : i32
    return %c0_i32, %c0_i32_0 : i32, i32
  }
  func.func @transform_17(%arg0: i32) -> (i32, i32) {
    %c0_i32 = arith.constant 0 : i32
    %c0_i32_0 = arith.constant 0 : i32
    %c0_i32_1 = arith.constant 0 : i32
    return %c0_i32, %c0_i32_0 : i32, i32
  }
  func.func @transform_18(%arg0: i32) -> (i32, i32) {
    %c0_i32 = arith.constant 0 : i32
    %c0_i32_0 = arith.constant 0 : i32
    %c0_i32_1 = arith.constant 0 : i32
    return %c0_i32, %c0_i32_0 : i32, i32
  }
  func.func @transform_19(%arg0: i32) -> (i32, i32) {
    %c0_i32 = arith.constant 0 : i32
    %c0_i32_0 = arith.constant 0 : i32
    %c0_i32_1 = arith.constant 0 : i32
    return %c0_i32, %c0_i32_0 : i32, i32
  }
  func.func @transform_20(%arg0: i32) -> (i32, i32) {
    %c0_i32 = arith.constant 0 : i32
    %c0_i32_0 = arith.constant 0 : i32
    %c0_i32_1 = arith.constant 0 : i32
    return %c0_i32, %c0_i32_0 : i32, i32
  }
  func.func @transform_21(%arg0: i32) -> (i32, i32) {
    %c0_i32 = arith.constant 0 : i32
    %c0_i32_0 = arith.constant 0 : i32
    %c0_i32_1 = arith.constant 0 : i32
    return %c0_i32, %c0_i32_0 : i32, i32
  }
  func.func @transform_22(%arg0: i32) -> (i32, i32) {
    %c0_i32 = arith.constant 0 : i32
    %c0_i32_0 = arith.constant 0 : i32
    %c0_i32_1 = arith.constant 0 : i32
    return %c0_i32, %c0_i32_0 : i32, i32
  }
  func.func @transform_23(%arg0: i32) -> (i32, i32) {
    %c0_i32 = arith.constant 0 : i32
    %c0_i32_0 = arith.constant 0 : i32
    %c0_i32_1 = arith.constant 0 : i32
    return %c0_i32, %c0_i32_0 : i32, i32
  }
  func.func @transform_24(%arg0: i32) -> (i32, i32) {
    %c0_i32 = arith.constant 0 : i32
    %c0_i32_0 = arith.constant 0 : i32
    %c0_i32_1 = arith.constant 0 : i32
    return %c0_i32, %c0_i32_0 : i32, i32
  }
  func.func @transform_25(%arg0: i32) -> (i32, i32) {
    %c0_i32 = arith.constant 0 : i32
    %c0_i32_0 = arith.constant 0 : i32
    %c0_i32_1 = arith.constant 0 : i32
    return %c0_i32, %c0_i32_0 : i32, i32
  }
  func.func @transform_26(%arg0: i32) -> (i32, i32) {
    %c0_i32 = arith.constant 0 : i32
    %c0_i32_0 = arith.constant 0 : i32
    %c0_i32_1 = arith.constant 0 : i32
    return %c0_i32, %c0_i32_0 : i32, i32
  }
  func.func @transform_27(%arg0: i32) -> (i32, i32) {
    %c0_i32 = arith.constant 0 : i32
    %c0_i32_0 = arith.constant 0 : i32
    %c0_i32_1 = arith.constant 0 : i32
    return %c0_i32, %c0_i32_0 : i32, i32
  }
  func.func @transform_28(%arg0: i32) -> (i32, i32) {
    %c0_i32 = arith.constant 0 : i32
    %c0_i32_0 = arith.constant 0 : i32
    %c0_i32_1 = arith.constant 0 : i32
    return %c0_i32, %c0_i32_0 : i32, i32
  }
  func.func @transform_29(%arg0: i32) -> (i32, i32) {
    %c0_i32 = arith.constant 0 : i32
    %c0_i32_0 = arith.constant 0 : i32
    %c0_i32_1 = arith.constant 0 : i32
    return %c0_i32, %c0_i32_0 : i32, i32
  }
  func.func @transform_30(%arg0: i32) -> (i32, i32) {
    %c0_i32 = arith.constant 0 : i32
    %c0_i32_0 = arith.constant 0 : i32
    %c0_i32_1 = arith.constant 0 : i32
    return %c0_i32, %c0_i32_0 : i32, i32
  }
  func.func @transform_31(%arg0: i32) -> (i32, i32) {
    %c0_i32 = arith.constant 0 : i32
    %c0_i32_0 = arith.constant 0 : i32
    %c0_i32_1 = arith.constant 0 : i32
    return %c0_i32, %c0_i32_0 : i32, i32
  }
  func.func @transform_32(%arg0: i32) -> (i32, i32) {
    %c0_i32 = arith.constant 0 : i32
    %c0_i32_0 = arith.constant 0 : i32
    %c0_i32_1 = arith.constant 0 : i32
    return %c0_i32, %c0_i32_0 : i32, i32
  }
  func.func @transform_33(%arg0: i32) -> (i32, i32) {
    %c0_i32 = arith.constant 0 : i32
    %c0_i32_0 = arith.constant 0 : i32
    %c0_i32_1 = arith.constant 0 : i32
    return %c0_i32, %c0_i32_0 : i32, i32
  }
  func.func @transform_34(%arg0: i32) -> (i32, i32) {
    %c0_i32 = arith.constant 0 : i32
    %c0_i32_0 = arith.constant 0 : i32
    %c0_i32_1 = arith.constant 0 : i32
    return %c0_i32, %c0_i32_0 : i32, i32
  }
  func.func @transform_35(%arg0: i32) -> (i32, i32) {
    %c0_i32 = arith.constant 0 : i32
    %c0_i32_0 = arith.constant 0 : i32
    %c0_i32_1 = arith.constant 0 : i32
    return %c0_i32, %c0_i32_0 : i32, i32
  }
  func.func @transform_36(%arg0: i32) -> (i32, i32) {
    %c0_i32 = arith.constant 0 : i32
    %c0_i32_0 = arith.constant 0 : i32
    %c0_i32_1 = arith.constant 0 : i32
    return %c0_i32, %c0_i32_0 : i32, i32
  }
  func.func @transform_37(%arg0: i32) -> (i32, i32) {
    %c0_i32 = arith.constant 0 : i32
    %c0_i32_0 = arith.constant 0 : i32
    %c0_i32_1 = arith.constant 0 : i32
    return %c0_i32, %c0_i32_0 : i32, i32
  }
  func.func @transform_38(%arg0: i32) -> (i32, i32) {
    %c0_i32 = arith.constant 0 : i32
    %c0_i32_0 = arith.constant 0 : i32
    %c0_i32_1 = arith.constant 0 : i32
    return %c0_i32, %c0_i32_0 : i32, i32
  }
  func.func @transform_39(%arg0: i32) -> (i32, i32) {
    %c0_i32 = arith.constant 0 : i32
    %c0_i32_0 = arith.constant 0 : i32
    %c0_i32_1 = arith.constant 0 : i32
    return %c0_i32, %c0_i32_0 : i32, i32
  }
  func.func @transform_40(%arg0: i32) -> (i32, i32) {
    %c0_i32 = arith.constant 0 : i32
    %c0_i32_0 = arith.constant 0 : i32
    %c0_i32_1 = arith.constant 0 : i32
    return %c0_i32, %c0_i32_0 : i32, i32
  }
  func.func @transform_41(%arg0: i32) -> (i32, i32) {
    %c0_i32 = arith.constant 0 : i32
    %c0_i32_0 = arith.constant 0 : i32
    %c0_i32_1 = arith.constant 0 : i32
    return %c0_i32, %c0_i32_0 : i32, i32
  }
  func.func @transform_42(%arg0: i32) -> (i32, i32) {
    %c0_i32 = arith.constant 0 : i32
    %c0_i32_0 = arith.constant 0 : i32
    %c0_i32_1 = arith.constant 0 : i32
    return %c0_i32, %c0_i32_0 : i32, i32
  }
  func.func @transform_43(%arg0: i32) -> (i32, i32) {
    %c0_i32 = arith.constant 0 : i32
    %c0_i32_0 = arith.constant 0 : i32
    %c0_i32_1 = arith.constant 0 : i32
    return %c0_i32, %c0_i32_0 : i32, i32
  }
  func.func @transform_44(%arg0: i32) -> (i32, i32) {
    %c0_i32 = arith.constant 0 : i32
    %c0_i32_0 = arith.constant 0 : i32
    %c0_i32_1 = arith.constant 0 : i32
    return %c0_i32, %c0_i32_0 : i32, i32
  }
  func.func @transform_45(%arg0: i32) -> (i32, i32) {
    %c0_i32 = arith.constant 0 : i32
    %c0_i32_0 = arith.constant 0 : i32
    %c0_i32_1 = arith.constant 0 : i32
    return %c0_i32, %c0_i32_0 : i32, i32
  }
  func.func @transform_46(%arg0: i32) -> (i32, i32) {
    %c0_i32 = arith.constant 0 : i32
    %c0_i32_0 = arith.constant 0 : i32
    %c0_i32_1 = arith.constant 0 : i32
    return %c0_i32, %c0_i32_0 : i32, i32
  }
  func.func @transform_47(%arg0: i32) -> (i32, i32, i32) {
    %c0_i32 = arith.constant 0 : i32
    %c0_i32_0 = arith.constant 0 : i32
    %c0_i32_1 = arith.constant 0 : i32
    %c0_i32_2 = arith.constant 0 : i32
    return %c0_i32, %c0_i32_0, %c0_i32_1 : i32, i32, i32
  }
  func.func @transform_48(%arg0: i32) -> (i32, i32) {
    %c0_i32 = arith.constant 0 : i32
    %c0_i32_0 = arith.constant 0 : i32
    %c0_i32_1 = arith.constant 0 : i32
    return %c0_i32, %c0_i32_0 : i32, i32
  }
  func.func @transform_49(%arg0: i32) -> (i32, i32) {
    %c0_i32 = arith.constant 0 : i32
    %c0_i32_0 = arith.constant 0 : i32
    %c0_i32_1 = arith.constant 0 : i32
    return %c0_i32, %c0_i32_0 : i32, i32
  }
  func.func @transform_50(%arg0: i32) -> (i32, i32) {
    %c0_i32 = arith.constant 0 : i32
    %c0_i32_0 = arith.constant 0 : i32
    %c0_i32_1 = arith.constant 0 : i32
    return %c0_i32, %c0_i32_0 : i32, i32
  }
  func.func @transform_51(%arg0: i32) -> (i32, i32) {
    %c0_i32 = arith.constant 0 : i32
    %c0_i32_0 = arith.constant 0 : i32
    %c0_i32_1 = arith.constant 0 : i32
    return %c0_i32, %c0_i32_0 : i32, i32
  }
  func.func @transform_52(%arg0: i32) -> (i32, i32) {
    %c0_i32 = arith.constant 0 : i32
    %c0_i32_0 = arith.constant 0 : i32
    %c0_i32_1 = arith.constant 0 : i32
    return %c0_i32, %c0_i32_0 : i32, i32
  }
  func.func @transform_53(%arg0: i32) -> (i32, i32, i32, i32) {
    %c0_i32 = arith.constant 0 : i32
    %c0_i32_0 = arith.constant 0 : i32
    %c0_i32_1 = arith.constant 0 : i32
    %c0_i32_2 = arith.constant 0 : i32
    return %arg0, %c0_i32, %c0_i32_0, %c0_i32_1 : i32, i32, i32, i32
  }
}

</mosaic_0001>

<llo_original>
// kernel: stark_forward.1
$region0: #{stark_forward.1}
  #allocation0 [shape = 'u32[]', space=smem, size = 0x4, offset = 0x4, fixed_abs, tag = 'smem constant byte address 0x4 - core index']
  #allocation1 [shape = 'u32[144,128]{1,0:T(1,128)}', space=vmem, size = 0x12000, scoped, tag = 'internal scratch']
  %s0 = inlined_call_operand.smem [shape: u32[54], index: -1, kind: input, shape index: {}]
  %s1 = sld [smem:[%s0]]
  %s2 = scalar_lea.smem %s0, 1
  %s3 = sld [smem:[%s2]]
  %s4 = scalar_lea.smem %s0, 2
  %s5 = sld [smem:[%s4]]
  %s6 = scalar_lea.smem %s0, 3
  %s7 = sld [smem:[%s6]]
  %s8 = scalar_lea.smem %s0, 4
  %s9 = sld [smem:[%s8]]
  %s10 = scalar_lea.smem %s0, 5
  %s11 = sld [smem:[%s10]]
  %s12 = scalar_lea.smem %s0, 6
  %s13 = sld [smem:[%s12]]
  %s14 = scalar_lea.smem %s0, 7
  %s15 = sld [smem:[%s14]]
  %s16 = scalar_lea.smem %s0, 8
  %s17 = sld [smem:[%s16]]
  %s18 = scalar_lea.smem %s0, 9
  %s19 = sld [smem:[%s18]]
  %s20 = scalar_lea.smem %s0, 10
  %s21 = sld [smem:[%s20]]
  %s22 = scalar_lea.smem %s0, 11
  %s23 = sld [smem:[%s22]]
  %s24 = scalar_lea.smem %s0, 12
  %s25 = sld [smem:[%s24]]
  %s26 = scalar_lea.smem %s0, 13
  %s27 = sld [smem:[%s26]]
  %s28 = scalar_lea.smem %s0, 14
  %s29 = sld [smem:[%s28]]
  %s30 = scalar_lea.smem %s0, 15
  %s31 = sld [smem:[%s30]]
  %s32 = scalar_lea.smem %s0, 16
  %s33 = sld [smem:[%s32]]
  %s34 = scalar_lea.smem %s0, 17
  %s35 = sld [smem:[%s34]]
  %s36 = scalar_lea.smem %s0, 18
  %s37 = sld [smem:[%s36]]
  %s38 = scalar_lea.smem %s0, 19
  %s39 = sld [smem:[%s38]]
  %s40 = scalar_lea.smem %s0, 20
  %s41 = sld [smem:[%s40]]
  %s42 = scalar_lea.smem %s0, 21
  %s43 = sld [smem:[%s42]]
  %s44 = scalar_lea.smem %s0, 22
  %s45 = sld [smem:[%s44]]
  %s46 = scalar_lea.smem %s0, 23
  %s47 = sld [smem:[%s46]]
  %s48 = scalar_lea.smem %s0, 24
  %s49 = sld [smem:[%s48]]
  %s50 = scalar_lea.smem %s0, 25
  %s51 = sld [smem:[%s50]]
  %s52 = scalar_lea.smem %s0, 26
  %s53 = sld [smem:[%s52]]
  %s54 = scalar_lea.smem %s0, 27
  %s55 = sld [smem:[%s54]]
  %s56 = scalar_lea.smem %s0, 28
  %s57 = sld [smem:[%s56]]
  %s58 = scalar_lea.smem %s0, 29
  %s59 = sld [smem:[%s58]]
  %s60 = scalar_lea.smem %s0, 30
  %s61 = sld [smem:[%s60]]
  %s62 = scalar_lea.smem %s0, 31
  %s63 = sld [smem:[%s62]]
  %s64 = scalar_lea.smem %s0, 32
  %s65 = sld [smem:[%s64]]
  %s66 = scalar_lea.smem %s0, 33
  %s67 = sld [smem:[%s66]]
  %s68 = scalar_lea.smem %s0, 34
  %s69 = sld [smem:[%s68]]
  %s70 = scalar_lea.smem %s0, 35
  %s71 = sld [smem:[%s70]]
  %s72 = scalar_lea.smem %s0, 36
  %s73 = sld [smem:[%s72]]
  %s74 = scalar_lea.smem %s0, 37
  %s75 = sld [smem:[%s74]]
  %s76 = scalar_lea.smem %s0, 38
  %s77 = sld [smem:[%s76]]
  %s78 = scalar_lea.smem %s0, 39
  %s79 = sld [smem:[%s78]]
  %s80 = scalar_lea.smem %s0, 40
  %s81 = sld [smem:[%s80]]
  %s82 = scalar_lea.smem %s0, 41
  %s83 = sld [smem:[%s82]]
  %s84 = scalar_lea.smem %s0, 42
  %s85 = sld [smem:[%s84]]
  %s86 = scalar_lea.smem %s0, 43
  %s87 = sld [smem:[%s86]]
  %s88 = scalar_lea.smem %s0, 44
  %s89 = sld [smem:[%s88]]
  %s90 = scalar_lea.smem %s0, 45
  %s91 = sld [smem:[%s90]]
  %s92 = scalar_lea.smem %s0, 46
  %s93 = sld [smem:[%s92]]
  %s94 = scalar_lea.smem %s0, 47
  %s95 = sld [smem:[%s94]]
  %s96 = scalar_lea.smem %s0, 48
  %s97 = sld [smem:[%s96]]
  %s98 = scalar_lea.smem %s0, 49
  %s99 = sld [smem:[%s98]]
  %s100 = scalar_lea.smem %s0, 50
  %s101 = sld [smem:[%s100]]
  %s102 = scalar_lea.smem %s0, 51
  %s103 = sld [smem:[%s102]]
  %s104 = scalar_lea.smem %s0, 52
  %s105 = sld [smem:[%s104]]
  %s106 = scalar_lea.smem %s0, 53
  %s107 = sld [smem:[%s106]]
  %s108 = sld [smem:[#allocation0]]
  $region281: #{stark_forward.1} parent=0
    _
  %s110 = ssub.s32 1, %s108
  %s111 = scalar_select 0, %s110, %s108
  $region1: #{stark_forward.1} parent=0
    #allocation2 [shape = 'u8[512]{0}', space=vmem, size = 0x400, scoped, tag = 'input window, operand 35, single buffered']
    #allocation3 [shape = 's32[2]{0}', space=sflag, size = 0x8, scoped, tag = 'scoped memory for stark_forward.1']
    #allocation4 [shape = 'u8[512]{0}', space=vmem, size = 0x400, scoped, tag = 'input window, operand 36, single buffered']
    #allocation5 [shape = 's32[1]{0}', space=sflag, size = 0x4, scoped, tag = 'scoped memory for stark_forward.1']
    #allocation6 [shape = 'u8[512]{0}', space=vmem, size = 0x400, scoped, tag = 'input window, operand 37, single buffered']
    #allocation7 [shape = 'u8[512]{0}', space=vmem, size = 0x400, scoped, tag = 'input window, operand 39, single buffered']
    #allocation8 [shape = 's32[1]{0}', space=sflag, size = 0x4, scoped, tag = 'scoped memory for stark_forward.1']
    #allocation9 [shape = 'u8[512]{0}', space=vmem, size = 0x400, scoped, tag = 'input window, operand 41, single buffered']
    #allocation10 [shape = 'u8[512]{0}', space=vmem, size = 0x400, scoped, tag = 'input window, operand 42, single buffered']
    #allocation11 [shape = 's32[1]{0}', space=sflag, size = 0x4, scoped, tag = 'scoped memory for stark_forward.1']
    #allocation12 [shape = 'u8[512]{0}', space=vmem, size = 0x400, scoped, tag = 'input window, operand 43, single buffered']
    #allocation13 [shape = 'u8[512]{0}', space=vmem, size = 0x400, scoped, tag = 'input window, operand 44, single buffered']
    #allocation14 [shape = 's32[1]{0}', space=sflag, size = 0x4, scoped, tag = 'scoped memory for stark_forward.1']
    #allocation15 [shape = 'u8[512]{0}', space=vmem, size = 0x400, scoped, tag = 'input window, operand 45, single buffered']
    %112 = vsyncpa [#allocation3], 0
    %113 = vsyncpa [#allocation5], 0
    %114 = vsyncpa [#allocation8], 0
    %115 = vsyncpa [#allocation11], 0
    %116 = vsyncpa [#allocation14], 0
    loop: start=0, step=1, limit=4
    $region2: #{stark_forward.1} parent=1 // loop_pre_header
      _
    $region3: #{stark_forward.1} parent=1 // loop_header
      %s118 = sphi 0, %s122
      %p119 = scmp.ge.s32.totalorder %s118, 4
      %s128 = sphi 0, %s130
      %s131 = sphi 0, %s128
      %s132 = sphi 0, %s131
      %s148 = sphi 0, %s132
      %s154 = sphi 0, %s156
      %s157 = sphi 0, %s154
      %s158 = sphi 0, %s157
      %s174 = sphi 0, %s158
      %s180 = sphi 0, %s182
      %s183 = sphi 0, %s180
      %s184 = sphi 0, %s183
      %s200 = sphi 0, %s184
      %s206 = sphi 0, %s208
      %s209 = sphi 0, %s206
      %s210 = sphi 0, %s209
      %s226 = sphi 0, %s210
      %s230 = sphi 0, %s230
      %s232 = sphi 0, %s230
      %s233 = sphi 0, %s232
      %s247 = sphi 0, %s233
      %s251 = sphi 0, %s251
      %s253 = sphi 0, %s251
      %s254 = sphi 0, %s253
      %s268 = sphi 0, %s254
      %s272 = sphi 0, %s272
      %s274 = sphi 0, %s272
      %s275 = sphi 0, %s274
      %s289 = sphi 0, %s275
      %s293 = sphi 0, %s293
      %s295 = sphi 0, %s293
      %s296 = sphi 0, %s295
      %s310 = sphi 0, %s296
      %s314 = sphi 0, %s314
      %s316 = sphi 0, %s314
      %s317 = sphi 0, %s316
      %s331 = sphi 0, %s317
      %s335 = sphi 0, %s335
      %s337 = sphi 0, %s335
      %s338 = sphi 0, %s337
      %s352 = sphi 0, %s338
      %s356 = sphi 0, %s356
      %s358 = sphi 0, %s356
      %s359 = sphi 0, %s358
      %s373 = sphi 0, %s359
      %s377 = sphi 0, %s377
      %s379 = sphi 0, %s377
      %s380 = sphi 0, %s379
      %s394 = sphi 0, %s380
      %s398 = sphi 0, %s398
      %s400 = sphi 0, %s398
      %s401 = sphi 0, %s400
      %s415 = sphi 0, %s401
      %s419 = sphi 0, %s419
      %s421 = sphi 0, %s419
      %s422 = sphi 0, %s421
      %s436 = sphi 0, %s422
      %s440 = sphi 0, %s440
      %s442 = sphi 0, %s440
      %s443 = sphi 0, %s442
      %s457 = sphi 0, %s443
      %s461 = sphi 0, %s461
      %s463 = sphi 0, %s461
      %s464 = sphi 0, %s463
      %s478 = sphi 0, %s464
      %s482 = sphi 0, %s482
      %s484 = sphi 0, %s482
      %s485 = sphi 0, %s484
      %s499 = sphi 0, %s485
      %s503 = sphi 0, %s503
      %s505 = sphi 0, %s503
      %s506 = sphi 0, %s505
      %s520 = sphi 0, %s506
      %s524 = sphi 0, %s524
      %s526 = sphi 0, %s524
      %s527 = sphi 0, %s526
      %s541 = sphi 0, %s527
      %s545 = sphi 0, %s545
      %s547 = sphi 0, %s545
      %s548 = sphi 0, %s547
      %s562 = sphi 0, %s548
      %s566 = sphi 0, %s566
      %s568 = sphi 0, %s566
      %s569 = sphi 0, %s568
      %s583 = sphi 0, %s569
      %s587 = sphi 0, %s587
      %s589 = sphi 0, %s587
      %s590 = sphi 0, %s589
      %s604 = sphi 0, %s590
      %s608 = sphi 0, %s608
      %s610 = sphi 0, %s608
      %s611 = sphi 0, %s610
      %s625 = sphi 0, %s611
      %s629 = sphi 0, %s629
      %s631 = sphi 0, %s629
      %s632 = sphi 0, %s631
      %s646 = sphi 0, %s632
      %s650 = sphi 0, %s650
      %s652 = sphi 0, %s650
      %s653 = sphi 0, %s652
      %s667 = sphi 0, %s653
      %s671 = sphi 0, %s671
      %s673 = sphi 0, %s671
      %s674 = sphi 0, %s673
      %s688 = sphi 0, %s674
      %s692 = sphi 0, %s692
      %s694 = sphi 0, %s692
      %s695 = sphi 0, %s694
      %s709 = sphi 0, %s695
      %s713 = sphi 0, %s713
      %s715 = sphi 0, %s713
      %s716 = sphi 0, %s715
      %s730 = sphi 0, %s716
      %s734 = sphi 0, %s734
      %s736 = sphi 0, %s734
      %s737 = sphi 0, %s736
      %s751 = sphi 0, %s737
      %s755 = sphi 0, %s755
      %s757 = sphi 0, %s755
      %s758 = sphi 0, %s757
      %s772 = sphi 0, %s758
      %s776 = sphi 0, %s776
      %s778 = sphi 0, %s776
      %s779 = sphi 0, %s778
      %s793 = sphi 0, %s779
      %s797 = sphi 0, %s797
      %s799 = sphi 0, %s797
      %s800 = sphi 0, %s799
      %s814 = sphi 0, %s800
      %s818 = sphi 0, %s818
      %s820 = sphi 0, %s818
      %s821 = sphi 0, %s820
      %s835 = sphi 0, %s821
      %s839 = sphi 0, %s839
      %s841 = sphi 0, %s839
      %s842 = sphi 0, %s841
      %s856 = sphi 0, %s842
      %s860 = sphi 0, %s860
      %s862 = sphi 0, %s860
      %s863 = sphi 0, %s862
      %s877 = sphi 0, %s863
      %s881 = sphi 0, %s881
      %s883 = sphi 0, %s881
      %s884 = sphi 0, %s883
      %s898 = sphi 0, %s884
      %s902 = sphi 0, %s902
      %s904 = sphi 0, %s902
      %s905 = sphi 0, %s904
      %s919 = sphi 0, %s905
      %s923 = sphi 0, %s923
      %s925 = sphi 0, %s923
      %s926 = sphi 0, %s925
      %s940 = sphi 0, %s926
      %s944 = sphi 0, %s944
      %s946 = sphi 0, %s944
      %s947 = sphi 0, %s946
      %s961 = sphi 0, %s947
      %s965 = sphi 0, %s965
      %s967 = sphi 0, %s965
      %s968 = sphi 0, %s967
      %s982 = sphi 0, %s968
      %s986 = sphi 0, %s986
      %s988 = sphi 0, %s986
      %s989 = sphi 0, %s988
      %s1003 = sphi 0, %s989
      %s1007 = sphi 0, %s1007
      %s1009 = sphi 0, %s1007
      %s1010 = sphi 0, %s1009
      %s1024 = sphi 0, %s1010
      %s1028 = sphi 0, %s1028
      %s1030 = sphi 0, %s1028
      %s1031 = sphi 0, %s1030
      %s1045 = sphi 0, %s1031
      %s1049 = sphi 0, %s1049
      %s1051 = sphi 0, %s1049
      %s1052 = sphi 0, %s1051
      %s1066 = sphi 0, %s1052
      %s1070 = sphi 0, %s1070
      %s1072 = sphi 0, %s1070
      %s1073 = sphi 0, %s1072
      %s1087 = sphi 0, %s1073
      %s1091 = sphi 0, %s1091
      %s1093 = sphi 0, %s1091
      %s1094 = sphi 0, %s1093
      %s1108 = sphi 0, %s1094
      %s1112 = sphi 0, %s1112
      %s1114 = sphi 0, %s1112
      %s1115 = sphi 0, %s1114
      %s1129 = sphi 0, %s1115
      %s1133 = sphi 0, %s1133
      %s1135 = sphi 0, %s1133
      %s1136 = sphi 0, %s1135
      %s1150 = sphi 0, %s1136
      %s1154 = sphi 0, %s1154
      %s1156 = sphi 0, %s1154
      %s1157 = sphi 0, %s1156
      %s1171 = sphi 0, %s1157
      %s1175 = sphi 0, %s1175
      %s1177 = sphi 0, %s1175
      %s1178 = sphi 0, %s1177
      %s1192 = sphi 0, %s1178
      %s1196 = sphi 0, %s1196
      %s1198 = sphi 0, %s1196
      %s1199 = sphi 0, %s1198
      %s1213 = sphi 0, %s1199
      %s1217 = sphi 0, %s1217
      %s1219 = sphi 0, %s1217
      %s1220 = sphi 0, %s1219
      %s1234 = sphi 0, %s1220
      %s1238 = sphi 0, %s1238
      %s1240 = sphi 0, %s1238
      %s1241 = sphi 0, %s1240
      %s1255 = sphi 0, %s1241
      %s1261 = sphi 0, %s1263
      %s1264 = sphi 0, %s1261
      %s1265 = sphi 0, %s1264
      %s1281 = sphi 0, %s1265
    $region4: #{stark_forward.1} parent=1 // loop_header_branch
      %121 = sbr.rel (%p119) target = $region8
    $region5: #{stark_forward.1} parent=1 // loop_body
      %s123 = ssub.s32 %s118, 1
      %s124 = ssub.s32 %s118, 2
      %s125 = sadd.s32 %s118, 1
      %s126 = ssub.s32 %s118, %s125
      %p127 = scmp.eq.s32.totalorder %s126, 0
      %s129 = sadd.s32 %s128, 1
      %s130 = scalar_select %p127, %s128, %s129
      %p133 = pneg %p127
      %p134 = scmp.eq.s32.totalorder %s118, 1
      %p135 = por %p133, %p134
      %p136 = scmp.ne.s32.totalorder %s128, %s131
      %p137 = scmp.eq.s32.totalorder %s118, 0
      %p138 = por %p136, %p137
      %p139 = scmp.ne.s32.totalorder %s128, %s131
      %p140 = scmp.eq.s32.totalorder %s123, 1
      %p141 = por %p139, %p140
      %p142 = scmp.ne.s32.totalorder %s131, %s132
      %p143 = scmp.eq.s32.totalorder %s123, 0
      %p144 = por %p142, %p143
      %p145 = scmp.ne.s32.totalorder %s131, %s132
      %p146 = scmp.eq.s32.totalorder %s124, 1
      %p147 = por %p145, %p146
      %p149 = scmp.ne.s32.totalorder %s132, %s148
      %p150 = scmp.eq.s32.totalorder %s124, 0
      %p151 = por %p149, %p150
      %s152 = ssub.s32 %s118, %s125
      %p153 = scmp.eq.s32.totalorder %s152, 0
      %s155 = sadd.s32 %s154, 1
      %s156 = scalar_select %p153, %s154, %s155
      %p159 = pneg %p153
      %p160 = scmp.eq.s32.totalorder %s118, 1
      %p161 = por %p159, %p160
      %p162 = scmp.ne.s32.totalorder %s154, %s157
      %p163 = scmp.eq.s32.totalorder %s118, 0
      %p164 = por %p162, %p163
      %p165 = scmp.ne.s32.totalorder %s154, %s157
      %p166 = scmp.eq.s32.totalorder %s123, 1
      %p167 = por %p165, %p166
      %p168 = scmp.ne.s32.totalorder %s157, %s158
      %p169 = scmp.eq.s32.totalorder %s123, 0
      %p170 = por %p168, %p169
      %p171 = scmp.ne.s32.totalorder %s157, %s158
      %p172 = scmp.eq.s32.totalorder %s124, 1
      %p173 = por %p171, %p172
      %p175 = scmp.ne.s32.totalorder %s158, %s174
      %p176 = scmp.eq.s32.totalorder %s124, 0
      %p177 = por %p175, %p176
      %s178 = ssub.s32 %s118, %s125
      %p179 = scmp.eq.s32.totalorder %s178, 0
      %s181 = sadd.s32 %s180, 1
      %s182 = scalar_select %p179, %s180, %s181
      %p185 = pneg %p179
      %p186 = scmp.eq.s32.totalorder %s118, 1
      %p187 = por %p185, %p186
      %p188 = scmp.ne.s32.totalorder %s180, %s183
      %p189 = scmp.eq.s32.totalorder %s118, 0
      %p190 = por %p188, %p189
      %p191 = scmp.ne.s32.totalorder %s180, %s183
      %p192 = scmp.eq.s32.totalorder %s123, 1
      %p193 = por %p191, %p192
      %p194 = scmp.ne.s32.totalorder %s183, %s184
      %p195 = scmp.eq.s32.totalorder %s123, 0
      %p196 = por %p194, %p195
      %p197 = scmp.ne.s32.totalorder %s183, %s184
      %p198 = scmp.eq.s32.totalorder %s124, 1
      %p199 = por %p197, %p198
      %p201 = scmp.ne.s32.totalorder %s184, %s200
      %p202 = scmp.eq.s32.totalorder %s124, 0
      %p203 = por %p201, %p202
      %s204 = ssub.s32 %s118, %s125
      %p205 = scmp.eq.s32.totalorder %s204, 0
      %s207 = sadd.s32 %s206, 1
      %s208 = scalar_select %p205, %s206, %s207
      %p211 = pneg %p205
      %p212 = scmp.eq.s32.totalorder %s118, 1
      %p213 = por %p211, %p212
      %p214 = scmp.ne.s32.totalorder %s206, %s209
      %p215 = scmp.eq.s32.totalorder %s118, 0
      %p216 = por %p214, %p215
      %p217 = scmp.ne.s32.totalorder %s206, %s209
      %p218 = scmp.eq.s32.totalorder %s123, 1
      %p219 = por %p217, %p218
      %p220 = scmp.ne.s32.totalorder %s209, %s210
      %p221 = scmp.eq.s32.totalorder %s123, 0
      %p222 = por %p220, %p221
      %p223 = scmp.ne.s32.totalorder %s209, %s210
      %p224 = scmp.eq.s32.totalorder %s124, 1
      %p225 = por %p223, %p224
      %p227 = scmp.ne.s32.totalorder %s210, %s226
      %p228 = scmp.eq.s32.totalorder %s124, 0
      %p229 = por %p227, %p228
      %s231 = sadd.s32 %s230, 1
      %p234 = scmp.eq.s32.totalorder %s118, 1
      %p235 = scmp.ne.s32.totalorder %s230, %s232
      %p236 = scmp.eq.s32.totalorder %s118, 0
      %p237 = por %p235, %p236
      %p238 = scmp.ne.s32.totalorder %s230, %s232
      %p239 = scmp.eq.s32.totalorder %s123, 1
      %p240 = por %p238, %p239
      %p241 = scmp.ne.s32.totalorder %s232, %s233
      %p242 = scmp.eq.s32.totalorder %s123, 0
      %p243 = por %p241, %p242
      %p244 = scmp.ne.s32.totalorder %s232, %s233
      %p245 = scmp.eq.s32.totalorder %s124, 1
      %p246 = por %p244, %p245
      %p248 = scmp.ne.s32.totalorder %s233, %s247
      %p249 = scmp.eq.s32.totalorder %s124, 0
      %p250 = por %p248, %p249
      %s252 = sadd.s32 %s251, 1
      %p255 = scmp.eq.s32.totalorder %s118, 1
      %p256 = scmp.ne.s32.totalorder %s251, %s253
      %p257 = scmp.eq.s32.totalorder %s118, 0
      %p258 = por %p256, %p257
      %p259 = scmp.ne.s32.totalorder %s251, %s253
      %p260 = scmp.eq.s32.totalorder %s123, 1
      %p261 = por %p259, %p260
      %p262 = scmp.ne.s32.totalorder %s253, %s254
      %p263 = scmp.eq.s32.totalorder %s123, 0
      %p264 = por %p262, %p263
      %p265 = scmp.ne.s32.totalorder %s253, %s254
      %p266 = scmp.eq.s32.totalorder %s124, 1
      %p267 = por %p265, %p266
      %p269 = scmp.ne.s32.totalorder %s254, %s268
      %p270 = scmp.eq.s32.totalorder %s124, 0
      %p271 = por %p269, %p270
      %s273 = sadd.s32 %s272, 1
      %p276 = scmp.eq.s32.totalorder %s118, 1
      %p277 = scmp.ne.s32.totalorder %s272, %s274
      %p278 = scmp.eq.s32.totalorder %s118, 0
      %p279 = por %p277, %p278
      %p280 = scmp.ne.s32.totalorder %s272, %s274
      %p281 = scmp.eq.s32.totalorder %s123, 1
      %p282 = por %p280, %p281
      %p283 = scmp.ne.s32.totalorder %s274, %s275
      %p284 = scmp.eq.s32.totalorder %s123, 0
      %p285 = por %p283, %p284
      %p286 = scmp.ne.s32.totalorder %s274, %s275
      %p287 = scmp.eq.s32.totalorder %s124, 1
      %p288 = por %p286, %p287
      %p290 = scmp.ne.s32.totalorder %s275, %s289
      %p291 = scmp.eq.s32.totalorder %s124, 0
      %p292 = por %p290, %p291
      %s294 = sadd.s32 %s293, 1
      %p297 = scmp.eq.s32.totalorder %s118, 1
      %p298 = scmp.ne.s32.totalorder %s293, %s295
      %p299 = scmp.eq.s32.totalorder %s118, 0
      %p300 = por %p298, %p299
      %p301 = scmp.ne.s32.totalorder %s293, %s295
      %p302 = scmp.eq.s32.totalorder %s123, 1
      %p303 = por %p301, %p302
      %p304 = scmp.ne.s32.totalorder %s295, %s296
      %p305 = scmp.eq.s32.totalorder %s123, 0
      %p306 = por %p304, %p305
      %p307 = scmp.ne.s32.totalorder %s295, %s296
      %p308 = scmp.eq.s32.totalorder %s124, 1
      %p309 = por %p307, %p308
      %p311 = scmp.ne.s32.totalorder %s296, %s310
      %p312 = scmp.eq.s32.totalorder %s124, 0
      %p313 = por %p311, %p312
      %s315 = sadd.s32 %s314, 1
      %p318 = scmp.eq.s32.totalorder %s118, 1
      %p319 = scmp.ne.s32.totalorder %s314, %s316
      %p320 = scmp.eq.s32.totalorder %s118, 0
      %p321 = por %p319, %p320
      %p322 = scmp.ne.s32.totalorder %s314, %s316
      %p323 = scmp.eq.s32.totalorder %s123, 1
      %p324 = por %p322, %p323
      %p325 = scmp.ne.s32.totalorder %s316, %s317
      %p326 = scmp.eq.s32.totalorder %s123, 0
      %p327 = por %p325, %p326
      %p328 = scmp.ne.s32.totalorder %s316, %s317
      %p329 = scmp.eq.s32.totalorder %s124, 1
      %p330 = por %p328, %p329
      %p332 = scmp.ne.s32.totalorder %s317, %s331
      %p333 = scmp.eq.s32.totalorder %s124, 0
      %p334 = por %p332, %p333
      %s336 = sadd.s32 %s335, 1
      %p339 = scmp.eq.s32.totalorder %s118, 1
      %p340 = scmp.ne.s32.totalorder %s335, %s337
      %p341 = scmp.eq.s32.totalorder %s118, 0
      %p342 = por %p340, %p341
      %p343 = scmp.ne.s32.totalorder %s335, %s337
      %p344 = scmp.eq.s32.totalorder %s123, 1
      %p345 = por %p343, %p344
      %p346 = scmp.ne.s32.totalorder %s337, %s338
      %p347 = scmp.eq.s32.totalorder %s123, 0
      %p348 = por %p346, %p347
      %p349 = scmp.ne.s32.totalorder %s337, %s338
      %p350 = scmp.eq.s32.totalorder %s124, 1
      %p351 = por %p349, %p350
      %p353 = scmp.ne.s32.totalorder %s338, %s352
      %p354 = scmp.eq.s32.totalorder %s124, 0
      %p355 = por %p353, %p354
      %s357 = sadd.s32 %s356, 1
      %p360 = scmp.eq.s32.totalorder %s118, 1
      %p361 = scmp.ne.s32.totalorder %s356, %s358
      %p362 = scmp.eq.s32.totalorder %s118, 0
      %p363 = por %p361, %p362
      %p364 = scmp.ne.s32.totalorder %s356, %s358
      %p365 = scmp.eq.s32.totalorder %s123, 1
      %p366 = por %p364, %p365
      %p367 = scmp.ne.s32.totalorder %s358, %s359
      %p368 = scmp.eq.s32.totalorder %s123, 0
      %p369 = por %p367, %p368
      %p370 = scmp.ne.s32.totalorder %s358, %s359
      %p371 = scmp.eq.s32.totalorder %s124, 1
      %p372 = por %p370, %p371
      %p374 = scmp.ne.s32.totalorder %s359, %s373
      %p375 = scmp.eq.s32.totalorder %s124, 0
      %p376 = por %p374, %p375
      %s378 = sadd.s32 %s377, 1
      %p381 = scmp.eq.s32.totalorder %s118, 1
      %p382 = scmp.ne.s32.totalorder %s377, %s379
      %p383 = scmp.eq.s32.totalorder %s118, 0
      %p384 = por %p382, %p383
      %p385 = scmp.ne.s32.totalorder %s377, %s379
      %p386 = scmp.eq.s32.totalorder %s123, 1
      %p387 = por %p385, %p386
      %p388 = scmp.ne.s32.totalorder %s379, %s380
      %p389 = scmp.eq.s32.totalorder %s123, 0
      %p390 = por %p388, %p389
      %p391 = scmp.ne.s32.totalorder %s379, %s380
      %p392 = scmp.eq.s32.totalorder %s124, 1
      %p393 = por %p391, %p392
      %p395 = scmp.ne.s32.totalorder %s380, %s394
      %p396 = scmp.eq.s32.totalorder %s124, 0
      %p397 = por %p395, %p396
      %s399 = sadd.s32 %s398, 1
      %p402 = scmp.eq.s32.totalorder %s118, 1
      %p403 = scmp.ne.s32.totalorder %s398, %s400
      %p404 = scmp.eq.s32.totalorder %s118, 0
      %p405 = por %p403, %p404
      %p406 = scmp.ne.s32.totalorder %s398, %s400
      %p407 = scmp.eq.s32.totalorder %s123, 1
      %p408 = por %p406, %p407
      %p409 = scmp.ne.s32.totalorder %s400, %s401
      %p410 = scmp.eq.s32.totalorder %s123, 0
      %p411 = por %p409, %p410
      %p412 = scmp.ne.s32.totalorder %s400, %s401
      %p413 = scmp.eq.s32.totalorder %s124, 1
      %p414 = por %p412, %p413
      %p416 = scmp.ne.s32.totalorder %s401, %s415
      %p417 = scmp.eq.s32.totalorder %s124, 0
      %p418 = por %p416, %p417
      %s420 = sadd.s32 %s419, 1
      %p423 = scmp.eq.s32.totalorder %s118, 1
      %p424 = scmp.ne.s32.totalorder %s419, %s421
      %p425 = scmp.eq.s32.totalorder %s118, 0
      %p426 = por %p424, %p425
      %p427 = scmp.ne.s32.totalorder %s419, %s421
      %p428 = scmp.eq.s32.totalorder %s123, 1
      %p429 = por %p427, %p428
      %p430 = scmp.ne.s32.totalorder %s421, %s422
      %p431 = scmp.eq.s32.totalorder %s123, 0
      %p432 = por %p430, %p431
      %p433 = scmp.ne.s32.totalorder %s421, %s422
      %p434 = scmp.eq.s32.totalorder %s124, 1
      %p435 = por %p433, %p434
      %p437 = scmp.ne.s32.totalorder %s422, %s436
      %p438 = scmp.eq.s32.totalorder %s124, 0
      %p439 = por %p437, %p438
      %s441 = sadd.s32 %s440, 1
      %p444 = scmp.eq.s32.totalorder %s118, 1
      %p445 = scmp.ne.s32.totalorder %s440, %s442
      %p446 = scmp.eq.s32.totalorder %s118, 0
      %p447 = por %p445, %p446
      %p448 = scmp.ne.s32.totalorder %s440, %s442
      %p449 = scmp.eq.s32.totalorder %s123, 1
      %p450 = por %p448, %p449
      %p451 = scmp.ne.s32.totalorder %s442, %s443
      %p452 = scmp.eq.s32.totalorder %s123, 0
      %p453 = por %p451, %p452
      %p454 = scmp.ne.s32.totalorder %s442, %s443
      %p455 = scmp.eq.s32.totalorder %s124, 1
      %p456 = por %p454, %p455
      %p458 = scmp.ne.s32.totalorder %s443, %s457
      %p459 = scmp.eq.s32.totalorder %s124, 0
      %p460 = por %p458, %p459
      %s462 = sadd.s32 %s461, 1
      %p465 = scmp.eq.s32.totalorder %s118, 1
      %p466 = scmp.ne.s32.totalorder %s461, %s463
      %p467 = scmp.eq.s32.totalorder %s118, 0
      %p468 = por %p466, %p467
      %p469 = scmp.ne.s32.totalorder %s461, %s463
      %p470 = scmp.eq.s32.totalorder %s123, 1
      %p471 = por %p469, %p470
      %p472 = scmp.ne.s32.totalorder %s463, %s464
      %p473 = scmp.eq.s32.totalorder %s123, 0
      %p474 = por %p472, %p473
      %p475 = scmp.ne.s32.totalorder %s463, %s464
      %p476 = scmp.eq.s32.totalorder %s124, 1
      %p477 = por %p475, %p476
      %p479 = scmp.ne.s32.totalorder %s464, %s478
      %p480 = scmp.eq.s32.totalorder %s124, 0
      %p481 = por %p479, %p480
      %s483 = sadd.s32 %s482, 1
      %p486 = scmp.eq.s32.totalorder %s118, 1
      %p487 = scmp.ne.s32.totalorder %s482, %s484
      %p488 = scmp.eq.s32.totalorder %s118, 0
      %p489 = por %p487, %p488
      %p490 = scmp.ne.s32.totalorder %s482, %s484
      %p491 = scmp.eq.s32.totalorder %s123, 1
      %p492 = por %p490, %p491
      %p493 = scmp.ne.s32.totalorder %s484, %s485
      %p494 = scmp.eq.s32.totalorder %s123, 0
      %p495 = por %p493, %p494
      %p496 = scmp.ne.s32.totalorder %s484, %s485
      %p497 = scmp.eq.s32.totalorder %s124, 1
      %p498 = por %p496, %p497
      %p500 = scmp.ne.s32.totalorder %s485, %s499
      %p501 = scmp.eq.s32.totalorder %s124, 0
      %p502 = por %p500, %p501
      %s504 = sadd.s32 %s503, 1
      %p507 = scmp.eq.s32.totalorder %s118, 1
      %p508 = scmp.ne.s32.totalorder %s503, %s505
      %p509 = scmp.eq.s32.totalorder %s118, 0
      %p510 = por %p508, %p509
      %p511 = scmp.ne.s32.totalorder %s503, %s505
      %p512 = scmp.eq.s32.totalorder %s123, 1
      %p513 = por %p511, %p512
      %p514 = scmp.ne.s32.totalorder %s505, %s506
      %p515 = scmp.eq.s32.totalorder %s123, 0
      %p516 = por %p514, %p515
      %p517 = scmp.ne.s32.totalorder %s505, %s506
      %p518 = scmp.eq.s32.totalorder %s124, 1
      %p519 = por %p517, %p518
      %p521 = scmp.ne.s32.totalorder %s506, %s520
      %p522 = scmp.eq.s32.totalorder %s124, 0
      %p523 = por %p521, %p522
      %s525 = sadd.s32 %s524, 1
      %p528 = scmp.eq.s32.totalorder %s118, 1
      %p529 = scmp.ne.s32.totalorder %s524, %s526
      %p530 = scmp.eq.s32.totalorder %s118, 0
      %p531 = por %p529, %p530
      %p532 = scmp.ne.s32.totalorder %s524, %s526
      %p533 = scmp.eq.s32.totalorder %s123, 1
      %p534 = por %p532, %p533
      %p535 = scmp.ne.s32.totalorder %s526, %s527
      %p536 = scmp.eq.s32.totalorder %s123, 0
      %p537 = por %p535, %p536
      %p538 = scmp.ne.s32.totalorder %s526, %s527
      %p539 = scmp.eq.s32.totalorder %s124, 1
      %p540 = por %p538, %p539
      %p542 = scmp.ne.s32.totalorder %s527, %s541
      %p543 = scmp.eq.s32.totalorder %s124, 0
      %p544 = por %p542, %p543
      %s546 = sadd.s32 %s545, 1
      %p549 = scmp.eq.s32.totalorder %s118, 1
      %p550 = scmp.ne.s32.totalorder %s545, %s547
      %p551 = scmp.eq.s32.totalorder %s118, 0
      %p552 = por %p550, %p551
      %p553 = scmp.ne.s32.totalorder %s545, %s547
      %p554 = scmp.eq.s32.totalorder %s123, 1
      %p555 = por %p553, %p554
      %p556 = scmp.ne.s32.totalorder %s547, %s548
      %p557 = scmp.eq.s32.totalorder %s123, 0
      %p558 = por %p556, %p557
      %p559 = scmp.ne.s32.totalorder %s547, %s548
      %p560 = scmp.eq.s32.totalorder %s124, 1
      %p561 = por %p559, %p560
      %p563 = scmp.ne.s32.totalorder %s548, %s562
      %p564 = scmp.eq.s32.totalorder %s124, 0
      %p565 = por %p563, %p564
      %s567 = sadd.s32 %s566, 1
      %p570 = scmp.eq.s32.totalorder %s118, 1
      %p571 = scmp.ne.s32.totalorder %s566, %s568
      %p572 = scmp.eq.s32.totalorder %s118, 0
      %p573 = por %p571, %p572
      %p574 = scmp.ne.s32.totalorder %s566, %s568
      %p575 = scmp.eq.s32.totalorder %s123, 1
      %p576 = por %p574, %p575
      %p577 = scmp.ne.s32.totalorder %s568, %s569
      %p578 = scmp.eq.s32.totalorder %s123, 0
      %p579 = por %p577, %p578
      %p580 = scmp.ne.s32.totalorder %s568, %s569
      %p581 = scmp.eq.s32.totalorder %s124, 1
      %p582 = por %p580, %p581
      %p584 = scmp.ne.s32.totalorder %s569, %s583
      %p585 = scmp.eq.s32.totalorder %s124, 0
      %p586 = por %p584, %p585
      %s588 = sadd.s32 %s587, 1
      %p591 = scmp.eq.s32.totalorder %s118, 1
      %p592 = scmp.ne.s32.totalorder %s587, %s589
      %p593 = scmp.eq.s32.totalorder %s118, 0
      %p594 = por %p592, %p593
      %p595 = scmp.ne.s32.totalorder %s587, %s589
      %p596 = scmp.eq.s32.totalorder %s123, 1
      %p597 = por %p595, %p596
      %p598 = scmp.ne.s32.totalorder %s589, %s590
      %p599 = scmp.eq.s32.totalorder %s123, 0
      %p600 = por %p598, %p599
      %p601 = scmp.ne.s32.totalorder %s589, %s590
      %p602 = scmp.eq.s32.totalorder %s124, 1
      %p603 = por %p601, %p602
      %p605 = scmp.ne.s32.totalorder %s590, %s604
      %p606 = scmp.eq.s32.totalorder %s124, 0
      %p607 = por %p605, %p606
      %s609 = sadd.s32 %s608, 1
      %p612 = scmp.eq.s32.totalorder %s118, 1
      %p613 = scmp.ne.s32.totalorder %s608, %s610
      %p614 = scmp.eq.s32.totalorder %s118, 0
      %p615 = por %p613, %p614
      %p616 = scmp.ne.s32.totalorder %s608, %s610
      %p617 = scmp.eq.s32.totalorder %s123, 1
      %p618 = por %p616, %p617
      %p619 = scmp.ne.s32.totalorder %s610, %s611
      %p620 = scmp.eq.s32.totalorder %s123, 0
      %p621 = por %p619, %p620
      %p622 = scmp.ne.s32.totalorder %s610, %s611
      %p623 = scmp.eq.s32.totalorder %s124, 1
      %p624 = por %p622, %p623
      %p626 = scmp.ne.s32.totalorder %s611, %s625
      %p627 = scmp.eq.s32.totalorder %s124, 0
      %p628 = por %p626, %p627
      %s630 = sadd.s32 %s629, 1
      %p633 = scmp.eq.s32.totalorder %s118, 1
      %p634 = scmp.ne.s32.totalorder %s629, %s631
      %p635 = scmp.eq.s32.totalorder %s118, 0
      %p636 = por %p634, %p635
      %p637 = scmp.ne.s32.totalorder %s629, %s631
      %p638 = scmp.eq.s32.totalorder %s123, 1
      %p639 = por %p637, %p638
      %p640 = scmp.ne.s32.totalorder %s631, %s632
      %p641 = scmp.eq.s32.totalorder %s123, 0
      %p642 = por %p640, %p641
      %p643 = scmp.ne.s32.totalorder %s631, %s632
      %p644 = scmp.eq.s32.totalorder %s124, 1
      %p645 = por %p643, %p644
      %p647 = scmp.ne.s32.totalorder %s632, %s646
      %p648 = scmp.eq.s32.totalorder %s124, 0
      %p649 = por %p647, %p648
      %s651 = sadd.s32 %s650, 1
      %p654 = scmp.eq.s32.totalorder %s118, 1
      %p655 = scmp.ne.s32.totalorder %s650, %s652
      %p656 = scmp.eq.s32.totalorder %s118, 0
      %p657 = por %p655, %p656
      %p658 = scmp.ne.s32.totalorder %s650, %s652
      %p659 = scmp.eq.s32.totalorder %s123, 1
      %p660 = por %p658, %p659
      %p661 = scmp.ne.s32.totalorder %s652, %s653
      %p662 = scmp.eq.s32.totalorder %s123, 0
      %p663 = por %p661, %p662
      %p664 = scmp.ne.s32.totalorder %s652, %s653
      %p665 = scmp.eq.s32.totalorder %s124, 1
      %p666 = por %p664, %p665
      %p668 = scmp.ne.s32.totalorder %s653, %s667
      %p669 = scmp.eq.s32.totalorder %s124, 0
      %p670 = por %p668, %p669
      %s672 = sadd.s32 %s671, 1
      %p675 = scmp.eq.s32.totalorder %s118, 1
      %p676 = scmp.ne.s32.totalorder %s671, %s673
      %p677 = scmp.eq.s32.totalorder %s118, 0
      %p678 = por %p676, %p677
      %p679 = scmp.ne.s32.totalorder %s671, %s673
      %p680 = scmp.eq.s32.totalorder %s123, 1
      %p681 = por %p679, %p680
      %p682 = scmp.ne.s32.totalorder %s673, %s674
      %p683 = scmp.eq.s32.totalorder %s123, 0
      %p684 = por %p682, %p683
      %p685 = scmp.ne.s32.totalorder %s673, %s674
      %p686 = scmp.eq.s32.totalorder %s124, 1
      %p687 = por %p685, %p686
      %p689 = scmp.ne.s32.totalorder %s674, %s688
      %p690 = scmp.eq.s32.totalorder %s124, 0
      %p691 = por %p689, %p690
      %s693 = sadd.s32 %s692, 1
      %p696 = scmp.eq.s32.totalorder %s118, 1
      %p697 = scmp.ne.s32.totalorder %s692, %s694
      %p698 = scmp.eq.s32.totalorder %s118, 0
      %p699 = por %p697, %p698
      %p700 = scmp.ne.s32.totalorder %s692, %s694
      %p701 = scmp.eq.s32.totalorder %s123, 1
      %p702 = por %p700, %p701
      %p703 = scmp.ne.s32.totalorder %s694, %s695
      %p704 = scmp.eq.s32.totalorder %s123, 0
      %p705 = por %p703, %p704
      %p706 = scmp.ne.s32.totalorder %s694, %s695
      %p707 = scmp.eq.s32.totalorder %s124, 1
      %p708 = por %p706, %p707
      %p710 = scmp.ne.s32.totalorder %s695, %s709
      %p711 = scmp.eq.s32.totalorder %s124, 0
      %p712 = por %p710, %p711
      %s714 = sadd.s32 %s713, 1
      %p717 = scmp.eq.s32.totalorder %s118, 1
      %p718 = scmp.ne.s32.totalorder %s713, %s715
      %p719 = scmp.eq.s32.totalorder %s118, 0
      %p720 = por %p718, %p719
      %p721 = scmp.ne.s32.totalorder %s713, %s715
      %p722 = scmp.eq.s32.totalorder %s123, 1
      %p723 = por %p721, %p722
      %p724 = scmp.ne.s32.totalorder %s715, %s716
      %p725 = scmp.eq.s32.totalorder %s123, 0
      %p726 = por %p724, %p725
      %p727 = scmp.ne.s32.totalorder %s715, %s716
      %p728 = scmp.eq.s32.totalorder %s124, 1
      %p729 = por %p727, %p728
      %p731 = scmp.ne.s32.totalorder %s716, %s730
      %p732 = scmp.eq.s32.totalorder %s124, 0
      %p733 = por %p731, %p732
      %s735 = sadd.s32 %s734, 1
      %p738 = scmp.eq.s32.totalorder %s118, 1
      %p739 = scmp.ne.s32.totalorder %s734, %s736
      %p740 = scmp.eq.s32.totalorder %s118, 0
      %p741 = por %p739, %p740
      %p742 = scmp.ne.s32.totalorder %s734, %s736
      %p743 = scmp.eq.s32.totalorder %s123, 1
      %p744 = por %p742, %p743
      %p745 = scmp.ne.s32.totalorder %s736, %s737
      %p746 = scmp.eq.s32.totalorder %s123, 0
      %p747 = por %p745, %p746
      %p748 = scmp.ne.s32.totalorder %s736, %s737
      %p749 = scmp.eq.s32.totalorder %s124, 1
      %p750 = por %p748, %p749
      %p752 = scmp.ne.s32.totalorder %s737, %s751
      %p753 = scmp.eq.s32.totalorder %s124, 0
      %p754 = por %p752, %p753
      %s756 = sadd.s32 %s755, 1
      %p759 = scmp.eq.s32.totalorder %s118, 1
      %p760 = scmp.ne.s32.totalorder %s755, %s757
      %p761 = scmp.eq.s32.totalorder %s118, 0
      %p762 = por %p760, %p761
      %p763 = scmp.ne.s32.totalorder %s755, %s757
      %p764 = scmp.eq.s32.totalorder %s123, 1
      %p765 = por %p763, %p764
      %p766 = scmp.ne.s32.totalorder %s757, %s758
      %p767 = scmp.eq.s32.totalorder %s123, 0
      %p768 = por %p766, %p767
      %p769 = scmp.ne.s32.totalorder %s757, %s758
      %p770 = scmp.eq.s32.totalorder %s124, 1
      %p771 = por %p769, %p770
      %p773 = scmp.ne.s32.totalorder %s758, %s772
      %p774 = scmp.eq.s32.totalorder %s124, 0
      %p775 = por %p773, %p774
      %s777 = sadd.s32 %s776, 1
      %p780 = scmp.eq.s32.totalorder %s118, 1
      %p781 = scmp.ne.s32.totalorder %s776, %s778
      %p782 = scmp.eq.s32.totalorder %s118, 0
      %p783 = por %p781, %p782
      %p784 = scmp.ne.s32.totalorder %s776, %s778
      %p785 = scmp.eq.s32.totalorder %s123, 1
      %p786 = por %p784, %p785
      %p787 = scmp.ne.s32.totalorder %s778, %s779
      %p788 = scmp.eq.s32.totalorder %s123, 0
      %p789 = por %p787, %p788
      %p790 = scmp.ne.s32.totalorder %s778, %s779
      %p791 = scmp.eq.s32.totalorder %s124, 1
      %p792 = por %p790, %p791
      %p794 = scmp.ne.s32.totalorder %s779, %s793
      %p795 = scmp.eq.s32.totalorder %s124, 0
      %p796 = por %p794, %p795
      %s798 = sadd.s32 %s797, 1
      %p801 = scmp.eq.s32.totalorder %s118, 1
      %p802 = scmp.ne.s32.totalorder %s797, %s799
      %p803 = scmp.eq.s32.totalorder %s118, 0
      %p804 = por %p802, %p803
      %p805 = scmp.ne.s32.totalorder %s797, %s799
      %p806 = scmp.eq.s32.totalorder %s123, 1
      %p807 = por %p805, %p806
      %p808 = scmp.ne.s32.totalorder %s799, %s800
      %p809 = scmp.eq.s32.totalorder %s123, 0
      %p810 = por %p808, %p809
      %p811 = scmp.ne.s32.totalorder %s799, %s800
      %p812 = scmp.eq.s32.totalorder %s124, 1
      %p813 = por %p811, %p812
      %p815 = scmp.ne.s32.totalorder %s800, %s814
      %p816 = scmp.eq.s32.totalorder %s124, 0
      %p817 = por %p815, %p816
      %s819 = sadd.s32 %s818, 1
      %p822 = scmp.eq.s32.totalorder %s118, 1
      %p823 = scmp.ne.s32.totalorder %s818, %s820
      %p824 = scmp.eq.s32.totalorder %s118, 0
      %p825 = por %p823, %p824
      %p826 = scmp.ne.s32.totalorder %s818, %s820
      %p827 = scmp.eq.s32.totalorder %s123, 1
      %p828 = por %p826, %p827
      %p829 = scmp.ne.s32.totalorder %s820, %s821
      %p830 = scmp.eq.s32.totalorder %s123, 0
      %p831 = por %p829, %p830
      %p832 = scmp.ne.s32.totalorder %s820, %s821
      %p833 = scmp.eq.s32.totalorder %s124, 1
      %p834 = por %p832, %p833
      %p836 = scmp.ne.s32.totalorder %s821, %s835
      %p837 = scmp.eq.s32.totalorder %s124, 0
      %p838 = por %p836, %p837
      %s840 = sadd.s32 %s839, 1
      %p843 = scmp.eq.s32.totalorder %s118, 1
      %p844 = scmp.ne.s32.totalorder %s839, %s841
      %p845 = scmp.eq.s32.totalorder %s118, 0
      %p846 = por %p844, %p845
      %p847 = scmp.ne.s32.totalorder %s839, %s841
      %p848 = scmp.eq.s32.totalorder %s123, 1
      %p849 = por %p847, %p848
      %p850 = scmp.ne.s32.totalorder %s841, %s842
      %p851 = scmp.eq.s32.totalorder %s123, 0
      %p852 = por %p850, %p851
      %p853 = scmp.ne.s32.totalorder %s841, %s842
      %p854 = scmp.eq.s32.totalorder %s124, 1
      %p855 = por %p853, %p854
      %p857 = scmp.ne.s32.totalorder %s842, %s856
      %p858 = scmp.eq.s32.totalorder %s124, 0
      %p859 = por %p857, %p858
      %s861 = sadd.s32 %s860, 1
      %p864 = scmp.eq.s32.totalorder %s118, 1
      %p865 = scmp.ne.s32.totalorder %s860, %s862
      %p866 = scmp.eq.s32.totalorder %s118, 0
      %p867 = por %p865, %p866
      %p868 = scmp.ne.s32.totalorder %s860, %s862
      %p869 = scmp.eq.s32.totalorder %s123, 1
      %p870 = por %p868, %p869
      %p871 = scmp.ne.s32.totalorder %s862, %s863
      %p872 = scmp.eq.s32.totalorder %s123, 0
      %p873 = por %p871, %p872
      %p874 = scmp.ne.s32.totalorder %s862, %s863
      %p875 = scmp.eq.s32.totalorder %s124, 1
      %p876 = por %p874, %p875
      %p878 = scmp.ne.s32.totalorder %s863, %s877
      %p879 = scmp.eq.s32.totalorder %s124, 0
      %p880 = por %p878, %p879
      %s882 = sadd.s32 %s881, 1
      %p885 = scmp.eq.s32.totalorder %s118, 1
      %p886 = scmp.ne.s32.totalorder %s881, %s883
      %p887 = scmp.eq.s32.totalorder %s118, 0
      %p888 = por %p886, %p887
      %p889 = scmp.ne.s32.totalorder %s881, %s883
      %p890 = scmp.eq.s32.totalorder %s123, 1
      %p891 = por %p889, %p890
      %p892 = scmp.ne.s32.totalorder %s883, %s884
      %p893 = scmp.eq.s32.totalorder %s123, 0
      %p894 = por %p892, %p893
      %p895 = scmp.ne.s32.totalorder %s883, %s884
      %p896 = scmp.eq.s32.totalorder %s124, 1
      %p897 = por %p895, %p896
      %p899 = scmp.ne.s32.totalorder %s884, %s898
      %p900 = scmp.eq.s32.totalorder %s124, 0
      %p901 = por %p899, %p900
      %s903 = sadd.s32 %s902, 1
      %p906 = scmp.eq.s32.totalorder %s118, 1
      %p907 = scmp.ne.s32.totalorder %s902, %s904
      %p908 = scmp.eq.s32.totalorder %s118, 0
      %p909 = por %p907, %p908
      %p910 = scmp.ne.s32.totalorder %s902, %s904
      %p911 = scmp.eq.s32.totalorder %s123, 1
      %p912 = por %p910, %p911
      %p913 = scmp.ne.s32.totalorder %s904, %s905
      %p914 = scmp.eq.s32.totalorder %s123, 0
      %p915 = por %p913, %p914
      %p916 = scmp.ne.s32.totalorder %s904, %s905
      %p917 = scmp.eq.s32.totalorder %s124, 1
      %p918 = por %p916, %p917
      %p920 = scmp.ne.s32.totalorder %s905, %s919
      %p921 = scmp.eq.s32.totalorder %s124, 0
      %p922 = por %p920, %p921
      %s924 = sadd.s32 %s923, 1
      %p927 = scmp.eq.s32.totalorder %s118, 1
      %p928 = scmp.ne.s32.totalorder %s923, %s925
      %p929 = scmp.eq.s32.totalorder %s118, 0
      %p930 = por %p928, %p929
      %p931 = scmp.ne.s32.totalorder %s923, %s925
      %p932 = scmp.eq.s32.totalorder %s123, 1
      %p933 = por %p931, %p932
      %p934 = scmp.ne.s32.totalorder %s925, %s926
      %p935 = scmp.eq.s32.totalorder %s123, 0
      %p936 = por %p934, %p935
      %p937 = scmp.ne.s32.totalorder %s925, %s926
      %p938 = scmp.eq.s32.totalorder %s124, 1
      %p939 = por %p937, %p938
      %p941 = scmp.ne.s32.totalorder %s926, %s940
      %p942 = scmp.eq.s32.totalorder %s124, 0
      %p943 = por %p941, %p942
      %s945 = sadd.s32 %s944, 1
      %p948 = scmp.eq.s32.totalorder %s118, 1
      %p949 = scmp.ne.s32.totalorder %s944, %s946
      %p950 = scmp.eq.s32.totalorder %s118, 0
      %p951 = por %p949, %p950
      %p952 = scmp.ne.s32.totalorder %s944, %s946
      %p953 = scmp.eq.s32.totalorder %s123, 1
      %p954 = por %p952, %p953
      %p955 = scmp.ne.s32.totalorder %s946, %s947
      %p956 = scmp.eq.s32.totalorder %s123, 0
      %p957 = por %p955, %p956
      %p958 = scmp.ne.s32.totalorder %s946, %s947
      %p959 = scmp.eq.s32.totalorder %s124, 1
      %p960 = por %p958, %p959
      %p962 = scmp.ne.s32.totalorder %s947, %s961
      %p963 = scmp.eq.s32.totalorder %s124, 0
      %p964 = por %p962, %p963
      %s966 = sadd.s32 %s965, 1
      %p969 = scmp.eq.s32.totalorder %s118, 1
      %p970 = scmp.ne.s32.totalorder %s965, %s967
      %p971 = scmp.eq.s32.totalorder %s118, 0
      %p972 = por %p970, %p971
      %p973 = scmp.ne.s32.totalorder %s965, %s967
      %p974 = scmp.eq.s32.totalorder %s123, 1
      %p975 = por %p973, %p974
      %p976 = scmp.ne.s32.totalorder %s967, %s968
      %p977 = scmp.eq.s32.totalorder %s123, 0
      %p978 = por %p976, %p977
      %p979 = scmp.ne.s32.totalorder %s967, %s968
      %p980 = scmp.eq.s32.totalorder %s124, 1
      %p981 = por %p979, %p980
      %p983 = scmp.ne.s32.totalorder %s968, %s982
      %p984 = scmp.eq.s32.totalorder %s124, 0
      %p985 = por %p983, %p984
      %s987 = sadd.s32 %s986, 1
      %p990 = scmp.eq.s32.totalorder %s118, 1
      %p991 = scmp.ne.s32.totalorder %s986, %s988
      %p992 = scmp.eq.s32.totalorder %s118, 0
      %p993 = por %p991, %p992
      %p994 = scmp.ne.s32.totalorder %s986, %s988
      %p995 = scmp.eq.s32.totalorder %s123, 1
      %p996 = por %p994, %p995
      %p997 = scmp.ne.s32.totalorder %s988, %s989
      %p998 = scmp.eq.s32.totalorder %s123, 0
      %p999 = por %p997, %p998
      %p1000 = scmp.ne.s32.totalorder %s988, %s989
      %p1001 = scmp.eq.s32.totalorder %s124, 1
      %p1002 = por %p1000, %p1001
      %p1004 = scmp.ne.s32.totalorder %s989, %s1003
      %p1005 = scmp.eq.s32.totalorder %s124, 0
      %p1006 = por %p1004, %p1005
      %s1008 = sadd.s32 %s1007, 1
      %p1011 = scmp.eq.s32.totalorder %s118, 1
      %p1012 = scmp.ne.s32.totalorder %s1007, %s1009
      %p1013 = scmp.eq.s32.totalorder %s118, 0
      %p1014 = por %p1012, %p1013
      %p1015 = scmp.ne.s32.totalorder %s1007, %s1009
      %p1016 = scmp.eq.s32.totalorder %s123, 1
      %p1017 = por %p1015, %p1016
      %p1018 = scmp.ne.s32.totalorder %s1009, %s1010
      %p1019 = scmp.eq.s32.totalorder %s123, 0
      %p1020 = por %p1018, %p1019
      %p1021 = scmp.ne.s32.totalorder %s1009, %s1010
      %p1022 = scmp.eq.s32.totalorder %s124, 1
      %p1023 = por %p1021, %p1022
      %p1025 = scmp.ne.s32.totalorder %s1010, %s1024
      %p1026 = scmp.eq.s32.totalorder %s124, 0
      %p1027 = por %p1025, %p1026
      %s1029 = sadd.s32 %s1028, 1
      %p1032 = scmp.eq.s32.totalorder %s118, 1
      %p1033 = scmp.ne.s32.totalorder %s1028, %s1030
      %p1034 = scmp.eq.s32.totalorder %s118, 0
      %p1035 = por %p1033, %p1034
      %p1036 = scmp.ne.s32.totalorder %s1028, %s1030
      %p1037 = scmp.eq.s32.totalorder %s123, 1
      %p1038 = por %p1036, %p1037
      %p1039 = scmp.ne.s32.totalorder %s1030, %s1031
      %p1040 = scmp.eq.s32.totalorder %s123, 0
      %p1041 = por %p1039, %p1040
      %p1042 = scmp.ne.s32.totalorder %s1030, %s1031
      %p1043 = scmp.eq.s32.totalorder %s124, 1
      %p1044 = por %p1042, %p1043
      %p1046 = scmp.ne.s32.totalorder %s1031, %s1045
      %p1047 = scmp.eq.s32.totalorder %s124, 0
      %p1048 = por %p1046, %p1047
      %s1050 = sadd.s32 %s1049, 1
      %p1053 = scmp.eq.s32.totalorder %s118, 1
      %p1054 = scmp.ne.s32.totalorder %s1049, %s1051
      %p1055 = scmp.eq.s32.totalorder %s118, 0
      %p1056 = por %p1054, %p1055
      %p1057 = scmp.ne.s32.totalorder %s1049, %s1051
      %p1058 = scmp.eq.s32.totalorder %s123, 1
      %p1059 = por %p1057, %p1058
      %p1060 = scmp.ne.s32.totalorder %s1051, %s1052
      %p1061 = scmp.eq.s32.totalorder %s123, 0
      %p1062 = por %p1060, %p1061
      %p1063 = scmp.ne.s32.totalorder %s1051, %s1052
      %p1064 = scmp.eq.s32.totalorder %s124, 1
      %p1065 = por %p1063, %p1064
      %p1067 = scmp.ne.s32.totalorder %s1052, %s1066
      %p1068 = scmp.eq.s32.totalorder %s124, 0
      %p1069 = por %p1067, %p1068
      %s1071 = sadd.s32 %s1070, 1
      %p1074 = scmp.eq.s32.totalorder %s118, 1
      %p1075 = scmp.ne.s32.totalorder %s1070, %s1072
      %p1076 = scmp.eq.s32.totalorder %s118, 0
      %p1077 = por %p1075, %p1076
      %p1078 = scmp.ne.s32.totalorder %s1070, %s1072
      %p1079 = scmp.eq.s32.totalorder %s123, 1
      %p1080 = por %p1078, %p1079
      %p1081 = scmp.ne.s32.totalorder %s1072, %s1073
      %p1082 = scmp.eq.s32.totalorder %s123, 0
      %p1083 = por %p1081, %p1082
      %p1084 = scmp.ne.s32.totalorder %s1072, %s1073
      %p1085 = scmp.eq.s32.totalorder %s124, 1
      %p1086 = por %p1084, %p1085
      %p1088 = scmp.ne.s32.totalorder %s1073, %s1087
      %p1089 = scmp.eq.s32.totalorder %s124, 0
      %p1090 = por %p1088, %p1089
      %s1092 = sadd.s32 %s1091, 1
      %p1095 = scmp.eq.s32.totalorder %s118, 1
      %p1096 = scmp.ne.s32.totalorder %s1091, %s1093
      %p1097 = scmp.eq.s32.totalorder %s118, 0
      %p1098 = por %p1096, %p1097
      %p1099 = scmp.ne.s32.totalorder %s1091, %s1093
      %p1100 = scmp.eq.s32.totalorder %s123, 1
      %p1101 = por %p1099, %p1100
      %p1102 = scmp.ne.s32.totalorder %s1093, %s1094
      %p1103 = scmp.eq.s32.totalorder %s123, 0
      %p1104 = por %p1102, %p1103
      %p1105 = scmp.ne.s32.totalorder %s1093, %s1094
      %p1106 = scmp.eq.s32.totalorder %s124, 1
      %p1107 = por %p1105, %p1106
      %p1109 = scmp.ne.s32.totalorder %s1094, %s1108
      %p1110 = scmp.eq.s32.totalorder %s124, 0
      %p1111 = por %p1109, %p1110
      %s1113 = sadd.s32 %s1112, 1
      %p1116 = scmp.eq.s32.totalorder %s118, 1
      %p1117 = scmp.ne.s32.totalorder %s1112, %s1114
      %p1118 = scmp.eq.s32.totalorder %s118, 0
      %p1119 = por %p1117, %p1118
      %p1120 = scmp.ne.s32.totalorder %s1112, %s1114
      %p1121 = scmp.eq.s32.totalorder %s123, 1
      %p1122 = por %p1120, %p1121
      %p1123 = scmp.ne.s32.totalorder %s1114, %s1115
      %p1124 = scmp.eq.s32.totalorder %s123, 0
      %p1125 = por %p1123, %p1124
      %p1126 = scmp.ne.s32.totalorder %s1114, %s1115
      %p1127 = scmp.eq.s32.totalorder %s124, 1
      %p1128 = por %p1126, %p1127
      %p1130 = scmp.ne.s32.totalorder %s1115, %s1129
      %p1131 = scmp.eq.s32.totalorder %s124, 0
      %p1132 = por %p1130, %p1131
      %s1134 = sadd.s32 %s1133, 1
      %p1137 = scmp.eq.s32.totalorder %s118, 1
      %p1138 = scmp.ne.s32.totalorder %s1133, %s1135
      %p1139 = scmp.eq.s32.totalorder %s118, 0
      %p1140 = por %p1138, %p1139
      %p1141 = scmp.ne.s32.totalorder %s1133, %s1135
      %p1142 = scmp.eq.s32.totalorder %s123, 1
      %p1143 = por %p1141, %p1142
      %p1144 = scmp.ne.s32.totalorder %s1135, %s1136
      %p1145 = scmp.eq.s32.totalorder %s123, 0
      %p1146 = por %p1144, %p1145
      %p1147 = scmp.ne.s32.totalorder %s1135, %s1136
      %p1148 = scmp.eq.s32.totalorder %s124, 1
      %p1149 = por %p1147, %p1148
      %p1151 = scmp.ne.s32.totalorder %s1136, %s1150
      %p1152 = scmp.eq.s32.totalorder %s124, 0
      %p1153 = por %p1151, %p1152
      %s1155 = sadd.s32 %s1154, 1
      %p1158 = scmp.eq.s32.totalorder %s118, 1
      %p1159 = scmp.ne.s32.totalorder %s1154, %s1156
      %p1160 = scmp.eq.s32.totalorder %s118, 0
      %p1161 = por %p1159, %p1160
      %p1162 = scmp.ne.s32.totalorder %s1154, %s1156
      %p1163 = scmp.eq.s32.totalorder %s123, 1
      %p1164 = por %p1162, %p1163
      %p1165 = scmp.ne.s32.totalorder %s1156, %s1157
      %p1166 = scmp.eq.s32.totalorder %s123, 0
      %p1167 = por %p1165, %p1166
      %p1168 = scmp.ne.s32.totalorder %s1156, %s1157
      %p1169 = scmp.eq.s32.totalorder %s124, 1
      %p1170 = por %p1168, %p1169
      %p1172 = scmp.ne.s32.totalorder %s1157, %s1171
      %p1173 = scmp.eq.s32.totalorder %s124, 0
      %p1174 = por %p1172, %p1173
      %s1176 = sadd.s32 %s1175, 1
      %p1179 = scmp.eq.s32.totalorder %s118, 1
      %p1180 = scmp.ne.s32.totalorder %s1175, %s1177
      %p1181 = scmp.eq.s32.totalorder %s118, 0
      %p1182 = por %p1180, %p1181
      %p1183 = scmp.ne.s32.totalorder %s1175, %s1177
      %p1184 = scmp.eq.s32.totalorder %s123, 1
      %p1185 = por %p1183, %p1184
      %p1186 = scmp.ne.s32.totalorder %s1177, %s1178
      %p1187 = scmp.eq.s32.totalorder %s123, 0
      %p1188 = por %p1186, %p1187
      %p1189 = scmp.ne.s32.totalorder %s1177, %s1178
      %p1190 = scmp.eq.s32.totalorder %s124, 1
      %p1191 = por %p1189, %p1190
      %p1193 = scmp.ne.s32.totalorder %s1178, %s1192
      %p1194 = scmp.eq.s32.totalorder %s124, 0
      %p1195 = por %p1193, %p1194
      %s1197 = sadd.s32 %s1196, 1
      %p1200 = scmp.eq.s32.totalorder %s118, 1
      %p1201 = scmp.ne.s32.totalorder %s1196, %s1198
      %p1202 = scmp.eq.s32.totalorder %s118, 0
      %p1203 = por %p1201, %p1202
      %p1204 = scmp.ne.s32.totalorder %s1196, %s1198
      %p1205 = scmp.eq.s32.totalorder %s123, 1
      %p1206 = por %p1204, %p1205
      %p1207 = scmp.ne.s32.totalorder %s1198, %s1199
      %p1208 = scmp.eq.s32.totalorder %s123, 0
      %p1209 = por %p1207, %p1208
      %p1210 = scmp.ne.s32.totalorder %s1198, %s1199
      %p1211 = scmp.eq.s32.totalorder %s124, 1
      %p1212 = por %p1210, %p1211
      %p1214 = scmp.ne.s32.totalorder %s1199, %s1213
      %p1215 = scmp.eq.s32.totalorder %s124, 0
      %p1216 = por %p1214, %p1215
      %s1218 = sadd.s32 %s1217, 1
      %p1221 = scmp.eq.s32.totalorder %s118, 1
      %p1222 = scmp.ne.s32.totalorder %s1217, %s1219
      %p1223 = scmp.eq.s32.totalorder %s118, 0
      %p1224 = por %p1222, %p1223
      %p1225 = scmp.ne.s32.totalorder %s1217, %s1219
      %p1226 = scmp.eq.s32.totalorder %s123, 1
      %p1227 = por %p1225, %p1226
      %p1228 = scmp.ne.s32.totalorder %s1219, %s1220
      %p1229 = scmp.eq.s32.totalorder %s123, 0
      %p1230 = por %p1228, %p1229
      %p1231 = scmp.ne.s32.totalorder %s1219, %s1220
      %p1232 = scmp.eq.s32.totalorder %s124, 1
      %p1233 = por %p1231, %p1232
      %p1235 = scmp.ne.s32.totalorder %s1220, %s1234
      %p1236 = scmp.eq.s32.totalorder %s124, 0
      %p1237 = por %p1235, %p1236
      %s1239 = sadd.s32 %s1238, 1
      %p1242 = scmp.eq.s32.totalorder %s118, 1
      %p1243 = scmp.ne.s32.totalorder %s1238, %s1240
      %p1244 = scmp.eq.s32.totalorder %s118, 0
      %p1245 = por %p1243, %p1244
      %p1246 = scmp.ne.s32.totalorder %s1238, %s1240
      %p1247 = scmp.eq.s32.totalorder %s123, 1
      %p1248 = por %p1246, %p1247
      %p1249 = scmp.ne.s32.totalorder %s1240, %s1241
      %p1250 = scmp.eq.s32.totalorder %s123, 0
      %p1251 = por %p1249, %p1250
      %p1252 = scmp.ne.s32.totalorder %s1240, %s1241
      %p1253 = scmp.eq.s32.totalorder %s124, 1
      %p1254 = por %p1252, %p1253
      %p1256 = scmp.ne.s32.totalorder %s1241, %s1255
      %p1257 = scmp.eq.s32.totalorder %s124, 0
      %p1258 = por %p1256, %p1257
      %s1259 = ssub.s32 %s118, %s125
      %p1260 = scmp.eq.s32.totalorder %s1259, 0
      %s1262 = sadd.s32 %s1261, 1
      %s1263 = scalar_select %p1260, %s1261, %s1262
      %p1266 = pneg %p1260
      %p1267 = scmp.eq.s32.totalorder %s118, 1
      %p1268 = por %p1266, %p1267
      %p1269 = scmp.ne.s32.totalorder %s1261, %s1264
      %p1270 = scmp.eq.s32.totalorder %s118, 0
      %p1271 = por %p1269, %p1270
      %p1272 = scmp.ne.s32.totalorder %s1261, %s1264
      %p1273 = scmp.eq.s32.totalorder %s123, 1
      %p1274 = por %p1272, %p1273
      %p1275 = scmp.ne.s32.totalorder %s1264, %s1265
      %p1276 = scmp.eq.s32.totalorder %s123, 0
      %p1277 = por %p1275, %p1276
      %p1278 = scmp.ne.s32.totalorder %s1264, %s1265
      %p1279 = scmp.eq.s32.totalorder %s124, 1
      %p1280 = por %p1278, %p1279
      %p1282 = scmp.ne.s32.totalorder %s1265, %s1281
      %p1283 = scmp.eq.s32.totalorder %s124, 0
      %p1284 = por %p1282, %p1283
      %p1285 = scmp.le.s32.totalorder 1, %s118
      %p1286 = scmp.lt.s32.totalorder %s118, 3
      %p1287 = pnand %p1285, %p1286
      %p1288 = pneg %p1287
      // Predicated region
      $region9: #{stark_forward.1} parent=5 // pred_check
        _
      $region10: #{stark_forward.1} parent=5 // pred_check_branch
        %1290 = sbr.rel (%p1287) target = $region12
      $region11: #{stark_forward.1} parent=5 // pred_region
        %s1291 = ssub.s32 %s118, 1
        // Predicated region
        $region13: #{stark_forward.1} parent=11 // pred_check
          %p1292 = pneg %p243
        $region14: #{stark_forward.1} parent=11 // pred_check_branch
          %1294 = sbr.rel (%p1292) target = $region16
        $region15: #{stark_forward.1} parent=11 // pred_region
          _
        $region16: #{stark_forward.1} parent=11 // pred_fallthru
          _
        // Predicated region
        $region17: #{stark_forward.1} parent=11 // pred_check
          %p1295 = pneg %p264
        $region18: #{stark_forward.1} parent=11 // pred_check_branch
          %1297 = sbr.rel (%p1295) target = $region20
        $region19: #{stark_forward.1} parent=11 // pred_region
          _
        $region20: #{stark_forward.1} parent=11 // pred_fallthru
          _
        // Predicated region
        $region21: #{stark_forward.1} parent=11 // pred_check
          %p1298 = pneg %p285
        $region22: #{stark_forward.1} parent=11 // pred_check_branch
          %1300 = sbr.rel (%p1298) target = $region24
        $region23: #{stark_forward.1} parent=11 // pred_region
          _
        $region24: #{stark_forward.1} parent=11 // pred_fallthru
          _
        // Predicated region
        $region25: #{stark_forward.1} parent=11 // pred_check
          %p1301 = pneg %p306
        $region26: #{stark_forward.1} parent=11 // pred_check_branch
          %1303 = sbr.rel (%p1301) target = $region28
        $region27: #{stark_forward.1} parent=11 // pred_region
          _
        $region28: #{stark_forward.1} parent=11 // pred_fallthru
          _
        // Predicated region
        $region29: #{stark_forward.1} parent=11 // pred_check
          %p1304 = pneg %p327
        $region30: #{stark_forward.1} parent=11 // pred_check_branch
          %1306 = sbr.rel (%p1304) target = $region32
        $region31: #{stark_forward.1} parent=11 // pred_region
          _
        $region32: #{stark_forward.1} parent=11 // pred_fallthru
          _
        // Predicated region
        $region33: #{stark_forward.1} parent=11 // pred_check
          %p1307 = pneg %p348
        $region34: #{stark_forward.1} parent=11 // pred_check_branch
          %1309 = sbr.rel (%p1307) target = $region36
        $region35: #{stark_forward.1} parent=11 // pred_region
          _
        $region36: #{stark_forward.1} parent=11 // pred_fallthru
          _
        // Predicated region
        $region37: #{stark_forward.1} parent=11 // pred_check
          %p1310 = pneg %p369
        $region38: #{stark_forward.1} parent=11 // pred_check_branch
          %1312 = sbr.rel (%p1310) target = $region40
        $region39: #{stark_forward.1} parent=11 // pred_region
          _
        $region40: #{stark_forward.1} parent=11 // pred_fallthru
          _
        // Predicated region
        $region41: #{stark_forward.1} parent=11 // pred_check
          %p1313 = pneg %p390
        $region42: #{stark_forward.1} parent=11 // pred_check_branch
          %1315 = sbr.rel (%p1313) target = $region44
        $region43: #{stark_forward.1} parent=11 // pred_region
          _
        $region44: #{stark_forward.1} parent=11 // pred_fallthru
          _
        // Predicated region
        $region45: #{stark_forward.1} parent=11 // pred_check
          %p1316 = pneg %p411
        $region46: #{stark_forward.1} parent=11 // pred_check_branch
          %1318 = sbr.rel (%p1316) target = $region48
        $region47: #{stark_forward.1} parent=11 // pred_region
          _
        $region48: #{stark_forward.1} parent=11 // pred_fallthru
          _
        // Predicated region
        $region49: #{stark_forward.1} parent=11 // pred_check
          %p1319 = pneg %p432
        $region50: #{stark_forward.1} parent=11 // pred_check_branch
          %1321 = sbr.rel (%p1319) target = $region52
        $region51: #{stark_forward.1} parent=11 // pred_region
          _
        $region52: #{stark_forward.1} parent=11 // pred_fallthru
          _
        // Predicated region
        $region53: #{stark_forward.1} parent=11 // pred_check
          %p1322 = pneg %p453
        $region54: #{stark_forward.1} parent=11 // pred_check_branch
          %1324 = sbr.rel (%p1322) target = $region56
        $region55: #{stark_forward.1} parent=11 // pred_region
          _
        $region56: #{stark_forward.1} parent=11 // pred_fallthru
          _
        // Predicated region
        $region57: #{stark_forward.1} parent=11 // pred_check
          %p1325 = pneg %p474
        $region58: #{stark_forward.1} parent=11 // pred_check_branch
          %1327 = sbr.rel (%p1325) target = $region60
        $region59: #{stark_forward.1} parent=11 // pred_region
          _
        $region60: #{stark_forward.1} parent=11 // pred_fallthru
          _
        // Predicated region
        $region61: #{stark_forward.1} parent=11 // pred_check
          %p1328 = pneg %p495
        $region62: #{stark_forward.1} parent=11 // pred_check_branch
          %1330 = sbr.rel (%p1328) target = $region64
        $region63: #{stark_forward.1} parent=11 // pred_region
          _
        $region64: #{stark_forward.1} parent=11 // pred_fallthru
          _
        // Predicated region
        $region65: #{stark_forward.1} parent=11 // pred_check
          %p1331 = pneg %p516
        $region66: #{stark_forward.1} parent=11 // pred_check_branch
          %1333 = sbr.rel (%p1331) target = $region68
        $region67: #{stark_forward.1} parent=11 // pred_region
          _
        $region68: #{stark_forward.1} parent=11 // pred_fallthru
          _
        // Predicated region
        $region69: #{stark_forward.1} parent=11 // pred_check
          %p1334 = pneg %p537
        $region70: #{stark_forward.1} parent=11 // pred_check_branch
          %1336 = sbr.rel (%p1334) target = $region72
        $region71: #{stark_forward.1} parent=11 // pred_region
          _
        $region72: #{stark_forward.1} parent=11 // pred_fallthru
          _
        // Predicated region
        $region73: #{stark_forward.1} parent=11 // pred_check
          %p1337 = pneg %p558
        $region74: #{stark_forward.1} parent=11 // pred_check_branch
          %1339 = sbr.rel (%p1337) target = $region76
        $region75: #{stark_forward.1} parent=11 // pred_region
          _
        $region76: #{stark_forward.1} parent=11 // pred_fallthru
          _
        // Predicated region
        $region77: #{stark_forward.1} parent=11 // pred_check
          %p1340 = pneg %p579
        $region78: #{stark_forward.1} parent=11 // pred_check_branch
          %1342 = sbr.rel (%p1340) target = $region80
        $region79: #{stark_forward.1} parent=11 // pred_region
          _
        $region80: #{stark_forward.1} parent=11 // pred_fallthru
          _
        // Predicated region
        $region81: #{stark_forward.1} parent=11 // pred_check
          %p1343 = pneg %p600
        $region82: #{stark_forward.1} parent=11 // pred_check_branch
          %1345 = sbr.rel (%p1343) target = $region84
        $region83: #{stark_forward.1} parent=11 // pred_region
          _
        $region84: #{stark_forward.1} parent=11 // pred_fallthru
          _
        // Predicated region
        $region85: #{stark_forward.1} parent=11 // pred_check
          %p1346 = pneg %p621
        $region86: #{stark_forward.1} parent=11 // pred_check_branch
          %1348 = sbr.rel (%p1346) target = $region88
        $region87: #{stark_forward.1} parent=11 // pred_region
          _
        $region88: #{stark_forward.1} parent=11 // pred_fallthru
          _
        // Predicated region
        $region89: #{stark_forward.1} parent=11 // pred_check
          %p1349 = pneg %p642
        $region90: #{stark_forward.1} parent=11 // pred_check_branch
          %1351 = sbr.rel (%p1349) target = $region92
        $region91: #{stark_forward.1} parent=11 // pred_region
          _
        $region92: #{stark_forward.1} parent=11 // pred_fallthru
          _
        // Predicated region
        $region93: #{stark_forward.1} parent=11 // pred_check
          %p1352 = pneg %p663
        $region94: #{stark_forward.1} parent=11 // pred_check_branch
          %1354 = sbr.rel (%p1352) target = $region96
        $region95: #{stark_forward.1} parent=11 // pred_region
          _
        $region96: #{stark_forward.1} parent=11 // pred_fallthru
          _
        // Predicated region
        $region97: #{stark_forward.1} parent=11 // pred_check
          %p1355 = pneg %p684
        $region98: #{stark_forward.1} parent=11 // pred_check_branch
          %1357 = sbr.rel (%p1355) target = $region100
        $region99: #{stark_forward.1} parent=11 // pred_region
          _
        $region100: #{stark_forward.1} parent=11 // pred_fallthru
          _
        // Predicated region
        $region101: #{stark_forward.1} parent=11 // pred_check
          %p1358 = pneg %p705
        $region102: #{stark_forward.1} parent=11 // pred_check_branch
          %1360 = sbr.rel (%p1358) target = $region104
        $region103: #{stark_forward.1} parent=11 // pred_region
          _
        $region104: #{stark_forward.1} parent=11 // pred_fallthru
          _
        // Predicated region
        $region105: #{stark_forward.1} parent=11 // pred_check
          %p1361 = pneg %p726
        $region106: #{stark_forward.1} parent=11 // pred_check_branch
          %1363 = sbr.rel (%p1361) target = $region108
        $region107: #{stark_forward.1} parent=11 // pred_region
          _
        $region108: #{stark_forward.1} parent=11 // pred_fallthru
          _
        // Predicated region
        $region109: #{stark_forward.1} parent=11 // pred_check
          %p1364 = pneg %p747
        $region110: #{stark_forward.1} parent=11 // pred_check_branch
          %1366 = sbr.rel (%p1364) target = $region112
        $region111: #{stark_forward.1} parent=11 // pred_region
          _
        $region112: #{stark_forward.1} parent=11 // pred_fallthru
          _
        // Predicated region
        $region113: #{stark_forward.1} parent=11 // pred_check
          %p1367 = pneg %p768
        $region114: #{stark_forward.1} parent=11 // pred_check_branch
          %1369 = sbr.rel (%p1367) target = $region116
        $region115: #{stark_forward.1} parent=11 // pred_region
          _
        $region116: #{stark_forward.1} parent=11 // pred_fallthru
          _
        // Predicated region
        $region117: #{stark_forward.1} parent=11 // pred_check
          %p1370 = pneg %p789
        $region118: #{stark_forward.1} parent=11 // pred_check_branch
          %1372 = sbr.rel (%p1370) target = $region120
        $region119: #{stark_forward.1} parent=11 // pred_region
          _
        $region120: #{stark_forward.1} parent=11 // pred_fallthru
          _
        // Predicated region
        $region121: #{stark_forward.1} parent=11 // pred_check
          %p1373 = pneg %p810
        $region122: #{stark_forward.1} parent=11 // pred_check_branch
          %1375 = sbr.rel (%p1373) target = $region124
        $region123: #{stark_forward.1} parent=11 // pred_region
          _
        $region124: #{stark_forward.1} parent=11 // pred_fallthru
          _
        // Predicated region
        $region125: #{stark_forward.1} parent=11 // pred_check
          %p1376 = pneg %p831
        $region126: #{stark_forward.1} parent=11 // pred_check_branch
          %1378 = sbr.rel (%p1376) target = $region128
        $region127: #{stark_forward.1} parent=11 // pred_region
          _
        $region128: #{stark_forward.1} parent=11 // pred_fallthru
          _
        // Predicated region
        $region129: #{stark_forward.1} parent=11 // pred_check
          %p1379 = pneg %p852
        $region130: #{stark_forward.1} parent=11 // pred_check_branch
          %1381 = sbr.rel (%p1379) target = $region132
        $region131: #{stark_forward.1} parent=11 // pred_region
          _
        $region132: #{stark_forward.1} parent=11 // pred_fallthru
          _
        // Predicated region
        $region133: #{stark_forward.1} parent=11 // pred_check
          %p1382 = pneg %p873
        $region134: #{stark_forward.1} parent=11 // pred_check_branch
          %1384 = sbr.rel (%p1382) target = $region136
        $region135: #{stark_forward.1} parent=11 // pred_region
          _
        $region136: #{stark_forward.1} parent=11 // pred_fallthru
          _
        // Predicated region
        $region137: #{stark_forward.1} parent=11 // pred_check
          %p1385 = pneg %p894
        $region138: #{stark_forward.1} parent=11 // pred_check_branch
          %1387 = sbr.rel (%p1385) target = $region140
        $region139: #{stark_forward.1} parent=11 // pred_region
          %s1389 = ssub.s32 16, 16
          %1390 = vsyncadd [#allocation3], %s1389
          %s1392 = sshll.u32 [#allocation2], 4
          %s1393 = int_to_ptr.vmem [resolvable:$true] %s1392
          %1395 = dma.hbm_to_vmem [thread:$0]  %s71, 16, %s1393, [#allocation3]
        $region140: #{stark_forward.1} parent=11 // pred_fallthru
          _
        // Predicated region
        $region141: #{stark_forward.1} parent=11 // pred_check
          %p1396 = pneg %p915
        $region142: #{stark_forward.1} parent=11 // pred_check_branch
          %1398 = sbr.rel (%p1396) target = $region144
        $region143: #{stark_forward.1} parent=11 // pred_region
          %s1400 = ssub.s32 16, 16
          %1401 = vsyncadd [#allocation5], %s1400
          %s1403 = sshll.u32 [#allocation4], 4
          %s1404 = int_to_ptr.vmem [resolvable:$true] %s1403
          %1406 = dma.hbm_to_vmem [thread:$0]  %s73, 16, %s1404, [#allocation5]
        $region144: #{stark_forward.1} parent=11 // pred_fallthru
          _
        // Predicated region
        $region145: #{stark_forward.1} parent=11 // pred_check
          %p1407 = pneg %p936
        $region146: #{stark_forward.1} parent=11 // pred_check_branch
          %1409 = sbr.rel (%p1407) target = $region148
        $region147: #{stark_forward.1} parent=11 // pred_region
          %s1411 = ssub.s32 16, 16
          %1412 = vsyncadd [#allocation5], %s1411
          %s1414 = sshll.u32 [#allocation6], 4
          %s1415 = int_to_ptr.vmem [resolvable:$true] %s1414
          %1417 = dma.hbm_to_vmem [thread:$0]  %s75, 16, %s1415, [#allocation5]
        $region148: #{stark_forward.1} parent=11 // pred_fallthru
          _
        // Predicated region
        $region149: #{stark_forward.1} parent=11 // pred_check
          %p1418 = pneg %p957
        $region150: #{stark_forward.1} parent=11 // pred_check_branch
          %1420 = sbr.rel (%p1418) target = $region152
        $region151: #{stark_forward.1} parent=11 // pred_region
          _
        $region152: #{stark_forward.1} parent=11 // pred_fallthru
          _
        // Predicated region
        $region153: #{stark_forward.1} parent=11 // pred_check
          %p1421 = pneg %p978
        $region154: #{stark_forward.1} parent=11 // pred_check_branch
          %1423 = sbr.rel (%p1421) target = $region156
        $region155: #{stark_forward.1} parent=11 // pred_region
          %s1425 = ssub.s32 16, 16
          %1426 = vsyncadd [#allocation8], %s1425
          %s1428 = sshll.u32 [#allocation7], 4
          %s1429 = int_to_ptr.vmem [resolvable:$true] %s1428
          %1431 = dma.hbm_to_vmem [thread:$0]  %s79, 16, %s1429, [#allocation8]
        $region156: #{stark_forward.1} parent=11 // pred_fallthru
          _
        // Predicated region
        $region157: #{stark_forward.1} parent=11 // pred_check
          %p1432 = pneg %p999
        $region158: #{stark_forward.1} parent=11 // pred_check_branch
          %1434 = sbr.rel (%p1432) target = $region160
        $region159: #{stark_forward.1} parent=11 // pred_region
          _
        $region160: #{stark_forward.1} parent=11 // pred_fallthru
          _
        // Predicated region
        $region161: #{stark_forward.1} parent=11 // pred_check
          %p1435 = pneg %p1020
        $region162: #{stark_forward.1} parent=11 // pred_check_branch
          %1437 = sbr.rel (%p1435) target = $region164
        $region163: #{stark_forward.1} parent=11 // pred_region
          %s1439 = ssub.s32 16, 16
          %1440 = vsyncadd [#allocation8], %s1439
          %s1442 = sshll.u32 [#allocation9], 4
          %s1443 = int_to_ptr.vmem [resolvable:$true] %s1442
          %1445 = dma.hbm_to_vmem [thread:$0]  %s83, 16, %s1443, [#allocation8]
        $region164: #{stark_forward.1} parent=11 // pred_fallthru
          _
        // Predicated region
        $region165: #{stark_forward.1} parent=11 // pred_check
          %p1446 = pneg %p1041
        $region166: #{stark_forward.1} parent=11 // pred_check_branch
          %1448 = sbr.rel (%p1446) target = $region168
        $region167: #{stark_forward.1} parent=11 // pred_region
          %s1450 = ssub.s32 16, 16
          %1451 = vsyncadd [#allocation11], %s1450
          %s1453 = sshll.u32 [#allocation10], 4
          %s1454 = int_to_ptr.vmem [resolvable:$true] %s1453
          %1456 = dma.hbm_to_vmem [thread:$0]  %s85, 16, %s1454, [#allocation11]
        $region168: #{stark_forward.1} parent=11 // pred_fallthru
          _
        // Predicated region
        $region169: #{stark_forward.1} parent=11 // pred_check
          %p1457 = pneg %p1062
        $region170: #{stark_forward.1} parent=11 // pred_check_branch
          %1459 = sbr.rel (%p1457) target = $region172
        $region171: #{stark_forward.1} parent=11 // pred_region
          %s1461 = ssub.s32 16, 16
          %1462 = vsyncadd [#allocation11], %s1461
          %s1464 = sshll.u32 [#allocation12], 4
          %s1465 = int_to_ptr.vmem [resolvable:$true] %s1464
          %1467 = dma.hbm_to_vmem [thread:$0]  %s87, 16, %s1465, [#allocation11]
        $region172: #{stark_forward.1} parent=11 // pred_fallthru
          _
        // Predicated region
        $region173: #{stark_forward.1} parent=11 // pred_check
          %p1468 = pneg %p1083
        $region174: #{stark_forward.1} parent=11 // pred_check_branch
          %1470 = sbr.rel (%p1468) target = $region176
        $region175: #{stark_forward.1} parent=11 // pred_region
          %s1472 = ssub.s32 16, 16
          %1473 = vsyncadd [#allocation14], %s1472
          %s1475 = sshll.u32 [#allocation13], 4
          %s1476 = int_to_ptr.vmem [resolvable:$true] %s1475
          %1478 = dma.hbm_to_vmem [thread:$0]  %s89, 16, %s1476, [#allocation14]
        $region176: #{stark_forward.1} parent=11 // pred_fallthru
          _
        // Predicated region
        $region177: #{stark_forward.1} parent=11 // pred_check
          %p1479 = pneg %p1104
        $region178: #{stark_forward.1} parent=11 // pred_check_branch
          %1481 = sbr.rel (%p1479) target = $region180
        $region179: #{stark_forward.1} parent=11 // pred_region
          %s1483 = ssub.s32 16, 16
          %1484 = vsyncadd [#allocation14], %s1483
          %s1486 = sshll.u32 [#allocation15], 4
          %s1487 = int_to_ptr.vmem [resolvable:$true] %s1486
          %1489 = dma.hbm_to_vmem [thread:$0]  %s91, 16, %s1487, [#allocation14]
        $region180: #{stark_forward.1} parent=11 // pred_fallthru
          _
        // Predicated region
        $region181: #{stark_forward.1} parent=11 // pred_check
          %p1490 = pneg %p1125
        $region182: #{stark_forward.1} parent=11 // pred_check_branch
          %1492 = sbr.rel (%p1490) target = $region184
        $region183: #{stark_forward.1} parent=11 // pred_region
          _
        $region184: #{stark_forward.1} parent=11 // pred_fallthru
          _
        // Predicated region
        $region185: #{stark_forward.1} parent=11 // pred_check
          %p1493 = pneg %p1146
        $region186: #{stark_forward.1} parent=11 // pred_check_branch
          %1495 = sbr.rel (%p1493) target = $region188
        $region187: #{stark_forward.1} parent=11 // pred_region
          _
        $region188: #{stark_forward.1} parent=11 // pred_fallthru
          _
        // Predicated region
        $region189: #{stark_forward.1} parent=11 // pred_check
          %p1496 = pneg %p1167
        $region190: #{stark_forward.1} parent=11 // pred_check_branch
          %1498 = sbr.rel (%p1496) target = $region192
        $region191: #{stark_forward.1} parent=11 // pred_region
          _
        $region192: #{stark_forward.1} parent=11 // pred_fallthru
          _
        // Predicated region
        $region193: #{stark_forward.1} parent=11 // pred_check
          %p1499 = pneg %p1188
        $region194: #{stark_forward.1} parent=11 // pred_check_branch
          %1501 = sbr.rel (%p1499) target = $region196
        $region195: #{stark_forward.1} parent=11 // pred_region
          _
        $region196: #{stark_forward.1} parent=11 // pred_fallthru
          _
        // Predicated region
        $region197: #{stark_forward.1} parent=11 // pred_check
          %p1502 = pneg %p1209
        $region198: #{stark_forward.1} parent=11 // pred_check_branch
          %1504 = sbr.rel (%p1502) target = $region200
        $region199: #{stark_forward.1} parent=11 // pred_region
          _
        $region200: #{stark_forward.1} parent=11 // pred_fallthru
          _
        // Predicated region
        $region201: #{stark_forward.1} parent=11 // pred_check
          %p1505 = pneg %p1230
        $region202: #{stark_forward.1} parent=11 // pred_check_branch
          %1507 = sbr.rel (%p1505) target = $region204
        $region203: #{stark_forward.1} parent=11 // pred_region
          _
        $region204: #{stark_forward.1} parent=11 // pred_fallthru
          _
        // Predicated region
        $region205: #{stark_forward.1} parent=11 // pred_check
          %p1508 = pneg %p1251
        $region206: #{stark_forward.1} parent=11 // pred_check_branch
          %1510 = sbr.rel (%p1508) target = $region208
        $region207: #{stark_forward.1} parent=11 // pred_region
          _
        $region208: #{stark_forward.1} parent=11 // pred_fallthru
          _
      $region12: #{stark_forward.1} parent=5 // pred_fallthru
        _
      %p1511 = scmp.lt.s32.totalorder %s118, 2
      // Predicated region
      $region209: #{stark_forward.1} parent=5 // pred_check
        %p1512 = pneg %p1511
      $region210: #{stark_forward.1} parent=5 // pred_check_branch
        %1514 = sbr.rel (%p1512) target = $region212
      $region211: #{stark_forward.1} parent=5 // pred_region
        // Predicated region
        $region213: #{stark_forward.1} parent=211 // pred_check
          %p1515 = pneg %p138
        $region214: #{stark_forward.1} parent=211 // pred_check_branch
          %1517 = sbr.rel (%p1515) target = $region216
        $region215: #{stark_forward.1} parent=211 // pred_region
          %p1518 = scmp.lt.s32.totalorder %s118, 1
          %s1519 = scalar_select %p1518, %s118, 1
          %s1520 = smul.addr %s1519, 8
          %s1521 = smul.addr %s1520, 8
          %s1522 = scalar_lea.vmem %s1, %s1521
        $region216: #{stark_forward.1} parent=211 // pred_fallthru
          _
        // Predicated region
        $region217: #{stark_forward.1} parent=211 // pred_check
          %p1523 = pneg %p164
        $region218: #{stark_forward.1} parent=211 // pred_check_branch
          %1525 = sbr.rel (%p1523) target = $region220
        $region219: #{stark_forward.1} parent=211 // pred_region
          %p1526 = scmp.lt.s32.totalorder %s118, 1
          %s1527 = scalar_select %p1526, %s118, 1
          %s1528 = smul.addr %s1527, 2
          %s1529 = smul.addr %s1528, 8
          %s1530 = scalar_lea.vmem %s3, %s1529
        $region220: #{stark_forward.1} parent=211 // pred_fallthru
          _
        // Predicated region
        $region221: #{stark_forward.1} parent=211 // pred_check
          %p1531 = pneg %p190
        $region222: #{stark_forward.1} parent=211 // pred_check_branch
          %1533 = sbr.rel (%p1531) target = $region224
        $region223: #{stark_forward.1} parent=211 // pred_region
          %p1534 = scmp.lt.s32.totalorder %s118, 1
          %s1535 = scalar_select %p1534, %s118, 1
          %s1536 = smul.addr %s1535, 10
          %s1537 = smul.addr %s1536, 8
          %s1538 = scalar_lea.vmem %s5, %s1537
        $region224: #{stark_forward.1} parent=211 // pred_fallthru
          _
        // Predicated region
        $region225: #{stark_forward.1} parent=211 // pred_check
          %p1539 = pneg %p216
        $region226: #{stark_forward.1} parent=211 // pred_check_branch
          %1541 = sbr.rel (%p1539) target = $region228
        $region227: #{stark_forward.1} parent=211 // pred_region
          %p1542 = scmp.lt.s32.totalorder %s118, 1
          %s1543 = scalar_select %p1542, %s118, 1
          %s1544 = scalar_lea.vmem %s7, %s1543
        $region228: #{stark_forward.1} parent=211 // pred_fallthru
          _
      $region212: #{stark_forward.1} parent=5 // pred_fallthru
        _
      %p1545 = scmp.le.s32.totalorder 1, %s118
      %p1546 = scmp.lt.s32.totalorder %s118, 3
      %p1547 = pnand %p1545, %p1546
      %p1548 = pneg %p1547
      // Predicated region
      $region229: #{stark_forward.1} parent=5 // pred_check
        _
      $region230: #{stark_forward.1} parent=5 // pred_check_branch
        %1550 = sbr.rel (%p1547) target = $region232
      $region231: #{stark_forward.1} parent=5 // pred_region
        %s1551 = ssub.s32 %s118, 1
        // Predicated region
        $region233: #{stark_forward.1} parent=231 // pred_check
          %p1552 = pneg %p894
        $region234: #{stark_forward.1} parent=231 // pred_check_branch
          %1554 = sbr.rel (%p1552) target = $region236
        $region235: #{stark_forward.1} parent=231 // pred_region
          %1555 = dma.done [#allocation3], 16
        $region236: #{stark_forward.1} parent=231 // pred_fallthru
          _
        // Predicated region
        $region237: #{stark_forward.1} parent=231 // pred_check
          %p1556 = pneg %p915
        $region238: #{stark_forward.1} parent=231 // pred_check_branch
          %1558 = sbr.rel (%p1556) target = $region240
        $region239: #{stark_forward.1} parent=231 // pred_region
          %1559 = dma.done [#allocation5], 16
        $region240: #{stark_forward.1} parent=231 // pred_fallthru
          _
        // Predicated region
        $region241: #{stark_forward.1} parent=231 // pred_check
          %p1560 = pneg %p936
        $region242: #{stark_forward.1} parent=231 // pred_check_branch
          %1562 = sbr.rel (%p1560) target = $region244
        $region243: #{stark_forward.1} parent=231 // pred_region
          %1563 = dma.done [#allocation5], 16
        $region244: #{stark_forward.1} parent=231 // pred_fallthru
          _
        // Predicated region
        $region245: #{stark_forward.1} parent=231 // pred_check
          %p1564 = pneg %p978
        $region246: #{stark_forward.1} parent=231 // pred_check_branch
          %1566 = sbr.rel (%p1564) target = $region248
        $region247: #{stark_forward.1} parent=231 // pred_region
          %1567 = dma.done [#allocation8], 16
        $region248: #{stark_forward.1} parent=231 // pred_fallthru
          _
        // Predicated region
        $region249: #{stark_forward.1} parent=231 // pred_check
          %p1568 = pneg %p1020
        $region250: #{stark_forward.1} parent=231 // pred_check_branch
          %1570 = sbr.rel (%p1568) target = $region252
        $region251: #{stark_forward.1} parent=231 // pred_region
          %1571 = dma.done [#allocation8], 16
        $region252: #{stark_forward.1} parent=231 // pred_fallthru
          _
        // Predicated region
        $region253: #{stark_forward.1} parent=231 // pred_check
          %p1572 = pneg %p1041
        $region254: #{stark_forward.1} parent=231 // pred_check_branch
          %1574 = sbr.rel (%p1572) target = $region256
        $region255: #{stark_forward.1} parent=231 // pred_region
          %1575 = dma.done [#allocation11], 16
        $region256: #{stark_forward.1} parent=231 // pred_fallthru
          _
        // Predicated region
        $region257: #{stark_forward.1} parent=231 // pred_check
          %p1576 = pneg %p1062
        $region258: #{stark_forward.1} parent=231 // pred_check_branch
          %1578 = sbr.rel (%p1576) target = $region260
        $region259: #{stark_forward.1} parent=231 // pred_region
          %1579 = dma.done [#allocation11], 16
        $region260: #{stark_forward.1} parent=231 // pred_fallthru
          _
        // Predicated region
        $region261: #{stark_forward.1} parent=231 // pred_check
          %p1580 = pneg %p1083
        $region262: #{stark_forward.1} parent=231 // pred_check_branch
          %1582 = sbr.rel (%p1580) target = $region264
        $region263: #{stark_forward.1} parent=231 // pred_region
          %1583 = dma.done [#allocation14], 16
        $region264: #{stark_forward.1} parent=231 // pred_fallthru
          _
        // Predicated region
        $region265: #{stark_forward.1} parent=231 // pred_check
          %p1584 = pneg %p1104
        $region266: #{stark_forward.1} parent=231 // pred_check_branch
          %1586 = sbr.rel (%p1584) target = $region268
        $region267: #{stark_forward.1} parent=231 // pred_region
          %1587 = dma.done [#allocation14], 16
        $region268: #{stark_forward.1} parent=231 // pred_fallthru
          _
        %p1588 = scmp.lt.s32.totalorder %s123, 1
        %s1589 = scalar_select %p1588, %s123, 1
        %s1590 = smul.addr %s1589, 8
        %s1591 = smul.addr %s1590, 8
        %s1592 = scalar_lea.vmem %s1, %s1591
        %p1593 = pneg %p144
        %p1594 = pneg %p141
        %p1595 = scmp.lt.s32.totalorder %s123, 1
        %s1596 = scalar_select %p1595, %s123, 1
        %s1597 = smul.addr %s1596, 2
        %s1598 = smul.addr %s1597, 8
        %s1599 = scalar_lea.vmem %s3, %s1598
        %p1600 = pneg %p170
        %p1601 = pneg %p167
        %p1602 = scmp.lt.s32.totalorder %s123, 1
        %s1603 = scalar_select %p1602, %s123, 1
        %s1604 = smul.addr %s1603, 10
        %s1605 = smul.addr %s1604, 8
        %s1606 = scalar_lea.vmem %s5, %s1605
        %p1607 = pneg %p196
        %p1608 = pneg %p193
        %p1609 = scmp.lt.s32.totalorder %s123, 1
        %s1610 = scalar_select %p1609, %s123, 1
        %s1611 = scalar_lea.vmem %s7, %s1610
        %p1612 = pneg %p222
        %p1613 = pneg %p219
        %p1614 = pneg %p243
        %p1615 = pneg %p240
        %p1616 = pneg %p264
        %p1617 = pneg %p261
        %p1618 = pneg %p285
        %p1619 = pneg %p282
        %p1620 = pneg %p306
        %p1621 = pneg %p303
        %p1622 = pneg %p327
        %p1623 = pneg %p324
        %p1624 = pneg %p348
        %p1625 = pneg %p345
        %p1626 = pneg %p369
        %p1627 = pneg %p366
        %p1628 = pneg %p390
        %p1629 = pneg %p387
        %p1630 = pneg %p411
        %p1631 = pneg %p408
        %p1632 = pneg %p432
        %p1633 = pneg %p429
        %p1634 = pneg %p453
        %p1635 = pneg %p450
        %p1636 = pneg %p474
        %p1637 = pneg %p471
        %p1638 = pneg %p495
        %p1639 = pneg %p492
        %p1640 = pneg %p516
        %p1641 = pneg %p513
        %p1642 = pneg %p537
        %p1643 = pneg %p534
        %p1644 = pneg %p558
        %p1645 = pneg %p555
        %p1646 = pneg %p579
        %p1647 = pneg %p576
        %p1648 = pneg %p600
        %p1649 = pneg %p597
        %p1650 = pneg %p621
        %p1651 = pneg %p618
        %p1652 = pneg %p642
        %p1653 = pneg %p639
        %p1654 = pneg %p663
        %p1655 = pneg %p660
        %p1656 = pneg %p684
        %p1657 = pneg %p681
        %p1658 = pneg %p705
        %p1659 = pneg %p702
        %p1660 = pneg %p726
        %p1661 = pneg %p723
        %p1662 = pneg %p747
        %p1663 = pneg %p744
        %p1664 = pneg %p768
        %p1665 = pneg %p765
        %p1666 = pneg %p789
        %p1667 = pneg %p786
        %p1668 = pneg %p810
        %p1669 = pneg %p807
        %p1670 = pneg %p831
        %p1671 = pneg %p828
        %p1672 = pneg %p852
        %p1673 = pneg %p849
        %p1674 = pneg %p873
        %p1675 = pneg %p870
        %p1676 = pneg %p894
        %p1677 = pneg %p891
        %p1678 = pneg %p915
        %p1679 = pneg %p912
        %p1680 = pneg %p936
        %p1681 = pneg %p933
        %p1682 = pneg %p957
        %p1683 = pneg %p954
        %p1684 = pneg %p978
        %p1685 = pneg %p975
        %p1686 = pneg %p999
        %p1687 = pneg %p996
        %p1688 = pneg %p1020
        %p1689 = pneg %p1017
        %p1690 = pneg %p1041
        %p1691 = pneg %p1038
        %p1692 = pneg %p1062
        %p1693 = pneg %p1059
        %p1694 = pneg %p1083
        %p1695 = pneg %p1080
        %p1696 = pneg %p1104
        %p1697 = pneg %p1101
        %p1698 = pneg %p1125
        %p1699 = pneg %p1122
        %p1700 = pneg %p1146
        %p1701 = pneg %p1143
        %p1702 = pneg %p1167
        %p1703 = pneg %p1164
        %p1704 = pneg %p1188
        %p1705 = pneg %p1185
        %p1706 = pneg %p1209
        %p1707 = pneg %p1206
        %p1708 = pneg %p1230
        %p1709 = pneg %p1227
        %p1710 = pneg %p1251
        %p1711 = pneg %p1248
        %p1712 = pneg %p1277
        %p1713 = pneg %p1274
        %p1714 = scmp.lt.s32.totalorder %s123, 1
        %s1715 = scalar_select %p1714, %s123, 1
        %s1716 = smul.addr %s1715, 2
        %s1717 = scalar_lea.vmem %s107, %s1716
        %p1718 = scmp.lt.s32.totalorder %s123, 1
        %s1719 = scalar_select %p1718, %s123, 1
        %s1720 = smul.addr %s1719, 8
        %s1721 = smul.addr %s1720, 8
        %s1722 = scalar_lea.vmem %s1, %s1721
        %p1723 = scmp.lt.s32.totalorder %s123, 1
        %s1724 = scalar_select %p1723, %s123, 1
        %s1725 = smul.addr %s1724, 2
        %s1726 = smul.addr %s1725, 8
        %s1727 = scalar_lea.vmem %s3, %s1726
        %p1728 = scmp.lt.s32.totalorder %s123, 1
        %s1729 = scalar_select %p1728, %s123, 1
        %s1730 = smul.addr %s1729, 10
        %s1731 = smul.addr %s1730, 8
        %s1732 = scalar_lea.vmem %s5, %s1731
        %p1733 = scmp.lt.s32.totalorder %s123, 1
        %s1734 = scalar_select %p1733, %s123, 1
        %s1735 = scalar_lea.vmem %s7, %s1734
        %p1736 = scmp.lt.s32.totalorder %s123, 1
        %s1737 = scalar_select %p1736, %s123, 1
        %s1738 = smul.addr %s1737, 2
        %s1739 = scalar_lea.vmem %s107, %s1738
        %v1740 = vld [vmem:[%s93] sm:$0xf]
        %v1741 = vld [vmem:[%s1735] sm:$0x1]
        %v1742 = vld [vmem:[%s1722] sm:$0xff]
        %v1743 = vld [vmem:[%s1722 + $0x8] sm:$0xff]
        %v1744 = vld [vmem:[%s1722 + $0x10] sm:$0xff]
        %v1745 = vld [vmem:[%s1722 + $0x18] sm:$0xff]
        %v1746 = vld [vmem:[%s1722 + $0x20] sm:$0xff]
        %v1747 = vld [vmem:[%s1722 + $0x28] sm:$0xff]
        %v1748 = vld [vmem:[%s1722 + $0x30] sm:$0xff]
        %v1749 = vld [vmem:[%s1722 + $0x38] sm:$0xff]
        %v1750 = vld [vmem:[%s9] sm:$0xff]
        %v1751 = vld [vmem:[%s9 + $0x8] sm:$0xff]
        %v1752 = vld [vmem:[%s9 + $0x10] sm:$0xff]
        %v1753 = vld [vmem:[%s9 + $0x18] sm:$0xff]
        %v1754 = vld [vmem:[%s9 + $0x20] sm:$0xff]
        %v1755 = vld [vmem:[%s9 + $0x28] sm:$0xff]
        %v1756 = vld [vmem:[%s11] sm:$0x1]
        %v1758 = vlaneseq
        %v1759 = vshrl.u32 %v1758, 7
        %v1760 = vsub.s32 0, %v1759
        %v1761 = vrot.slane %v1756, %v1760
        %vm1763 = vcmask 392192
        %v1765 = vsel %vm1763, %v1742, 0
        %v1768 = vsel %vm1763, %v1743, 0
        %v1771 = vsel %vm1763, %v1744, 0
        %v1774 = vsel %vm1763, %v1745, 0
        %v1777 = vsel %vm1763, %v1746, 0
        %v1780 = vsel %vm1763, %v1747, 0
        %v1783 = vsel %vm1763, %v1748, 0
        %v1786 = vsel %vm1763, %v1749, 0
        %1788 = vmatprep.subr.mxu0 0.0
        %1789 = vmatpush1.msra.mxu0 0.0
        %1790 = vmatprep.subr.mxu0 0.0
        %1791 = vmatpush1.msra.mxu0 0.0
        %1792 = vmatprep.subr.mxu0 0.0
        %1793 = vmatpush1.msra.mxu0 0.0
        %1794 = vmatprep.subr.mxu0 0.0
        %1795 = vmatpush1.msra.mxu0 0.0
        %1796 = vmatprep.subr.mxu0 0.0
        %1797 = vmatpush1.msra.mxu0 0.0
        %1798 = vmatprep.subr.mxu0 0.0
        %1799 = vmatpush1.msra.mxu0 0.0
        %1800 = vmatprep.subr.mxu0 0.0
        %1801 = vmatpush1.msra.mxu0 0.0
        %1802 = vmatprep.subr.mxu0 0.0
        %1803 = vmatpush1.msra.mxu0 0.0
        %1804 = vmatprep.subr.mxu0 0.0
        %1805 = vmatpush1.msra.mxu0 0.0
        %1806 = vmatprep.subr.mxu0 0.0
        %1807 = vmatpush1.msra.mxu0 0.0
        %1808 = vmatprep.subr.mxu0 0.0
        %1809 = vmatpush1.msra.mxu0 %v1755
        %1810 = vmatprep.subr.mxu0 0.0
        %1811 = vmatpush1.msra.mxu0 %v1754
        %1812 = vmatprep.subr.mxu0 0.0
        %1813 = vmatpush1.msra.mxu0 %v1753
        %1814 = vmatprep.subr.mxu0 0.0
        %1815 = vmatpush1.msra.mxu0 %v1752
        %1816 = vmatprep.subr.mxu0 0.0
        %1817 = vmatpush1.msra.mxu0 %v1751
        %1818 = vmatprep.subr.mxu0 0.0
        %1819 = vmatpush1.msra.mxu0 %v1750
        %1820 = vmatprep.subr.mxu0 0.0
        %1821 = vmatpush2.msra.mxu0 0.0
        %1822 = vmatprep.subr.mxu0 0.0
        %1823 = vmatpush2.msra.mxu0 0.0
        %1824 = vmatprep.subr.mxu0 0.0
        %1825 = vmatpush2.msra.mxu0 0.0
        %1826 = vmatprep.subr.mxu0 0.0
        %1827 = vmatpush2.msra.mxu0 0.0
        %1828 = vmatprep.subr.mxu0 0.0
        %1829 = vmatpush2.msra.mxu0 0.0
        %1830 = vmatprep.subr.mxu0 0.0
        %1831 = vmatpush2.msra.mxu0 0.0
        %1832 = vmatprep.subr.mxu0 0.0
        %1833 = vmatpush2.msra.mxu0 0.0
        %1834 = vmatprep.subr.mxu0 0.0
        %1835 = vmatpush2.msra.mxu0 0.0
        %1836 = vmatprep.subr.mxu0 0.0
        %1837 = vmatpush2.msra.mxu0 0.0
        %1838 = vmatprep.subr.mxu0 0.0
        %1839 = vmatpush2.msra.mxu0 0.0
        %1840 = vmatprep.subr.mxu0 0.0
        %1841 = vmatpush2.msra.mxu0 0.0
        %1842 = vmatprep.subr.mxu0 0.0
        %1843 = vmatpush2.msra.mxu0 0.0
        %1844 = vmatprep.subr.mxu0 0.0
        %1845 = vmatpush2.msra.mxu0 0.0
        %1846 = vmatprep.subr.mxu0 0.0
        %1847 = vmatpush2.msra.mxu0 0.0
        %1848 = vmatprep.subr.mxu0 0.0
        %1849 = vmatpush2.msra.mxu0 0.0
        %1850 = vmatprep.subr.mxu0 0.0
        %1851 = vmatpush2.msra.mxu0 0.0
        %1852 = vmatprep.mubr.f32.mxu0 0.0
        %1853 = vmatmul.mubr.f32.gmra.mxu0 %v1765
        %v1854 = vpop.f32.mrf.mxu0
        %v1855 = vadd.f32 %v1761, %v1854
        %v1856 = vpop.f32.mrf.mxu0
        %1857 = vmatprep.mubr.f32.mxu0 0.0
        %1858 = vmatmul.mubr.f32.gmra.mxu0 %v1768
        %v1859 = vpop.f32.mrf.mxu0
        %v1860 = vadd.f32 %v1761, %v1859
        %v1861 = vpop.f32.mrf.mxu0
        %1862 = vmatprep.mubr.f32.mxu0 0.0
        %1863 = vmatmul.mubr.f32.gmra.mxu0 %v1771
        %v1864 = vpop.f32.mrf.mxu0
        %v1865 = vadd.f32 %v1761, %v1864
        %v1866 = vpop.f32.mrf.mxu0
        %1867 = vmatprep.mubr.f32.mxu0 0.0
        %1868 = vmatmul.mubr.f32.gmra.mxu0 %v1774
        %v1869 = vpop.f32.mrf.mxu0
        %v1870 = vadd.f32 %v1761, %v1869
        %v1871 = vpop.f32.mrf.mxu0
        %1872 = vmatprep.mubr.f32.mxu0 0.0
        %1873 = vmatmul.mubr.f32.gmra.mxu0 %v1777
        %v1874 = vpop.f32.mrf.mxu0
        %v1875 = vadd.f32 %v1761, %v1874
        %v1876 = vpop.f32.mrf.mxu0
        %1877 = vmatprep.mubr.f32.mxu0 0.0
        %1878 = vmatmul.mubr.f32.gmra.mxu0 %v1780
        %v1879 = vpop.f32.mrf.mxu0
        %v1880 = vadd.f32 %v1761, %v1879
        %v1881 = vpop.f32.mrf.mxu0
        %1882 = vmatprep.mubr.f32.mxu0 0.0
        %1883 = vmatmul.mubr.f32.gmra.mxu0 %v1783
        %v1884 = vpop.f32.mrf.mxu0
        %v1885 = vadd.f32 %v1761, %v1884
        %v1886 = vpop.f32.mrf.mxu0
        %1887 = vmatprep.mubr.f32.mxu0 0.0
        %1888 = vmatmul.mubr.f32.gmra.mxu0 %v1786
        %v1889 = vpop.f32.mrf.mxu0
        %v1890 = vadd.f32 %v1761, %v1889
        %v1891 = vpop.f32.mrf.mxu0
        %1892 = vdwg.mxu0
        %v1893 = vmax.f32 %v1855, 0.0
        %v1894 = vmax.f32 %v1860, 0.0
        %v1895 = vmax.f32 %v1865, 0.0
        %v1896 = vmax.f32 %v1870, 0.0
        %v1897 = vmax.f32 %v1875, 0.0
        %v1898 = vmax.f32 %v1880, 0.0
        %v1899 = vmax.f32 %v1885, 0.0
        %v1900 = vmax.f32 %v1890, 0.0
        %v1901 = vld [vmem:[%s13] sm:$0xff]
        %v1902 = vld [vmem:[%s13 + $0x8] sm:$0xff]
        %v1903 = vld [vmem:[%s15] sm:$0x1]
        %v1905 = vlaneseq
        %v1906 = vshrl.u32 %v1905, 7
        %v1907 = vsub.s32 0, %v1906
        %v1908 = vrot.slane %v1903, %v1907
        %vm1910 = vcmask 130048
        %v1912 = vsel %vm1910, %v1893, 0
        %v1915 = vsel %vm1910, %v1894, 0
        %v1918 = vsel %vm1910, %v1895, 0
        %v1921 = vsel %vm1910, %v1896, 0
        %v1924 = vsel %vm1910, %v1897, 0
        %v1927 = vsel %vm1910, %v1898, 0
        %v1930 = vsel %vm1910, %v1899, 0
        %v1933 = vsel %vm1910, %v1900, 0
        %1935 = vmatprep.subr.mxu0 0.0
        %1936 = vmatpush1.msra.mxu0 0.0
        %1937 = vmatprep.subr.mxu0 0.0
        %1938 = vmatpush1.msra.mxu0 0.0
        %1939 = vmatprep.subr.mxu0 0.0
        %1940 = vmatpush1.msra.mxu0 0.0
        %1941 = vmatprep.subr.mxu0 0.0
        %1942 = vmatpush1.msra.mxu0 0.0
        %1943 = vmatprep.subr.mxu0 0.0
        %1944 = vmatpush1.msra.mxu0 0.0
        %1945 = vmatprep.subr.mxu0 0.0
        %1946 = vmatpush1.msra.mxu0 0.0
        %1947 = vmatprep.subr.mxu0 0.0
        %1948 = vmatpush1.msra.mxu0 0.0
        %1949 = vmatprep.subr.mxu0 0.0
        %1950 = vmatpush1.msra.mxu0 0.0
        %1951 = vmatprep.subr.mxu0 0.0
        %1952 = vmatpush1.msra.mxu0 0.0
        %1953 = vmatprep.subr.mxu0 0.0
        %1954 = vmatpush1.msra.mxu0 0.0
        %1955 = vmatprep.subr.mxu0 0.0
        %1956 = vmatpush1.msra.mxu0 0.0
        %1957 = vmatprep.subr.mxu0 0.0
        %1958 = vmatpush1.msra.mxu0 0.0
        %1959 = vmatprep.subr.mxu0 0.0
        %1960 = vmatpush1.msra.mxu0 0.0
        %1961 = vmatprep.subr.mxu0 0.0
        %1962 = vmatpush1.msra.mxu0 0.0
        %1963 = vmatprep.subr.mxu0 0.0
        %1964 = vmatpush1.msra.mxu0 %v1902
        %1965 = vmatprep.subr.mxu0 0.0
        %1966 = vmatpush1.msra.mxu0 %v1901
        %1967 = vmatprep.subr.mxu0 0.0
        %1968 = vmatpush2.msra.mxu0 0.0
        %1969 = vmatprep.subr.mxu0 0.0
        %1970 = vmatpush2.msra.mxu0 0.0
        %1971 = vmatprep.subr.mxu0 0.0
        %1972 = vmatpush2.msra.mxu0 0.0
        %1973 = vmatprep.subr.mxu0 0.0
        %1974 = vmatpush2.msra.mxu0 0.0
        %1975 = vmatprep.subr.mxu0 0.0
        %1976 = vmatpush2.msra.mxu0 0.0
        %1977 = vmatprep.subr.mxu0 0.0
        %1978 = vmatpush2.msra.mxu0 0.0
        %1979 = vmatprep.subr.mxu0 0.0
        %1980 = vmatpush2.msra.mxu0 0.0
        %1981 = vmatprep.subr.mxu0 0.0
        %1982 = vmatpush2.msra.mxu0 0.0
        %1983 = vmatprep.subr.mxu0 0.0
        %1984 = vmatpush2.msra.mxu0 0.0
        %1985 = vmatprep.subr.mxu0 0.0
        %1986 = vmatpush2.msra.mxu0 0.0
        %1987 = vmatprep.subr.mxu0 0.0
        %1988 = vmatpush2.msra.mxu0 0.0
        %1989 = vmatprep.subr.mxu0 0.0
        %1990 = vmatpush2.msra.mxu0 0.0
        %1991 = vmatprep.subr.mxu0 0.0
        %1992 = vmatpush2.msra.mxu0 0.0
        %1993 = vmatprep.subr.mxu0 0.0
        %1994 = vmatpush2.msra.mxu0 0.0
        %1995 = vmatprep.subr.mxu0 0.0
        %1996 = vmatpush2.msra.mxu0 0.0
        %1997 = vmatprep.subr.mxu0 0.0
        %1998 = vmatpush2.msra.mxu0 0.0
        %1999 = vmatprep.mubr.f32.mxu0 0.0
        %2000 = vmatmul.mubr.f32.gmra.mxu0 %v1912
        %v2001 = vpop.f32.mrf.mxu0
        %v2002 = vadd.f32 %v1908, %v2001
        %v2003 = vpop.f32.mrf.mxu0
        %2004 = vmatprep.mubr.f32.mxu0 0.0
        %2005 = vmatmul.mubr.f32.gmra.mxu0 %v1915
        %v2006 = vpop.f32.mrf.mxu0
        %v2007 = vadd.f32 %v1908, %v2006
        %v2008 = vpop.f32.mrf.mxu0
        %2009 = vmatprep.mubr.f32.mxu0 0.0
        %2010 = vmatmul.mubr.f32.gmra.mxu0 %v1918
        %v2011 = vpop.f32.mrf.mxu0
        %v2012 = vadd.f32 %v1908, %v2011
        %v2013 = vpop.f32.mrf.mxu0
        %2014 = vmatprep.mubr.f32.mxu0 0.0
        %2015 = vmatmul.mubr.f32.gmra.mxu0 %v1921
        %v2016 = vpop.f32.mrf.mxu0
        %v2017 = vadd.f32 %v1908, %v2016
        %v2018 = vpop.f32.mrf.mxu0
        %2019 = vmatprep.mubr.f32.mxu0 0.0
        %2020 = vmatmul.mubr.f32.gmra.mxu0 %v1924
        %v2021 = vpop.f32.mrf.mxu0
        %v2022 = vadd.f32 %v1908, %v2021
        %v2023 = vpop.f32.mrf.mxu0
        %2024 = vmatprep.mubr.f32.mxu0 0.0
        %2025 = vmatmul.mubr.f32.gmra.mxu0 %v1927
        %v2026 = vpop.f32.mrf.mxu0
        %v2027 = vadd.f32 %v1908, %v2026
        %v2028 = vpop.f32.mrf.mxu0
        %2029 = vmatprep.mubr.f32.mxu0 0.0
        %2030 = vmatmul.mubr.f32.gmra.mxu0 %v1930
        %v2031 = vpop.f32.mrf.mxu0
        %v2032 = vadd.f32 %v1908, %v2031
        %v2033 = vpop.f32.mrf.mxu0
        %2034 = vmatprep.mubr.f32.mxu0 0.0
        %2035 = vmatmul.mubr.f32.gmra.mxu0 %v1933
        %v2036 = vpop.f32.mrf.mxu0
        %v2037 = vadd.f32 %v1908, %v2036
        %v2038 = vpop.f32.mrf.mxu0
        %2039 = vdwg.mxu0
        %v2040 = vld [vmem:[%s1727] sm:$0xff]
        %v2041 = vld [vmem:[%s1727 + $0x8] sm:$0xff]
        %v2042 = vld [vmem:[%s1732] sm:$0xff]
        %v2043 = vld [vmem:[%s1732 + $0x8] sm:$0xff]
        %v2044 = vld [vmem:[%s1732 + $0x10] sm:$0xff]
        %v2045 = vld [vmem:[%s1732 + $0x18] sm:$0xff]
        %v2046 = vld [vmem:[%s1732 + $0x20] sm:$0xff]
        %v2047 = vld [vmem:[%s1732 + $0x28] sm:$0xff]
        %v2048 = vld [vmem:[%s1732 + $0x30] sm:$0xff]
        %v2049 = vld [vmem:[%s1732 + $0x38] sm:$0xff]
        %v2050 = vld [vmem:[%s1732 + $0x40] sm:$0xff]
        %v2051 = vld [vmem:[%s1732 + $0x48] sm:$0xff]
        %v2052 = vadd.f32 %v2040, %v2042
        %v2053 = vadd.f32 %v2041, %v2043
        %v2054 = vadd.f32 %v2002, %v2044
        %v2055 = vadd.f32 %v2007, %v2045
        %v2056 = vadd.f32 %v2012, %v2046
        %v2057 = vadd.f32 %v2017, %v2047
        %v2058 = vadd.f32 %v2022, %v2048
        %v2059 = vadd.f32 %v2027, %v2049
        %v2060 = vadd.f32 %v2032, %v2050
        %v2061 = vadd.f32 %v2037, %v2051
        %v2062 = vld [vmem:[%s17] sm:$0xff]
        %v2063 = vld [vmem:[%s17 + $0x8] sm:$0xff]
        %v2064 = vld [vmem:[%s17 + $0x10] sm:$0xff]
        %v2065 = vld [vmem:[%s17 + $0x18] sm:$0xff]
        %v2066 = vld [vmem:[%s19] sm:$0x1]
        %v2068 = vlaneseq
        %v2069 = vshrl.u32 %v2068, 7
        %v2070 = vsub.s32 0, %v2069
        %v2071 = vrot.slane %v2066, %v2070
        %vm2073 = vcmask 261120
        %v2075 = vsel %vm2073, %v2052, 0
        %v2078 = vsel %vm2073, %v2053, 0
        %v2081 = vsel %vm2073, %v2054, 0
        %v2084 = vsel %vm2073, %v2055, 0
        %v2087 = vsel %vm2073, %v2056, 0
        %v2090 = vsel %vm2073, %v2057, 0
        %v2093 = vsel %vm2073, %v2058, 0
        %v2096 = vsel %vm2073, %v2059, 0
        %v2099 = vsel %vm2073, %v2060, 0
        %v2102 = vsel %vm2073, %v2061, 0
        %2104 = vmatprep.subr.mxu0 0.0
        %2105 = vmatpush1.msra.mxu0 0.0
        %2106 = vmatprep.subr.mxu0 0.0
        %2107 = vmatpush1.msra.mxu0 0.0
        %2108 = vmatprep.subr.mxu0 0.0
        %2109 = vmatpush1.msra.mxu0 0.0
        %2110 = vmatprep.subr.mxu0 0.0
        %2111 = vmatpush1.msra.mxu0 0.0
        %2112 = vmatprep.subr.mxu0 0.0
        %2113 = vmatpush1.msra.mxu0 0.0
        %2114 = vmatprep.subr.mxu0 0.0
        %2115 = vmatpush1.msra.mxu0 0.0
        %2116 = vmatprep.subr.mxu0 0.0
        %2117 = vmatpush1.msra.mxu0 0.0
        %2118 = vmatprep.subr.mxu0 0.0
        %2119 = vmatpush1.msra.mxu0 0.0
        %2120 = vmatprep.subr.mxu0 0.0
        %2121 = vmatpush1.msra.mxu0 0.0
        %2122 = vmatprep.subr.mxu0 0.0
        %2123 = vmatpush1.msra.mxu0 0.0
        %2124 = vmatprep.subr.mxu0 0.0
        %2125 = vmatpush1.msra.mxu0 0.0
        %2126 = vmatprep.subr.mxu0 0.0
        %2127 = vmatpush1.msra.mxu0 0.0
        %2128 = vmatprep.subr.mxu0 0.0
        %2129 = vmatpush1.msra.mxu0 %v2065
        %2130 = vmatprep.subr.mxu0 0.0
        %2131 = vmatpush1.msra.mxu0 %v2064
        %2132 = vmatprep.subr.mxu0 0.0
        %2133 = vmatpush1.msra.mxu0 %v2063
        %2134 = vmatprep.subr.mxu0 0.0
        %2135 = vmatpush1.msra.mxu0 %v2062
        %2136 = vmatprep.subr.mxu0 0.0
        %2137 = vmatpush2.msra.mxu0 0.0
        %2138 = vmatprep.subr.mxu0 0.0
        %2139 = vmatpush2.msra.mxu0 0.0
        %2140 = vmatprep.subr.mxu0 0.0
        %2141 = vmatpush2.msra.mxu0 0.0
        %2142 = vmatprep.subr.mxu0 0.0
        %2143 = vmatpush2.msra.mxu0 0.0
        %2144 = vmatprep.subr.mxu0 0.0
        %2145 = vmatpush2.msra.mxu0 0.0
        %2146 = vmatprep.subr.mxu0 0.0
        %2147 = vmatpush2.msra.mxu0 0.0
        %2148 = vmatprep.subr.mxu0 0.0
        %2149 = vmatpush2.msra.mxu0 0.0
        %2150 = vmatprep.subr.mxu0 0.0
        %2151 = vmatpush2.msra.mxu0 0.0
        %2152 = vmatprep.subr.mxu0 0.0
        %2153 = vmatpush2.msra.mxu0 0.0
        %2154 = vmatprep.subr.mxu0 0.0
        %2155 = vmatpush2.msra.mxu0 0.0
        %2156 = vmatprep.subr.mxu0 0.0
        %2157 = vmatpush2.msra.mxu0 0.0
        %2158 = vmatprep.subr.mxu0 0.0
        %2159 = vmatpush2.msra.mxu0 0.0
        %2160 = vmatprep.subr.mxu0 0.0
        %2161 = vmatpush2.msra.mxu0 0.0
        %2162 = vmatprep.subr.mxu0 0.0
        %2163 = vmatpush2.msra.mxu0 0.0
        %2164 = vmatprep.subr.mxu0 0.0
        %2165 = vmatpush2.msra.mxu0 0.0
        %2166 = vmatprep.subr.mxu0 0.0
        %2167 = vmatpush2.msra.mxu0 0.0
        %2168 = vmatprep.mubr.f32.mxu0 0.0
        %2169 = vmatmul.mubr.f32.gmra.mxu0 %v2075
        %v2170 = vpop.f32.mrf.mxu0
        %v2171 = vadd.f32 %v2071, %v2170
        %v2172 = vpop.f32.mrf.mxu0
        %2173 = vmatprep.mubr.f32.mxu0 0.0
        %2174 = vmatmul.mubr.f32.gmra.mxu0 %v2078
        %v2175 = vpop.f32.mrf.mxu0
        %v2176 = vadd.f32 %v2071, %v2175
        %v2177 = vpop.f32.mrf.mxu0
        %2178 = vmatprep.mubr.f32.mxu0 0.0
        %2179 = vmatmul.mubr.f32.gmra.mxu0 %v2081
        %v2180 = vpop.f32.mrf.mxu0
        %v2181 = vadd.f32 %v2071, %v2180
        %v2182 = vpop.f32.mrf.mxu0
        %2183 = vmatprep.mubr.f32.mxu0 0.0
        %2184 = vmatmul.mubr.f32.gmra.mxu0 %v2084
        %v2185 = vpop.f32.mrf.mxu0
        %v2186 = vadd.f32 %v2071, %v2185
        %v2187 = vpop.f32.mrf.mxu0
        %2188 = vmatprep.mubr.f32.mxu0 0.0
        %2189 = vmatmul.mubr.f32.gmra.mxu0 %v2087
        %v2190 = vpop.f32.mrf.mxu0
        %v2191 = vadd.f32 %v2071, %v2190
        %v2192 = vpop.f32.mrf.mxu0
        %2193 = vmatprep.mubr.f32.mxu0 0.0
        %2194 = vmatmul.mubr.f32.gmra.mxu0 %v2090
        %v2195 = vpop.f32.mrf.mxu0
        %v2196 = vadd.f32 %v2071, %v2195
        %v2197 = vpop.f32.mrf.mxu0
        %2198 = vmatprep.mubr.f32.mxu0 0.0
        %2199 = vmatmul.mubr.f32.gmra.mxu0 %v2093
        %v2200 = vpop.f32.mrf.mxu0
        %v2201 = vadd.f32 %v2071, %v2200
        %v2202 = vpop.f32.mrf.mxu0
        %2203 = vmatprep.mubr.f32.mxu0 0.0
        %2204 = vmatmul.mubr.f32.gmra.mxu0 %v2096
        %v2205 = vpop.f32.mrf.mxu0
        %v2206 = vadd.f32 %v2071, %v2205
        %v2207 = vpop.f32.mrf.mxu0
        %2208 = vmatprep.mubr.f32.mxu0 0.0
        %2209 = vmatmul.mubr.f32.gmra.mxu0 %v2099
        %v2210 = vpop.f32.mrf.mxu0
        %v2211 = vadd.f32 %v2071, %v2210
        %v2212 = vpop.f32.mrf.mxu0
        %2213 = vmatprep.mubr.f32.mxu0 0.0
        %2214 = vmatmul.mubr.f32.gmra.mxu0 %v2102
        %v2215 = vpop.f32.mrf.mxu0
        %v2216 = vadd.f32 %v2071, %v2215
        %v2217 = vpop.f32.mrf.mxu0
        %2218 = vdwg.mxu0
        %v2219 = vld [vmem:[%s21] sm:$0xff]
        %v2220 = vld [vmem:[%s21 + $0x8] sm:$0xff]
        %v2221 = vld [vmem:[%s21 + $0x10] sm:$0xff]
        %v2222 = vld [vmem:[%s21 + $0x18] sm:$0xff]
        %v2223 = vld [vmem:[%s23] sm:$0x1]
        %v2225 = vlaneseq
        %v2226 = vshrl.u32 %v2225, 7
        %v2227 = vsub.s32 0, %v2226
        %v2228 = vrot.slane %v2223, %v2227
        %v2231 = vsel %vm2073, %v2040, 0
        %v2234 = vsel %vm2073, %v2041, 0
        %v2237 = vsel %vm2073, %v2002, 0
        %v2240 = vsel %vm2073, %v2007, 0
        %v2243 = vsel %vm2073, %v2012, 0
        %v2246 = vsel %vm2073, %v2017, 0
        %v2249 = vsel %vm2073, %v2022, 0
        %v2252 = vsel %vm2073, %v2027, 0
        %v2255 = vsel %vm2073, %v2032, 0
        %v2258 = vsel %vm2073, %v2037, 0
        %2260 = vmatprep.subr.mxu0 0.0
        %2261 = vmatpush1.msra.mxu0 0.0
        %2262 = vmatprep.subr.mxu0 0.0
        %2263 = vmatpush1.msra.mxu0 0.0
        %2264 = vmatprep.subr.mxu0 0.0
        %2265 = vmatpush1.msra.mxu0 0.0
        %2266 = vmatprep.subr.mxu0 0.0
        %2267 = vmatpush1.msra.mxu0 0.0
        %2268 = vmatprep.subr.mxu0 0.0
        %2269 = vmatpush1.msra.mxu0 0.0
        %2270 = vmatprep.subr.mxu0 0.0
        %2271 = vmatpush1.msra.mxu0 0.0
        %2272 = vmatprep.subr.mxu0 0.0
        %2273 = vmatpush1.msra.mxu0 0.0
        %2274 = vmatprep.subr.mxu0 0.0
        %2275 = vmatpush1.msra.mxu0 0.0
        %2276 = vmatprep.subr.mxu0 0.0
        %2277 = vmatpush1.msra.mxu0 0.0
        %2278 = vmatprep.subr.mxu0 0.0
        %2279 = vmatpush1.msra.mxu0 0.0
        %2280 = vmatprep.subr.mxu0 0.0
        %2281 = vmatpush1.msra.mxu0 0.0
        %2282 = vmatprep.subr.mxu0 0.0
        %2283 = vmatpush1.msra.mxu0 0.0
        %2284 = vmatprep.subr.mxu0 0.0
        %2285 = vmatpush1.msra.mxu0 %v2222
        %2286 = vmatprep.subr.mxu0 0.0
        %2287 = vmatpush1.msra.mxu0 %v2221
        %2288 = vmatprep.subr.mxu0 0.0
        %2289 = vmatpush1.msra.mxu0 %v2220
        %2290 = vmatprep.subr.mxu0 0.0
        %2291 = vmatpush1.msra.mxu0 %v2219
        %2292 = vmatprep.subr.mxu0 0.0
        %2293 = vmatpush2.msra.mxu0 0.0
        %2294 = vmatprep.subr.mxu0 0.0
        %2295 = vmatpush2.msra.mxu0 0.0
        %2296 = vmatprep.subr.mxu0 0.0
        %2297 = vmatpush2.msra.mxu0 0.0
        %2298 = vmatprep.subr.mxu0 0.0
        %2299 = vmatpush2.msra.mxu0 0.0
        %2300 = vmatprep.subr.mxu0 0.0
        %2301 = vmatpush2.msra.mxu0 0.0
        %2302 = vmatprep.subr.mxu0 0.0
        %2303 = vmatpush2.msra.mxu0 0.0
        %2304 = vmatprep.subr.mxu0 0.0
        %2305 = vmatpush2.msra.mxu0 0.0
        %2306 = vmatprep.subr.mxu0 0.0
        %2307 = vmatpush2.msra.mxu0 0.0
        %2308 = vmatprep.subr.mxu0 0.0
        %2309 = vmatpush2.msra.mxu0 0.0
        %2310 = vmatprep.subr.mxu0 0.0
        %2311 = vmatpush2.msra.mxu0 0.0
        %2312 = vmatprep.subr.mxu0 0.0
        %2313 = vmatpush2.msra.mxu0 0.0
        %2314 = vmatprep.subr.mxu0 0.0
        %2315 = vmatpush2.msra.mxu0 0.0
        %2316 = vmatprep.subr.mxu0 0.0
        %2317 = vmatpush2.msra.mxu0 0.0
        %2318 = vmatprep.subr.mxu0 0.0
        %2319 = vmatpush2.msra.mxu0 0.0
        %2320 = vmatprep.subr.mxu0 0.0
        %2321 = vmatpush2.msra.mxu0 0.0
        %2322 = vmatprep.subr.mxu0 0.0
        %2323 = vmatpush2.msra.mxu0 0.0
        %2324 = vmatprep.mubr.f32.mxu0 0.0
        %2325 = vmatmul.mubr.f32.gmra.mxu0 %v2231
        %v2326 = vpop.f32.mrf.mxu0
        %v2327 = vadd.f32 %v2228, %v2326
        %v2328 = vpop.f32.mrf.mxu0
        %2329 = vmatprep.mubr.f32.mxu0 0.0
        %2330 = vmatmul.mubr.f32.gmra.mxu0 %v2234
        %v2331 = vpop.f32.mrf.mxu0
        %v2332 = vadd.f32 %v2228, %v2331
        %v2333 = vpop.f32.mrf.mxu0
        %2334 = vmatprep.mubr.f32.mxu0 0.0
        %2335 = vmatmul.mubr.f32.gmra.mxu0 %v2237
        %v2336 = vpop.f32.mrf.mxu0
        %v2337 = vadd.f32 %v2228, %v2336
        %v2338 = vpop.f32.mrf.mxu0
        %2339 = vmatprep.mubr.f32.mxu0 0.0
        %2340 = vmatmul.mubr.f32.gmra.mxu0 %v2240
        %v2341 = vpop.f32.mrf.mxu0
        %v2342 = vadd.f32 %v2228, %v2341
        %v2343 = vpop.f32.mrf.mxu0
        %2344 = vmatprep.mubr.f32.mxu0 0.0
        %2345 = vmatmul.mubr.f32.gmra.mxu0 %v2243
        %v2346 = vpop.f32.mrf.mxu0
        %v2347 = vadd.f32 %v2228, %v2346
        %v2348 = vpop.f32.mrf.mxu0
        %2349 = vmatprep.mubr.f32.mxu0 0.0
        %2350 = vmatmul.mubr.f32.gmra.mxu0 %v2246
        %v2351 = vpop.f32.mrf.mxu0
        %v2352 = vadd.f32 %v2228, %v2351
        %v2353 = vpop.f32.mrf.mxu0
        %2354 = vmatprep.mubr.f32.mxu0 0.0
        %2355 = vmatmul.mubr.f32.gmra.mxu0 %v2249
        %v2356 = vpop.f32.mrf.mxu0
        %v2357 = vadd.f32 %v2228, %v2356
        %v2358 = vpop.f32.mrf.mxu0
        %2359 = vmatprep.mubr.f32.mxu0 0.0
        %2360 = vmatmul.mubr.f32.gmra.mxu0 %v2252
        %v2361 = vpop.f32.mrf.mxu0
        %v2362 = vadd.f32 %v2228, %v2361
        %v2363 = vpop.f32.mrf.mxu0
        %2364 = vmatprep.mubr.f32.mxu0 0.0
        %2365 = vmatmul.mubr.f32.gmra.mxu0 %v2255
        %v2366 = vpop.f32.mrf.mxu0
        %v2367 = vadd.f32 %v2228, %v2366
        %v2368 = vpop.f32.mrf.mxu0
        %2369 = vmatprep.mubr.f32.mxu0 0.0
        %2370 = vmatmul.mubr.f32.gmra.mxu0 %v2258
        %v2371 = vpop.f32.mrf.mxu0
        %v2372 = vadd.f32 %v2228, %v2371
        %v2373 = vpop.f32.mrf.mxu0
        %2374 = vdwg.mxu0
        %v2375 = vlaneseq
        %v2376 = vshrl.u32 %v2375, 7
        %v2377 = vsub.s32 0, %v2376
        %v2378 = vrot.slane %v1740, %v2377
        %v2379 = vmul.f32 %v2171, %v2378
        %v2380 = vmul.f32 %v2176, %v2378
        %v2381 = vmul.f32 %v2181, %v2378
        %v2382 = vmul.f32 %v2186, %v2378
        %v2383 = vmul.f32 %v2191, %v2378
        %v2384 = vmul.f32 %v2196, %v2378
        %v2385 = vmul.f32 %v2201, %v2378
        %v2386 = vmul.f32 %v2206, %v2378
        %v2387 = vmul.f32 %v2211, %v2378
        %v2388 = vmul.f32 %v2216, %v2378
        %v2389 = vlaneseq
        %v2390 = vshrl.u32 %v2389, 7
        %v2391 = vsub.s32 1, %v2390
        %v2392 = vrot.slane %v1740, %v2391
        %v2393 = vmul.f32 %v2171, %v2392
        %v2394 = vmul.f32 %v2176, %v2392
        %v2395 = vmul.f32 %v2181, %v2392
        %v2396 = vmul.f32 %v2186, %v2392
        %v2397 = vmul.f32 %v2191, %v2392
        %v2398 = vmul.f32 %v2196, %v2392
        %v2399 = vmul.f32 %v2201, %v2392
        %v2400 = vmul.f32 %v2206, %v2392
        %v2401 = vmul.f32 %v2211, %v2392
        %v2402 = vmul.f32 %v2216, %v2392
        %v2403 = vlaneseq
        %v2404 = vshrl.u32 %v2403, 7
        %v2405 = vsub.s32 2, %v2404
        %v2406 = vrot.slane %v1740, %v2405
        %v2407 = vmul.f32 %v2171, %v2406
        %v2408 = vmul.f32 %v2176, %v2406
        %v2409 = vmul.f32 %v2181, %v2406
        %v2410 = vmul.f32 %v2186, %v2406
        %v2411 = vmul.f32 %v2191, %v2406
        %v2412 = vmul.f32 %v2196, %v2406
        %v2413 = vmul.f32 %v2201, %v2406
        %v2414 = vmul.f32 %v2206, %v2406
        %v2415 = vmul.f32 %v2211, %v2406
        %v2416 = vmul.f32 %v2216, %v2406
        %v2417 = vlaneseq
        %v2418 = vshrl.u32 %v2417, 7
        %v2419 = vsub.s32 3, %v2418
        %v2420 = vrot.slane %v1740, %v2419
        %v2421 = vmul.f32 %v2171, %v2420
        %v2422 = vmul.f32 %v2176, %v2420
        %v2423 = vmul.f32 %v2181, %v2420
        %v2424 = vmul.f32 %v2186, %v2420
        %v2425 = vmul.f32 %v2191, %v2420
        %v2426 = vmul.f32 %v2196, %v2420
        %v2427 = vmul.f32 %v2201, %v2420
        %v2428 = vmul.f32 %v2206, %v2420
        %v2429 = vmul.f32 %v2211, %v2420
        %v2430 = vmul.f32 %v2216, %v2420
        %v2432 = vlaneseq
        %v2433 = vshrl.u32 %v2432, 7
        %v2434 = vsub.s32 0, %v2433
        %v2435 = vrot.slane %v1741, %v2434
        %2447 = vrot.lane.b32.xlu0 %v2171, 96
        %v2448 = vpop.permute.xlu0 %2447
        %2449 = vrot.lane.b32.xlu0 %v2176, 96
        %v2450 = vpop.permute.xlu0 %2449
        %2451 = vrot.lane.b32.xlu0 %v2181, 96
        %v2452 = vpop.permute.xlu0 %2451
        %2453 = vrot.lane.b32.xlu0 %v2186, 96
        %v2454 = vpop.permute.xlu0 %2453
        %2455 = vrot.lane.b32.xlu0 %v2191, 96
        %v2456 = vpop.permute.xlu0 %2455
        %2457 = vrot.lane.b32.xlu0 %v2196, 96
        %v2458 = vpop.permute.xlu0 %2457
        %2459 = vrot.lane.b32.xlu0 %v2201, 96
        %v2460 = vpop.permute.xlu0 %2459
        %2461 = vrot.lane.b32.xlu0 %v2206, 96
        %v2462 = vpop.permute.xlu0 %2461
        %2463 = vrot.lane.b32.xlu0 %v2211, 96
        %v2464 = vpop.permute.xlu0 %2463
        %2465 = vrot.lane.b32.xlu0 %v2216, 96
        %v2466 = vpop.permute.xlu0 %2465
        %v2468 = vsel %vm2073, %v2379, 0
        %v2471 = vsel %vm2073, %v2380, 0
        %v2474 = vsel %vm2073, %v2381, 0
        %v2477 = vsel %vm2073, %v2382, 0
        %v2480 = vsel %vm2073, %v2383, 0
        %v2483 = vsel %vm2073, %v2384, 0
        %v2486 = vsel %vm2073, %v2385, 0
        %v2489 = vsel %vm2073, %v2386, 0
        %v2492 = vsel %vm2073, %v2387, 0
        %v2495 = vsel %vm2073, %v2388, 0
        %v2498 = vsel %vm2073, %v2393, 0
        %v2501 = vsel %vm2073, %v2394, 0
        %v2504 = vsel %vm2073, %v2395, 0
        %v2507 = vsel %vm2073, %v2396, 0
        %v2510 = vsel %vm2073, %v2397, 0
        %v2513 = vsel %vm2073, %v2398, 0
        %v2516 = vsel %vm2073, %v2399, 0
        %v2519 = vsel %vm2073, %v2400, 0
        %v2522 = vsel %vm2073, %v2401, 0
        %v2525 = vsel %vm2073, %v2402, 0
        %v2528 = vsel %vm2073, %v2407, 0
        %v2531 = vsel %vm2073, %v2408, 0
        %v2534 = vsel %vm2073, %v2409, 0
        %v2537 = vsel %vm2073, %v2410, 0
        %v2540 = vsel %vm2073, %v2411, 0
        %v2543 = vsel %vm2073, %v2412, 0
        %v2546 = vsel %vm2073, %v2413, 0
        %v2549 = vsel %vm2073, %v2414, 0
        %v2552 = vsel %vm2073, %v2415, 0
        %v2555 = vsel %vm2073, %v2416, 0
        %v2558 = vsel %vm2073, %v2421, 0
        %v2561 = vsel %vm2073, %v2422, 0
        %v2564 = vsel %vm2073, %v2423, 0
        %v2567 = vsel %vm2073, %v2424, 0
        %v2570 = vsel %vm2073, %v2425, 0
        %v2573 = vsel %vm2073, %v2426, 0
        %v2576 = vsel %vm2073, %v2427, 0
        %v2579 = vsel %vm2073, %v2428, 0
        %v2582 = vsel %vm2073, %v2429, 0
        %v2585 = vsel %vm2073, %v2430, 0
        %v2587 = vsel %vm2073, %v2448, 0
        %v2589 = vsel %vm2073, %v2450, 0
        %v2591 = vsel %vm2073, %v2452, 0
        %v2593 = vsel %vm2073, %v2454, 0
        %v2595 = vsel %vm2073, %v2456, 0
        %v2597 = vsel %vm2073, %v2458, 0
        %v2599 = vsel %vm2073, %v2460, 0
        %v2601 = vsel %vm2073, %v2462, 0
        %v2603 = vsel %vm2073, %v2464, 0
        %v2605 = vsel %vm2073, %v2466, 0
        %2607 = vmatprep.subr.mxu0 0.0
        %2608 = vmatpush1.xpose.msra.mxu0 0.0
        %2609 = vmatprep.subr.mxu0 0.0
        %2610 = vmatpush1.xpose.msra.mxu0 0.0
        %2611 = vmatprep.subr.mxu0 0.0
        %2612 = vmatpush1.xpose.msra.mxu0 0.0
        %2613 = vmatprep.subr.mxu0 0.0
        %2614 = vmatpush1.xpose.msra.mxu0 0.0
        %2615 = vmatprep.subr.mxu0 0.0
        %2616 = vmatpush1.xpose.msra.mxu0 0.0
        %2617 = vmatprep.subr.mxu0 0.0
        %2618 = vmatpush1.xpose.msra.mxu0 0.0
        %2619 = vmatprep.subr.mxu0 0.0
        %2620 = vmatpush1.xpose.msra.mxu0 %v2605
        %2621 = vmatprep.subr.mxu0 0.0
        %2622 = vmatpush1.xpose.msra.mxu0 %v2603
        %2623 = vmatprep.subr.mxu0 0.0
        %2624 = vmatpush1.xpose.msra.mxu0 %v2601
        %2625 = vmatprep.subr.mxu0 0.0
        %2626 = vmatpush1.xpose.msra.mxu0 %v2599
        %2627 = vmatprep.subr.mxu0 0.0
        %2628 = vmatpush1.xpose.msra.mxu0 %v2597
        %2629 = vmatprep.subr.mxu0 0.0
        %2630 = vmatpush1.xpose.msra.mxu0 %v2595
        %2631 = vmatprep.subr.mxu0 0.0
        %2632 = vmatpush1.xpose.msra.mxu0 %v2593
        %2633 = vmatprep.subr.mxu0 0.0
        %2634 = vmatpush1.xpose.msra.mxu0 %v2591
        %2635 = vmatprep.subr.mxu0 0.0
        %2636 = vmatpush1.xpose.msra.mxu0 %v2589
        %2637 = vmatprep.subr.mxu0 0.0
        %2638 = vmatpush1.xpose.msra.mxu0 %v2587
        %2639 = vmatprep.subr.mxu0 0.0
        %2640 = vmatpush2.xpose.msra.mxu0 0.0
        %2641 = vmatprep.subr.mxu0 0.0
        %2642 = vmatpush2.xpose.msra.mxu0 0.0
        %2643 = vmatprep.subr.mxu0 0.0
        %2644 = vmatpush2.xpose.msra.mxu0 0.0
        %2645 = vmatprep.subr.mxu0 0.0
        %2646 = vmatpush2.xpose.msra.mxu0 0.0
        %2647 = vmatprep.subr.mxu0 0.0
        %2648 = vmatpush2.xpose.msra.mxu0 0.0
        %2649 = vmatprep.subr.mxu0 0.0
        %2650 = vmatpush2.xpose.msra.mxu0 0.0
        %2651 = vmatprep.subr.mxu0 0.0
        %2652 = vmatpush2.xpose.msra.mxu0 0.0
        %2653 = vmatprep.subr.mxu0 0.0
        %2654 = vmatpush2.xpose.msra.mxu0 0.0
        %2655 = vmatprep.subr.mxu0 0.0
        %2656 = vmatpush2.xpose.msra.mxu0 0.0
        %2657 = vmatprep.subr.mxu0 0.0
        %2658 = vmatpush2.xpose.msra.mxu0 0.0
        %2659 = vmatprep.subr.mxu0 0.0
        %2660 = vmatpush2.xpose.msra.mxu0 0.0
        %2661 = vmatprep.subr.mxu0 0.0
        %2662 = vmatpush2.xpose.msra.mxu0 0.0
        %2663 = vmatprep.subr.mxu0 0.0
        %2664 = vmatpush2.xpose.msra.mxu0 0.0
        %2665 = vmatprep.subr.mxu0 0.0
        %2666 = vmatpush2.xpose.msra.mxu0 0.0
        %2667 = vmatprep.subr.mxu0 0.0
        %2668 = vmatpush2.xpose.msra.mxu0 0.0
        %2669 = vmatprep.subr.mxu0 0.0
        %2670 = vmatpush2.xpose.msra.mxu0 0.0
        %2671 = vmatprep.mubr.f32.mxu0 0.0
        %2672 = vmatmul.mubr.f32.gmra.mxu0 %v2468
        %v2673 = vpop.f32.mrf.mxu0
        %v2674 = vadd.f32 %v2435, %v2673
        %v2675 = vpop.f32.mrf.mxu0
        %2676 = vmatprep.mubr.f32.mxu0 0.0
        %2677 = vmatmul.mubr.f32.gmra.mxu0 %v2471
        %v2678 = vpop.f32.mrf.mxu0
        %v2679 = vadd.f32 %v2435, %v2678
        %v2680 = vpop.f32.mrf.mxu0
        %2681 = vmatprep.mubr.f32.mxu0 0.0
        %2682 = vmatmul.mubr.f32.gmra.mxu0 %v2474
        %v2683 = vpop.f32.mrf.mxu0
        %v2684 = vadd.f32 %v2435, %v2683
        %v2685 = vpop.f32.mrf.mxu0
        %2686 = vmatprep.mubr.f32.mxu0 0.0
        %2687 = vmatmul.mubr.f32.gmra.mxu0 %v2477
        %v2688 = vpop.f32.mrf.mxu0
        %v2689 = vadd.f32 %v2435, %v2688
        %v2690 = vpop.f32.mrf.mxu0
        %2691 = vmatprep.mubr.f32.mxu0 0.0
        %2692 = vmatmul.mubr.f32.gmra.mxu0 %v2480
        %v2693 = vpop.f32.mrf.mxu0
        %v2694 = vadd.f32 %v2435, %v2693
        %v2695 = vpop.f32.mrf.mxu0
        %2696 = vmatprep.mubr.f32.mxu0 0.0
        %2697 = vmatmul.mubr.f32.gmra.mxu0 %v2483
        %v2698 = vpop.f32.mrf.mxu0
        %v2699 = vadd.f32 %v2435, %v2698
        %v2700 = vpop.f32.mrf.mxu0
        %2701 = vmatprep.mubr.f32.mxu0 0.0
        %2702 = vmatmul.mubr.f32.gmra.mxu0 %v2486
        %v2703 = vpop.f32.mrf.mxu0
        %v2704 = vadd.f32 %v2435, %v2703
        %v2705 = vpop.f32.mrf.mxu0
        %2706 = vmatprep.mubr.f32.mxu0 0.0
        %2707 = vmatmul.mubr.f32.gmra.mxu0 %v2489
        %v2708 = vpop.f32.mrf.mxu0
        %v2709 = vadd.f32 %v2435, %v2708
        %v2710 = vpop.f32.mrf.mxu0
        %2711 = vmatprep.mubr.f32.mxu0 0.0
        %2712 = vmatmul.mubr.f32.gmra.mxu0 %v2492
        %v2713 = vpop.f32.mrf.mxu0
        %v2714 = vadd.f32 %v2435, %v2713
        %v2715 = vpop.f32.mrf.mxu0
        %2716 = vmatprep.mubr.f32.mxu0 0.0
        %2717 = vmatmul.mubr.f32.gmra.mxu0 %v2495
        %v2718 = vpop.f32.mrf.mxu0
        %v2719 = vadd.f32 %v2435, %v2718
        %v2720 = vpop.f32.mrf.mxu0
        %2721 = vmatprep.mubr.f32.mxu0 0.0
        %2722 = vmatmul.mubr.f32.gmra.mxu0 %v2498
        %v2723 = vpop.f32.mrf.mxu0
        %v2724 = vadd.f32 %v2435, %v2723
        %v2725 = vpop.f32.mrf.mxu0
        %2726 = vmatprep.mubr.f32.mxu0 0.0
        %2727 = vmatmul.mubr.f32.gmra.mxu0 %v2501
        %v2728 = vpop.f32.mrf.mxu0
        %v2729 = vadd.f32 %v2435, %v2728
        %v2730 = vpop.f32.mrf.mxu0
        %2731 = vmatprep.mubr.f32.mxu0 0.0
        %2732 = vmatmul.mubr.f32.gmra.mxu0 %v2504
        %v2733 = vpop.f32.mrf.mxu0
        %v2734 = vadd.f32 %v2435, %v2733
        %v2735 = vpop.f32.mrf.mxu0
        %2736 = vmatprep.mubr.f32.mxu0 0.0
        %2737 = vmatmul.mubr.f32.gmra.mxu0 %v2507
        %v2738 = vpop.f32.mrf.mxu0
        %v2739 = vadd.f32 %v2435, %v2738
        %v2740 = vpop.f32.mrf.mxu0
        %2741 = vmatprep.mubr.f32.mxu0 0.0
        %2742 = vmatmul.mubr.f32.gmra.mxu0 %v2510
        %v2743 = vpop.f32.mrf.mxu0
        %v2744 = vadd.f32 %v2435, %v2743
        %v2745 = vpop.f32.mrf.mxu0
        %2746 = vmatprep.mubr.f32.mxu0 0.0
        %2747 = vmatmul.mubr.f32.gmra.mxu0 %v2513
        %v2748 = vpop.f32.mrf.mxu0
        %v2749 = vadd.f32 %v2435, %v2748
        %v2750 = vpop.f32.mrf.mxu0
        %2751 = vmatprep.mubr.f32.mxu0 0.0
        %2752 = vmatmul.mubr.f32.gmra.mxu0 %v2516
        %v2753 = vpop.f32.mrf.mxu0
        %v2754 = vadd.f32 %v2435, %v2753
        %v2755 = vpop.f32.mrf.mxu0
        %2756 = vmatprep.mubr.f32.mxu0 0.0
        %2757 = vmatmul.mubr.f32.gmra.mxu0 %v2519
        %v2758 = vpop.f32.mrf.mxu0
        %v2759 = vadd.f32 %v2435, %v2758
        %v2760 = vpop.f32.mrf.mxu0
        %2761 = vmatprep.mubr.f32.mxu0 0.0
        %2762 = vmatmul.mubr.f32.gmra.mxu0 %v2522
        %v2763 = vpop.f32.mrf.mxu0
        %v2764 = vadd.f32 %v2435, %v2763
        %v2765 = vpop.f32.mrf.mxu0
        %2766 = vmatprep.mubr.f32.mxu0 0.0
        %2767 = vmatmul.mubr.f32.gmra.mxu0 %v2525
        %v2768 = vpop.f32.mrf.mxu0
        %v2769 = vadd.f32 %v2435, %v2768
        %v2770 = vpop.f32.mrf.mxu0
        %2771 = vmatprep.mubr.f32.mxu0 0.0
        %2772 = vmatmul.mubr.f32.gmra.mxu0 %v2528
        %v2773 = vpop.f32.mrf.mxu0
        %v2774 = vadd.f32 %v2435, %v2773
        %v2775 = vpop.f32.mrf.mxu0
        %2776 = vmatprep.mubr.f32.mxu0 0.0
        %2777 = vmatmul.mubr.f32.gmra.mxu0 %v2531
        %v2778 = vpop.f32.mrf.mxu0
        %v2779 = vadd.f32 %v2435, %v2778
        %v2780 = vpop.f32.mrf.mxu0
        %2781 = vmatprep.mubr.f32.mxu0 0.0
        %2782 = vmatmul.mubr.f32.gmra.mxu0 %v2534
        %v2783 = vpop.f32.mrf.mxu0
        %v2784 = vadd.f32 %v2435, %v2783
        %v2785 = vpop.f32.mrf.mxu0
        %2786 = vmatprep.mubr.f32.mxu0 0.0
        %2787 = vmatmul.mubr.f32.gmra.mxu0 %v2537
        %v2788 = vpop.f32.mrf.mxu0
        %v2789 = vadd.f32 %v2435, %v2788
        %v2790 = vpop.f32.mrf.mxu0
        %2791 = vmatprep.mubr.f32.mxu0 0.0
        %2792 = vmatmul.mubr.f32.gmra.mxu0 %v2540
        %v2793 = vpop.f32.mrf.mxu0
        %v2794 = vadd.f32 %v2435, %v2793
        %v2795 = vpop.f32.mrf.mxu0
        %2796 = vmatprep.mubr.f32.mxu0 0.0
        %2797 = vmatmul.mubr.f32.gmra.mxu0 %v2543
        %v2798 = vpop.f32.mrf.mxu0
        %v2799 = vadd.f32 %v2435, %v2798
        %v2800 = vpop.f32.mrf.mxu0
        %2801 = vmatprep.mubr.f32.mxu0 0.0
        %2802 = vmatmul.mubr.f32.gmra.mxu0 %v2546
        %v2803 = vpop.f32.mrf.mxu0
        %v2804 = vadd.f32 %v2435, %v2803
        %v2805 = vpop.f32.mrf.mxu0
        %2806 = vmatprep.mubr.f32.mxu0 0.0
        %2807 = vmatmul.mubr.f32.gmra.mxu0 %v2549
        %v2808 = vpop.f32.mrf.mxu0
        %v2809 = vadd.f32 %v2435, %v2808
        %v2810 = vpop.f32.mrf.mxu0
        %2811 = vmatprep.mubr.f32.mxu0 0.0
        %2812 = vmatmul.mubr.f32.gmra.mxu0 %v2552
        %v2813 = vpop.f32.mrf.mxu0
        %v2814 = vadd.f32 %v2435, %v2813
        %v2815 = vpop.f32.mrf.mxu0
        %2816 = vmatprep.mubr.f32.mxu0 0.0
        %2817 = vmatmul.mubr.f32.gmra.mxu0 %v2555
        %v2818 = vpop.f32.mrf.mxu0
        %v2819 = vadd.f32 %v2435, %v2818
        %v2820 = vpop.f32.mrf.mxu0
        %2821 = vmatprep.mubr.f32.mxu0 0.0
        %2822 = vmatmul.mubr.f32.gmra.mxu0 %v2558
        %v2823 = vpop.f32.mrf.mxu0
        %v2824 = vadd.f32 %v2435, %v2823
        %v2825 = vpop.f32.mrf.mxu0
        %2826 = vmatprep.mubr.f32.mxu0 0.0
        %2827 = vmatmul.mubr.f32.gmra.mxu0 %v2561
        %v2828 = vpop.f32.mrf.mxu0
        %v2829 = vadd.f32 %v2435, %v2828
        %v2830 = vpop.f32.mrf.mxu0
        %2831 = vmatprep.mubr.f32.mxu0 0.0
        %2832 = vmatmul.mubr.f32.gmra.mxu0 %v2564
        %v2833 = vpop.f32.mrf.mxu0
        %v2834 = vadd.f32 %v2435, %v2833
        %v2835 = vpop.f32.mrf.mxu0
        %2836 = vmatprep.mubr.f32.mxu0 0.0
        %2837 = vmatmul.mubr.f32.gmra.mxu0 %v2567
        %v2838 = vpop.f32.mrf.mxu0
        %v2839 = vadd.f32 %v2435, %v2838
        %v2840 = vpop.f32.mrf.mxu0
        %2841 = vmatprep.mubr.f32.mxu0 0.0
        %2842 = vmatmul.mubr.f32.gmra.mxu0 %v2570
        %v2843 = vpop.f32.mrf.mxu0
        %v2844 = vadd.f32 %v2435, %v2843
        %v2845 = vpop.f32.mrf.mxu0
        %2846 = vmatprep.mubr.f32.mxu0 0.0
        %2847 = vmatmul.mubr.f32.gmra.mxu0 %v2573
        %v2848 = vpop.f32.mrf.mxu0
        %v2849 = vadd.f32 %v2435, %v2848
        %v2850 = vpop.f32.mrf.mxu0
        %2851 = vmatprep.mubr.f32.mxu0 0.0
        %2852 = vmatmul.mubr.f32.gmra.mxu0 %v2576
        %v2853 = vpop.f32.mrf.mxu0
        %v2854 = vadd.f32 %v2435, %v2853
        %v2855 = vpop.f32.mrf.mxu0
        %2856 = vmatprep.mubr.f32.mxu0 0.0
        %2857 = vmatmul.mubr.f32.gmra.mxu0 %v2579
        %v2858 = vpop.f32.mrf.mxu0
        %v2859 = vadd.f32 %v2435, %v2858
        %v2860 = vpop.f32.mrf.mxu0
        %2861 = vmatprep.mubr.f32.mxu0 0.0
        %2862 = vmatmul.mubr.f32.gmra.mxu0 %v2582
        %v2863 = vpop.f32.mrf.mxu0
        %v2864 = vadd.f32 %v2435, %v2863
        %v2865 = vpop.f32.mrf.mxu0
        %2866 = vmatprep.mubr.f32.mxu0 0.0
        %2867 = vmatmul.mubr.f32.gmra.mxu0 %v2585
        %v2868 = vpop.f32.mrf.mxu0
        %v2869 = vadd.f32 %v2435, %v2868
        %v2870 = vpop.f32.mrf.mxu0
        %2871 = vdwg.mxu0
        %vm2872 = vcmask 654336
        %v2873 = vsel %vm2872, %v2674, -inf
        %2874 = vmax.xlane.f32.xlu0 %v2873
        %v2875 = vpop.xlane.xlu0 %2874
        %v2876 = vsel %vm2872, %v2679, -inf
        %2877 = vmax.xlane.f32.xlu0 %v2876
        %v2878 = vpop.xlane.xlu0 %2877
        %v2879 = vsel %vm2872, %v2684, -inf
        %2880 = vmax.xlane.f32.xlu0 %v2879
        %v2881 = vpop.xlane.xlu0 %2880
        %v2882 = vsel %vm2872, %v2689, -inf
        %2883 = vmax.xlane.f32.xlu0 %v2882
        %v2884 = vpop.xlane.xlu0 %2883
        %v2885 = vsel %vm2872, %v2694, -inf
        %2886 = vmax.xlane.f32.xlu0 %v2885
        %v2887 = vpop.xlane.xlu0 %2886
        %v2888 = vsel %vm2872, %v2699, -inf
        %2889 = vmax.xlane.f32.xlu0 %v2888
        %v2890 = vpop.xlane.xlu0 %2889
        %v2891 = vsel %vm2872, %v2704, -inf
        %2892 = vmax.xlane.f32.xlu0 %v2891
        %v2893 = vpop.xlane.xlu0 %2892
        %v2894 = vsel %vm2872, %v2709, -inf
        %2895 = vmax.xlane.f32.xlu0 %v2894
        %v2896 = vpop.xlane.xlu0 %2895
        %v2897 = vsel %vm2872, %v2714, -inf
        %2898 = vmax.xlane.f32.xlu0 %v2897
        %v2899 = vpop.xlane.xlu0 %2898
        %v2900 = vsel %vm2872, %v2719, -inf
        %2901 = vmax.xlane.f32.xlu0 %v2900
        %v2902 = vpop.xlane.xlu0 %2901
        %v2903 = vsel %vm2872, %v2724, -inf
        %2904 = vmax.xlane.f32.xlu0 %v2903
        %v2905 = vpop.xlane.xlu0 %2904
        %v2906 = vsel %vm2872, %v2729, -inf
        %2907 = vmax.xlane.f32.xlu0 %v2906
        %v2908 = vpop.xlane.xlu0 %2907
        %v2909 = vsel %vm2872, %v2734, -inf
        %2910 = vmax.xlane.f32.xlu0 %v2909
        %v2911 = vpop.xlane.xlu0 %2910
        %v2912 = vsel %vm2872, %v2739, -inf
        %2913 = vmax.xlane.f32.xlu0 %v2912
        %v2914 = vpop.xlane.xlu0 %2913
        %v2915 = vsel %vm2872, %v2744, -inf
        %2916 = vmax.xlane.f32.xlu0 %v2915
        %v2917 = vpop.xlane.xlu0 %2916
        %v2918 = vsel %vm2872, %v2749, -inf
        %2919 = vmax.xlane.f32.xlu0 %v2918
        %v2920 = vpop.xlane.xlu0 %2919
        %v2921 = vsel %vm2872, %v2754, -inf
        %2922 = vmax.xlane.f32.xlu0 %v2921
        %v2923 = vpop.xlane.xlu0 %2922
        %v2924 = vsel %vm2872, %v2759, -inf
        %2925 = vmax.xlane.f32.xlu0 %v2924
        %v2926 = vpop.xlane.xlu0 %2925
        %v2927 = vsel %vm2872, %v2764, -inf
        %2928 = vmax.xlane.f32.xlu0 %v2927
        %v2929 = vpop.xlane.xlu0 %2928
        %v2930 = vsel %vm2872, %v2769, -inf
        %2931 = vmax.xlane.f32.xlu0 %v2930
        %v2932 = vpop.xlane.xlu0 %2931
        %v2933 = vsel %vm2872, %v2774, -inf
        %2934 = vmax.xlane.f32.xlu0 %v2933
        %v2935 = vpop.xlane.xlu0 %2934
        %v2936 = vsel %vm2872, %v2779, -inf
        %2937 = vmax.xlane.f32.xlu0 %v2936
        %v2938 = vpop.xlane.xlu0 %2937
        %v2939 = vsel %vm2872, %v2784, -inf
        %2940 = vmax.xlane.f32.xlu0 %v2939
        %v2941 = vpop.xlane.xlu0 %2940
        %v2942 = vsel %vm2872, %v2789, -inf
        %2943 = vmax.xlane.f32.xlu0 %v2942
        %v2944 = vpop.xlane.xlu0 %2943
        %v2945 = vsel %vm2872, %v2794, -inf
        %2946 = vmax.xlane.f32.xlu0 %v2945
        %v2947 = vpop.xlane.xlu0 %2946
        %v2948 = vsel %vm2872, %v2799, -inf
        %2949 = vmax.xlane.f32.xlu0 %v2948
        %v2950 = vpop.xlane.xlu0 %2949
        %v2951 = vsel %vm2872, %v2804, -inf
        %2952 = vmax.xlane.f32.xlu0 %v2951
        %v2953 = vpop.xlane.xlu0 %2952
        %v2954 = vsel %vm2872, %v2809, -inf
        %2955 = vmax.xlane.f32.xlu0 %v2954
        %v2956 = vpop.xlane.xlu0 %2955
        %v2957 = vsel %vm2872, %v2814, -inf
        %2958 = vmax.xlane.f32.xlu0 %v2957
        %v2959 = vpop.xlane.xlu0 %2958
        %v2960 = vsel %vm2872, %v2819, -inf
        %2961 = vmax.xlane.f32.xlu0 %v2960
        %v2962 = vpop.xlane.xlu0 %2961
        %v2963 = vsel %vm2872, %v2824, -inf
        %2964 = vmax.xlane.f32.xlu0 %v2963
        %v2965 = vpop.xlane.xlu0 %2964
        %v2966 = vsel %vm2872, %v2829, -inf
        %2967 = vmax.xlane.f32.xlu0 %v2966
        %v2968 = vpop.xlane.xlu0 %2967
        %v2969 = vsel %vm2872, %v2834, -inf
        %2970 = vmax.xlane.f32.xlu0 %v2969
        %v2971 = vpop.xlane.xlu0 %2970
        %v2972 = vsel %vm2872, %v2839, -inf
        %2973 = vmax.xlane.f32.xlu0 %v2972
        %v2974 = vpop.xlane.xlu0 %2973
        %v2975 = vsel %vm2872, %v2844, -inf
        %2976 = vmax.xlane.f32.xlu0 %v2975
        %v2977 = vpop.xlane.xlu0 %2976
        %v2978 = vsel %vm2872, %v2849, -inf
        %2979 = vmax.xlane.f32.xlu0 %v2978
        %v2980 = vpop.xlane.xlu0 %2979
        %v2981 = vsel %vm2872, %v2854, -inf
        %2982 = vmax.xlane.f32.xlu0 %v2981
        %v2983 = vpop.xlane.xlu0 %2982
        %v2984 = vsel %vm2872, %v2859, -inf
        %2985 = vmax.xlane.f32.xlu0 %v2984
        %v2986 = vpop.xlane.xlu0 %2985
        %v2987 = vsel %vm2872, %v2864, -inf
        %2988 = vmax.xlane.f32.xlu0 %v2987
        %v2989 = vpop.xlane.xlu0 %2988
        %v2990 = vsel %vm2872, %v2869, -inf
        %2991 = vmax.xlane.f32.xlu0 %v2990
        %v2992 = vpop.xlane.xlu0 %2991
        %v2993 = vsub.f32 %v2674, %v2875
        %v2994 = vsub.f32 %v2679, %v2878
        %v2995 = vsub.f32 %v2684, %v2881
        %v2996 = vsub.f32 %v2689, %v2884
        %v2997 = vsub.f32 %v2694, %v2887
        %v2998 = vsub.f32 %v2699, %v2890
        %v2999 = vsub.f32 %v2704, %v2893
        %v3000 = vsub.f32 %v2709, %v2896
        %v3001 = vsub.f32 %v2714, %v2899
        %v3002 = vsub.f32 %v2719, %v2902
        %v3003 = vsub.f32 %v2724, %v2905
        %v3004 = vsub.f32 %v2729, %v2908
        %v3005 = vsub.f32 %v2734, %v2911
        %v3006 = vsub.f32 %v2739, %v2914
        %v3007 = vsub.f32 %v2744, %v2917
        %v3008 = vsub.f32 %v2749, %v2920
        %v3009 = vsub.f32 %v2754, %v2923
        %v3010 = vsub.f32 %v2759, %v2926
        %v3011 = vsub.f32 %v2764, %v2929
        %v3012 = vsub.f32 %v2769, %v2932
        %v3013 = vsub.f32 %v2774, %v2935
        %v3014 = vsub.f32 %v2779, %v2938
        %v3015 = vsub.f32 %v2784, %v2941
        %v3016 = vsub.f32 %v2789, %v2944
        %v3017 = vsub.f32 %v2794, %v2947
        %v3018 = vsub.f32 %v2799, %v2950
        %v3019 = vsub.f32 %v2804, %v2953
        %v3020 = vsub.f32 %v2809, %v2956
        %v3021 = vsub.f32 %v2814, %v2959
        %v3022 = vsub.f32 %v2819, %v2962
        %v3023 = vsub.f32 %v2824, %v2965
        %v3024 = vsub.f32 %v2829, %v2968
        %v3025 = vsub.f32 %v2834, %v2971
        %v3026 = vsub.f32 %v2839, %v2974
        %v3027 = vsub.f32 %v2844, %v2977
        %v3028 = vsub.f32 %v2849, %v2980
        %v3029 = vsub.f32 %v2854, %v2983
        %v3030 = vsub.f32 %v2859, %v2986
        %v3031 = vsub.f32 %v2864, %v2989
        %v3032 = vsub.f32 %v2869, %v2992
        %v3033 = vmul.f32 %v2993, 1.442695
        %v3034 = vpow.pop %v3033
        %v3035 = vmul.f32 %v2994, 1.442695
        %v3036 = vpow.pop %v3035
        %v3037 = vmul.f32 %v2995, 1.442695
        %v3038 = vpow.pop %v3037
        %v3039 = vmul.f32 %v2996, 1.442695
        %v3040 = vpow.pop %v3039
        %v3041 = vmul.f32 %v2997, 1.442695
        %v3042 = vpow.pop %v3041
        %v3043 = vmul.f32 %v2998, 1.442695
        %v3044 = vpow.pop %v3043
        %v3045 = vmul.f32 %v2999, 1.442695
        %v3046 = vpow.pop %v3045
        %v3047 = vmul.f32 %v3000, 1.442695
        %v3048 = vpow.pop %v3047
        %v3049 = vmul.f32 %v3001, 1.442695
        %v3050 = vpow.pop %v3049
        %v3051 = vmul.f32 %v3002, 1.442695
        %v3052 = vpow.pop %v3051
        %v3053 = vmul.f32 %v3003, 1.442695
        %v3054 = vpow.pop %v3053
        %v3055 = vmul.f32 %v3004, 1.442695
        %v3056 = vpow.pop %v3055
        %v3057 = vmul.f32 %v3005, 1.442695
        %v3058 = vpow.pop %v3057
        %v3059 = vmul.f32 %v3006, 1.442695
        %v3060 = vpow.pop %v3059
        %v3061 = vmul.f32 %v3007, 1.442695
        %v3062 = vpow.pop %v3061
        %v3063 = vmul.f32 %v3008, 1.442695
        %v3064 = vpow.pop %v3063
        %v3065 = vmul.f32 %v3009, 1.442695
        %v3066 = vpow.pop %v3065
        %v3067 = vmul.f32 %v3010, 1.442695
        %v3068 = vpow.pop %v3067
        %v3069 = vmul.f32 %v3011, 1.442695
        %v3070 = vpow.pop %v3069
        %v3071 = vmul.f32 %v3012, 1.442695
        %v3072 = vpow.pop %v3071
        %v3073 = vmul.f32 %v3013, 1.442695
        %v3074 = vpow.pop %v3073
        %v3075 = vmul.f32 %v3014, 1.442695
        %v3076 = vpow.pop %v3075
        %v3077 = vmul.f32 %v3015, 1.442695
        %v3078 = vpow.pop %v3077
        %v3079 = vmul.f32 %v3016, 1.442695
        %v3080 = vpow.pop %v3079
        %v3081 = vmul.f32 %v3017, 1.442695
        %v3082 = vpow.pop %v3081
        %v3083 = vmul.f32 %v3018, 1.442695
        %v3084 = vpow.pop %v3083
        %v3085 = vmul.f32 %v3019, 1.442695
        %v3086 = vpow.pop %v3085
        %v3087 = vmul.f32 %v3020, 1.442695
        %v3088 = vpow.pop %v3087
        %v3089 = vmul.f32 %v3021, 1.442695
        %v3090 = vpow.pop %v3089
        %v3091 = vmul.f32 %v3022, 1.442695
        %v3092 = vpow.pop %v3091
        %v3093 = vmul.f32 %v3023, 1.442695
        %v3094 = vpow.pop %v3093
        %v3095 = vmul.f32 %v3024, 1.442695
        %v3096 = vpow.pop %v3095
        %v3097 = vmul.f32 %v3025, 1.442695
        %v3098 = vpow.pop %v3097
        %v3099 = vmul.f32 %v3026, 1.442695
        %v3100 = vpow.pop %v3099
        %v3101 = vmul.f32 %v3027, 1.442695
        %v3102 = vpow.pop %v3101
        %v3103 = vmul.f32 %v3028, 1.442695
        %v3104 = vpow.pop %v3103
        %v3105 = vmul.f32 %v3029, 1.442695
        %v3106 = vpow.pop %v3105
        %v3107 = vmul.f32 %v3030, 1.442695
        %v3108 = vpow.pop %v3107
        %v3109 = vmul.f32 %v3031, 1.442695
        %v3110 = vpow.pop %v3109
        %v3111 = vmul.f32 %v3032, 1.442695
        %v3112 = vpow.pop %v3111
        %v3113 = vsel %vm2872, %v3034, 0.0
        %3114 = vadd.xlane.f32.xlu0 %v3113
        %v3115 = vpop.xlane.xlu0 %3114
        %v3116 = vsel %vm2872, %v3036, 0.0
        %3117 = vadd.xlane.f32.xlu0 %v3116
        %v3118 = vpop.xlane.xlu0 %3117
        %v3119 = vsel %vm2872, %v3038, 0.0
        %3120 = vadd.xlane.f32.xlu0 %v3119
        %v3121 = vpop.xlane.xlu0 %3120
        %v3122 = vsel %vm2872, %v3040, 0.0
        %3123 = vadd.xlane.f32.xlu0 %v3122
        %v3124 = vpop.xlane.xlu0 %3123
        %v3125 = vsel %vm2872, %v3042, 0.0
        %3126 = vadd.xlane.f32.xlu0 %v3125
        %v3127 = vpop.xlane.xlu0 %3126
        %v3128 = vsel %vm2872, %v3044, 0.0
        %3129 = vadd.xlane.f32.xlu0 %v3128
        %v3130 = vpop.xlane.xlu0 %3129
        %v3131 = vsel %vm2872, %v3046, 0.0
        %3132 = vadd.xlane.f32.xlu0 %v3131
        %v3133 = vpop.xlane.xlu0 %3132
        %v3134 = vsel %vm2872, %v3048, 0.0
        %3135 = vadd.xlane.f32.xlu0 %v3134
        %v3136 = vpop.xlane.xlu0 %3135
        %v3137 = vsel %vm2872, %v3050, 0.0
        %3138 = vadd.xlane.f32.xlu0 %v3137
        %v3139 = vpop.xlane.xlu0 %3138
        %v3140 = vsel %vm2872, %v3052, 0.0
        %3141 = vadd.xlane.f32.xlu0 %v3140
        %v3142 = vpop.xlane.xlu0 %3141
        %v3143 = vsel %vm2872, %v3054, 0.0
        %3144 = vadd.xlane.f32.xlu0 %v3143
        %v3145 = vpop.xlane.xlu0 %3144
        %v3146 = vsel %vm2872, %v3056, 0.0
        %3147 = vadd.xlane.f32.xlu0 %v3146
        %v3148 = vpop.xlane.xlu0 %3147
        %v3149 = vsel %vm2872, %v3058, 0.0
        %3150 = vadd.xlane.f32.xlu0 %v3149
        %v3151 = vpop.xlane.xlu0 %3150
        %v3152 = vsel %vm2872, %v3060, 0.0
        %3153 = vadd.xlane.f32.xlu0 %v3152
        %v3154 = vpop.xlane.xlu0 %3153
        %v3155 = vsel %vm2872, %v3062, 0.0
        %3156 = vadd.xlane.f32.xlu0 %v3155
        %v3157 = vpop.xlane.xlu0 %3156
        %v3158 = vsel %vm2872, %v3064, 0.0
        %3159 = vadd.xlane.f32.xlu0 %v3158
        %v3160 = vpop.xlane.xlu0 %3159
        %v3161 = vsel %vm2872, %v3066, 0.0
        %3162 = vadd.xlane.f32.xlu0 %v3161
        %v3163 = vpop.xlane.xlu0 %3162
        %v3164 = vsel %vm2872, %v3068, 0.0
        %3165 = vadd.xlane.f32.xlu0 %v3164
        %v3166 = vpop.xlane.xlu0 %3165
        %v3167 = vsel %vm2872, %v3070, 0.0
        %3168 = vadd.xlane.f32.xlu0 %v3167
        %v3169 = vpop.xlane.xlu0 %3168
        %v3170 = vsel %vm2872, %v3072, 0.0
        %3171 = vadd.xlane.f32.xlu0 %v3170
        %v3172 = vpop.xlane.xlu0 %3171
        %v3173 = vsel %vm2872, %v3074, 0.0
        %3174 = vadd.xlane.f32.xlu0 %v3173
        %v3175 = vpop.xlane.xlu0 %3174
        %v3176 = vsel %vm2872, %v3076, 0.0
        %3177 = vadd.xlane.f32.xlu0 %v3176
        %v3178 = vpop.xlane.xlu0 %3177
        %v3179 = vsel %vm2872, %v3078, 0.0
        %3180 = vadd.xlane.f32.xlu0 %v3179
        %v3181 = vpop.xlane.xlu0 %3180
        %v3182 = vsel %vm2872, %v3080, 0.0
        %3183 = vadd.xlane.f32.xlu0 %v3182
        %v3184 = vpop.xlane.xlu0 %3183
        %v3185 = vsel %vm2872, %v3082, 0.0
        %3186 = vadd.xlane.f32.xlu0 %v3185
        %v3187 = vpop.xlane.xlu0 %3186
        %v3188 = vsel %vm2872, %v3084, 0.0
        %3189 = vadd.xlane.f32.xlu0 %v3188
        %v3190 = vpop.xlane.xlu0 %3189
        %v3191 = vsel %vm2872, %v3086, 0.0
        %3192 = vadd.xlane.f32.xlu0 %v3191
        %v3193 = vpop.xlane.xlu0 %3192
        %v3194 = vsel %vm2872, %v3088, 0.0
        %3195 = vadd.xlane.f32.xlu0 %v3194
        %v3196 = vpop.xlane.xlu0 %3195
        %v3197 = vsel %vm2872, %v3090, 0.0
        %3198 = vadd.xlane.f32.xlu0 %v3197
        %v3199 = vpop.xlane.xlu0 %3198
        %v3200 = vsel %vm2872, %v3092, 0.0
        %3201 = vadd.xlane.f32.xlu0 %v3200
        %v3202 = vpop.xlane.xlu0 %3201
        %v3203 = vsel %vm2872, %v3094, 0.0
        %3204 = vadd.xlane.f32.xlu0 %v3203
        %v3205 = vpop.xlane.xlu0 %3204
        %v3206 = vsel %vm2872, %v3096, 0.0
        %3207 = vadd.xlane.f32.xlu0 %v3206
        %v3208 = vpop.xlane.xlu0 %3207
        %v3209 = vsel %vm2872, %v3098, 0.0
        %3210 = vadd.xlane.f32.xlu0 %v3209
        %v3211 = vpop.xlane.xlu0 %3210
        %v3212 = vsel %vm2872, %v3100, 0.0
        %3213 = vadd.xlane.f32.xlu0 %v3212
        %v3214 = vpop.xlane.xlu0 %3213
        %v3215 = vsel %vm2872, %v3102, 0.0
        %3216 = vadd.xlane.f32.xlu0 %v3215
        %v3217 = vpop.xlane.xlu0 %3216
        %v3218 = vsel %vm2872, %v3104, 0.0
        %3219 = vadd.xlane.f32.xlu0 %v3218
        %v3220 = vpop.xlane.xlu0 %3219
        %v3221 = vsel %vm2872, %v3106, 0.0
        %3222 = vadd.xlane.f32.xlu0 %v3221
        %v3223 = vpop.xlane.xlu0 %3222
        %v3224 = vsel %vm2872, %v3108, 0.0
        %3225 = vadd.xlane.f32.xlu0 %v3224
        %v3226 = vpop.xlane.xlu0 %3225
        %v3227 = vsel %vm2872, %v3110, 0.0
        %3228 = vadd.xlane.f32.xlu0 %v3227
        %v3229 = vpop.xlane.xlu0 %3228
        %v3230 = vsel %vm2872, %v3112, 0.0
        %3231 = vadd.xlane.f32.xlu0 %v3230
        %v3232 = vpop.xlane.xlu0 %3231
        %v3233 = vadd.f32 %v3115, 1e-09
        %v3234 = vadd.f32 %v3118, 1e-09
        %v3235 = vadd.f32 %v3121, 1e-09
        %v3236 = vadd.f32 %v3124, 1e-09
        %v3237 = vadd.f32 %v3127, 1e-09
        %v3238 = vadd.f32 %v3130, 1e-09
        %v3239 = vadd.f32 %v3133, 1e-09
        %v3240 = vadd.f32 %v3136, 1e-09
        %v3241 = vadd.f32 %v3139, 1e-09
        %v3242 = vadd.f32 %v3142, 1e-09
        %v3243 = vadd.f32 %v3145, 1e-09
        %v3244 = vadd.f32 %v3148, 1e-09
        %v3245 = vadd.f32 %v3151, 1e-09
        %v3246 = vadd.f32 %v3154, 1e-09
        %v3247 = vadd.f32 %v3157, 1e-09
        %v3248 = vadd.f32 %v3160, 1e-09
        %v3249 = vadd.f32 %v3163, 1e-09
        %v3250 = vadd.f32 %v3166, 1e-09
        %v3251 = vadd.f32 %v3169, 1e-09
        %v3252 = vadd.f32 %v3172, 1e-09
        %v3253 = vadd.f32 %v3175, 1e-09
        %v3254 = vadd.f32 %v3178, 1e-09
        %v3255 = vadd.f32 %v3181, 1e-09
        %v3256 = vadd.f32 %v3184, 1e-09
        %v3257 = vadd.f32 %v3187, 1e-09
        %v3258 = vadd.f32 %v3190, 1e-09
        %v3259 = vadd.f32 %v3193, 1e-09
        %v3260 = vadd.f32 %v3196, 1e-09
        %v3261 = vadd.f32 %v3199, 1e-09
        %v3262 = vadd.f32 %v3202, 1e-09
        %v3263 = vadd.f32 %v3205, 1e-09
        %v3264 = vadd.f32 %v3208, 1e-09
        %v3265 = vadd.f32 %v3211, 1e-09
        %v3266 = vadd.f32 %v3214, 1e-09
        %v3267 = vadd.f32 %v3217, 1e-09
        %v3268 = vadd.f32 %v3220, 1e-09
        %v3269 = vadd.f32 %v3223, 1e-09
        %v3270 = vadd.f32 %v3226, 1e-09
        %v3271 = vadd.f32 %v3229, 1e-09
        %v3272 = vadd.f32 %v3232, 1e-09
        %v3273 = vrcp.pop %v3233
        %v3274 = vrcp.pop %v3234
        %v3275 = vrcp.pop %v3235
        %v3276 = vrcp.pop %v3236
        %v3277 = vrcp.pop %v3237
        %v3278 = vrcp.pop %v3238
        %v3279 = vrcp.pop %v3239
        %v3280 = vrcp.pop %v3240
        %v3281 = vrcp.pop %v3241
        %v3282 = vrcp.pop %v3242
        %v3283 = vrcp.pop %v3243
        %v3284 = vrcp.pop %v3244
        %v3285 = vrcp.pop %v3245
        %v3286 = vrcp.pop %v3246
        %v3287 = vrcp.pop %v3247
        %v3288 = vrcp.pop %v3248
        %v3289 = vrcp.pop %v3249
        %v3290 = vrcp.pop %v3250
        %v3291 = vrcp.pop %v3251
        %v3292 = vrcp.pop %v3252
        %v3293 = vrcp.pop %v3253
        %v3294 = vrcp.pop %v3254
        %v3295 = vrcp.pop %v3255
        %v3296 = vrcp.pop %v3256
        %v3297 = vrcp.pop %v3257
        %v3298 = vrcp.pop %v3258
        %v3299 = vrcp.pop %v3259
        %v3300 = vrcp.pop %v3260
        %v3301 = vrcp.pop %v3261
        %v3302 = vrcp.pop %v3262
        %v3303 = vrcp.pop %v3263
        %v3304 = vrcp.pop %v3264
        %v3305 = vrcp.pop %v3265
        %v3306 = vrcp.pop %v3266
        %v3307 = vrcp.pop %v3267
        %v3308 = vrcp.pop %v3268
        %v3309 = vrcp.pop %v3269
        %v3310 = vrcp.pop %v3270
        %v3311 = vrcp.pop %v3271
        %v3312 = vrcp.pop %v3272
        %v3313 = vmul.f32 %v3034, %v3273
        %v3314 = vmul.f32 %v3036, %v3274
        %v3315 = vmul.f32 %v3038, %v3275
        %v3316 = vmul.f32 %v3040, %v3276
        %v3317 = vmul.f32 %v3042, %v3277
        %v3318 = vmul.f32 %v3044, %v3278
        %v3319 = vmul.f32 %v3046, %v3279
        %v3320 = vmul.f32 %v3048, %v3280
        %v3321 = vmul.f32 %v3050, %v3281
        %v3322 = vmul.f32 %v3052, %v3282
        %v3323 = vmul.f32 %v3054, %v3283
        %v3324 = vmul.f32 %v3056, %v3284
        %v3325 = vmul.f32 %v3058, %v3285
        %v3326 = vmul.f32 %v3060, %v3286
        %v3327 = vmul.f32 %v3062, %v3287
        %v3328 = vmul.f32 %v3064, %v3288
        %v3329 = vmul.f32 %v3066, %v3289
        %v3330 = vmul.f32 %v3068, %v3290
        %v3331 = vmul.f32 %v3070, %v3291
        %v3332 = vmul.f32 %v3072, %v3292
        %v3333 = vmul.f32 %v3074, %v3293
        %v3334 = vmul.f32 %v3076, %v3294
        %v3335 = vmul.f32 %v3078, %v3295
        %v3336 = vmul.f32 %v3080, %v3296
        %v3337 = vmul.f32 %v3082, %v3297
        %v3338 = vmul.f32 %v3084, %v3298
        %v3339 = vmul.f32 %v3086, %v3299
        %v3340 = vmul.f32 %v3088, %v3300
        %v3341 = vmul.f32 %v3090, %v3301
        %v3342 = vmul.f32 %v3092, %v3302
        %v3343 = vmul.f32 %v3094, %v3303
        %v3344 = vmul.f32 %v3096, %v3304
        %v3345 = vmul.f32 %v3098, %v3305
        %v3346 = vmul.f32 %v3100, %v3306
        %v3347 = vmul.f32 %v3102, %v3307
        %v3348 = vmul.f32 %v3104, %v3308
        %v3349 = vmul.f32 %v3106, %v3309
        %v3350 = vmul.f32 %v3108, %v3310
        %v3351 = vmul.f32 %v3110, %v3311
        %v3352 = vmul.f32 %v3112, %v3312
        %v3354 = vsel %vm2872, %v3313, 0
        %v3357 = vsel %vm2872, %v3314, 0
        %v3360 = vsel %vm2872, %v3315, 0
        %v3363 = vsel %vm2872, %v3316, 0
        %v3366 = vsel %vm2872, %v3317, 0
        %v3369 = vsel %vm2872, %v3318, 0
        %v3372 = vsel %vm2872, %v3319, 0
        %v3375 = vsel %vm2872, %v3320, 0
        %v3378 = vsel %vm2872, %v3321, 0
        %v3381 = vsel %vm2872, %v3322, 0
        %v3384 = vsel %vm2872, %v3323, 0
        %v3387 = vsel %vm2872, %v3324, 0
        %v3390 = vsel %vm2872, %v3325, 0
        %v3393 = vsel %vm2872, %v3326, 0
        %v3396 = vsel %vm2872, %v3327, 0
        %v3399 = vsel %vm2872, %v3328, 0
        %v3402 = vsel %vm2872, %v3329, 0
        %v3405 = vsel %vm2872, %v3330, 0
        %v3408 = vsel %vm2872, %v3331, 0
        %v3411 = vsel %vm2872, %v3332, 0
        %v3414 = vsel %vm2872, %v3333, 0
        %v3417 = vsel %vm2872, %v3334, 0
        %v3420 = vsel %vm2872, %v3335, 0
        %v3423 = vsel %vm2872, %v3336, 0
        %v3426 = vsel %vm2872, %v3337, 0
        %v3429 = vsel %vm2872, %v3338, 0
        %v3432 = vsel %vm2872, %v3339, 0
        %v3435 = vsel %vm2872, %v3340, 0
        %v3438 = vsel %vm2872, %v3341, 0
        %v3441 = vsel %vm2872, %v3342, 0
        %v3444 = vsel %vm2872, %v3343, 0
        %v3447 = vsel %vm2872, %v3344, 0
        %v3450 = vsel %vm2872, %v3345, 0
        %v3453 = vsel %vm2872, %v3346, 0
        %v3456 = vsel %vm2872, %v3347, 0
        %v3459 = vsel %vm2872, %v3348, 0
        %v3462 = vsel %vm2872, %v3349, 0
        %v3465 = vsel %vm2872, %v3350, 0
        %v3468 = vsel %vm2872, %v3351, 0
        %v3471 = vsel %vm2872, %v3352, 0
        %3473 = vmatprep.subr.mxu0 0.0
        %3474 = vmatpush1.msra.mxu0 0.0
        %3475 = vmatprep.subr.mxu0 0.0
        %3476 = vmatpush1.msra.mxu0 0.0
        %3477 = vmatprep.subr.mxu0 0.0
        %3478 = vmatpush1.msra.mxu0 0.0
        %3479 = vmatprep.subr.mxu0 0.0
        %3480 = vmatpush1.msra.mxu0 0.0
        %3481 = vmatprep.subr.mxu0 0.0
        %3482 = vmatpush1.msra.mxu0 0.0
        %3483 = vmatprep.subr.mxu0 0.0
        %3484 = vmatpush1.msra.mxu0 0.0
        %3485 = vmatprep.subr.mxu0 0.0
        %3486 = vmatpush1.msra.mxu0 %v2372
        %3487 = vmatprep.subr.mxu0 0.0
        %3488 = vmatpush1.msra.mxu0 %v2367
        %3489 = vmatprep.subr.mxu0 0.0
        %3490 = vmatpush1.msra.mxu0 %v2362
        %3491 = vmatprep.subr.mxu0 0.0
        %3492 = vmatpush1.msra.mxu0 %v2357
        %3493 = vmatprep.subr.mxu0 0.0
        %3494 = vmatpush1.msra.mxu0 %v2352
        %3495 = vmatprep.subr.mxu0 0.0
        %3496 = vmatpush1.msra.mxu0 %v2347
        %3497 = vmatprep.subr.mxu0 0.0
        %3498 = vmatpush1.msra.mxu0 %v2342
        %3499 = vmatprep.subr.mxu0 0.0
        %3500 = vmatpush1.msra.mxu0 %v2337
        %3501 = vmatprep.subr.mxu0 0.0
        %3502 = vmatpush1.msra.mxu0 %v2332
        %3503 = vmatprep.subr.mxu0 0.0
        %3504 = vmatpush1.msra.mxu0 %v2327
        %3505 = vmatprep.subr.mxu0 0.0
        %3506 = vmatpush2.msra.mxu0 0.0
        %3507 = vmatprep.subr.mxu0 0.0
        %3508 = vmatpush2.msra.mxu0 0.0
        %3509 = vmatprep.subr.mxu0 0.0
        %3510 = vmatpush2.msra.mxu0 0.0
        %3511 = vmatprep.subr.mxu0 0.0
        %3512 = vmatpush2.msra.mxu0 0.0
        %3513 = vmatprep.subr.mxu0 0.0
        %3514 = vmatpush2.msra.mxu0 0.0
        %3515 = vmatprep.subr.mxu0 0.0
        %3516 = vmatpush2.msra.mxu0 0.0
        %3517 = vmatprep.subr.mxu0 0.0
        %3518 = vmatpush2.msra.mxu0 0.0
        %3519 = vmatprep.subr.mxu0 0.0
        %3520 = vmatpush2.msra.mxu0 0.0
        %3521 = vmatprep.subr.mxu0 0.0
        %3522 = vmatpush2.msra.mxu0 0.0
        %3523 = vmatprep.subr.mxu0 0.0
        %3524 = vmatpush2.msra.mxu0 0.0
        %3525 = vmatprep.subr.mxu0 0.0
        %3526 = vmatpush2.msra.mxu0 0.0
        %3527 = vmatprep.subr.mxu0 0.0
        %3528 = vmatpush2.msra.mxu0 0.0
        %3529 = vmatprep.subr.mxu0 0.0
        %3530 = vmatpush2.msra.mxu0 0.0
        %3531 = vmatprep.subr.mxu0 0.0
        %3532 = vmatpush2.msra.mxu0 0.0
        %3533 = vmatprep.subr.mxu0 0.0
        %3534 = vmatpush2.msra.mxu0 0.0
        %3535 = vmatprep.subr.mxu0 0.0
        %3536 = vmatpush2.msra.mxu0 0.0
        %3537 = vmatprep.mubr.f32.mxu0 0.0
        %3538 = vmatmul.mubr.f32.gmra.mxu0 %v3354
        %v3539 = vpop.f32.mrf.mxu0
        %v3540 = vadd.f32 0.0, %v3539
        %v3541 = vpop.f32.mrf.mxu0
        %3542 = vmatprep.mubr.f32.mxu0 0.0
        %3543 = vmatmul.mubr.f32.gmra.mxu0 %v3357
        %v3544 = vpop.f32.mrf.mxu0
        %v3545 = vadd.f32 0.0, %v3544
        %v3546 = vpop.f32.mrf.mxu0
        %3547 = vmatprep.mubr.f32.mxu0 0.0
        %3548 = vmatmul.mubr.f32.gmra.mxu0 %v3360
        %v3549 = vpop.f32.mrf.mxu0
        %v3550 = vadd.f32 0.0, %v3549
        %v3551 = vpop.f32.mrf.mxu0
        %3552 = vmatprep.mubr.f32.mxu0 0.0
        %3553 = vmatmul.mubr.f32.gmra.mxu0 %v3363
        %v3554 = vpop.f32.mrf.mxu0
        %v3555 = vadd.f32 0.0, %v3554
        %v3556 = vpop.f32.mrf.mxu0
        %3557 = vmatprep.mubr.f32.mxu0 0.0
        %3558 = vmatmul.mubr.f32.gmra.mxu0 %v3366
        %v3559 = vpop.f32.mrf.mxu0
        %v3560 = vadd.f32 0.0, %v3559
        %v3561 = vpop.f32.mrf.mxu0
        %3562 = vmatprep.mubr.f32.mxu0 0.0
        %3563 = vmatmul.mubr.f32.gmra.mxu0 %v3369
        %v3564 = vpop.f32.mrf.mxu0
        %v3565 = vadd.f32 0.0, %v3564
        %v3566 = vpop.f32.mrf.mxu0
        %3567 = vmatprep.mubr.f32.mxu0 0.0
        %3568 = vmatmul.mubr.f32.gmra.mxu0 %v3372
        %v3569 = vpop.f32.mrf.mxu0
        %v3570 = vadd.f32 0.0, %v3569
        %v3571 = vpop.f32.mrf.mxu0
        %3572 = vmatprep.mubr.f32.mxu0 0.0
        %3573 = vmatmul.mubr.f32.gmra.mxu0 %v3375
        %v3574 = vpop.f32.mrf.mxu0
        %v3575 = vadd.f32 0.0, %v3574
        %v3576 = vpop.f32.mrf.mxu0
        %3577 = vmatprep.mubr.f32.mxu0 0.0
        %3578 = vmatmul.mubr.f32.gmra.mxu0 %v3378
        %v3579 = vpop.f32.mrf.mxu0
        %v3580 = vadd.f32 0.0, %v3579
        %v3581 = vpop.f32.mrf.mxu0
        %3582 = vmatprep.mubr.f32.mxu0 0.0
        %3583 = vmatmul.mubr.f32.gmra.mxu0 %v3381
        %v3584 = vpop.f32.mrf.mxu0
        %v3585 = vadd.f32 0.0, %v3584
        %v3586 = vpop.f32.mrf.mxu0
        %3587 = vmatprep.mubr.f32.mxu0 0.0
        %3588 = vmatmul.mubr.f32.gmra.mxu0 %v3384
        %v3589 = vpop.f32.mrf.mxu0
        %v3590 = vadd.f32 0.0, %v3589
        %v3591 = vpop.f32.mrf.mxu0
        %3592 = vmatprep.mubr.f32.mxu0 0.0
        %3593 = vmatmul.mubr.f32.gmra.mxu0 %v3387
        %v3594 = vpop.f32.mrf.mxu0
        %v3595 = vadd.f32 0.0, %v3594
        %v3596 = vpop.f32.mrf.mxu0
        %3597 = vmatprep.mubr.f32.mxu0 0.0
        %3598 = vmatmul.mubr.f32.gmra.mxu0 %v3390
        %v3599 = vpop.f32.mrf.mxu0
        %v3600 = vadd.f32 0.0, %v3599
        %v3601 = vpop.f32.mrf.mxu0
        %3602 = vmatprep.mubr.f32.mxu0 0.0
        %3603 = vmatmul.mubr.f32.gmra.mxu0 %v3393
        %v3604 = vpop.f32.mrf.mxu0
        %v3605 = vadd.f32 0.0, %v3604
        %v3606 = vpop.f32.mrf.mxu0
        %3607 = vmatprep.mubr.f32.mxu0 0.0
        %3608 = vmatmul.mubr.f32.gmra.mxu0 %v3396
        %v3609 = vpop.f32.mrf.mxu0
        %v3610 = vadd.f32 0.0, %v3609
        %v3611 = vpop.f32.mrf.mxu0
        %3612 = vmatprep.mubr.f32.mxu0 0.0
        %3613 = vmatmul.mubr.f32.gmra.mxu0 %v3399
        %v3614 = vpop.f32.mrf.mxu0
        %v3615 = vadd.f32 0.0, %v3614
        %v3616 = vpop.f32.mrf.mxu0
        %3617 = vmatprep.mubr.f32.mxu0 0.0
        %3618 = vmatmul.mubr.f32.gmra.mxu0 %v3402
        %v3619 = vpop.f32.mrf.mxu0
        %v3620 = vadd.f32 0.0, %v3619
        %v3621 = vpop.f32.mrf.mxu0
        %3622 = vmatprep.mubr.f32.mxu0 0.0
        %3623 = vmatmul.mubr.f32.gmra.mxu0 %v3405
        %v3624 = vpop.f32.mrf.mxu0
        %v3625 = vadd.f32 0.0, %v3624
        %v3626 = vpop.f32.mrf.mxu0
        %3627 = vmatprep.mubr.f32.mxu0 0.0
        %3628 = vmatmul.mubr.f32.gmra.mxu0 %v3408
        %v3629 = vpop.f32.mrf.mxu0
        %v3630 = vadd.f32 0.0, %v3629
        %v3631 = vpop.f32.mrf.mxu0
        %3632 = vmatprep.mubr.f32.mxu0 0.0
        %3633 = vmatmul.mubr.f32.gmra.mxu0 %v3411
        %v3634 = vpop.f32.mrf.mxu0
        %v3635 = vadd.f32 0.0, %v3634
        %v3636 = vpop.f32.mrf.mxu0
        %3637 = vmatprep.mubr.f32.mxu0 0.0
        %3638 = vmatmul.mubr.f32.gmra.mxu0 %v3414
        %v3639 = vpop.f32.mrf.mxu0
        %v3640 = vadd.f32 0.0, %v3639
        %v3641 = vpop.f32.mrf.mxu0
        %3642 = vmatprep.mubr.f32.mxu0 0.0
        %3643 = vmatmul.mubr.f32.gmra.mxu0 %v3417
        %v3644 = vpop.f32.mrf.mxu0
        %v3645 = vadd.f32 0.0, %v3644
        %v3646 = vpop.f32.mrf.mxu0
        %3647 = vmatprep.mubr.f32.mxu0 0.0
        %3648 = vmatmul.mubr.f32.gmra.mxu0 %v3420
        %v3649 = vpop.f32.mrf.mxu0
        %v3650 = vadd.f32 0.0, %v3649
        %v3651 = vpop.f32.mrf.mxu0
        %3652 = vmatprep.mubr.f32.mxu0 0.0
        %3653 = vmatmul.mubr.f32.gmra.mxu0 %v3423
        %v3654 = vpop.f32.mrf.mxu0
        %v3655 = vadd.f32 0.0, %v3654
        %v3656 = vpop.f32.mrf.mxu0
        %3657 = vmatprep.mubr.f32.mxu0 0.0
        %3658 = vmatmul.mubr.f32.gmra.mxu0 %v3426
        %v3659 = vpop.f32.mrf.mxu0
        %v3660 = vadd.f32 0.0, %v3659
        %v3661 = vpop.f32.mrf.mxu0
        %3662 = vmatprep.mubr.f32.mxu0 0.0
        %3663 = vmatmul.mubr.f32.gmra.mxu0 %v3429
        %v3664 = vpop.f32.mrf.mxu0
        %v3665 = vadd.f32 0.0, %v3664
        %v3666 = vpop.f32.mrf.mxu0
        %3667 = vmatprep.mubr.f32.mxu0 0.0
        %3668 = vmatmul.mubr.f32.gmra.mxu0 %v3432
        %v3669 = vpop.f32.mrf.mxu0
        %v3670 = vadd.f32 0.0, %v3669
        %v3671 = vpop.f32.mrf.mxu0
        %3672 = vmatprep.mubr.f32.mxu0 0.0
        %3673 = vmatmul.mubr.f32.gmra.mxu0 %v3435
        %v3674 = vpop.f32.mrf.mxu0
        %v3675 = vadd.f32 0.0, %v3674
        %v3676 = vpop.f32.mrf.mxu0
        %3677 = vmatprep.mubr.f32.mxu0 0.0
        %3678 = vmatmul.mubr.f32.gmra.mxu0 %v3438
        %v3679 = vpop.f32.mrf.mxu0
        %v3680 = vadd.f32 0.0, %v3679
        %v3681 = vpop.f32.mrf.mxu0
        %3682 = vmatprep.mubr.f32.mxu0 0.0
        %3683 = vmatmul.mubr.f32.gmra.mxu0 %v3441
        %v3684 = vpop.f32.mrf.mxu0
        %v3685 = vadd.f32 0.0, %v3684
        %v3686 = vpop.f32.mrf.mxu0
        %3687 = vmatprep.mubr.f32.mxu0 0.0
        %3688 = vmatmul.mubr.f32.gmra.mxu0 %v3444
        %v3689 = vpop.f32.mrf.mxu0
        %v3690 = vadd.f32 0.0, %v3689
        %v3691 = vpop.f32.mrf.mxu0
        %3692 = vmatprep.mubr.f32.mxu0 0.0
        %3693 = vmatmul.mubr.f32.gmra.mxu0 %v3447
        %v3694 = vpop.f32.mrf.mxu0
        %v3695 = vadd.f32 0.0, %v3694
        %v3696 = vpop.f32.mrf.mxu0
        %3697 = vmatprep.mubr.f32.mxu0 0.0
        %3698 = vmatmul.mubr.f32.gmra.mxu0 %v3450
        %v3699 = vpop.f32.mrf.mxu0
        %v3700 = vadd.f32 0.0, %v3699
        %v3701 = vpop.f32.mrf.mxu0
        %3702 = vmatprep.mubr.f32.mxu0 0.0
        %3703 = vmatmul.mubr.f32.gmra.mxu0 %v3453
        %v3704 = vpop.f32.mrf.mxu0
        %v3705 = vadd.f32 0.0, %v3704
        %v3706 = vpop.f32.mrf.mxu0
        %3707 = vmatprep.mubr.f32.mxu0 0.0
        %3708 = vmatmul.mubr.f32.gmra.mxu0 %v3456
        %v3709 = vpop.f32.mrf.mxu0
        %v3710 = vadd.f32 0.0, %v3709
        %v3711 = vpop.f32.mrf.mxu0
        %3712 = vmatprep.mubr.f32.mxu0 0.0
        %3713 = vmatmul.mubr.f32.gmra.mxu0 %v3459
        %v3714 = vpop.f32.mrf.mxu0
        %v3715 = vadd.f32 0.0, %v3714
        %v3716 = vpop.f32.mrf.mxu0
        %3717 = vmatprep.mubr.f32.mxu0 0.0
        %3718 = vmatmul.mubr.f32.gmra.mxu0 %v3462
        %v3719 = vpop.f32.mrf.mxu0
        %v3720 = vadd.f32 0.0, %v3719
        %v3721 = vpop.f32.mrf.mxu0
        %3722 = vmatprep.mubr.f32.mxu0 0.0
        %3723 = vmatmul.mubr.f32.gmra.mxu0 %v3465
        %v3724 = vpop.f32.mrf.mxu0
        %v3725 = vadd.f32 0.0, %v3724
        %v3726 = vpop.f32.mrf.mxu0
        %3727 = vmatprep.mubr.f32.mxu0 0.0
        %3728 = vmatmul.mubr.f32.gmra.mxu0 %v3468
        %v3729 = vpop.f32.mrf.mxu0
        %v3730 = vadd.f32 0.0, %v3729
        %v3731 = vpop.f32.mrf.mxu0
        %3732 = vmatprep.mubr.f32.mxu0 0.0
        %3733 = vmatmul.mubr.f32.gmra.mxu0 %v3471
        %v3734 = vpop.f32.mrf.mxu0
        %v3735 = vadd.f32 0.0, %v3734
        %v3736 = vpop.f32.mrf.mxu0
        %3737 = vdwg.mxu0
        %v3738 = vmul.f32 %v3540, %v2378
        %v3739 = vmul.f32 %v3545, %v2378
        %v3740 = vmul.f32 %v3550, %v2378
        %v3741 = vmul.f32 %v3555, %v2378
        %v3742 = vmul.f32 %v3560, %v2378
        %v3743 = vmul.f32 %v3565, %v2378
        %v3744 = vmul.f32 %v3570, %v2378
        %v3745 = vmul.f32 %v3575, %v2378
        %v3746 = vmul.f32 %v3580, %v2378
        %v3747 = vmul.f32 %v3585, %v2378
        %v3748 = vmul.f32 %v3590, %v2392
        %v3749 = vmul.f32 %v3595, %v2392
        %v3750 = vmul.f32 %v3600, %v2392
        %v3751 = vmul.f32 %v3605, %v2392
        %v3752 = vmul.f32 %v3610, %v2392
        %v3753 = vmul.f32 %v3615, %v2392
        %v3754 = vmul.f32 %v3620, %v2392
        %v3755 = vmul.f32 %v3625, %v2392
        %v3756 = vmul.f32 %v3630, %v2392
        %v3757 = vmul.f32 %v3635, %v2392
        %v3758 = vadd.f32 %v3738, %v3748
        %v3759 = vadd.f32 %v3739, %v3749
        %v3760 = vadd.f32 %v3740, %v3750
        %v3761 = vadd.f32 %v3741, %v3751
        %v3762 = vadd.f32 %v3742, %v3752
        %v3763 = vadd.f32 %v3743, %v3753
        %v3764 = vadd.f32 %v3744, %v3754
        %v3765 = vadd.f32 %v3745, %v3755
        %v3766 = vadd.f32 %v3746, %v3756
        %v3767 = vadd.f32 %v3747, %v3757
        %v3768 = vmul.f32 %v3640, %v2406
        %v3769 = vmul.f32 %v3645, %v2406
        %v3770 = vmul.f32 %v3650, %v2406
        %v3771 = vmul.f32 %v3655, %v2406
        %v3772 = vmul.f32 %v3660, %v2406
        %v3773 = vmul.f32 %v3665, %v2406
        %v3774 = vmul.f32 %v3670, %v2406
        %v3775 = vmul.f32 %v3675, %v2406
        %v3776 = vmul.f32 %v3680, %v2406
        %v3777 = vmul.f32 %v3685, %v2406
        %v3778 = vadd.f32 %v3758, %v3768
        %v3779 = vadd.f32 %v3759, %v3769
        %v3780 = vadd.f32 %v3760, %v3770
        %v3781 = vadd.f32 %v3761, %v3771
        %v3782 = vadd.f32 %v3762, %v3772
        %v3783 = vadd.f32 %v3763, %v3773
        %v3784 = vadd.f32 %v3764, %v3774
        %v3785 = vadd.f32 %v3765, %v3775
        %v3786 = vadd.f32 %v3766, %v3776
        %v3787 = vadd.f32 %v3767, %v3777
        %v3788 = vmul.f32 %v3690, %v2420
        %v3789 = vmul.f32 %v3695, %v2420
        %v3790 = vmul.f32 %v3700, %v2420
        %v3791 = vmul.f32 %v3705, %v2420
        %v3792 = vmul.f32 %v3710, %v2420
        %v3793 = vmul.f32 %v3715, %v2420
        %v3794 = vmul.f32 %v3720, %v2420
        %v3795 = vmul.f32 %v3725, %v2420
        %v3796 = vmul.f32 %v3730, %v2420
        %v3797 = vmul.f32 %v3735, %v2420
        %v3798 = vadd.f32 %v3778, %v3788
        %v3799 = vadd.f32 %v3779, %v3789
        %v3800 = vadd.f32 %v3780, %v3790
        %v3801 = vadd.f32 %v3781, %v3791
        %v3802 = vadd.f32 %v3782, %v3792
        %v3803 = vadd.f32 %v3783, %v3793
        %v3804 = vadd.f32 %v3784, %v3794
        %v3805 = vadd.f32 %v3785, %v3795
        %v3806 = vadd.f32 %v3786, %v3796
        %v3807 = vadd.f32 %v3787, %v3797
        %v3808 = vld [vmem:[%s25] sm:$0xff]
        %v3809 = vld [vmem:[%s25 + $0x8] sm:$0xff]
        %v3810 = vld [vmem:[%s25 + $0x10] sm:$0xff]
        %v3811 = vld [vmem:[%s25 + $0x18] sm:$0xff]
        %v3813 = vsel %vm2073, %v3798, 0
        %v3816 = vsel %vm2073, %v3799, 0
        %v3819 = vsel %vm2073, %v3800, 0
        %v3822 = vsel %vm2073, %v3801, 0
        %v3825 = vsel %vm2073, %v3802, 0
        %v3828 = vsel %vm2073, %v3803, 0
        %v3831 = vsel %vm2073, %v3804, 0
        %v3834 = vsel %vm2073, %v3805, 0
        %v3837 = vsel %vm2073, %v3806, 0
        %v3840 = vsel %vm2073, %v3807, 0
        %3842 = vmatprep.subr.mxu0 0.0
        %3843 = vmatpush1.msra.mxu0 0.0
        %3844 = vmatprep.subr.mxu0 0.0
        %3845 = vmatpush1.msra.mxu0 0.0
        %3846 = vmatprep.subr.mxu0 0.0
        %3847 = vmatpush1.msra.mxu0 0.0
        %3848 = vmatprep.subr.mxu0 0.0
        %3849 = vmatpush1.msra.mxu0 0.0
        %3850 = vmatprep.subr.mxu0 0.0
        %3851 = vmatpush1.msra.mxu0 0.0
        %3852 = vmatprep.subr.mxu0 0.0
        %3853 = vmatpush1.msra.mxu0 0.0
        %3854 = vmatprep.subr.mxu0 0.0
        %3855 = vmatpush1.msra.mxu0 0.0
        %3856 = vmatprep.subr.mxu0 0.0
        %3857 = vmatpush1.msra.mxu0 0.0
        %3858 = vmatprep.subr.mxu0 0.0
        %3859 = vmatpush1.msra.mxu0 0.0
        %3860 = vmatprep.subr.mxu0 0.0
        %3861 = vmatpush1.msra.mxu0 0.0
        %3862 = vmatprep.subr.mxu0 0.0
        %3863 = vmatpush1.msra.mxu0 0.0
        %3864 = vmatprep.subr.mxu0 0.0
        %3865 = vmatpush1.msra.mxu0 0.0
        %3866 = vmatprep.subr.mxu0 0.0
        %3867 = vmatpush1.msra.mxu0 %v3811
        %3868 = vmatprep.subr.mxu0 0.0
        %3869 = vmatpush1.msra.mxu0 %v3810
        %3870 = vmatprep.subr.mxu0 0.0
        %3871 = vmatpush1.msra.mxu0 %v3809
        %3872 = vmatprep.subr.mxu0 0.0
        %3873 = vmatpush1.msra.mxu0 %v3808
        %3874 = vmatprep.subr.mxu0 0.0
        %3875 = vmatpush2.msra.mxu0 0.0
        %3876 = vmatprep.subr.mxu0 0.0
        %3877 = vmatpush2.msra.mxu0 0.0
        %3878 = vmatprep.subr.mxu0 0.0
        %3879 = vmatpush2.msra.mxu0 0.0
        %3880 = vmatprep.subr.mxu0 0.0
        %3881 = vmatpush2.msra.mxu0 0.0
        %3882 = vmatprep.subr.mxu0 0.0
        %3883 = vmatpush2.msra.mxu0 0.0
        %3884 = vmatprep.subr.mxu0 0.0
        %3885 = vmatpush2.msra.mxu0 0.0
        %3886 = vmatprep.subr.mxu0 0.0
        %3887 = vmatpush2.msra.mxu0 0.0
        %3888 = vmatprep.subr.mxu0 0.0
        %3889 = vmatpush2.msra.mxu0 0.0
        %3890 = vmatprep.subr.mxu0 0.0
        %3891 = vmatpush2.msra.mxu0 0.0
        %3892 = vmatprep.subr.mxu0 0.0
        %3893 = vmatpush2.msra.mxu0 0.0
        %3894 = vmatprep.subr.mxu0 0.0
        %3895 = vmatpush2.msra.mxu0 0.0
        %3896 = vmatprep.subr.mxu0 0.0
        %3897 = vmatpush2.msra.mxu0 0.0
        %3898 = vmatprep.subr.mxu0 0.0
        %3899 = vmatpush2.msra.mxu0 0.0
        %3900 = vmatprep.subr.mxu0 0.0
        %3901 = vmatpush2.msra.mxu0 0.0
        %3902 = vmatprep.subr.mxu0 0.0
        %3903 = vmatpush2.msra.mxu0 0.0
        %3904 = vmatprep.subr.mxu0 0.0
        %3905 = vmatpush2.msra.mxu0 0.0
        %3906 = vmatprep.mubr.f32.mxu0 0.0
        %3907 = vmatmul.mubr.f32.gmra.mxu0 %v3813
        %v3908 = vpop.f32.mrf.mxu0
        %v3909 = vadd.f32 0.0, %v3908
        %v3910 = vpop.f32.mrf.mxu0
        %3911 = vmatprep.mubr.f32.mxu0 0.0
        %3912 = vmatmul.mubr.f32.gmra.mxu0 %v3816
        %v3913 = vpop.f32.mrf.mxu0
        %v3914 = vadd.f32 0.0, %v3913
        %v3915 = vpop.f32.mrf.mxu0
        %3916 = vmatprep.mubr.f32.mxu0 0.0
        %3917 = vmatmul.mubr.f32.gmra.mxu0 %v3819
        %v3918 = vpop.f32.mrf.mxu0
        %v3919 = vadd.f32 0.0, %v3918
        %v3920 = vpop.f32.mrf.mxu0
        %3921 = vmatprep.mubr.f32.mxu0 0.0
        %3922 = vmatmul.mubr.f32.gmra.mxu0 %v3822
        %v3923 = vpop.f32.mrf.mxu0
        %v3924 = vadd.f32 0.0, %v3923
        %v3925 = vpop.f32.mrf.mxu0
        %3926 = vmatprep.mubr.f32.mxu0 0.0
        %3927 = vmatmul.mubr.f32.gmra.mxu0 %v3825
        %v3928 = vpop.f32.mrf.mxu0
        %v3929 = vadd.f32 0.0, %v3928
        %v3930 = vpop.f32.mrf.mxu0
        %3931 = vmatprep.mubr.f32.mxu0 0.0
        %3932 = vmatmul.mubr.f32.gmra.mxu0 %v3828
        %v3933 = vpop.f32.mrf.mxu0
        %v3934 = vadd.f32 0.0, %v3933
        %v3935 = vpop.f32.mrf.mxu0
        %3936 = vmatprep.mubr.f32.mxu0 0.0
        %3937 = vmatmul.mubr.f32.gmra.mxu0 %v3831
        %v3938 = vpop.f32.mrf.mxu0
        %v3939 = vadd.f32 0.0, %v3938
        %v3940 = vpop.f32.mrf.mxu0
        %3941 = vmatprep.mubr.f32.mxu0 0.0
        %3942 = vmatmul.mubr.f32.gmra.mxu0 %v3834
        %v3943 = vpop.f32.mrf.mxu0
        %v3944 = vadd.f32 0.0, %v3943
        %v3945 = vpop.f32.mrf.mxu0
        %3946 = vmatprep.mubr.f32.mxu0 0.0
        %3947 = vmatmul.mubr.f32.gmra.mxu0 %v3837
        %v3948 = vpop.f32.mrf.mxu0
        %v3949 = vadd.f32 0.0, %v3948
        %v3950 = vpop.f32.mrf.mxu0
        %3951 = vmatprep.mubr.f32.mxu0 0.0
        %3952 = vmatmul.mubr.f32.gmra.mxu0 %v3840
        %v3953 = vpop.f32.mrf.mxu0
        %v3954 = vadd.f32 0.0, %v3953
        %v3955 = vpop.f32.mrf.mxu0
        %3956 = vdwg.mxu0
        %v3957 = vadd.f32 %v2040, %v3909
        %v3958 = vadd.f32 %v2041, %v3914
        %v3959 = vadd.f32 %v2002, %v3919
        %v3960 = vadd.f32 %v2007, %v3924
        %v3961 = vadd.f32 %v2012, %v3929
        %v3962 = vadd.f32 %v2017, %v3934
        %v3963 = vadd.f32 %v2022, %v3939
        %v3964 = vadd.f32 %v2027, %v3944
        %v3965 = vadd.f32 %v2032, %v3949
        %v3966 = vadd.f32 %v2037, %v3954
        %v3967 = vld [vmem:[%s27] sm:$0x1]
        %v3969 = vlaneseq
        %v3970 = vshrl.u32 %v3969, 7
        %v3971 = vsub.s32 0, %v3970
        %v3972 = vrot.slane %v3967, %v3971
        %v3974 = vadd.f32 %v3957, %v3972
        %v3975 = vadd.f32 %v3958, %v3972
        %v3976 = vadd.f32 %v3959, %v3972
        %v3977 = vadd.f32 %v3960, %v3972
        %v3978 = vadd.f32 %v3961, %v3972
        %v3979 = vadd.f32 %v3962, %v3972
        %v3980 = vadd.f32 %v3963, %v3972
        %v3981 = vadd.f32 %v3964, %v3972
        %v3982 = vadd.f32 %v3965, %v3972
        %v3983 = vadd.f32 %v3966, %v3972
        %v3984 = vld [vmem:[%s29] sm:$0x1]
        %v3985 = vld [vmem:[%s31] sm:$0x1]
        %v3986 = vsel %vm2073, %v3974, 0.0
        %3987 = vadd.xlane.f32.xlu0 %v3986
        %v3988 = vpop.xlane.xlu0 %3987
        %v3989 = vsel %vm2073, %v3975, 0.0
        %3990 = vadd.xlane.f32.xlu0 %v3989
        %v3991 = vpop.xlane.xlu0 %3990
        %v3992 = vsel %vm2073, %v3976, 0.0
        %3993 = vadd.xlane.f32.xlu0 %v3992
        %v3994 = vpop.xlane.xlu0 %3993
        %v3995 = vsel %vm2073, %v3977, 0.0
        %3996 = vadd.xlane.f32.xlu0 %v3995
        %v3997 = vpop.xlane.xlu0 %3996
        %v3998 = vsel %vm2073, %v3978, 0.0
        %3999 = vadd.xlane.f32.xlu0 %v3998
        %v4000 = vpop.xlane.xlu0 %3999
        %v4001 = vsel %vm2073, %v3979, 0.0
        %4002 = vadd.xlane.f32.xlu0 %v4001
        %v4003 = vpop.xlane.xlu0 %4002
        %v4004 = vsel %vm2073, %v3980, 0.0
        %4005 = vadd.xlane.f32.xlu0 %v4004
        %v4006 = vpop.xlane.xlu0 %4005
        %v4007 = vsel %vm2073, %v3981, 0.0
        %4008 = vadd.xlane.f32.xlu0 %v4007
        %v4009 = vpop.xlane.xlu0 %4008
        %v4010 = vsel %vm2073, %v3982, 0.0
        %4011 = vadd.xlane.f32.xlu0 %v4010
        %v4012 = vpop.xlane.xlu0 %4011
        %v4013 = vsel %vm2073, %v3983, 0.0
        %4014 = vadd.xlane.f32.xlu0 %v4013
        %v4015 = vpop.xlane.xlu0 %4014
        %v4016 = vrcp.pop 32.0
        %v4017 = vmul.f32 %v3988, %v4016
        %v4018 = vmul.f32 %v3991, %v4016
        %v4019 = vmul.f32 %v3994, %v4016
        %v4020 = vmul.f32 %v3997, %v4016
        %v4021 = vmul.f32 %v4000, %v4016
        %v4022 = vmul.f32 %v4003, %v4016
        %v4023 = vmul.f32 %v4006, %v4016
        %v4024 = vmul.f32 %v4009, %v4016
        %v4025 = vmul.f32 %v4012, %v4016
        %v4026 = vmul.f32 %v4015, %v4016
        %v4027 = vsub.f32 %v3974, %v4017
        %v4028 = vsub.f32 %v3975, %v4018
        %v4029 = vsub.f32 %v3976, %v4019
        %v4030 = vsub.f32 %v3977, %v4020
        %v4031 = vsub.f32 %v3978, %v4021
        %v4032 = vsub.f32 %v3979, %v4022
        %v4033 = vsub.f32 %v3980, %v4023
        %v4034 = vsub.f32 %v3981, %v4024
        %v4035 = vsub.f32 %v3982, %v4025
        %v4036 = vsub.f32 %v3983, %v4026
        %v4037 = vmul.f32 %v4027, %v4027
        %v4038 = vmul.f32 %v4028, %v4028
        %v4039 = vmul.f32 %v4029, %v4029
        %v4040 = vmul.f32 %v4030, %v4030
        %v4041 = vmul.f32 %v4031, %v4031
        %v4042 = vmul.f32 %v4032, %v4032
        %v4043 = vmul.f32 %v4033, %v4033
        %v4044 = vmul.f32 %v4034, %v4034
        %v4045 = vmul.f32 %v4035, %v4035
        %v4046 = vmul.f32 %v4036, %v4036
        %v4047 = vsel %vm2073, %v4037, 0.0
        %4048 = vadd.xlane.f32.xlu0 %v4047
        %v4049 = vpop.xlane.xlu0 %4048
        %v4050 = vsel %vm2073, %v4038, 0.0
        %4051 = vadd.xlane.f32.xlu0 %v4050
        %v4052 = vpop.xlane.xlu0 %4051
        %v4053 = vsel %vm2073, %v4039, 0.0
        %4054 = vadd.xlane.f32.xlu0 %v4053
        %v4055 = vpop.xlane.xlu0 %4054
        %v4056 = vsel %vm2073, %v4040, 0.0
        %4057 = vadd.xlane.f32.xlu0 %v4056
        %v4058 = vpop.xlane.xlu0 %4057
        %v4059 = vsel %vm2073, %v4041, 0.0
        %4060 = vadd.xlane.f32.xlu0 %v4059
        %v4061 = vpop.xlane.xlu0 %4060
        %v4062 = vsel %vm2073, %v4042, 0.0
        %4063 = vadd.xlane.f32.xlu0 %v4062
        %v4064 = vpop.xlane.xlu0 %4063
        %v4065 = vsel %vm2073, %v4043, 0.0
        %4066 = vadd.xlane.f32.xlu0 %v4065
        %v4067 = vpop.xlane.xlu0 %4066
        %v4068 = vsel %vm2073, %v4044, 0.0
        %4069 = vadd.xlane.f32.xlu0 %v4068
        %v4070 = vpop.xlane.xlu0 %4069
        %v4071 = vsel %vm2073, %v4045, 0.0
        %4072 = vadd.xlane.f32.xlu0 %v4071
        %v4073 = vpop.xlane.xlu0 %4072
        %v4074 = vsel %vm2073, %v4046, 0.0
        %4075 = vadd.xlane.f32.xlu0 %v4074
        %v4076 = vpop.xlane.xlu0 %4075
        %v4077 = vmul.f32 %v4049, %v4016
        %v4078 = vmul.f32 %v4052, %v4016
        %v4079 = vmul.f32 %v4055, %v4016
        %v4080 = vmul.f32 %v4058, %v4016
        %v4081 = vmul.f32 %v4061, %v4016
        %v4082 = vmul.f32 %v4064, %v4016
        %v4083 = vmul.f32 %v4067, %v4016
        %v4084 = vmul.f32 %v4070, %v4016
        %v4085 = vmul.f32 %v4073, %v4016
        %v4086 = vmul.f32 %v4076, %v4016
        %v4087 = vadd.f32 %v4077, 1e-05
        %v4088 = vadd.f32 %v4078, 1e-05
        %v4089 = vadd.f32 %v4079, 1e-05
        %v4090 = vadd.f32 %v4080, 1e-05
        %v4091 = vadd.f32 %v4081, 1e-05
        %v4092 = vadd.f32 %v4082, 1e-05
        %v4093 = vadd.f32 %v4083, 1e-05
        %v4094 = vadd.f32 %v4084, 1e-05
        %v4095 = vadd.f32 %v4085, 1e-05
        %v4096 = vadd.f32 %v4086, 1e-05
        %v4097 = vrsqrt.pop %v4087
        %v4098 = vrsqrt.pop %v4088
        %v4099 = vrsqrt.pop %v4089
        %v4100 = vrsqrt.pop %v4090
        %v4101 = vrsqrt.pop %v4091
        %v4102 = vrsqrt.pop %v4092
        %v4103 = vrsqrt.pop %v4093
        %v4104 = vrsqrt.pop %v4094
        %v4105 = vrsqrt.pop %v4095
        %v4106 = vrsqrt.pop %v4096
        %v4107 = vmul.f32 %v4027, %v4097
        %v4108 = vmul.f32 %v4028, %v4098
        %v4109 = vmul.f32 %v4029, %v4099
        %v4110 = vmul.f32 %v4030, %v4100
        %v4111 = vmul.f32 %v4031, %v4101
        %v4112 = vmul.f32 %v4032, %v4102
        %v4113 = vmul.f32 %v4033, %v4103
        %v4114 = vmul.f32 %v4034, %v4104
        %v4115 = vmul.f32 %v4035, %v4105
        %v4116 = vmul.f32 %v4036, %v4106
        %v4118 = vlaneseq
        %v4119 = vshrl.u32 %v4118, 7
        %v4120 = vsub.s32 0, %v4119
        %v4121 = vrot.slane %v3984, %v4120
        %v4123 = vmul.f32 %v4107, %v4121
        %v4124 = vmul.f32 %v4108, %v4121
        %v4125 = vmul.f32 %v4109, %v4121
        %v4126 = vmul.f32 %v4110, %v4121
        %v4127 = vmul.f32 %v4111, %v4121
        %v4128 = vmul.f32 %v4112, %v4121
        %v4129 = vmul.f32 %v4113, %v4121
        %v4130 = vmul.f32 %v4114, %v4121
        %v4131 = vmul.f32 %v4115, %v4121
        %v4132 = vmul.f32 %v4116, %v4121
        %v4134 = vlaneseq
        %v4135 = vshrl.u32 %v4134, 7
        %v4136 = vsub.s32 0, %v4135
        %v4137 = vrot.slane %v3985, %v4136
        %v4139 = vadd.f32 %v4123, %v4137
        %v4140 = vadd.f32 %v4124, %v4137
        %v4141 = vadd.f32 %v4125, %v4137
        %v4142 = vadd.f32 %v4126, %v4137
        %v4143 = vadd.f32 %v4127, %v4137
        %v4144 = vadd.f32 %v4128, %v4137
        %v4145 = vadd.f32 %v4129, %v4137
        %v4146 = vadd.f32 %v4130, %v4137
        %v4147 = vadd.f32 %v4131, %v4137
        %v4148 = vadd.f32 %v4132, %v4137
        %v4149 = vld [vmem:[%s33] sm:$0xff]
        %v4150 = vld [vmem:[%s33 + $0x8] sm:$0xff]
        %v4151 = vld [vmem:[%s33 + $0x10] sm:$0xff]
        %v4152 = vld [vmem:[%s33 + $0x18] sm:$0xff]
        %v4153 = vld [vmem:[%s35] sm:$0x1]
        %v4155 = vlaneseq
        %v4156 = vshrl.u32 %v4155, 7
        %v4157 = vsub.s32 0, %v4156
        %v4158 = vrot.slane %v4153, %v4157
        %v4161 = vsel %vm2073, %v4139, 0
        %v4164 = vsel %vm2073, %v4140, 0
        %v4167 = vsel %vm2073, %v4141, 0
        %v4170 = vsel %vm2073, %v4142, 0
        %v4173 = vsel %vm2073, %v4143, 0
        %v4176 = vsel %vm2073, %v4144, 0
        %v4179 = vsel %vm2073, %v4145, 0
        %v4182 = vsel %vm2073, %v4146, 0
        %v4185 = vsel %vm2073, %v4147, 0
        %v4188 = vsel %vm2073, %v4148, 0
        %4190 = vmatprep.subr.mxu0 0.0
        %4191 = vmatpush1.msra.mxu0 0.0
        %4192 = vmatprep.subr.mxu0 0.0
        %4193 = vmatpush1.msra.mxu0 0.0
        %4194 = vmatprep.subr.mxu0 0.0
        %4195 = vmatpush1.msra.mxu0 0.0
        %4196 = vmatprep.subr.mxu0 0.0
        %4197 = vmatpush1.msra.mxu0 0.0
        %4198 = vmatprep.subr.mxu0 0.0
        %4199 = vmatpush1.msra.mxu0 0.0
        %4200 = vmatprep.subr.mxu0 0.0
        %4201 = vmatpush1.msra.mxu0 0.0
        %4202 = vmatprep.subr.mxu0 0.0
        %4203 = vmatpush1.msra.mxu0 0.0
        %4204 = vmatprep.subr.mxu0 0.0
        %4205 = vmatpush1.msra.mxu0 0.0
        %4206 = vmatprep.subr.mxu0 0.0
        %4207 = vmatpush1.msra.mxu0 0.0
        %4208 = vmatprep.subr.mxu0 0.0
        %4209 = vmatpush1.msra.mxu0 0.0
        %4210 = vmatprep.subr.mxu0 0.0
        %4211 = vmatpush1.msra.mxu0 0.0
        %4212 = vmatprep.subr.mxu0 0.0
        %4213 = vmatpush1.msra.mxu0 0.0
        %4214 = vmatprep.subr.mxu0 0.0
        %4215 = vmatpush1.msra.mxu0 %v4152
        %4216 = vmatprep.subr.mxu0 0.0
        %4217 = vmatpush1.msra.mxu0 %v4151
        %4218 = vmatprep.subr.mxu0 0.0
        %4219 = vmatpush1.msra.mxu0 %v4150
        %4220 = vmatprep.subr.mxu0 0.0
        %4221 = vmatpush1.msra.mxu0 %v4149
        %4222 = vmatprep.subr.mxu0 0.0
        %4223 = vmatpush2.msra.mxu0 0.0
        %4224 = vmatprep.subr.mxu0 0.0
        %4225 = vmatpush2.msra.mxu0 0.0
        %4226 = vmatprep.subr.mxu0 0.0
        %4227 = vmatpush2.msra.mxu0 0.0
        %4228 = vmatprep.subr.mxu0 0.0
        %4229 = vmatpush2.msra.mxu0 0.0
        %4230 = vmatprep.subr.mxu0 0.0
        %4231 = vmatpush2.msra.mxu0 0.0
        %4232 = vmatprep.subr.mxu0 0.0
        %4233 = vmatpush2.msra.mxu0 0.0
        %4234 = vmatprep.subr.mxu0 0.0
        %4235 = vmatpush2.msra.mxu0 0.0
        %4236 = vmatprep.subr.mxu0 0.0
        %4237 = vmatpush2.msra.mxu0 0.0
        %4238 = vmatprep.subr.mxu0 0.0
        %4239 = vmatpush2.msra.mxu0 0.0
        %4240 = vmatprep.subr.mxu0 0.0
        %4241 = vmatpush2.msra.mxu0 0.0
        %4242 = vmatprep.subr.mxu0 0.0
        %4243 = vmatpush2.msra.mxu0 0.0
        %4244 = vmatprep.subr.mxu0 0.0
        %4245 = vmatpush2.msra.mxu0 0.0
        %4246 = vmatprep.subr.mxu0 0.0
        %4247 = vmatpush2.msra.mxu0 0.0
        %4248 = vmatprep.subr.mxu0 0.0
        %4249 = vmatpush2.msra.mxu0 0.0
        %4250 = vmatprep.subr.mxu0 0.0
        %4251 = vmatpush2.msra.mxu0 0.0
        %4252 = vmatprep.subr.mxu0 0.0
        %4253 = vmatpush2.msra.mxu0 0.0
        %4254 = vmatprep.mubr.f32.mxu0 0.0
        %4255 = vmatmul.mubr.f32.gmra.mxu0 %v4161
        %v4256 = vpop.f32.mrf.mxu0
        %v4257 = vadd.f32 %v4158, %v4256
        %v4258 = vpop.f32.mrf.mxu0
        %4259 = vmatprep.mubr.f32.mxu0 0.0
        %4260 = vmatmul.mubr.f32.gmra.mxu0 %v4164
        %v4261 = vpop.f32.mrf.mxu0
        %v4262 = vadd.f32 %v4158, %v4261
        %v4263 = vpop.f32.mrf.mxu0
        %4264 = vmatprep.mubr.f32.mxu0 0.0
        %4265 = vmatmul.mubr.f32.gmra.mxu0 %v4167
        %v4266 = vpop.f32.mrf.mxu0
        %v4267 = vadd.f32 %v4158, %v4266
        %v4268 = vpop.f32.mrf.mxu0
        %4269 = vmatprep.mubr.f32.mxu0 0.0
        %4270 = vmatmul.mubr.f32.gmra.mxu0 %v4170
        %v4271 = vpop.f32.mrf.mxu0
        %v4272 = vadd.f32 %v4158, %v4271
        %v4273 = vpop.f32.mrf.mxu0
        %4274 = vmatprep.mubr.f32.mxu0 0.0
        %4275 = vmatmul.mubr.f32.gmra.mxu0 %v4173
        %v4276 = vpop.f32.mrf.mxu0
        %v4277 = vadd.f32 %v4158, %v4276
        %v4278 = vpop.f32.mrf.mxu0
        %4279 = vmatprep.mubr.f32.mxu0 0.0
        %4280 = vmatmul.mubr.f32.gmra.mxu0 %v4176
        %v4281 = vpop.f32.mrf.mxu0
        %v4282 = vadd.f32 %v4158, %v4281
        %v4283 = vpop.f32.mrf.mxu0
        %4284 = vmatprep.mubr.f32.mxu0 0.0
        %4285 = vmatmul.mubr.f32.gmra.mxu0 %v4179
        %v4286 = vpop.f32.mrf.mxu0
        %v4287 = vadd.f32 %v4158, %v4286
        %v4288 = vpop.f32.mrf.mxu0
        %4289 = vmatprep.mubr.f32.mxu0 0.0
        %4290 = vmatmul.mubr.f32.gmra.mxu0 %v4182
        %v4291 = vpop.f32.mrf.mxu0
        %v4292 = vadd.f32 %v4158, %v4291
        %v4293 = vpop.f32.mrf.mxu0
        %4294 = vmatprep.mubr.f32.mxu0 0.0
        %4295 = vmatmul.mubr.f32.gmra.mxu0 %v4185
        %v4296 = vpop.f32.mrf.mxu0
        %v4297 = vadd.f32 %v4158, %v4296
        %v4298 = vpop.f32.mrf.mxu0
        %4299 = vmatprep.mubr.f32.mxu0 0.0
        %4300 = vmatmul.mubr.f32.gmra.mxu0 %v4188
        %v4301 = vpop.f32.mrf.mxu0
        %v4302 = vadd.f32 %v4158, %v4301
        %v4303 = vpop.f32.mrf.mxu0
        %4304 = vdwg.mxu0
        %v4305 = vmax.f32 %v4257, 0.0
        %v4306 = vmax.f32 %v4262, 0.0
        %v4307 = vmax.f32 %v4267, 0.0
        %v4308 = vmax.f32 %v4272, 0.0
        %v4309 = vmax.f32 %v4277, 0.0
        %v4310 = vmax.f32 %v4282, 0.0
        %v4311 = vmax.f32 %v4287, 0.0
        %v4312 = vmax.f32 %v4292, 0.0
        %v4313 = vmax.f32 %v4297, 0.0
        %v4314 = vmax.f32 %v4302, 0.0
        %v4315 = vld [vmem:[%s37] sm:$0xff]
        %v4316 = vld [vmem:[%s37 + $0x8] sm:$0xff]
        %v4317 = vld [vmem:[%s37 + $0x10] sm:$0xff]
        %v4318 = vld [vmem:[%s37 + $0x18] sm:$0xff]
        %v4319 = vld [vmem:[%s37 + $0x20] sm:$0xff]
        %v4320 = vld [vmem:[%s37 + $0x28] sm:$0xff]
        %v4321 = vld [vmem:[%s37 + $0x30] sm:$0xff]
        %v4322 = vld [vmem:[%s37 + $0x38] sm:$0xff]
        %v4323 = vld [vmem:[%s39] sm:$0x1]
        %v4325 = vlaneseq
        %v4326 = vshrl.u32 %v4325, 7
        %v4327 = vsub.s32 0, %v4326
        %v4328 = vrot.slane %v4323, %v4327
        %vm4330 = vcmask 523264
        %v4332 = vsel %vm4330, %v4305, 0
        %v4335 = vsel %vm4330, %v4306, 0
        %v4338 = vsel %vm4330, %v4307, 0
        %v4341 = vsel %vm4330, %v4308, 0
        %v4344 = vsel %vm4330, %v4309, 0
        %v4347 = vsel %vm4330, %v4310, 0
        %v4350 = vsel %vm4330, %v4311, 0
        %v4353 = vsel %vm4330, %v4312, 0
        %v4356 = vsel %vm4330, %v4313, 0
        %v4359 = vsel %vm4330, %v4314, 0
        %4361 = vmatprep.subr.mxu0 0.0
        %4362 = vmatpush1.msra.mxu0 0.0
        %4363 = vmatprep.subr.mxu0 0.0
        %4364 = vmatpush1.msra.mxu0 0.0
        %4365 = vmatprep.subr.mxu0 0.0
        %4366 = vmatpush1.msra.mxu0 0.0
        %4367 = vmatprep.subr.mxu0 0.0
        %4368 = vmatpush1.msra.mxu0 0.0
        %4369 = vmatprep.subr.mxu0 0.0
        %4370 = vmatpush1.msra.mxu0 0.0
        %4371 = vmatprep.subr.mxu0 0.0
        %4372 = vmatpush1.msra.mxu0 0.0
        %4373 = vmatprep.subr.mxu0 0.0
        %4374 = vmatpush1.msra.mxu0 0.0
        %4375 = vmatprep.subr.mxu0 0.0
        %4376 = vmatpush1.msra.mxu0 0.0
        %4377 = vmatprep.subr.mxu0 0.0
        %4378 = vmatpush1.msra.mxu0 %v4322
        %4379 = vmatprep.subr.mxu0 0.0
        %4380 = vmatpush1.msra.mxu0 %v4321
        %4381 = vmatprep.subr.mxu0 0.0
        %4382 = vmatpush1.msra.mxu0 %v4320
        %4383 = vmatprep.subr.mxu0 0.0
        %4384 = vmatpush1.msra.mxu0 %v4319
        %4385 = vmatprep.subr.mxu0 0.0
        %4386 = vmatpush1.msra.mxu0 %v4318
        %4387 = vmatprep.subr.mxu0 0.0
        %4388 = vmatpush1.msra.mxu0 %v4317
        %4389 = vmatprep.subr.mxu0 0.0
        %4390 = vmatpush1.msra.mxu0 %v4316
        %4391 = vmatprep.subr.mxu0 0.0
        %4392 = vmatpush1.msra.mxu0 %v4315
        %4393 = vmatprep.subr.mxu0 0.0
        %4394 = vmatpush2.msra.mxu0 0.0
        %4395 = vmatprep.subr.mxu0 0.0
        %4396 = vmatpush2.msra.mxu0 0.0
        %4397 = vmatprep.subr.mxu0 0.0
        %4398 = vmatpush2.msra.mxu0 0.0
        %4399 = vmatprep.subr.mxu0 0.0
        %4400 = vmatpush2.msra.mxu0 0.0
        %4401 = vmatprep.subr.mxu0 0.0
        %4402 = vmatpush2.msra.mxu0 0.0
        %4403 = vmatprep.subr.mxu0 0.0
        %4404 = vmatpush2.msra.mxu0 0.0
        %4405 = vmatprep.subr.mxu0 0.0
        %4406 = vmatpush2.msra.mxu0 0.0
        %4407 = vmatprep.subr.mxu0 0.0
        %4408 = vmatpush2.msra.mxu0 0.0
        %4409 = vmatprep.subr.mxu0 0.0
        %4410 = vmatpush2.msra.mxu0 0.0
        %4411 = vmatprep.subr.mxu0 0.0
        %4412 = vmatpush2.msra.mxu0 0.0
        %4413 = vmatprep.subr.mxu0 0.0
        %4414 = vmatpush2.msra.mxu0 0.0
        %4415 = vmatprep.subr.mxu0 0.0
        %4416 = vmatpush2.msra.mxu0 0.0
        %4417 = vmatprep.subr.mxu0 0.0
        %4418 = vmatpush2.msra.mxu0 0.0
        %4419 = vmatprep.subr.mxu0 0.0
        %4420 = vmatpush2.msra.mxu0 0.0
        %4421 = vmatprep.subr.mxu0 0.0
        %4422 = vmatpush2.msra.mxu0 0.0
        %4423 = vmatprep.subr.mxu0 0.0
        %4424 = vmatpush2.msra.mxu0 0.0
        %4425 = vmatprep.mubr.f32.mxu0 0.0
        %4426 = vmatmul.mubr.f32.gmra.mxu0 %v4332
        %v4427 = vpop.f32.mrf.mxu0
        %v4428 = vadd.f32 %v4328, %v4427
        %v4429 = vpop.f32.mrf.mxu0
        %4430 = vmatprep.mubr.f32.mxu0 0.0
        %4431 = vmatmul.mubr.f32.gmra.mxu0 %v4335
        %v4432 = vpop.f32.mrf.mxu0
        %v4433 = vadd.f32 %v4328, %v4432
        %v4434 = vpop.f32.mrf.mxu0
        %4435 = vmatprep.mubr.f32.mxu0 0.0
        %4436 = vmatmul.mubr.f32.gmra.mxu0 %v4338
        %v4437 = vpop.f32.mrf.mxu0
        %v4438 = vadd.f32 %v4328, %v4437
        %v4439 = vpop.f32.mrf.mxu0
        %4440 = vmatprep.mubr.f32.mxu0 0.0
        %4441 = vmatmul.mubr.f32.gmra.mxu0 %v4341
        %v4442 = vpop.f32.mrf.mxu0
        %v4443 = vadd.f32 %v4328, %v4442
        %v4444 = vpop.f32.mrf.mxu0
        %4445 = vmatprep.mubr.f32.mxu0 0.0
        %4446 = vmatmul.mubr.f32.gmra.mxu0 %v4344
        %v4447 = vpop.f32.mrf.mxu0
        %v4448 = vadd.f32 %v4328, %v4447
        %v4449 = vpop.f32.mrf.mxu0
        %4450 = vmatprep.mubr.f32.mxu0 0.0
        %4451 = vmatmul.mubr.f32.gmra.mxu0 %v4347
        %v4452 = vpop.f32.mrf.mxu0
        %v4453 = vadd.f32 %v4328, %v4452
        %v4454 = vpop.f32.mrf.mxu0
        %4455 = vmatprep.mubr.f32.mxu0 0.0
        %4456 = vmatmul.mubr.f32.gmra.mxu0 %v4350
        %v4457 = vpop.f32.mrf.mxu0
        %v4458 = vadd.f32 %v4328, %v4457
        %v4459 = vpop.f32.mrf.mxu0
        %4460 = vmatprep.mubr.f32.mxu0 0.0
        %4461 = vmatmul.mubr.f32.gmra.mxu0 %v4353
        %v4462 = vpop.f32.mrf.mxu0
        %v4463 = vadd.f32 %v4328, %v4462
        %v4464 = vpop.f32.mrf.mxu0
        %4465 = vmatprep.mubr.f32.mxu0 0.0
        %4466 = vmatmul.mubr.f32.gmra.mxu0 %v4356
        %v4467 = vpop.f32.mrf.mxu0
        %v4468 = vadd.f32 %v4328, %v4467
        %v4469 = vpop.f32.mrf.mxu0
        %4470 = vmatprep.mubr.f32.mxu0 0.0
        %4471 = vmatmul.mubr.f32.gmra.mxu0 %v4359
        %v4472 = vpop.f32.mrf.mxu0
        %v4473 = vadd.f32 %v4328, %v4472
        %v4474 = vpop.f32.mrf.mxu0
        %4475 = vdwg.mxu0
        %v4476 = vadd.f32 %v4139, %v4428
        %v4477 = vadd.f32 %v4140, %v4433
        %v4478 = vadd.f32 %v4141, %v4438
        %v4479 = vadd.f32 %v4142, %v4443
        %v4480 = vadd.f32 %v4143, %v4448
        %v4481 = vadd.f32 %v4144, %v4453
        %v4482 = vadd.f32 %v4145, %v4458
        %v4483 = vadd.f32 %v4146, %v4463
        %v4484 = vadd.f32 %v4147, %v4468
        %v4485 = vadd.f32 %v4148, %v4473
        %v4486 = vld [vmem:[%s41] sm:$0x1]
        %v4487 = vld [vmem:[%s43] sm:$0x1]
        %v4488 = vsel %vm2073, %v4476, 0.0
        %4489 = vadd.xlane.f32.xlu0 %v4488
        %v4490 = vpop.xlane.xlu0 %4489
        %v4491 = vsel %vm2073, %v4477, 0.0
        %4492 = vadd.xlane.f32.xlu0 %v4491
        %v4493 = vpop.xlane.xlu0 %4492
        %v4494 = vsel %vm2073, %v4478, 0.0
        %4495 = vadd.xlane.f32.xlu0 %v4494
        %v4496 = vpop.xlane.xlu0 %4495
        %v4497 = vsel %vm2073, %v4479, 0.0
        %4498 = vadd.xlane.f32.xlu0 %v4497
        %v4499 = vpop.xlane.xlu0 %4498
        %v4500 = vsel %vm2073, %v4480, 0.0
        %4501 = vadd.xlane.f32.xlu0 %v4500
        %v4502 = vpop.xlane.xlu0 %4501
        %v4503 = vsel %vm2073, %v4481, 0.0
        %4504 = vadd.xlane.f32.xlu0 %v4503
        %v4505 = vpop.xlane.xlu0 %4504
        %v4506 = vsel %vm2073, %v4482, 0.0
        %4507 = vadd.xlane.f32.xlu0 %v4506
        %v4508 = vpop.xlane.xlu0 %4507
        %v4509 = vsel %vm2073, %v4483, 0.0
        %4510 = vadd.xlane.f32.xlu0 %v4509
        %v4511 = vpop.xlane.xlu0 %4510
        %v4512 = vsel %vm2073, %v4484, 0.0
        %4513 = vadd.xlane.f32.xlu0 %v4512
        %v4514 = vpop.xlane.xlu0 %4513
        %v4515 = vsel %vm2073, %v4485, 0.0
        %4516 = vadd.xlane.f32.xlu0 %v4515
        %v4517 = vpop.xlane.xlu0 %4516
        %v4518 = vmul.f32 %v4490, %v4016
        %v4519 = vmul.f32 %v4493, %v4016
        %v4520 = vmul.f32 %v4496, %v4016
        %v4521 = vmul.f32 %v4499, %v4016
        %v4522 = vmul.f32 %v4502, %v4016
        %v4523 = vmul.f32 %v4505, %v4016
        %v4524 = vmul.f32 %v4508, %v4016
        %v4525 = vmul.f32 %v4511, %v4016
        %v4526 = vmul.f32 %v4514, %v4016
        %v4527 = vmul.f32 %v4517, %v4016
        %v4528 = vsub.f32 %v4476, %v4518
        %v4529 = vsub.f32 %v4477, %v4519
        %v4530 = vsub.f32 %v4478, %v4520
        %v4531 = vsub.f32 %v4479, %v4521
        %v4532 = vsub.f32 %v4480, %v4522
        %v4533 = vsub.f32 %v4481, %v4523
        %v4534 = vsub.f32 %v4482, %v4524
        %v4535 = vsub.f32 %v4483, %v4525
        %v4536 = vsub.f32 %v4484, %v4526
        %v4537 = vsub.f32 %v4485, %v4527
        %v4538 = vmul.f32 %v4528, %v4528
        %v4539 = vmul.f32 %v4529, %v4529
        %v4540 = vmul.f32 %v4530, %v4530
        %v4541 = vmul.f32 %v4531, %v4531
        %v4542 = vmul.f32 %v4532, %v4532
        %v4543 = vmul.f32 %v4533, %v4533
        %v4544 = vmul.f32 %v4534, %v4534
        %v4545 = vmul.f32 %v4535, %v4535
        %v4546 = vmul.f32 %v4536, %v4536
        %v4547 = vmul.f32 %v4537, %v4537
        %v4548 = vsel %vm2073, %v4538, 0.0
        %4549 = vadd.xlane.f32.xlu0 %v4548
        %v4550 = vpop.xlane.xlu0 %4549
        %v4551 = vsel %vm2073, %v4539, 0.0
        %4552 = vadd.xlane.f32.xlu0 %v4551
        %v4553 = vpop.xlane.xlu0 %4552
        %v4554 = vsel %vm2073, %v4540, 0.0
        %4555 = vadd.xlane.f32.xlu0 %v4554
        %v4556 = vpop.xlane.xlu0 %4555
        %v4557 = vsel %vm2073, %v4541, 0.0
        %4558 = vadd.xlane.f32.xlu0 %v4557
        %v4559 = vpop.xlane.xlu0 %4558
        %v4560 = vsel %vm2073, %v4542, 0.0
        %4561 = vadd.xlane.f32.xlu0 %v4560
        %v4562 = vpop.xlane.xlu0 %4561
        %v4563 = vsel %vm2073, %v4543, 0.0
        %4564 = vadd.xlane.f32.xlu0 %v4563
        %v4565 = vpop.xlane.xlu0 %4564
        %v4566 = vsel %vm2073, %v4544, 0.0
        %4567 = vadd.xlane.f32.xlu0 %v4566
        %v4568 = vpop.xlane.xlu0 %4567
        %v4569 = vsel %vm2073, %v4545, 0.0
        %4570 = vadd.xlane.f32.xlu0 %v4569
        %v4571 = vpop.xlane.xlu0 %4570
        %v4572 = vsel %vm2073, %v4546, 0.0
        %4573 = vadd.xlane.f32.xlu0 %v4572
        %v4574 = vpop.xlane.xlu0 %4573
        %v4575 = vsel %vm2073, %v4547, 0.0
        %4576 = vadd.xlane.f32.xlu0 %v4575
        %v4577 = vpop.xlane.xlu0 %4576
        %v4578 = vmul.f32 %v4550, %v4016
        %v4579 = vmul.f32 %v4553, %v4016
        %v4580 = vmul.f32 %v4556, %v4016
        %v4581 = vmul.f32 %v4559, %v4016
        %v4582 = vmul.f32 %v4562, %v4016
        %v4583 = vmul.f32 %v4565, %v4016
        %v4584 = vmul.f32 %v4568, %v4016
        %v4585 = vmul.f32 %v4571, %v4016
        %v4586 = vmul.f32 %v4574, %v4016
        %v4587 = vmul.f32 %v4577, %v4016
        %v4588 = vadd.f32 %v4578, 1e-05
        %v4589 = vadd.f32 %v4579, 1e-05
        %v4590 = vadd.f32 %v4580, 1e-05
        %v4591 = vadd.f32 %v4581, 1e-05
        %v4592 = vadd.f32 %v4582, 1e-05
        %v4593 = vadd.f32 %v4583, 1e-05
        %v4594 = vadd.f32 %v4584, 1e-05
        %v4595 = vadd.f32 %v4585, 1e-05
        %v4596 = vadd.f32 %v4586, 1e-05
        %v4597 = vadd.f32 %v4587, 1e-05
        %v4598 = vrsqrt.pop %v4588
        %v4599 = vrsqrt.pop %v4589
        %v4600 = vrsqrt.pop %v4590
        %v4601 = vrsqrt.pop %v4591
        %v4602 = vrsqrt.pop %v4592
        %v4603 = vrsqrt.pop %v4593
        %v4604 = vrsqrt.pop %v4594
        %v4605 = vrsqrt.pop %v4595
        %v4606 = vrsqrt.pop %v4596
        %v4607 = vrsqrt.pop %v4597
        %v4608 = vmul.f32 %v4528, %v4598
        %v4609 = vmul.f32 %v4529, %v4599
        %v4610 = vmul.f32 %v4530, %v4600
        %v4611 = vmul.f32 %v4531, %v4601
        %v4612 = vmul.f32 %v4532, %v4602
        %v4613 = vmul.f32 %v4533, %v4603
        %v4614 = vmul.f32 %v4534, %v4604
        %v4615 = vmul.f32 %v4535, %v4605
        %v4616 = vmul.f32 %v4536, %v4606
        %v4617 = vmul.f32 %v4537, %v4607
        %v4619 = vlaneseq
        %v4620 = vshrl.u32 %v4619, 7
        %v4621 = vsub.s32 0, %v4620
        %v4622 = vrot.slane %v4486, %v4621
        %v4624 = vmul.f32 %v4608, %v4622
        %v4625 = vmul.f32 %v4609, %v4622
        %v4626 = vmul.f32 %v4610, %v4622
        %v4627 = vmul.f32 %v4611, %v4622
        %v4628 = vmul.f32 %v4612, %v4622
        %v4629 = vmul.f32 %v4613, %v4622
        %v4630 = vmul.f32 %v4614, %v4622
        %v4631 = vmul.f32 %v4615, %v4622
        %v4632 = vmul.f32 %v4616, %v4622
        %v4633 = vmul.f32 %v4617, %v4622
        %v4635 = vlaneseq
        %v4636 = vshrl.u32 %v4635, 7
        %v4637 = vsub.s32 0, %v4636
        %v4638 = vrot.slane %v4487, %v4637
        %v4640 = vadd.f32 %v4624, %v4638
        %v4641 = vadd.f32 %v4625, %v4638
        %v4642 = vadd.f32 %v4626, %v4638
        %v4643 = vadd.f32 %v4627, %v4638
        %v4644 = vadd.f32 %v4628, %v4638
        %v4645 = vadd.f32 %v4629, %v4638
        %v4646 = vadd.f32 %v4630, %v4638
        %v4647 = vadd.f32 %v4631, %v4638
        %v4648 = vadd.f32 %v4632, %v4638
        %v4649 = vadd.f32 %v4633, %v4638
        %v4650 = vld [vmem:[%s45] sm:$0x1]
        %v4651 = vld [vmem:[%s47] sm:$0x1]
        %v4652 = vld [vmem:[%s49] sm:$0xff]
        %v4653 = vld [vmem:[%s49 + $0x8] sm:$0xff]
        %v4654 = vld [vmem:[%s49 + $0x10] sm:$0xff]
        %v4655 = vld [vmem:[%s49 + $0x18] sm:$0xff]
        %v4656 = vld [vmem:[%s51] sm:$0x1]
        %v4658 = vsel %vm2073, %v4651, 0
        %4660 = vmatprep.subr.mxu0 0.0
        %4661 = vmatpush1.msra.mxu0 0.0
        %4662 = vmatprep.subr.mxu0 0.0
        %4663 = vmatpush1.msra.mxu0 0.0
        %4664 = vmatprep.subr.mxu0 0.0
        %4665 = vmatpush1.msra.mxu0 0.0
        %4666 = vmatprep.subr.mxu0 0.0
        %4667 = vmatpush1.msra.mxu0 0.0
        %4668 = vmatprep.subr.mxu0 0.0
        %4669 = vmatpush1.msra.mxu0 0.0
        %4670 = vmatprep.subr.mxu0 0.0
        %4671 = vmatpush1.msra.mxu0 0.0
        %4672 = vmatprep.subr.mxu0 0.0
        %4673 = vmatpush1.msra.mxu0 0.0
        %4674 = vmatprep.subr.mxu0 0.0
        %4675 = vmatpush1.msra.mxu0 0.0
        %4676 = vmatprep.subr.mxu0 0.0
        %4677 = vmatpush1.msra.mxu0 0.0
        %4678 = vmatprep.subr.mxu0 0.0
        %4679 = vmatpush1.msra.mxu0 0.0
        %4680 = vmatprep.subr.mxu0 0.0
        %4681 = vmatpush1.msra.mxu0 0.0
        %4682 = vmatprep.subr.mxu0 0.0
        %4683 = vmatpush1.msra.mxu0 0.0
        %4684 = vmatprep.subr.mxu0 0.0
        %4685 = vmatpush1.msra.mxu0 %v4655
        %4686 = vmatprep.subr.mxu0 0.0
        %4687 = vmatpush1.msra.mxu0 %v4654
        %4688 = vmatprep.subr.mxu0 0.0
        %4689 = vmatpush1.msra.mxu0 %v4653
        %4690 = vmatprep.subr.mxu0 0.0
        %4691 = vmatpush1.msra.mxu0 %v4652
        %4692 = vmatprep.subr.mxu0 0.0
        %4693 = vmatpush2.msra.mxu0 0.0
        %4694 = vmatprep.subr.mxu0 0.0
        %4695 = vmatpush2.msra.mxu0 0.0
        %4696 = vmatprep.subr.mxu0 0.0
        %4697 = vmatpush2.msra.mxu0 0.0
        %4698 = vmatprep.subr.mxu0 0.0
        %4699 = vmatpush2.msra.mxu0 0.0
        %4700 = vmatprep.subr.mxu0 0.0
        %4701 = vmatpush2.msra.mxu0 0.0
        %4702 = vmatprep.subr.mxu0 0.0
        %4703 = vmatpush2.msra.mxu0 0.0
        %4704 = vmatprep.subr.mxu0 0.0
        %4705 = vmatpush2.msra.mxu0 0.0
        %4706 = vmatprep.subr.mxu0 0.0
        %4707 = vmatpush2.msra.mxu0 0.0
        %4708 = vmatprep.subr.mxu0 0.0
        %4709 = vmatpush2.msra.mxu0 0.0
        %4710 = vmatprep.subr.mxu0 0.0
        %4711 = vmatpush2.msra.mxu0 0.0
        %4712 = vmatprep.subr.mxu0 0.0
        %4713 = vmatpush2.msra.mxu0 0.0
        %4714 = vmatprep.subr.mxu0 0.0
        %4715 = vmatpush2.msra.mxu0 0.0
        %4716 = vmatprep.subr.mxu0 0.0
        %4717 = vmatpush2.msra.mxu0 0.0
        %4718 = vmatprep.subr.mxu0 0.0
        %4719 = vmatpush2.msra.mxu0 0.0
        %4720 = vmatprep.subr.mxu0 0.0
        %4721 = vmatpush2.msra.mxu0 0.0
        %4722 = vmatprep.subr.mxu0 0.0
        %4723 = vmatpush2.msra.mxu0 0.0
        %4724 = vmatprep.mubr.f32.mxu0 0.0
        %4725 = vmatmul.mubr.f32.gmra.mxu0 %v4658
        %v4726 = vpop.f32.mrf.mxu0
        %v4727 = vadd.f32 %v4656, %v4726
        %v4728 = vpop.f32.mrf.mxu0
        %4729 = vdwg.mxu0
        %v4730 = vld [vmem:[%s53] sm:$0x1]
        %v4731 = vld [vmem:[%s55] sm:$0x1]
        %vm4732 = vcmask 253952
        %v4733 = vsel %vm4732, %v4727, 0.0
        %4734 = vadd.xlane.f32.xlu0 %v4733
        %v4735 = vpop.xlane.xlu0 %4734
        %v4736 = vmul.f32 %v4735, %v4016
        %v4737 = vsub.f32 %v4727, %v4736
        %v4738 = vmul.f32 %v4737, %v4737
        %v4739 = vsel %vm4732, %v4738, 0.0
        %4740 = vadd.xlane.f32.xlu0 %v4739
        %v4741 = vpop.xlane.xlu0 %4740
        %v4742 = vmul.f32 %v4741, %v4016
        %v4743 = vadd.f32 %v4742, 1e-05
        %v4744 = vrsqrt.pop %v4743
        %v4745 = vmul.f32 %v4737, %v4744
        %v4746 = vmul.f32 %v4745, %v4730
        %v4747 = vadd.f32 %v4746, %v4731
        %v4748 = vadd.f32 %v4747, %v4650
        %v4749 = vld [vmem:[%s57] sm:$0xff]
        %v4750 = vld [vmem:[%s57 + $0x8] sm:$0xff]
        %v4751 = vld [vmem:[%s57 + $0x10] sm:$0xff]
        %v4752 = vld [vmem:[%s57 + $0x18] sm:$0xff]
        %v4753 = vld [vmem:[%s59] sm:$0x1]
        %v4755 = vsel %vm2073, %v4748, 0
        %4757 = vmatprep.subr.mxu0 0.0
        %4758 = vmatpush1.msra.mxu0 0.0
        %4759 = vmatprep.subr.mxu0 0.0
        %4760 = vmatpush1.msra.mxu0 0.0
        %4761 = vmatprep.subr.mxu0 0.0
        %4762 = vmatpush1.msra.mxu0 0.0
        %4763 = vmatprep.subr.mxu0 0.0
        %4764 = vmatpush1.msra.mxu0 0.0
        %4765 = vmatprep.subr.mxu0 0.0
        %4766 = vmatpush1.msra.mxu0 0.0
        %4767 = vmatprep.subr.mxu0 0.0
        %4768 = vmatpush1.msra.mxu0 0.0
        %4769 = vmatprep.subr.mxu0 0.0
        %4770 = vmatpush1.msra.mxu0 0.0
        %4771 = vmatprep.subr.mxu0 0.0
        %4772 = vmatpush1.msra.mxu0 0.0
        %4773 = vmatprep.subr.mxu0 0.0
        %4774 = vmatpush1.msra.mxu0 0.0
        %4775 = vmatprep.subr.mxu0 0.0
        %4776 = vmatpush1.msra.mxu0 0.0
        %4777 = vmatprep.subr.mxu0 0.0
        %4778 = vmatpush1.msra.mxu0 0.0
        %4779 = vmatprep.subr.mxu0 0.0
        %4780 = vmatpush1.msra.mxu0 0.0
        %4781 = vmatprep.subr.mxu0 0.0
        %4782 = vmatpush1.msra.mxu0 %v4752
        %4783 = vmatprep.subr.mxu0 0.0
        %4784 = vmatpush1.msra.mxu0 %v4751
        %4785 = vmatprep.subr.mxu0 0.0
        %4786 = vmatpush1.msra.mxu0 %v4750
        %4787 = vmatprep.subr.mxu0 0.0
        %4788 = vmatpush1.msra.mxu0 %v4749
        %4789 = vmatprep.subr.mxu0 0.0
        %4790 = vmatpush2.msra.mxu0 0.0
        %4791 = vmatprep.subr.mxu0 0.0
        %4792 = vmatpush2.msra.mxu0 0.0
        %4793 = vmatprep.subr.mxu0 0.0
        %4794 = vmatpush2.msra.mxu0 0.0
        %4795 = vmatprep.subr.mxu0 0.0
        %4796 = vmatpush2.msra.mxu0 0.0
        %4797 = vmatprep.subr.mxu0 0.0
        %4798 = vmatpush2.msra.mxu0 0.0
        %4799 = vmatprep.subr.mxu0 0.0
        %4800 = vmatpush2.msra.mxu0 0.0
        %4801 = vmatprep.subr.mxu0 0.0
        %4802 = vmatpush2.msra.mxu0 0.0
        %4803 = vmatprep.subr.mxu0 0.0
        %4804 = vmatpush2.msra.mxu0 0.0
        %4805 = vmatprep.subr.mxu0 0.0
        %4806 = vmatpush2.msra.mxu0 0.0
        %4807 = vmatprep.subr.mxu0 0.0
        %4808 = vmatpush2.msra.mxu0 0.0
        %4809 = vmatprep.subr.mxu0 0.0
        %4810 = vmatpush2.msra.mxu0 0.0
        %4811 = vmatprep.subr.mxu0 0.0
        %4812 = vmatpush2.msra.mxu0 0.0
        %4813 = vmatprep.subr.mxu0 0.0
        %4814 = vmatpush2.msra.mxu0 0.0
        %4815 = vmatprep.subr.mxu0 0.0
        %4816 = vmatpush2.msra.mxu0 0.0
        %4817 = vmatprep.subr.mxu0 0.0
        %4818 = vmatpush2.msra.mxu0 0.0
        %4819 = vmatprep.subr.mxu0 0.0
        %4820 = vmatpush2.msra.mxu0 0.0
        %4821 = vmatprep.mubr.f32.mxu0 0.0
        %4822 = vmatmul.mubr.f32.gmra.mxu0 %v4755
        %v4823 = vpop.f32.mrf.mxu0
        %v4824 = vadd.f32 %v4753, %v4823
        %v4825 = vpop.f32.mrf.mxu0
        %4826 = vdwg.mxu0
        %v4827 = vadd.f32 %v4640, %v2042
        %v4828 = vadd.f32 %v4641, %v2043
        %v4829 = vadd.f32 %v4642, %v2044
        %v4830 = vadd.f32 %v4643, %v2045
        %v4831 = vadd.f32 %v4644, %v2046
        %v4832 = vadd.f32 %v4645, %v2047
        %v4833 = vadd.f32 %v4646, %v2048
        %v4834 = vadd.f32 %v4647, %v2049
        %v4835 = vadd.f32 %v4648, %v2050
        %v4836 = vadd.f32 %v4649, %v2051
        %v4837 = vld [vmem:[%s61] sm:$0xff]
        %v4838 = vld [vmem:[%s61 + $0x8] sm:$0xff]
        %v4839 = vld [vmem:[%s61 + $0x10] sm:$0xff]
        %v4840 = vld [vmem:[%s61 + $0x18] sm:$0xff]
        %v4841 = vld [vmem:[%s63] sm:$0x1]
        %v4843 = vlaneseq
        %v4844 = vshrl.u32 %v4843, 7
        %v4845 = vsub.s32 0, %v4844
        %v4846 = vrot.slane %v4841, %v4845
        %v4849 = vsel %vm2073, %v4827, 0
        %v4852 = vsel %vm2073, %v4828, 0
        %v4855 = vsel %vm2073, %v4829, 0
        %v4858 = vsel %vm2073, %v4830, 0
        %v4861 = vsel %vm2073, %v4831, 0
        %v4864 = vsel %vm2073, %v4832, 0
        %v4867 = vsel %vm2073, %v4833, 0
        %v4870 = vsel %vm2073, %v4834, 0
        %v4873 = vsel %vm2073, %v4835, 0
        %v4876 = vsel %vm2073, %v4836, 0
        %4878 = vmatprep.subr.mxu0 0.0
        %4879 = vmatpush1.msra.mxu0 0.0
        %4880 = vmatprep.subr.mxu0 0.0
        %4881 = vmatpush1.msra.mxu0 0.0
        %4882 = vmatprep.subr.mxu0 0.0
        %4883 = vmatpush1.msra.mxu0 0.0
        %4884 = vmatprep.subr.mxu0 0.0
        %4885 = vmatpush1.msra.mxu0 0.0
        %4886 = vmatprep.subr.mxu0 0.0
        %4887 = vmatpush1.msra.mxu0 0.0
        %4888 = vmatprep.subr.mxu0 0.0
        %4889 = vmatpush1.msra.mxu0 0.0
        %4890 = vmatprep.subr.mxu0 0.0
        %4891 = vmatpush1.msra.mxu0 0.0
        %4892 = vmatprep.subr.mxu0 0.0
        %4893 = vmatpush1.msra.mxu0 0.0
        %4894 = vmatprep.subr.mxu0 0.0
        %4895 = vmatpush1.msra.mxu0 0.0
        %4896 = vmatprep.subr.mxu0 0.0
        %4897 = vmatpush1.msra.mxu0 0.0
        %4898 = vmatprep.subr.mxu0 0.0
        %4899 = vmatpush1.msra.mxu0 0.0
        %4900 = vmatprep.subr.mxu0 0.0
        %4901 = vmatpush1.msra.mxu0 0.0
        %4902 = vmatprep.subr.mxu0 0.0
        %4903 = vmatpush1.msra.mxu0 %v4840
        %4904 = vmatprep.subr.mxu0 0.0
        %4905 = vmatpush1.msra.mxu0 %v4839
        %4906 = vmatprep.subr.mxu0 0.0
        %4907 = vmatpush1.msra.mxu0 %v4838
        %4908 = vmatprep.subr.mxu0 0.0
        %4909 = vmatpush1.msra.mxu0 %v4837
        %4910 = vmatprep.subr.mxu0 0.0
        %4911 = vmatpush2.msra.mxu0 0.0
        %4912 = vmatprep.subr.mxu0 0.0
        %4913 = vmatpush2.msra.mxu0 0.0
        %4914 = vmatprep.subr.mxu0 0.0
        %4915 = vmatpush2.msra.mxu0 0.0
        %4916 = vmatprep.subr.mxu0 0.0
        %4917 = vmatpush2.msra.mxu0 0.0
        %4918 = vmatprep.subr.mxu0 0.0
        %4919 = vmatpush2.msra.mxu0 0.0
        %4920 = vmatprep.subr.mxu0 0.0
        %4921 = vmatpush2.msra.mxu0 0.0
        %4922 = vmatprep.subr.mxu0 0.0
        %4923 = vmatpush2.msra.mxu0 0.0
        %4924 = vmatprep.subr.mxu0 0.0
        %4925 = vmatpush2.msra.mxu0 0.0
        %4926 = vmatprep.subr.mxu0 0.0
        %4927 = vmatpush2.msra.mxu0 0.0
        %4928 = vmatprep.subr.mxu0 0.0
        %4929 = vmatpush2.msra.mxu0 0.0
        %4930 = vmatprep.subr.mxu0 0.0
        %4931 = vmatpush2.msra.mxu0 0.0
        %4932 = vmatprep.subr.mxu0 0.0
        %4933 = vmatpush2.msra.mxu0 0.0
        %4934 = vmatprep.subr.mxu0 0.0
        %4935 = vmatpush2.msra.mxu0 0.0
        %4936 = vmatprep.subr.mxu0 0.0
        %4937 = vmatpush2.msra.mxu0 0.0
        %4938 = vmatprep.subr.mxu0 0.0
        %4939 = vmatpush2.msra.mxu0 0.0
        %4940 = vmatprep.subr.mxu0 0.0
        %4941 = vmatpush2.msra.mxu0 0.0
        %4942 = vmatprep.mubr.f32.mxu0 0.0
        %4943 = vmatmul.mubr.f32.gmra.mxu0 %v4849
        %v4944 = vpop.f32.mrf.mxu0
        %v4945 = vadd.f32 %v4846, %v4944
        %v4946 = vpop.f32.mrf.mxu0
        %4947 = vmatprep.mubr.f32.mxu0 0.0
        %4948 = vmatmul.mubr.f32.gmra.mxu0 %v4852
        %v4949 = vpop.f32.mrf.mxu0
        %v4950 = vadd.f32 %v4846, %v4949
        %v4951 = vpop.f32.mrf.mxu0
        %4952 = vmatprep.mubr.f32.mxu0 0.0
        %4953 = vmatmul.mubr.f32.gmra.mxu0 %v4855
        %v4954 = vpop.f32.mrf.mxu0
        %v4955 = vadd.f32 %v4846, %v4954
        %v4956 = vpop.f32.mrf.mxu0
        %4957 = vmatprep.mubr.f32.mxu0 0.0
        %4958 = vmatmul.mubr.f32.gmra.mxu0 %v4858
        %v4959 = vpop.f32.mrf.mxu0
        %v4960 = vadd.f32 %v4846, %v4959
        %v4961 = vpop.f32.mrf.mxu0
        %4962 = vmatprep.mubr.f32.mxu0 0.0
        %4963 = vmatmul.mubr.f32.gmra.mxu0 %v4861
        %v4964 = vpop.f32.mrf.mxu0
        %v4965 = vadd.f32 %v4846, %v4964
        %v4966 = vpop.f32.mrf.mxu0
        %4967 = vmatprep.mubr.f32.mxu0 0.0
        %4968 = vmatmul.mubr.f32.gmra.mxu0 %v4864
        %v4969 = vpop.f32.mrf.mxu0
        %v4970 = vadd.f32 %v4846, %v4969
        %v4971 = vpop.f32.mrf.mxu0
        %4972 = vmatprep.mubr.f32.mxu0 0.0
        %4973 = vmatmul.mubr.f32.gmra.mxu0 %v4867
        %v4974 = vpop.f32.mrf.mxu0
        %v4975 = vadd.f32 %v4846, %v4974
        %v4976 = vpop.f32.mrf.mxu0
        %4977 = vmatprep.mubr.f32.mxu0 0.0
        %4978 = vmatmul.mubr.f32.gmra.mxu0 %v4870
        %v4979 = vpop.f32.mrf.mxu0
        %v4980 = vadd.f32 %v4846, %v4979
        %v4981 = vpop.f32.mrf.mxu0
        %4982 = vmatprep.mubr.f32.mxu0 0.0
        %4983 = vmatmul.mubr.f32.gmra.mxu0 %v4873
        %v4984 = vpop.f32.mrf.mxu0
        %v4985 = vadd.f32 %v4846, %v4984
        %v4986 = vpop.f32.mrf.mxu0
        %4987 = vmatprep.mubr.f32.mxu0 0.0
        %4988 = vmatmul.mubr.f32.gmra.mxu0 %v4876
        %v4989 = vpop.f32.mrf.mxu0
        %v4990 = vadd.f32 %v4846, %v4989
        %v4991 = vpop.f32.mrf.mxu0
        %4992 = vdwg.mxu0
        %v4993 = vld [vmem:[%s65] sm:$0xff]
        %v4994 = vld [vmem:[%s65 + $0x8] sm:$0xff]
        %v4995 = vld [vmem:[%s65 + $0x10] sm:$0xff]
        %v4996 = vld [vmem:[%s65 + $0x18] sm:$0xff]
        %v4997 = vld [vmem:[%s67] sm:$0x1]
        %v4999 = vlaneseq
        %v5000 = vshrl.u32 %v4999, 7
        %v5001 = vsub.s32 0, %v5000
        %v5002 = vrot.slane %v4997, %v5001
        %v5005 = vsel %vm2073, %v4640, 0
        %v5008 = vsel %vm2073, %v4641, 0
        %v5011 = vsel %vm2073, %v4642, 0
        %v5014 = vsel %vm2073, %v4643, 0
        %v5017 = vsel %vm2073, %v4644, 0
        %v5020 = vsel %vm2073, %v4645, 0
        %v5023 = vsel %vm2073, %v4646, 0
        %v5026 = vsel %vm2073, %v4647, 0
        %v5029 = vsel %vm2073, %v4648, 0
        %v5032 = vsel %vm2073, %v4649, 0
        %5034 = vmatprep.subr.mxu0 0.0
        %5035 = vmatpush1.msra.mxu0 0.0
        %5036 = vmatprep.subr.mxu0 0.0
        %5037 = vmatpush1.msra.mxu0 0.0
        %5038 = vmatprep.subr.mxu0 0.0
        %5039 = vmatpush1.msra.mxu0 0.0
        %5040 = vmatprep.subr.mxu0 0.0
        %5041 = vmatpush1.msra.mxu0 0.0
        %5042 = vmatprep.subr.mxu0 0.0
        %5043 = vmatpush1.msra.mxu0 0.0
        %5044 = vmatprep.subr.mxu0 0.0
        %5045 = vmatpush1.msra.mxu0 0.0
        %5046 = vmatprep.subr.mxu0 0.0
        %5047 = vmatpush1.msra.mxu0 0.0
        %5048 = vmatprep.subr.mxu0 0.0
        %5049 = vmatpush1.msra.mxu0 0.0
        %5050 = vmatprep.subr.mxu0 0.0
        %5051 = vmatpush1.msra.mxu0 0.0
        %5052 = vmatprep.subr.mxu0 0.0
        %5053 = vmatpush1.msra.mxu0 0.0
        %5054 = vmatprep.subr.mxu0 0.0
        %5055 = vmatpush1.msra.mxu0 0.0
        %5056 = vmatprep.subr.mxu0 0.0
        %5057 = vmatpush1.msra.mxu0 0.0
        %5058 = vmatprep.subr.mxu0 0.0
        %5059 = vmatpush1.msra.mxu0 %v4996
        %5060 = vmatprep.subr.mxu0 0.0
        %5061 = vmatpush1.msra.mxu0 %v4995
        %5062 = vmatprep.subr.mxu0 0.0
        %5063 = vmatpush1.msra.mxu0 %v4994
        %5064 = vmatprep.subr.mxu0 0.0
        %5065 = vmatpush1.msra.mxu0 %v4993
        %5066 = vmatprep.subr.mxu0 0.0
        %5067 = vmatpush2.msra.mxu0 0.0
        %5068 = vmatprep.subr.mxu0 0.0
        %5069 = vmatpush2.msra.mxu0 0.0
        %5070 = vmatprep.subr.mxu0 0.0
        %5071 = vmatpush2.msra.mxu0 0.0
        %5072 = vmatprep.subr.mxu0 0.0
        %5073 = vmatpush2.msra.mxu0 0.0
        %5074 = vmatprep.subr.mxu0 0.0
        %5075 = vmatpush2.msra.mxu0 0.0
        %5076 = vmatprep.subr.mxu0 0.0
        %5077 = vmatpush2.msra.mxu0 0.0
        %5078 = vmatprep.subr.mxu0 0.0
        %5079 = vmatpush2.msra.mxu0 0.0
        %5080 = vmatprep.subr.mxu0 0.0
        %5081 = vmatpush2.msra.mxu0 0.0
        %5082 = vmatprep.subr.mxu0 0.0
        %5083 = vmatpush2.msra.mxu0 0.0
        %5084 = vmatprep.subr.mxu0 0.0
        %5085 = vmatpush2.msra.mxu0 0.0
        %5086 = vmatprep.subr.mxu0 0.0
        %5087 = vmatpush2.msra.mxu0 0.0
        %5088 = vmatprep.subr.mxu0 0.0
        %5089 = vmatpush2.msra.mxu0 0.0
        %5090 = vmatprep.subr.mxu0 0.0
        %5091 = vmatpush2.msra.mxu0 0.0
        %5092 = vmatprep.subr.mxu0 0.0
        %5093 = vmatpush2.msra.mxu0 0.0
        %5094 = vmatprep.subr.mxu0 0.0
        %5095 = vmatpush2.msra.mxu0 0.0
        %5096 = vmatprep.subr.mxu0 0.0
        %5097 = vmatpush2.msra.mxu0 0.0
        %5098 = vmatprep.mubr.f32.mxu0 0.0
        %5099 = vmatmul.mubr.f32.gmra.mxu0 %v5005
        %v5100 = vpop.f32.mrf.mxu0
        %v5101 = vadd.f32 %v5002, %v5100
        %v5102 = vpop.f32.mrf.mxu0
        %5103 = vmatprep.mubr.f32.mxu0 0.0
        %5104 = vmatmul.mubr.f32.gmra.mxu0 %v5008
        %v5105 = vpop.f32.mrf.mxu0
        %v5106 = vadd.f32 %v5002, %v5105
        %v5107 = vpop.f32.mrf.mxu0
        %5108 = vmatprep.mubr.f32.mxu0 0.0
        %5109 = vmatmul.mubr.f32.gmra.mxu0 %v5011
        %v5110 = vpop.f32.mrf.mxu0
        %v5111 = vadd.f32 %v5002, %v5110
        %v5112 = vpop.f32.mrf.mxu0
        %5113 = vmatprep.mubr.f32.mxu0 0.0
        %5114 = vmatmul.mubr.f32.gmra.mxu0 %v5014
        %v5115 = vpop.f32.mrf.mxu0
        %v5116 = vadd.f32 %v5002, %v5115
        %v5117 = vpop.f32.mrf.mxu0
        %5118 = vmatprep.mubr.f32.mxu0 0.0
        %5119 = vmatmul.mubr.f32.gmra.mxu0 %v5017
        %v5120 = vpop.f32.mrf.mxu0
        %v5121 = vadd.f32 %v5002, %v5120
        %v5122 = vpop.f32.mrf.mxu0
        %5123 = vmatprep.mubr.f32.mxu0 0.0
        %5124 = vmatmul.mubr.f32.gmra.mxu0 %v5020
        %v5125 = vpop.f32.mrf.mxu0
        %v5126 = vadd.f32 %v5002, %v5125
        %v5127 = vpop.f32.mrf.mxu0
        %5128 = vmatprep.mubr.f32.mxu0 0.0
        %5129 = vmatmul.mubr.f32.gmra.mxu0 %v5023
        %v5130 = vpop.f32.mrf.mxu0
        %v5131 = vadd.f32 %v5002, %v5130
        %v5132 = vpop.f32.mrf.mxu0
        %5133 = vmatprep.mubr.f32.mxu0 0.0
        %5134 = vmatmul.mubr.f32.gmra.mxu0 %v5026
        %v5135 = vpop.f32.mrf.mxu0
        %v5136 = vadd.f32 %v5002, %v5135
        %v5137 = vpop.f32.mrf.mxu0
        %5138 = vmatprep.mubr.f32.mxu0 0.0
        %5139 = vmatmul.mubr.f32.gmra.mxu0 %v5029
        %v5140 = vpop.f32.mrf.mxu0
        %v5141 = vadd.f32 %v5002, %v5140
        %v5142 = vpop.f32.mrf.mxu0
        %5143 = vmatprep.mubr.f32.mxu0 0.0
        %5144 = vmatmul.mubr.f32.gmra.mxu0 %v5032
        %v5145 = vpop.f32.mrf.mxu0
        %v5146 = vadd.f32 %v5002, %v5145
        %v5147 = vpop.f32.mrf.mxu0
        %5148 = vdwg.mxu0
        %v5149 = vmul.f32 %v4824, %v1740
        %v5151 = vrot.slane %v1740, 1
        %v5153 = vmul.f32 %v4824, %v5151
        %v5154 = vrot.slane %v1740, 2
        %v5156 = vmul.f32 %v4824, %v5154
        %v5157 = vrot.slane %v1740, 3
        %v5159 = vmul.f32 %v4824, %v5157
        %v5161 = vrot.slane %v5153, 7
        %v5164 = vrot.slane %v5156, 6
        %v5167 = vrot.slane %v5159, 5
        %vm5169 = vcmask 1040384
        %v5170 = vsel %vm5169, %v5149, %v5161
        %vm5171 = vcmask 1041408
        %v5172 = vsel %vm5171, %v5170, %v5164
        %vm5173 = vcmask 1042432
        %v5174 = vsel %vm5173, %v5172, %v5167
        %v5176 = vsel %vm2073, %v5174, 0
        %v5179 = vsel %vm2073, %v4945, 0
        %v5182 = vsel %vm2073, %v4950, 0
        %v5185 = vsel %vm2073, %v4955, 0
        %v5188 = vsel %vm2073, %v4960, 0
        %v5191 = vsel %vm2073, %v4965, 0
        %v5194 = vsel %vm2073, %v4970, 0
        %v5197 = vsel %vm2073, %v4975, 0
        %v5200 = vsel %vm2073, %v4980, 0
        %v5203 = vsel %vm2073, %v4985, 0
        %v5206 = vsel %vm2073, %v4990, 0
        %5208 = vmatprep.subr.mxu0 0.0
        %5209 = vmatpush1.xpose.msra.mxu0 0.0
        %5210 = vmatprep.subr.mxu0 0.0
        %5211 = vmatpush1.xpose.msra.mxu0 0.0
        %5212 = vmatprep.subr.mxu0 0.0
        %5213 = vmatpush1.xpose.msra.mxu0 0.0
        %5214 = vmatprep.subr.mxu0 0.0
        %5215 = vmatpush1.xpose.msra.mxu0 0.0
        %5216 = vmatprep.subr.mxu0 0.0
        %5217 = vmatpush1.xpose.msra.mxu0 0.0
        %5218 = vmatprep.subr.mxu0 0.0
        %5219 = vmatpush1.xpose.msra.mxu0 0.0
        %5220 = vmatprep.subr.mxu0 0.0
        %5221 = vmatpush1.xpose.msra.mxu0 %v5206
        %5222 = vmatprep.subr.mxu0 0.0
        %5223 = vmatpush1.xpose.msra.mxu0 %v5203
        %5224 = vmatprep.subr.mxu0 0.0
        %5225 = vmatpush1.xpose.msra.mxu0 %v5200
        %5226 = vmatprep.subr.mxu0 0.0
        %5227 = vmatpush1.xpose.msra.mxu0 %v5197
        %5228 = vmatprep.subr.mxu0 0.0
        %5229 = vmatpush1.xpose.msra.mxu0 %v5194
        %5230 = vmatprep.subr.mxu0 0.0
        %5231 = vmatpush1.xpose.msra.mxu0 %v5191
        %5232 = vmatprep.subr.mxu0 0.0
        %5233 = vmatpush1.xpose.msra.mxu0 %v5188
        %5234 = vmatprep.subr.mxu0 0.0
        %5235 = vmatpush1.xpose.msra.mxu0 %v5185
        %5236 = vmatprep.subr.mxu0 0.0
        %5237 = vmatpush1.xpose.msra.mxu0 %v5182
        %5238 = vmatprep.subr.mxu0 0.0
        %5239 = vmatpush1.xpose.msra.mxu0 %v5179
        %5240 = vmatprep.subr.mxu0 0.0
        %5241 = vmatpush2.xpose.msra.mxu0 0.0
        %5242 = vmatprep.subr.mxu0 0.0
        %5243 = vmatpush2.xpose.msra.mxu0 0.0
        %5244 = vmatprep.subr.mxu0 0.0
        %5245 = vmatpush2.xpose.msra.mxu0 0.0
        %5246 = vmatprep.subr.mxu0 0.0
        %5247 = vmatpush2.xpose.msra.mxu0 0.0
        %5248 = vmatprep.subr.mxu0 0.0
        %5249 = vmatpush2.xpose.msra.mxu0 0.0
        %5250 = vmatprep.subr.mxu0 0.0
        %5251 = vmatpush2.xpose.msra.mxu0 0.0
        %5252 = vmatprep.subr.mxu0 0.0
        %5253 = vmatpush2.xpose.msra.mxu0 0.0
        %5254 = vmatprep.subr.mxu0 0.0
        %5255 = vmatpush2.xpose.msra.mxu0 0.0
        %5256 = vmatprep.subr.mxu0 0.0
        %5257 = vmatpush2.xpose.msra.mxu0 0.0
        %5258 = vmatprep.subr.mxu0 0.0
        %5259 = vmatpush2.xpose.msra.mxu0 0.0
        %5260 = vmatprep.subr.mxu0 0.0
        %5261 = vmatpush2.xpose.msra.mxu0 0.0
        %5262 = vmatprep.subr.mxu0 0.0
        %5263 = vmatpush2.xpose.msra.mxu0 0.0
        %5264 = vmatprep.subr.mxu0 0.0
        %5265 = vmatpush2.xpose.msra.mxu0 0.0
        %5266 = vmatprep.subr.mxu0 0.0
        %5267 = vmatpush2.xpose.msra.mxu0 0.0
        %5268 = vmatprep.subr.mxu0 0.0
        %5269 = vmatpush2.xpose.msra.mxu0 0.0
        %5270 = vmatprep.subr.mxu0 0.0
        %5271 = vmatpush2.xpose.msra.mxu0 0.0
        %5272 = vmatprep.mubr.f32.mxu0 0.0
        %5273 = vmatmul.mubr.f32.gmra.mxu0 %v5176
        %v5274 = vpop.f32.mrf.mxu0
        %v5275 = vadd.f32 %v2435, %v5274
        %v5276 = vpop.f32.mrf.mxu0
        %5277 = vdwg.mxu0
        %vm5278 = vcmask 650240
        %v5279 = vsel %vm5278, %v5275, -inf
        %5280 = vmax.xlane.f32.xlu0 %v5279
        %v5281 = vpop.xlane.xlu0 %5280
        %v5282 = vsub.f32 %v5275, %v5281
        %v5283 = vmul.f32 %v5282, 1.442695
        %v5284 = vpow.pop %v5283
        %v5285 = vsel %vm5278, %v5284, 0.0
        %5286 = vadd.xlane.f32.xlu0 %v5285
        %v5287 = vpop.xlane.xlu0 %5286
        %v5288 = vadd.f32 %v5287, 1e-09
        %v5289 = vrcp.pop %v5288
        %v5290 = vmul.f32 %v5284, %v5289
        %v5292 = vsel %vm2872, %v5290, 0
        %5294 = vmatprep.subr.mxu0 0.0
        %5295 = vmatpush1.msra.mxu0 0.0
        %5296 = vmatprep.subr.mxu0 0.0
        %5297 = vmatpush1.msra.mxu0 0.0
        %5298 = vmatprep.subr.mxu0 0.0
        %5299 = vmatpush1.msra.mxu0 0.0
        %5300 = vmatprep.subr.mxu0 0.0
        %5301 = vmatpush1.msra.mxu0 0.0
        %5302 = vmatprep.subr.mxu0 0.0
        %5303 = vmatpush1.msra.mxu0 0.0
        %5304 = vmatprep.subr.mxu0 0.0
        %5305 = vmatpush1.msra.mxu0 0.0
        %5306 = vmatprep.subr.mxu0 0.0
        %5307 = vmatpush1.msra.mxu0 %v5146
        %5308 = vmatprep.subr.mxu0 0.0
        %5309 = vmatpush1.msra.mxu0 %v5141
        %5310 = vmatprep.subr.mxu0 0.0
        %5311 = vmatpush1.msra.mxu0 %v5136
        %5312 = vmatprep.subr.mxu0 0.0
        %5313 = vmatpush1.msra.mxu0 %v5131
        %5314 = vmatprep.subr.mxu0 0.0
        %5315 = vmatpush1.msra.mxu0 %v5126
        %5316 = vmatprep.subr.mxu0 0.0
        %5317 = vmatpush1.msra.mxu0 %v5121
        %5318 = vmatprep.subr.mxu0 0.0
        %5319 = vmatpush1.msra.mxu0 %v5116
        %5320 = vmatprep.subr.mxu0 0.0
        %5321 = vmatpush1.msra.mxu0 %v5111
        %5322 = vmatprep.subr.mxu0 0.0
        %5323 = vmatpush1.msra.mxu0 %v5106
        %5324 = vmatprep.subr.mxu0 0.0
        %5325 = vmatpush1.msra.mxu0 %v5101
        %5326 = vmatprep.subr.mxu0 0.0
        %5327 = vmatpush2.msra.mxu0 0.0
        %5328 = vmatprep.subr.mxu0 0.0
        %5329 = vmatpush2.msra.mxu0 0.0
        %5330 = vmatprep.subr.mxu0 0.0
        %5331 = vmatpush2.msra.mxu0 0.0
        %5332 = vmatprep.subr.mxu0 0.0
        %5333 = vmatpush2.msra.mxu0 0.0
        %5334 = vmatprep.subr.mxu0 0.0
        %5335 = vmatpush2.msra.mxu0 0.0
        %5336 = vmatprep.subr.mxu0 0.0
        %5337 = vmatpush2.msra.mxu0 0.0
        %5338 = vmatprep.subr.mxu0 0.0
        %5339 = vmatpush2.msra.mxu0 0.0
        %5340 = vmatprep.subr.mxu0 0.0
        %5341 = vmatpush2.msra.mxu0 0.0
        %5342 = vmatprep.subr.mxu0 0.0
        %5343 = vmatpush2.msra.mxu0 0.0
        %5344 = vmatprep.subr.mxu0 0.0
        %5345 = vmatpush2.msra.mxu0 0.0
        %5346 = vmatprep.subr.mxu0 0.0
        %5347 = vmatpush2.msra.mxu0 0.0
        %5348 = vmatprep.subr.mxu0 0.0
        %5349 = vmatpush2.msra.mxu0 0.0
        %5350 = vmatprep.subr.mxu0 0.0
        %5351 = vmatpush2.msra.mxu0 0.0
        %5352 = vmatprep.subr.mxu0 0.0
        %5353 = vmatpush2.msra.mxu0 0.0
        %5354 = vmatprep.subr.mxu0 0.0
        %5355 = vmatpush2.msra.mxu0 0.0
        %5356 = vmatprep.subr.mxu0 0.0
        %5357 = vmatpush2.msra.mxu0 0.0
        %5358 = vmatprep.mubr.f32.mxu0 0.0
        %5359 = vmatmul.mubr.f32.gmra.mxu0 %v5292
        %v5360 = vpop.f32.mrf.mxu0
        %v5361 = vadd.f32 0.0, %v5360
        %v5362 = vpop.f32.mrf.mxu0
        %5363 = vdwg.mxu0
        %v5364 = vmul.f32 %v5361, %v1740
        %v5366 = vrot.slane %v5364, 1
        %v5368 = vadd.f32 %v5364, %v5366
        %v5369 = vrot.slane %v5364, 2
        %v5371 = vadd.f32 %v5368, %v5369
        %v5372 = vrot.slane %v5364, 3
        %v5374 = vadd.f32 %v5371, %v5372
        %v5375 = vld [vmem:[%s69] sm:$0xff]
        %v5376 = vld [vmem:[%s69 + $0x8] sm:$0xff]
        %v5377 = vld [vmem:[%s69 + $0x10] sm:$0xff]
        %v5378 = vld [vmem:[%s69 + $0x18] sm:$0xff]
        %v5380 = vsel %vm2073, %v5374, 0
        %5382 = vmatprep.subr.mxu0 0.0
        %5383 = vmatpush1.msra.mxu0 0.0
        %5384 = vmatprep.subr.mxu0 0.0
        %5385 = vmatpush1.msra.mxu0 0.0
        %5386 = vmatprep.subr.mxu0 0.0
        %5387 = vmatpush1.msra.mxu0 0.0
        %5388 = vmatprep.subr.mxu0 0.0
        %5389 = vmatpush1.msra.mxu0 0.0
        %5390 = vmatprep.subr.mxu0 0.0
        %5391 = vmatpush1.msra.mxu0 0.0
        %5392 = vmatprep.subr.mxu0 0.0
        %5393 = vmatpush1.msra.mxu0 0.0
        %5394 = vmatprep.subr.mxu0 0.0
        %5395 = vmatpush1.msra.mxu0 0.0
        %5396 = vmatprep.subr.mxu0 0.0
        %5397 = vmatpush1.msra.mxu0 0.0
        %5398 = vmatprep.subr.mxu0 0.0
        %5399 = vmatpush1.msra.mxu0 0.0
        %5400 = vmatprep.subr.mxu0 0.0
        %5401 = vmatpush1.msra.mxu0 0.0
        %5402 = vmatprep.subr.mxu0 0.0
        %5403 = vmatpush1.msra.mxu0 0.0
        %5404 = vmatprep.subr.mxu0 0.0
        %5405 = vmatpush1.msra.mxu0 0.0
        %5406 = vmatprep.subr.mxu0 0.0
        %5407 = vmatpush1.msra.mxu0 %v5378
        %5408 = vmatprep.subr.mxu0 0.0
        %5409 = vmatpush1.msra.mxu0 %v5377
        %5410 = vmatprep.subr.mxu0 0.0
        %5411 = vmatpush1.msra.mxu0 %v5376
        %5412 = vmatprep.subr.mxu0 0.0
        %5413 = vmatpush1.msra.mxu0 %v5375
        %5414 = vmatprep.subr.mxu0 0.0
        %5415 = vmatpush2.msra.mxu0 0.0
        %5416 = vmatprep.subr.mxu0 0.0
        %5417 = vmatpush2.msra.mxu0 0.0
        %5418 = vmatprep.subr.mxu0 0.0
        %5419 = vmatpush2.msra.mxu0 0.0
        %5420 = vmatprep.subr.mxu0 0.0
        %5421 = vmatpush2.msra.mxu0 0.0
        %5422 = vmatprep.subr.mxu0 0.0
        %5423 = vmatpush2.msra.mxu0 0.0
        %5424 = vmatprep.subr.mxu0 0.0
        %5425 = vmatpush2.msra.mxu0 0.0
        %5426 = vmatprep.subr.mxu0 0.0
        %5427 = vmatpush2.msra.mxu0 0.0
        %5428 = vmatprep.subr.mxu0 0.0
        %5429 = vmatpush2.msra.mxu0 0.0
        %5430 = vmatprep.subr.mxu0 0.0
        %5431 = vmatpush2.msra.mxu0 0.0
        %5432 = vmatprep.subr.mxu0 0.0
        %5433 = vmatpush2.msra.mxu0 0.0
        %5434 = vmatprep.subr.mxu0 0.0
        %5435 = vmatpush2.msra.mxu0 0.0
        %5436 = vmatprep.subr.mxu0 0.0
        %5437 = vmatpush2.msra.mxu0 0.0
        %5438 = vmatprep.subr.mxu0 0.0
        %5439 = vmatpush2.msra.mxu0 0.0
        %5440 = vmatprep.subr.mxu0 0.0
        %5441 = vmatpush2.msra.mxu0 0.0
        %5442 = vmatprep.subr.mxu0 0.0
        %5443 = vmatpush2.msra.mxu0 0.0
        %5444 = vmatprep.subr.mxu0 0.0
        %5445 = vmatpush2.msra.mxu0 0.0
        %5446 = vmatprep.mubr.f32.mxu0 0.0
        %5447 = vmatmul.mubr.f32.gmra.mxu0 %v5380
        %v5448 = vpop.f32.mrf.mxu0
        %v5449 = vadd.f32 0.0, %v5448
        %v5450 = vpop.f32.mrf.mxu0
        %5451 = vdwg.mxu0
        %v5452 = vadd.f32 %v4747, %v5449
        %v5453 = vld [vmem:[#allocation2] sm:$0x1]
        %v5454 = vadd.f32 %v5452, %v5453
        %v5455 = vld [vmem:[#allocation4] sm:$0x1]
        %v5456 = vld [vmem:[#allocation6] sm:$0x1]
        %v5457 = vsel %vm4732, %v5454, 0.0
        %5458 = vadd.xlane.f32.xlu0 %v5457
        %v5459 = vpop.xlane.xlu0 %5458
        %v5460 = vmul.f32 %v5459, %v4016
        %v5461 = vsub.f32 %v5454, %v5460
        %v5462 = vmul.f32 %v5461, %v5461
        %v5463 = vsel %vm4732, %v5462, 0.0
        %5464 = vadd.xlane.f32.xlu0 %v5463
        %v5465 = vpop.xlane.xlu0 %5464
        %v5466 = vmul.f32 %v5465, %v4016
        %v5467 = vadd.f32 %v5466, 1e-05
        %v5468 = vrsqrt.pop %v5467
        %v5469 = vmul.f32 %v5461, %v5468
        %v5470 = vmul.f32 %v5469, %v5455
        %v5471 = vadd.f32 %v5470, %v5456
        %v5472 = vld [vmem:[%s77] sm:$0xff]
        %v5473 = vld [vmem:[%s77 + $0x8] sm:$0xff]
        %v5474 = vld [vmem:[%s77 + $0x10] sm:$0xff]
        %v5475 = vld [vmem:[%s77 + $0x18] sm:$0xff]
        %v5476 = vld [vmem:[#allocation7] sm:$0x1]
        %v5478 = vsel %vm2073, %v5471, 0
        %5480 = vmatprep.subr.mxu0 0.0
        %5481 = vmatpush1.msra.mxu0 0.0
        %5482 = vmatprep.subr.mxu0 0.0
        %5483 = vmatpush1.msra.mxu0 0.0
        %5484 = vmatprep.subr.mxu0 0.0
        %5485 = vmatpush1.msra.mxu0 0.0
        %5486 = vmatprep.subr.mxu0 0.0
        %5487 = vmatpush1.msra.mxu0 0.0
        %5488 = vmatprep.subr.mxu0 0.0
        %5489 = vmatpush1.msra.mxu0 0.0
        %5490 = vmatprep.subr.mxu0 0.0
        %5491 = vmatpush1.msra.mxu0 0.0
        %5492 = vmatprep.subr.mxu0 0.0
        %5493 = vmatpush1.msra.mxu0 0.0
        %5494 = vmatprep.subr.mxu0 0.0
        %5495 = vmatpush1.msra.mxu0 0.0
        %5496 = vmatprep.subr.mxu0 0.0
        %5497 = vmatpush1.msra.mxu0 0.0
        %5498 = vmatprep.subr.mxu0 0.0
        %5499 = vmatpush1.msra.mxu0 0.0
        %5500 = vmatprep.subr.mxu0 0.0
        %5501 = vmatpush1.msra.mxu0 0.0
        %5502 = vmatprep.subr.mxu0 0.0
        %5503 = vmatpush1.msra.mxu0 0.0
        %5504 = vmatprep.subr.mxu0 0.0
        %5505 = vmatpush1.msra.mxu0 %v5475
        %5506 = vmatprep.subr.mxu0 0.0
        %5507 = vmatpush1.msra.mxu0 %v5474
        %5508 = vmatprep.subr.mxu0 0.0
        %5509 = vmatpush1.msra.mxu0 %v5473
        %5510 = vmatprep.subr.mxu0 0.0
        %5511 = vmatpush1.msra.mxu0 %v5472
        %5512 = vmatprep.subr.mxu0 0.0
        %5513 = vmatpush2.msra.mxu0 0.0
        %5514 = vmatprep.subr.mxu0 0.0
        %5515 = vmatpush2.msra.mxu0 0.0
        %5516 = vmatprep.subr.mxu0 0.0
        %5517 = vmatpush2.msra.mxu0 0.0
        %5518 = vmatprep.subr.mxu0 0.0
        %5519 = vmatpush2.msra.mxu0 0.0
        %5520 = vmatprep.subr.mxu0 0.0
        %5521 = vmatpush2.msra.mxu0 0.0
        %5522 = vmatprep.subr.mxu0 0.0
        %5523 = vmatpush2.msra.mxu0 0.0
        %5524 = vmatprep.subr.mxu0 0.0
        %5525 = vmatpush2.msra.mxu0 0.0
        %5526 = vmatprep.subr.mxu0 0.0
        %5527 = vmatpush2.msra.mxu0 0.0
        %5528 = vmatprep.subr.mxu0 0.0
        %5529 = vmatpush2.msra.mxu0 0.0
        %5530 = vmatprep.subr.mxu0 0.0
        %5531 = vmatpush2.msra.mxu0 0.0
        %5532 = vmatprep.subr.mxu0 0.0
        %5533 = vmatpush2.msra.mxu0 0.0
        %5534 = vmatprep.subr.mxu0 0.0
        %5535 = vmatpush2.msra.mxu0 0.0
        %5536 = vmatprep.subr.mxu0 0.0
        %5537 = vmatpush2.msra.mxu0 0.0
        %5538 = vmatprep.subr.mxu0 0.0
        %5539 = vmatpush2.msra.mxu0 0.0
        %5540 = vmatprep.subr.mxu0 0.0
        %5541 = vmatpush2.msra.mxu0 0.0
        %5542 = vmatprep.subr.mxu0 0.0
        %5543 = vmatpush2.msra.mxu0 0.0
        %5544 = vmatprep.mubr.f32.mxu0 0.0
        %5545 = vmatmul.mubr.f32.gmra.mxu0 %v5478
        %v5546 = vpop.f32.mrf.mxu0
        %v5547 = vadd.f32 %v5476, %v5546
        %v5548 = vpop.f32.mrf.mxu0
        %5549 = vdwg.mxu0
        %v5550 = vmax.f32 %v5547, 0.0
        %v5551 = vld [vmem:[%s81] sm:$0xff]
        %v5552 = vld [vmem:[%s81 + $0x8] sm:$0xff]
        %v5553 = vld [vmem:[%s81 + $0x10] sm:$0xff]
        %v5554 = vld [vmem:[%s81 + $0x18] sm:$0xff]
        %v5555 = vld [vmem:[%s81 + $0x20] sm:$0xff]
        %v5556 = vld [vmem:[%s81 + $0x28] sm:$0xff]
        %v5557 = vld [vmem:[%s81 + $0x30] sm:$0xff]
        %v5558 = vld [vmem:[%s81 + $0x38] sm:$0xff]
        %v5559 = vld [vmem:[#allocation9] sm:$0x1]
        %v5561 = vsel %vm4330, %v5550, 0
        %5563 = vmatprep.subr.mxu0 0.0
        %5564 = vmatpush1.msra.mxu0 0.0
        %5565 = vmatprep.subr.mxu0 0.0
        %5566 = vmatpush1.msra.mxu0 0.0
        %5567 = vmatprep.subr.mxu0 0.0
        %5568 = vmatpush1.msra.mxu0 0.0
        %5569 = vmatprep.subr.mxu0 0.0
        %5570 = vmatpush1.msra.mxu0 0.0
        %5571 = vmatprep.subr.mxu0 0.0
        %5572 = vmatpush1.msra.mxu0 0.0
        %5573 = vmatprep.subr.mxu0 0.0
        %5574 = vmatpush1.msra.mxu0 0.0
        %5575 = vmatprep.subr.mxu0 0.0
        %5576 = vmatpush1.msra.mxu0 0.0
        %5577 = vmatprep.subr.mxu0 0.0
        %5578 = vmatpush1.msra.mxu0 0.0
        %5579 = vmatprep.subr.mxu0 0.0
        %5580 = vmatpush1.msra.mxu0 %v5558
        %5581 = vmatprep.subr.mxu0 0.0
        %5582 = vmatpush1.msra.mxu0 %v5557
        %5583 = vmatprep.subr.mxu0 0.0
        %5584 = vmatpush1.msra.mxu0 %v5556
        %5585 = vmatprep.subr.mxu0 0.0
        %5586 = vmatpush1.msra.mxu0 %v5555
        %5587 = vmatprep.subr.mxu0 0.0
        %5588 = vmatpush1.msra.mxu0 %v5554
        %5589 = vmatprep.subr.mxu0 0.0
        %5590 = vmatpush1.msra.mxu0 %v5553
        %5591 = vmatprep.subr.mxu0 0.0
        %5592 = vmatpush1.msra.mxu0 %v5552
        %5593 = vmatprep.subr.mxu0 0.0
        %5594 = vmatpush1.msra.mxu0 %v5551
        %5595 = vmatprep.subr.mxu0 0.0
        %5596 = vmatpush2.msra.mxu0 0.0
        %5597 = vmatprep.subr.mxu0 0.0
        %5598 = vmatpush2.msra.mxu0 0.0
        %5599 = vmatprep.subr.mxu0 0.0
        %5600 = vmatpush2.msra.mxu0 0.0
        %5601 = vmatprep.subr.mxu0 0.0
        %5602 = vmatpush2.msra.mxu0 0.0
        %5603 = vmatprep.subr.mxu0 0.0
        %5604 = vmatpush2.msra.mxu0 0.0
        %5605 = vmatprep.subr.mxu0 0.0
        %5606 = vmatpush2.msra.mxu0 0.0
        %5607 = vmatprep.subr.mxu0 0.0
        %5608 = vmatpush2.msra.mxu0 0.0
        %5609 = vmatprep.subr.mxu0 0.0
        %5610 = vmatpush2.msra.mxu0 0.0
        %5611 = vmatprep.subr.mxu0 0.0
        %5612 = vmatpush2.msra.mxu0 0.0
        %5613 = vmatprep.subr.mxu0 0.0
        %5614 = vmatpush2.msra.mxu0 0.0
        %5615 = vmatprep.subr.mxu0 0.0
        %5616 = vmatpush2.msra.mxu0 0.0
        %5617 = vmatprep.subr.mxu0 0.0
        %5618 = vmatpush2.msra.mxu0 0.0
        %5619 = vmatprep.subr.mxu0 0.0
        %5620 = vmatpush2.msra.mxu0 0.0
        %5621 = vmatprep.subr.mxu0 0.0
        %5622 = vmatpush2.msra.mxu0 0.0
        %5623 = vmatprep.subr.mxu0 0.0
        %5624 = vmatpush2.msra.mxu0 0.0
        %5625 = vmatprep.subr.mxu0 0.0
        %5626 = vmatpush2.msra.mxu0 0.0
        %5627 = vmatprep.mubr.f32.mxu0 0.0
        %5628 = vmatmul.mubr.f32.gmra.mxu0 %v5561
        %v5629 = vpop.f32.mrf.mxu0
        %v5630 = vadd.f32 %v5559, %v5629
        %v5631 = vpop.f32.mrf.mxu0
        %5632 = vdwg.mxu0
        %v5633 = vadd.f32 %v5471, %v5630
        %v5634 = vld [vmem:[#allocation10] sm:$0x1]
        %v5635 = vld [vmem:[#allocation12] sm:$0x1]
        %v5636 = vsel %vm4732, %v5633, 0.0
        %5637 = vadd.xlane.f32.xlu0 %v5636
        %v5638 = vpop.xlane.xlu0 %5637
        %v5639 = vmul.f32 %v5638, %v4016
        %v5640 = vsub.f32 %v5633, %v5639
        %v5641 = vmul.f32 %v5640, %v5640
        %v5642 = vsel %vm4732, %v5641, 0.0
        %5643 = vadd.xlane.f32.xlu0 %v5642
        %v5644 = vpop.xlane.xlu0 %5643
        %v5645 = vmul.f32 %v5644, %v4016
        %v5646 = vadd.f32 %v5645, 1e-05
        %v5647 = vrsqrt.pop %v5646
        %v5648 = vmul.f32 %v5640, %v5647
        %v5649 = vmul.f32 %v5648, %v5634
        %v5650 = vadd.f32 %v5649, %v5635
        %v5651 = vld [vmem:[#allocation13] sm:$0x1]
        %v5652 = vld [vmem:[#allocation15] sm:$0x1]
        %v5653 = vsel %vm4732, %v5650, 0.0
        %5654 = vadd.xlane.f32.xlu0 %v5653
        %v5655 = vpop.xlane.xlu0 %5654
        %v5656 = vmul.f32 %v5655, %v4016
        %v5657 = vsub.f32 %v5650, %v5656
        %v5658 = vmul.f32 %v5657, %v5657
        %v5659 = vsel %vm4732, %v5658, 0.0
        %5660 = vadd.xlane.f32.xlu0 %v5659
        %v5661 = vpop.xlane.xlu0 %5660
        %v5662 = vmul.f32 %v5661, %v4016
        %v5663 = vadd.f32 %v5662, 1e-05
        %v5664 = vrsqrt.pop %v5663
        %v5665 = vmul.f32 %v5657, %v5664
        %v5666 = vmul.f32 %v5665, %v5651
        %v5667 = vadd.f32 %v5666, %v5652
        %5668 = vxpose.xlu0.b32.start [1/16] %v4642, 128
        %5669 = vxpose.xlu0.b32.cont [2/16] %v4643, 128
        %5670 = vxpose.xlu0.b32.cont [3/16] %v4644, 128
        %5671 = vxpose.xlu0.b32.cont [4/16] %v4645, 128
        %5672 = vxpose.xlu0.b32.cont [5/16] %v4646, 128
        %5673 = vxpose.xlu0.b32.cont [6/16] %v4647, 128
        %5674 = vxpose.xlu0.b32.cont [7/16] %v4648, 128
        %5675 = vxpose.xlu0.b32.cont [8/16] %v4649, 128
        %5676 = vxpose.xlu0.b32.cont [9/16] 0.0, 128
        %5677 = vxpose.xlu0.b32.cont [10/16] 0.0, 128
        %5678 = vxpose.xlu0.b32.cont [11/16] 0.0, 128
        %5679 = vxpose.xlu0.b32.cont [12/16] 0.0, 128
        %5680 = vxpose.xlu0.b32.cont [13/16] 0.0, 128
        %5681 = vxpose.xlu0.b32.cont [14/16] 0.0, 128
        %5682 = vxpose.xlu0.b32.cont [15/16] 0.0, 128
        %5683 = vxpose.xlu0.b32.end [16/16] 0.0, 128
        %v5684 = vpop.trf.xlu0
        %v5685 = vpop.trf.xlu0
        %v5686 = vpop.trf.xlu0
        %v5687 = vpop.trf.xlu0
        %v5688 = vpop.trf.xlu0
        %v5689 = vpop.trf.xlu0
        %v5690 = vpop.trf.xlu0
        %v5691 = vpop.trf.xlu0
        %v5692 = vpop.trf.xlu0
        %v5693 = vpop.trf.xlu0
        %v5694 = vpop.trf.xlu0
        %v5695 = vpop.trf.xlu0
        %v5696 = vpop.trf.xlu0
        %v5697 = vpop.trf.xlu0
        %v5698 = vpop.trf.xlu0
        %v5699 = vpop.trf.xlu0
        %v5701 = vsel %vm2073, %v5667, 0
        %5703 = vmatprep.subr.mxu0 0.0
        %5704 = vmatpush1.msra.mxu0 0.0
        %5705 = vmatprep.subr.mxu0 0.0
        %5706 = vmatpush1.msra.mxu0 0.0
        %5707 = vmatprep.subr.mxu0 0.0
        %5708 = vmatpush1.msra.mxu0 0.0
        %5709 = vmatprep.subr.mxu0 0.0
        %5710 = vmatpush1.msra.mxu0 0.0
        %5711 = vmatprep.subr.mxu0 0.0
        %5712 = vmatpush1.msra.mxu0 0.0
        %5713 = vmatprep.subr.mxu0 0.0
        %5714 = vmatpush1.msra.mxu0 0.0
        %5715 = vmatprep.subr.mxu0 0.0
        %5716 = vmatpush1.msra.mxu0 0.0
        %5717 = vmatprep.subr.mxu0 0.0
        %5718 = vmatpush1.msra.mxu0 0.0
        %5719 = vmatprep.subr.mxu0 0.0
        %5720 = vmatpush1.msra.mxu0 0.0
        %5721 = vmatprep.subr.mxu0 0.0
        %5722 = vmatpush1.msra.mxu0 0.0
        %5723 = vmatprep.subr.mxu0 0.0
        %5724 = vmatpush1.msra.mxu0 0.0
        %5725 = vmatprep.subr.mxu0 0.0
        %5726 = vmatpush1.msra.mxu0 0.0
        %5727 = vmatprep.subr.mxu0 0.0
        %5728 = vmatpush1.msra.mxu0 %v5687
        %5729 = vmatprep.subr.mxu0 0.0
        %5730 = vmatpush1.msra.mxu0 %v5686
        %5731 = vmatprep.subr.mxu0 0.0
        %5732 = vmatpush1.msra.mxu0 %v5685
        %5733 = vmatprep.subr.mxu0 0.0
        %5734 = vmatpush1.msra.mxu0 %v5684
        %5735 = vmatprep.subr.mxu0 0.0
        %5736 = vmatpush2.msra.mxu0 0.0
        %5737 = vmatprep.subr.mxu0 0.0
        %5738 = vmatpush2.msra.mxu0 0.0
        %5739 = vmatprep.subr.mxu0 0.0
        %5740 = vmatpush2.msra.mxu0 0.0
        %5741 = vmatprep.subr.mxu0 0.0
        %5742 = vmatpush2.msra.mxu0 0.0
        %5743 = vmatprep.subr.mxu0 0.0
        %5744 = vmatpush2.msra.mxu0 0.0
        %5745 = vmatprep.subr.mxu0 0.0
        %5746 = vmatpush2.msra.mxu0 0.0
        %5747 = vmatprep.subr.mxu0 0.0
        %5748 = vmatpush2.msra.mxu0 0.0
        %5749 = vmatprep.subr.mxu0 0.0
        %5750 = vmatpush2.msra.mxu0 0.0
        %5751 = vmatprep.subr.mxu0 0.0
        %5752 = vmatpush2.msra.mxu0 0.0
        %5753 = vmatprep.subr.mxu0 0.0
        %5754 = vmatpush2.msra.mxu0 0.0
        %5755 = vmatprep.subr.mxu0 0.0
        %5756 = vmatpush2.msra.mxu0 0.0
        %5757 = vmatprep.subr.mxu0 0.0
        %5758 = vmatpush2.msra.mxu0 0.0
        %5759 = vmatprep.subr.mxu0 0.0
        %5760 = vmatpush2.msra.mxu0 0.0
        %5761 = vmatprep.subr.mxu0 0.0
        %5762 = vmatpush2.msra.mxu0 0.0
        %5763 = vmatprep.subr.mxu0 0.0
        %5764 = vmatpush2.msra.mxu0 0.0
        %5765 = vmatprep.subr.mxu0 0.0
        %5766 = vmatpush2.msra.mxu0 0.0
        %5767 = vmatprep.mubr.f32.mxu0 0.0
        %5768 = vmatmul.mubr.f32.gmra.mxu0 %v5701
        %v5769 = vpop.f32.mrf.mxu0
        %v5770 = vadd.f32 0.0, %v5769
        %v5771 = vpop.f32.mrf.mxu0
        %5772 = vdwg.mxu0
        %v5773 = vlaneseq
        %v5774 = vshrl.u32 %v5773, 7
        %v5775 = vsub.s32 0, %v5774
        %v5776 = vrot.slane %v5770, %v5775
        %v5777 = vmul.f32 %v5684, %v5776
        %v5778 = vmul.f32 %v5685, %v5776
        %v5779 = vmul.f32 %v5686, %v5776
        %v5780 = vmul.f32 %v5687, %v5776
        %v5781 = vld [vmem:[%s95] sm:$0xff]
        %v5782 = vld [vmem:[%s95 + $0x8] sm:$0xff]
        %v5783 = vld [vmem:[%s95 + $0x10] sm:$0xff]
        %v5784 = vld [vmem:[%s95 + $0x18] sm:$0xff]
        %v5785 = vld [vmem:[%s95 + $0x20] sm:$0xff]
        %v5786 = vld [vmem:[%s95 + $0x28] sm:$0xff]
        %v5787 = vld [vmem:[%s95 + $0x30] sm:$0xff]
        %v5788 = vld [vmem:[%s95 + $0x38] sm:$0xff]
        %v5790 = vsel %vm4330, %v5777, 0
        %v5793 = vsel %vm4330, %v5778, 0
        %v5796 = vsel %vm4330, %v5779, 0
        %v5799 = vsel %vm4330, %v5780, 0
        %5801 = vmatprep.subr.mxu0 0.0
        %5802 = vmatpush1.msra.mxu0 0.0
        %5803 = vmatprep.subr.mxu0 0.0
        %5804 = vmatpush1.msra.mxu0 0.0
        %5805 = vmatprep.subr.mxu0 0.0
        %5806 = vmatpush1.msra.mxu0 0.0
        %5807 = vmatprep.subr.mxu0 0.0
        %5808 = vmatpush1.msra.mxu0 0.0
        %5809 = vmatprep.subr.mxu0 0.0
        %5810 = vmatpush1.msra.mxu0 0.0
        %5811 = vmatprep.subr.mxu0 0.0
        %5812 = vmatpush1.msra.mxu0 0.0
        %5813 = vmatprep.subr.mxu0 0.0
        %5814 = vmatpush1.msra.mxu0 0.0
        %5815 = vmatprep.subr.mxu0 0.0
        %5816 = vmatpush1.msra.mxu0 0.0
        %5817 = vmatprep.subr.mxu0 0.0
        %5818 = vmatpush1.msra.mxu0 %v5788
        %5819 = vmatprep.subr.mxu0 0.0
        %5820 = vmatpush1.msra.mxu0 %v5787
        %5821 = vmatprep.subr.mxu0 0.0
        %5822 = vmatpush1.msra.mxu0 %v5786
        %5823 = vmatprep.subr.mxu0 0.0
        %5824 = vmatpush1.msra.mxu0 %v5785
        %5825 = vmatprep.subr.mxu0 0.0
        %5826 = vmatpush1.msra.mxu0 %v5784
        %5827 = vmatprep.subr.mxu0 0.0
        %5828 = vmatpush1.msra.mxu0 %v5783
        %5829 = vmatprep.subr.mxu0 0.0
        %5830 = vmatpush1.msra.mxu0 %v5782
        %5831 = vmatprep.subr.mxu0 0.0
        %5832 = vmatpush1.msra.mxu0 %v5781
        %5833 = vmatprep.subr.mxu0 0.0
        %5834 = vmatpush2.msra.mxu0 0.0
        %5835 = vmatprep.subr.mxu0 0.0
        %5836 = vmatpush2.msra.mxu0 0.0
        %5837 = vmatprep.subr.mxu0 0.0
        %5838 = vmatpush2.msra.mxu0 0.0
        %5839 = vmatprep.subr.mxu0 0.0
        %5840 = vmatpush2.msra.mxu0 0.0
        %5841 = vmatprep.subr.mxu0 0.0
        %5842 = vmatpush2.msra.mxu0 0.0
        %5843 = vmatprep.subr.mxu0 0.0
        %5844 = vmatpush2.msra.mxu0 0.0
        %5845 = vmatprep.subr.mxu0 0.0
        %5846 = vmatpush2.msra.mxu0 0.0
        %5847 = vmatprep.subr.mxu0 0.0
        %5848 = vmatpush2.msra.mxu0 0.0
        %5849 = vmatprep.subr.mxu0 0.0
        %5850 = vmatpush2.msra.mxu0 0.0
        %5851 = vmatprep.subr.mxu0 0.0
        %5852 = vmatpush2.msra.mxu0 0.0
        %5853 = vmatprep.subr.mxu0 0.0
        %5854 = vmatpush2.msra.mxu0 0.0
        %5855 = vmatprep.subr.mxu0 0.0
        %5856 = vmatpush2.msra.mxu0 0.0
        %5857 = vmatprep.subr.mxu0 0.0
        %5858 = vmatpush2.msra.mxu0 0.0
        %5859 = vmatprep.subr.mxu0 0.0
        %5860 = vmatpush2.msra.mxu0 0.0
        %5861 = vmatprep.subr.mxu0 0.0
        %5862 = vmatpush2.msra.mxu0 0.0
        %5863 = vmatprep.subr.mxu0 0.0
        %5864 = vmatpush2.msra.mxu0 0.0
        %5865 = vmatprep.mubr.f32.mxu0 0.0
        %5866 = vmatmul.mubr.f32.gmra.mxu0 %v5790
        %v5867 = vpop.f32.mrf.mxu0
        %v5868 = vadd.f32 0.0, %v5867
        %v5869 = vpop.f32.mrf.mxu0
        %5870 = vmatprep.mubr.f32.mxu0 0.0
        %5871 = vmatmul.mubr.f32.gmra.mxu0 %v5793
        %v5872 = vpop.f32.mrf.mxu0
        %v5873 = vadd.f32 0.0, %v5872
        %v5874 = vpop.f32.mrf.mxu0
        %5875 = vmatprep.mubr.f32.mxu0 0.0
        %5876 = vmatmul.mubr.f32.gmra.mxu0 %v5796
        %v5877 = vpop.f32.mrf.mxu0
        %v5878 = vadd.f32 0.0, %v5877
        %v5879 = vpop.f32.mrf.mxu0
        %5880 = vmatprep.mubr.f32.mxu0 0.0
        %5881 = vmatmul.mubr.f32.gmra.mxu0 %v5799
        %v5882 = vpop.f32.mrf.mxu0
        %v5883 = vadd.f32 0.0, %v5882
        %v5884 = vpop.f32.mrf.mxu0
        %5885 = vdwg.mxu0
        %s5886 = scalar_lea.vmem %s95, 64
        %v5887 = vld [vmem:[%s5886] sm:$0xff]
        %v5888 = vld [vmem:[%s5886 + $0x8] sm:$0xff]
        %v5889 = vld [vmem:[%s5886 + $0x10] sm:$0xff]
        %v5890 = vld [vmem:[%s5886 + $0x18] sm:$0xff]
        %v5891 = vld [vmem:[%s5886 + $0x20] sm:$0xff]
        %v5892 = vld [vmem:[%s5886 + $0x28] sm:$0xff]
        %v5893 = vld [vmem:[%s5886 + $0x30] sm:$0xff]
        %v5894 = vld [vmem:[%s5886 + $0x38] sm:$0xff]
        %5895 = vmatprep.subr.mxu0 0.0
        %5896 = vmatpush1.msra.mxu0 0.0
        %5897 = vmatprep.subr.mxu0 0.0
        %5898 = vmatpush1.msra.mxu0 0.0
        %5899 = vmatprep.subr.mxu0 0.0
        %5900 = vmatpush1.msra.mxu0 0.0
        %5901 = vmatprep.subr.mxu0 0.0
        %5902 = vmatpush1.msra.mxu0 0.0
        %5903 = vmatprep.subr.mxu0 0.0
        %5904 = vmatpush1.msra.mxu0 0.0
        %5905 = vmatprep.subr.mxu0 0.0
        %5906 = vmatpush1.msra.mxu0 0.0
        %5907 = vmatprep.subr.mxu0 0.0
        %5908 = vmatpush1.msra.mxu0 0.0
        %5909 = vmatprep.subr.mxu0 0.0
        %5910 = vmatpush1.msra.mxu0 0.0
        %5911 = vmatprep.subr.mxu0 0.0
        %5912 = vmatpush1.msra.mxu0 %v5894
        %5913 = vmatprep.subr.mxu0 0.0
        %5914 = vmatpush1.msra.mxu0 %v5893
        %5915 = vmatprep.subr.mxu0 0.0
        %5916 = vmatpush1.msra.mxu0 %v5892
        %5917 = vmatprep.subr.mxu0 0.0
        %5918 = vmatpush1.msra.mxu0 %v5891
        %5919 = vmatprep.subr.mxu0 0.0
        %5920 = vmatpush1.msra.mxu0 %v5890
        %5921 = vmatprep.subr.mxu0 0.0
        %5922 = vmatpush1.msra.mxu0 %v5889
        %5923 = vmatprep.subr.mxu0 0.0
        %5924 = vmatpush1.msra.mxu0 %v5888
        %5925 = vmatprep.subr.mxu0 0.0
        %5926 = vmatpush1.msra.mxu0 %v5887
        %5927 = vmatprep.subr.mxu0 0.0
        %5928 = vmatpush2.msra.mxu0 0.0
        %5929 = vmatprep.subr.mxu0 0.0
        %5930 = vmatpush2.msra.mxu0 0.0
        %5931 = vmatprep.subr.mxu0 0.0
        %5932 = vmatpush2.msra.mxu0 0.0
        %5933 = vmatprep.subr.mxu0 0.0
        %5934 = vmatpush2.msra.mxu0 0.0
        %5935 = vmatprep.subr.mxu0 0.0
        %5936 = vmatpush2.msra.mxu0 0.0
        %5937 = vmatprep.subr.mxu0 0.0
        %5938 = vmatpush2.msra.mxu0 0.0
        %5939 = vmatprep.subr.mxu0 0.0
        %5940 = vmatpush2.msra.mxu0 0.0
        %5941 = vmatprep.subr.mxu0 0.0
        %5942 = vmatpush2.msra.mxu0 0.0
        %5943 = vmatprep.subr.mxu0 0.0
        %5944 = vmatpush2.msra.mxu0 0.0
        %5945 = vmatprep.subr.mxu0 0.0
        %5946 = vmatpush2.msra.mxu0 0.0
        %5947 = vmatprep.subr.mxu0 0.0
        %5948 = vmatpush2.msra.mxu0 0.0
        %5949 = vmatprep.subr.mxu0 0.0
        %5950 = vmatpush2.msra.mxu0 0.0
        %5951 = vmatprep.subr.mxu0 0.0
        %5952 = vmatpush2.msra.mxu0 0.0
        %5953 = vmatprep.subr.mxu0 0.0
        %5954 = vmatpush2.msra.mxu0 0.0
        %5955 = vmatprep.subr.mxu0 0.0
        %5956 = vmatpush2.msra.mxu0 0.0
        %5957 = vmatprep.subr.mxu0 0.0
        %5958 = vmatpush2.msra.mxu0 0.0
        %5959 = vmatprep.mubr.f32.mxu0 0.0
        %5960 = vmatmul.mubr.f32.gmra.mxu0 %v5790
        %v5961 = vpop.f32.mrf.mxu0
        %v5962 = vadd.f32 0.0, %v5961
        %v5963 = vpop.f32.mrf.mxu0
        %5964 = vmatprep.mubr.f32.mxu0 0.0
        %5965 = vmatmul.mubr.f32.gmra.mxu0 %v5793
        %v5966 = vpop.f32.mrf.mxu0
        %v5967 = vadd.f32 0.0, %v5966
        %v5968 = vpop.f32.mrf.mxu0
        %5969 = vmatprep.mubr.f32.mxu0 0.0
        %5970 = vmatmul.mubr.f32.gmra.mxu0 %v5796
        %v5971 = vpop.f32.mrf.mxu0
        %v5972 = vadd.f32 0.0, %v5971
        %v5973 = vpop.f32.mrf.mxu0
        %5974 = vmatprep.mubr.f32.mxu0 0.0
        %5975 = vmatmul.mubr.f32.gmra.mxu0 %v5799
        %v5976 = vpop.f32.mrf.mxu0
        %v5977 = vadd.f32 0.0, %v5976
        %v5978 = vpop.f32.mrf.mxu0
        %5979 = vdwg.mxu0
        %s5980 = scalar_lea.vmem %s95, 128
        %v5981 = vld [vmem:[%s5980] sm:$0xff]
        %v5982 = vld [vmem:[%s5980 + $0x8] sm:$0xff]
        %v5983 = vld [vmem:[%s5980 + $0x10] sm:$0xff]
        %v5984 = vld [vmem:[%s5980 + $0x18] sm:$0xff]
        %v5985 = vld [vmem:[%s5980 + $0x20] sm:$0xff]
        %v5986 = vld [vmem:[%s5980 + $0x28] sm:$0xff]
        %v5987 = vld [vmem:[%s5980 + $0x30] sm:$0xff]
        %v5988 = vld [vmem:[%s5980 + $0x38] sm:$0xff]
        %5989 = vmatprep.subr.mxu0 0.0
        %5990 = vmatpush1.msra.mxu0 0.0
        %5991 = vmatprep.subr.mxu0 0.0
        %5992 = vmatpush1.msra.mxu0 0.0
        %5993 = vmatprep.subr.mxu0 0.0
        %5994 = vmatpush1.msra.mxu0 0.0
        %5995 = vmatprep.subr.mxu0 0.0
        %5996 = vmatpush1.msra.mxu0 0.0
        %5997 = vmatprep.subr.mxu0 0.0
        %5998 = vmatpush1.msra.mxu0 0.0
        %5999 = vmatprep.subr.mxu0 0.0
        %6000 = vmatpush1.msra.mxu0 0.0
        %6001 = vmatprep.subr.mxu0 0.0
        %6002 = vmatpush1.msra.mxu0 0.0
        %6003 = vmatprep.subr.mxu0 0.0
        %6004 = vmatpush1.msra.mxu0 0.0
        %6005 = vmatprep.subr.mxu0 0.0
        %6006 = vmatpush1.msra.mxu0 %v5988
        %6007 = vmatprep.subr.mxu0 0.0
        %6008 = vmatpush1.msra.mxu0 %v5987
        %6009 = vmatprep.subr.mxu0 0.0
        %6010 = vmatpush1.msra.mxu0 %v5986
        %6011 = vmatprep.subr.mxu0 0.0
        %6012 = vmatpush1.msra.mxu0 %v5985
        %6013 = vmatprep.subr.mxu0 0.0
        %6014 = vmatpush1.msra.mxu0 %v5984
        %6015 = vmatprep.subr.mxu0 0.0
        %6016 = vmatpush1.msra.mxu0 %v5983
        %6017 = vmatprep.subr.mxu0 0.0
        %6018 = vmatpush1.msra.mxu0 %v5982
        %6019 = vmatprep.subr.mxu0 0.0
        %6020 = vmatpush1.msra.mxu0 %v5981
        %6021 = vmatprep.subr.mxu0 0.0
        %6022 = vmatpush2.msra.mxu0 0.0
        %6023 = vmatprep.subr.mxu0 0.0
        %6024 = vmatpush2.msra.mxu0 0.0
        %6025 = vmatprep.subr.mxu0 0.0
        %6026 = vmatpush2.msra.mxu0 0.0
        %6027 = vmatprep.subr.mxu0 0.0
        %6028 = vmatpush2.msra.mxu0 0.0
        %6029 = vmatprep.subr.mxu0 0.0
        %6030 = vmatpush2.msra.mxu0 0.0
        %6031 = vmatprep.subr.mxu0 0.0
        %6032 = vmatpush2.msra.mxu0 0.0
        %6033 = vmatprep.subr.mxu0 0.0
        %6034 = vmatpush2.msra.mxu0 0.0
        %6035 = vmatprep.subr.mxu0 0.0
        %6036 = vmatpush2.msra.mxu0 0.0
        %6037 = vmatprep.subr.mxu0 0.0
        %6038 = vmatpush2.msra.mxu0 0.0
        %6039 = vmatprep.subr.mxu0 0.0
        %6040 = vmatpush2.msra.mxu0 0.0
        %6041 = vmatprep.subr.mxu0 0.0
        %6042 = vmatpush2.msra.mxu0 0.0
        %6043 = vmatprep.subr.mxu0 0.0
        %6044 = vmatpush2.msra.mxu0 0.0
        %6045 = vmatprep.subr.mxu0 0.0
        %6046 = vmatpush2.msra.mxu0 0.0
        %6047 = vmatprep.subr.mxu0 0.0
        %6048 = vmatpush2.msra.mxu0 0.0
        %6049 = vmatprep.subr.mxu0 0.0
        %6050 = vmatpush2.msra.mxu0 0.0
        %6051 = vmatprep.subr.mxu0 0.0
        %6052 = vmatpush2.msra.mxu0 0.0
        %6053 = vmatprep.mubr.f32.mxu0 0.0
        %6054 = vmatmul.mubr.f32.gmra.mxu0 %v5790
        %v6055 = vpop.f32.mrf.mxu0
        %v6056 = vadd.f32 0.0, %v6055
        %v6057 = vpop.f32.mrf.mxu0
        %6058 = vmatprep.mubr.f32.mxu0 0.0
        %6059 = vmatmul.mubr.f32.gmra.mxu0 %v5793
        %v6060 = vpop.f32.mrf.mxu0
        %v6061 = vadd.f32 0.0, %v6060
        %v6062 = vpop.f32.mrf.mxu0
        %6063 = vmatprep.mubr.f32.mxu0 0.0
        %6064 = vmatmul.mubr.f32.gmra.mxu0 %v5796
        %v6065 = vpop.f32.mrf.mxu0
        %v6066 = vadd.f32 0.0, %v6065
        %v6067 = vpop.f32.mrf.mxu0
        %6068 = vmatprep.mubr.f32.mxu0 0.0
        %6069 = vmatmul.mubr.f32.gmra.mxu0 %v5799
        %v6070 = vpop.f32.mrf.mxu0
        %v6071 = vadd.f32 0.0, %v6070
        %v6072 = vpop.f32.mrf.mxu0
        %6073 = vdwg.mxu0
        %s6074 = scalar_lea.vmem %s95, 192
        %v6075 = vld [vmem:[%s6074] sm:$0xff]
        %v6076 = vld [vmem:[%s6074 + $0x8] sm:$0xff]
        %v6077 = vld [vmem:[%s6074 + $0x10] sm:$0xff]
        %v6078 = vld [vmem:[%s6074 + $0x18] sm:$0xff]
        %v6079 = vld [vmem:[%s6074 + $0x20] sm:$0xff]
        %v6080 = vld [vmem:[%s6074 + $0x28] sm:$0xff]
        %v6081 = vld [vmem:[%s6074 + $0x30] sm:$0xff]
        %v6082 = vld [vmem:[%s6074 + $0x38] sm:$0xff]
        %6083 = vmatprep.subr.mxu0 0.0
        %6084 = vmatpush1.msra.mxu0 0.0
        %6085 = vmatprep.subr.mxu0 0.0
        %6086 = vmatpush1.msra.mxu0 0.0
        %6087 = vmatprep.subr.mxu0 0.0
        %6088 = vmatpush1.msra.mxu0 0.0
        %6089 = vmatprep.subr.mxu0 0.0
        %6090 = vmatpush1.msra.mxu0 0.0
        %6091 = vmatprep.subr.mxu0 0.0
        %6092 = vmatpush1.msra.mxu0 0.0
        %6093 = vmatprep.subr.mxu0 0.0
        %6094 = vmatpush1.msra.mxu0 0.0
        %6095 = vmatprep.subr.mxu0 0.0
        %6096 = vmatpush1.msra.mxu0 0.0
        %6097 = vmatprep.subr.mxu0 0.0
        %6098 = vmatpush1.msra.mxu0 0.0
        %6099 = vmatprep.subr.mxu0 0.0
        %6100 = vmatpush1.msra.mxu0 %v6082
        %6101 = vmatprep.subr.mxu0 0.0
        %6102 = vmatpush1.msra.mxu0 %v6081
        %6103 = vmatprep.subr.mxu0 0.0
        %6104 = vmatpush1.msra.mxu0 %v6080
        %6105 = vmatprep.subr.mxu0 0.0
        %6106 = vmatpush1.msra.mxu0 %v6079
        %6107 = vmatprep.subr.mxu0 0.0
        %6108 = vmatpush1.msra.mxu0 %v6078
        %6109 = vmatprep.subr.mxu0 0.0
        %6110 = vmatpush1.msra.mxu0 %v6077
        %6111 = vmatprep.subr.mxu0 0.0
        %6112 = vmatpush1.msra.mxu0 %v6076
        %6113 = vmatprep.subr.mxu0 0.0
        %6114 = vmatpush1.msra.mxu0 %v6075
        %6115 = vmatprep.subr.mxu0 0.0
        %6116 = vmatpush2.msra.mxu0 0.0
        %6117 = vmatprep.subr.mxu0 0.0
        %6118 = vmatpush2.msra.mxu0 0.0
        %6119 = vmatprep.subr.mxu0 0.0
        %6120 = vmatpush2.msra.mxu0 0.0
        %6121 = vmatprep.subr.mxu0 0.0
        %6122 = vmatpush2.msra.mxu0 0.0
        %6123 = vmatprep.subr.mxu0 0.0
        %6124 = vmatpush2.msra.mxu0 0.0
        %6125 = vmatprep.subr.mxu0 0.0
        %6126 = vmatpush2.msra.mxu0 0.0
        %6127 = vmatprep.subr.mxu0 0.0
        %6128 = vmatpush2.msra.mxu0 0.0
        %6129 = vmatprep.subr.mxu0 0.0
        %6130 = vmatpush2.msra.mxu0 0.0
        %6131 = vmatprep.subr.mxu0 0.0
        %6132 = vmatpush2.msra.mxu0 0.0
        %6133 = vmatprep.subr.mxu0 0.0
        %6134 = vmatpush2.msra.mxu0 0.0
        %6135 = vmatprep.subr.mxu0 0.0
        %6136 = vmatpush2.msra.mxu0 0.0
        %6137 = vmatprep.subr.mxu0 0.0
        %6138 = vmatpush2.msra.mxu0 0.0
        %6139 = vmatprep.subr.mxu0 0.0
        %6140 = vmatpush2.msra.mxu0 0.0
        %6141 = vmatprep.subr.mxu0 0.0
        %6142 = vmatpush2.msra.mxu0 0.0
        %6143 = vmatprep.subr.mxu0 0.0
        %6144 = vmatpush2.msra.mxu0 0.0
        %6145 = vmatprep.subr.mxu0 0.0
        %6146 = vmatpush2.msra.mxu0 0.0
        %6147 = vmatprep.mubr.f32.mxu0 0.0
        %6148 = vmatmul.mubr.f32.gmra.mxu0 %v5790
        %v6149 = vpop.f32.mrf.mxu0
        %v6150 = vadd.f32 0.0, %v6149
        %v6151 = vpop.f32.mrf.mxu0
        %6152 = vmatprep.mubr.f32.mxu0 0.0
        %6153 = vmatmul.mubr.f32.gmra.mxu0 %v5793
        %v6154 = vpop.f32.mrf.mxu0
        %v6155 = vadd.f32 0.0, %v6154
        %v6156 = vpop.f32.mrf.mxu0
        %6157 = vmatprep.mubr.f32.mxu0 0.0
        %6158 = vmatmul.mubr.f32.gmra.mxu0 %v5796
        %v6159 = vpop.f32.mrf.mxu0
        %v6160 = vadd.f32 0.0, %v6159
        %v6161 = vpop.f32.mrf.mxu0
        %6162 = vmatprep.mubr.f32.mxu0 0.0
        %6163 = vmatmul.mubr.f32.gmra.mxu0 %v5799
        %v6164 = vpop.f32.mrf.mxu0
        %v6165 = vadd.f32 0.0, %v6164
        %v6166 = vpop.f32.mrf.mxu0
        %6167 = vdwg.mxu0
        %s6168 = scalar_lea.vmem %s95, 256
        %v6169 = vld [vmem:[%s6168] sm:$0xff]
        %v6170 = vld [vmem:[%s6168 + $0x8] sm:$0xff]
        %v6171 = vld [vmem:[%s6168 + $0x10] sm:$0xff]
        %v6172 = vld [vmem:[%s6168 + $0x18] sm:$0xff]
        %v6173 = vld [vmem:[%s6168 + $0x20] sm:$0xff]
        %v6174 = vld [vmem:[%s6168 + $0x28] sm:$0xff]
        %v6175 = vld [vmem:[%s6168 + $0x30] sm:$0xff]
        %v6176 = vld [vmem:[%s6168 + $0x38] sm:$0xff]
        %6177 = vmatprep.subr.mxu0 0.0
        %6178 = vmatpush1.msra.mxu0 0.0
        %6179 = vmatprep.subr.mxu0 0.0
        %6180 = vmatpush1.msra.mxu0 0.0
        %6181 = vmatprep.subr.mxu0 0.0
        %6182 = vmatpush1.msra.mxu0 0.0
        %6183 = vmatprep.subr.mxu0 0.0
        %6184 = vmatpush1.msra.mxu0 0.0
        %6185 = vmatprep.subr.mxu0 0.0
        %6186 = vmatpush1.msra.mxu0 0.0
        %6187 = vmatprep.subr.mxu0 0.0
        %6188 = vmatpush1.msra.mxu0 0.0
        %6189 = vmatprep.subr.mxu0 0.0
        %6190 = vmatpush1.msra.mxu0 0.0
        %6191 = vmatprep.subr.mxu0 0.0
        %6192 = vmatpush1.msra.mxu0 0.0
        %6193 = vmatprep.subr.mxu0 0.0
        %6194 = vmatpush1.msra.mxu0 %v6176
        %6195 = vmatprep.subr.mxu0 0.0
        %6196 = vmatpush1.msra.mxu0 %v6175
        %6197 = vmatprep.subr.mxu0 0.0
        %6198 = vmatpush1.msra.mxu0 %v6174
        %6199 = vmatprep.subr.mxu0 0.0
        %6200 = vmatpush1.msra.mxu0 %v6173
        %6201 = vmatprep.subr.mxu0 0.0
        %6202 = vmatpush1.msra.mxu0 %v6172
        %6203 = vmatprep.subr.mxu0 0.0
        %6204 = vmatpush1.msra.mxu0 %v6171
        %6205 = vmatprep.subr.mxu0 0.0
        %6206 = vmatpush1.msra.mxu0 %v6170
        %6207 = vmatprep.subr.mxu0 0.0
        %6208 = vmatpush1.msra.mxu0 %v6169
        %6209 = vmatprep.subr.mxu0 0.0
        %6210 = vmatpush2.msra.mxu0 0.0
        %6211 = vmatprep.subr.mxu0 0.0
        %6212 = vmatpush2.msra.mxu0 0.0
        %6213 = vmatprep.subr.mxu0 0.0
        %6214 = vmatpush2.msra.mxu0 0.0
        %6215 = vmatprep.subr.mxu0 0.0
        %6216 = vmatpush2.msra.mxu0 0.0
        %6217 = vmatprep.subr.mxu0 0.0
        %6218 = vmatpush2.msra.mxu0 0.0
        %6219 = vmatprep.subr.mxu0 0.0
        %6220 = vmatpush2.msra.mxu0 0.0
        %6221 = vmatprep.subr.mxu0 0.0
        %6222 = vmatpush2.msra.mxu0 0.0
        %6223 = vmatprep.subr.mxu0 0.0
        %6224 = vmatpush2.msra.mxu0 0.0
        %6225 = vmatprep.subr.mxu0 0.0
        %6226 = vmatpush2.msra.mxu0 0.0
        %6227 = vmatprep.subr.mxu0 0.0
        %6228 = vmatpush2.msra.mxu0 0.0
        %6229 = vmatprep.subr.mxu0 0.0
        %6230 = vmatpush2.msra.mxu0 0.0
        %6231 = vmatprep.subr.mxu0 0.0
        %6232 = vmatpush2.msra.mxu0 0.0
        %6233 = vmatprep.subr.mxu0 0.0
        %6234 = vmatpush2.msra.mxu0 0.0
        %6235 = vmatprep.subr.mxu0 0.0
        %6236 = vmatpush2.msra.mxu0 0.0
        %6237 = vmatprep.subr.mxu0 0.0
        %6238 = vmatpush2.msra.mxu0 0.0
        %6239 = vmatprep.subr.mxu0 0.0
        %6240 = vmatpush2.msra.mxu0 0.0
        %6241 = vmatprep.mubr.f32.mxu0 0.0
        %6242 = vmatmul.mubr.f32.gmra.mxu0 %v5790
        %v6243 = vpop.f32.mrf.mxu0
        %v6244 = vadd.f32 0.0, %v6243
        %v6245 = vpop.f32.mrf.mxu0
        %6246 = vmatprep.mubr.f32.mxu0 0.0
        %6247 = vmatmul.mubr.f32.gmra.mxu0 %v5793
        %v6248 = vpop.f32.mrf.mxu0
        %v6249 = vadd.f32 0.0, %v6248
        %v6250 = vpop.f32.mrf.mxu0
        %6251 = vmatprep.mubr.f32.mxu0 0.0
        %6252 = vmatmul.mubr.f32.gmra.mxu0 %v5796
        %v6253 = vpop.f32.mrf.mxu0
        %v6254 = vadd.f32 0.0, %v6253
        %v6255 = vpop.f32.mrf.mxu0
        %6256 = vmatprep.mubr.f32.mxu0 0.0
        %6257 = vmatmul.mubr.f32.gmra.mxu0 %v5799
        %v6258 = vpop.f32.mrf.mxu0
        %v6259 = vadd.f32 0.0, %v6258
        %v6260 = vpop.f32.mrf.mxu0
        %6261 = vdwg.mxu0
        %s6262 = scalar_lea.vmem %s95, 320
        %v6263 = vld [vmem:[%s6262] sm:$0xff]
        %v6264 = vld [vmem:[%s6262 + $0x8] sm:$0xff]
        %v6265 = vld [vmem:[%s6262 + $0x10] sm:$0xff]
        %v6266 = vld [vmem:[%s6262 + $0x18] sm:$0xff]
        %v6267 = vld [vmem:[%s6262 + $0x20] sm:$0xff]
        %v6268 = vld [vmem:[%s6262 + $0x28] sm:$0xff]
        %v6269 = vld [vmem:[%s6262 + $0x30] sm:$0xff]
        %v6270 = vld [vmem:[%s6262 + $0x38] sm:$0xff]
        %6271 = vmatprep.subr.mxu0 0.0
        %6272 = vmatpush1.msra.mxu0 0.0
        %6273 = vmatprep.subr.mxu0 0.0
        %6274 = vmatpush1.msra.mxu0 0.0
        %6275 = vmatprep.subr.mxu0 0.0
        %6276 = vmatpush1.msra.mxu0 0.0
        %6277 = vmatprep.subr.mxu0 0.0
        %6278 = vmatpush1.msra.mxu0 0.0
        %6279 = vmatprep.subr.mxu0 0.0
        %6280 = vmatpush1.msra.mxu0 0.0
        %6281 = vmatprep.subr.mxu0 0.0
        %6282 = vmatpush1.msra.mxu0 0.0
        %6283 = vmatprep.subr.mxu0 0.0
        %6284 = vmatpush1.msra.mxu0 0.0
        %6285 = vmatprep.subr.mxu0 0.0
        %6286 = vmatpush1.msra.mxu0 0.0
        %6287 = vmatprep.subr.mxu0 0.0
        %6288 = vmatpush1.msra.mxu0 %v6270
        %6289 = vmatprep.subr.mxu0 0.0
        %6290 = vmatpush1.msra.mxu0 %v6269
        %6291 = vmatprep.subr.mxu0 0.0
        %6292 = vmatpush1.msra.mxu0 %v6268
        %6293 = vmatprep.subr.mxu0 0.0
        %6294 = vmatpush1.msra.mxu0 %v6267
        %6295 = vmatprep.subr.mxu0 0.0
        %6296 = vmatpush1.msra.mxu0 %v6266
        %6297 = vmatprep.subr.mxu0 0.0
        %6298 = vmatpush1.msra.mxu0 %v6265
        %6299 = vmatprep.subr.mxu0 0.0
        %6300 = vmatpush1.msra.mxu0 %v6264
        %6301 = vmatprep.subr.mxu0 0.0
        %6302 = vmatpush1.msra.mxu0 %v6263
        %6303 = vmatprep.subr.mxu0 0.0
        %6304 = vmatpush2.msra.mxu0 0.0
        %6305 = vmatprep.subr.mxu0 0.0
        %6306 = vmatpush2.msra.mxu0 0.0
        %6307 = vmatprep.subr.mxu0 0.0
        %6308 = vmatpush2.msra.mxu0 0.0
        %6309 = vmatprep.subr.mxu0 0.0
        %6310 = vmatpush2.msra.mxu0 0.0
        %6311 = vmatprep.subr.mxu0 0.0
        %6312 = vmatpush2.msra.mxu0 0.0
        %6313 = vmatprep.subr.mxu0 0.0
        %6314 = vmatpush2.msra.mxu0 0.0
        %6315 = vmatprep.subr.mxu0 0.0
        %6316 = vmatpush2.msra.mxu0 0.0
        %6317 = vmatprep.subr.mxu0 0.0
        %6318 = vmatpush2.msra.mxu0 0.0
        %6319 = vmatprep.subr.mxu0 0.0
        %6320 = vmatpush2.msra.mxu0 0.0
        %6321 = vmatprep.subr.mxu0 0.0
        %6322 = vmatpush2.msra.mxu0 0.0
        %6323 = vmatprep.subr.mxu0 0.0
        %6324 = vmatpush2.msra.mxu0 0.0
        %6325 = vmatprep.subr.mxu0 0.0
        %6326 = vmatpush2.msra.mxu0 0.0
        %6327 = vmatprep.subr.mxu0 0.0
        %6328 = vmatpush2.msra.mxu0 0.0
        %6329 = vmatprep.subr.mxu0 0.0
        %6330 = vmatpush2.msra.mxu0 0.0
        %6331 = vmatprep.subr.mxu0 0.0
        %6332 = vmatpush2.msra.mxu0 0.0
        %6333 = vmatprep.subr.mxu0 0.0
        %6334 = vmatpush2.msra.mxu0 0.0
        %6335 = vmatprep.mubr.f32.mxu0 0.0
        %6336 = vmatmul.mubr.f32.gmra.mxu0 %v5790
        %v6337 = vpop.f32.mrf.mxu0
        %v6338 = vadd.f32 0.0, %v6337
        %v6339 = vpop.f32.mrf.mxu0
        %6340 = vmatprep.mubr.f32.mxu0 0.0
        %6341 = vmatmul.mubr.f32.gmra.mxu0 %v5793
        %v6342 = vpop.f32.mrf.mxu0
        %v6343 = vadd.f32 0.0, %v6342
        %v6344 = vpop.f32.mrf.mxu0
        %6345 = vmatprep.mubr.f32.mxu0 0.0
        %6346 = vmatmul.mubr.f32.gmra.mxu0 %v5796
        %v6347 = vpop.f32.mrf.mxu0
        %v6348 = vadd.f32 0.0, %v6347
        %v6349 = vpop.f32.mrf.mxu0
        %6350 = vmatprep.mubr.f32.mxu0 0.0
        %6351 = vmatmul.mubr.f32.gmra.mxu0 %v5799
        %v6352 = vpop.f32.mrf.mxu0
        %v6353 = vadd.f32 0.0, %v6352
        %v6354 = vpop.f32.mrf.mxu0
        %6355 = vdwg.mxu0
        %s6356 = scalar_lea.vmem %s95, 384
        %v6357 = vld [vmem:[%s6356] sm:$0xff]
        %v6358 = vld [vmem:[%s6356 + $0x8] sm:$0xff]
        %v6359 = vld [vmem:[%s6356 + $0x10] sm:$0xff]
        %v6360 = vld [vmem:[%s6356 + $0x18] sm:$0xff]
        %v6361 = vld [vmem:[%s6356 + $0x20] sm:$0xff]
        %v6362 = vld [vmem:[%s6356 + $0x28] sm:$0xff]
        %v6363 = vld [vmem:[%s6356 + $0x30] sm:$0xff]
        %v6364 = vld [vmem:[%s6356 + $0x38] sm:$0xff]
        %6365 = vmatprep.subr.mxu0 0.0
        %6366 = vmatpush1.msra.mxu0 0.0
        %6367 = vmatprep.subr.mxu0 0.0
        %6368 = vmatpush1.msra.mxu0 0.0
        %6369 = vmatprep.subr.mxu0 0.0
        %6370 = vmatpush1.msra.mxu0 0.0
        %6371 = vmatprep.subr.mxu0 0.0
        %6372 = vmatpush1.msra.mxu0 0.0
        %6373 = vmatprep.subr.mxu0 0.0
        %6374 = vmatpush1.msra.mxu0 0.0
        %6375 = vmatprep.subr.mxu0 0.0
        %6376 = vmatpush1.msra.mxu0 0.0
        %6377 = vmatprep.subr.mxu0 0.0
        %6378 = vmatpush1.msra.mxu0 0.0
        %6379 = vmatprep.subr.mxu0 0.0
        %6380 = vmatpush1.msra.mxu0 0.0
        %6381 = vmatprep.subr.mxu0 0.0
        %6382 = vmatpush1.msra.mxu0 %v6364
        %6383 = vmatprep.subr.mxu0 0.0
        %6384 = vmatpush1.msra.mxu0 %v6363
        %6385 = vmatprep.subr.mxu0 0.0
        %6386 = vmatpush1.msra.mxu0 %v6362
        %6387 = vmatprep.subr.mxu0 0.0
        %6388 = vmatpush1.msra.mxu0 %v6361
        %6389 = vmatprep.subr.mxu0 0.0
        %6390 = vmatpush1.msra.mxu0 %v6360
        %6391 = vmatprep.subr.mxu0 0.0
        %6392 = vmatpush1.msra.mxu0 %v6359
        %6393 = vmatprep.subr.mxu0 0.0
        %6394 = vmatpush1.msra.mxu0 %v6358
        %6395 = vmatprep.subr.mxu0 0.0
        %6396 = vmatpush1.msra.mxu0 %v6357
        %6397 = vmatprep.subr.mxu0 0.0
        %6398 = vmatpush2.msra.mxu0 0.0
        %6399 = vmatprep.subr.mxu0 0.0
        %6400 = vmatpush2.msra.mxu0 0.0
        %6401 = vmatprep.subr.mxu0 0.0
        %6402 = vmatpush2.msra.mxu0 0.0
        %6403 = vmatprep.subr.mxu0 0.0
        %6404 = vmatpush2.msra.mxu0 0.0
        %6405 = vmatprep.subr.mxu0 0.0
        %6406 = vmatpush2.msra.mxu0 0.0
        %6407 = vmatprep.subr.mxu0 0.0
        %6408 = vmatpush2.msra.mxu0 0.0
        %6409 = vmatprep.subr.mxu0 0.0
        %6410 = vmatpush2.msra.mxu0 0.0
        %6411 = vmatprep.subr.mxu0 0.0
        %6412 = vmatpush2.msra.mxu0 0.0
        %6413 = vmatprep.subr.mxu0 0.0
        %6414 = vmatpush2.msra.mxu0 0.0
        %6415 = vmatprep.subr.mxu0 0.0
        %6416 = vmatpush2.msra.mxu0 0.0
        %6417 = vmatprep.subr.mxu0 0.0
        %6418 = vmatpush2.msra.mxu0 0.0
        %6419 = vmatprep.subr.mxu0 0.0
        %6420 = vmatpush2.msra.mxu0 0.0
        %6421 = vmatprep.subr.mxu0 0.0
        %6422 = vmatpush2.msra.mxu0 0.0
        %6423 = vmatprep.subr.mxu0 0.0
        %6424 = vmatpush2.msra.mxu0 0.0
        %6425 = vmatprep.subr.mxu0 0.0
        %6426 = vmatpush2.msra.mxu0 0.0
        %6427 = vmatprep.subr.mxu0 0.0
        %6428 = vmatpush2.msra.mxu0 0.0
        %6429 = vmatprep.mubr.f32.mxu0 0.0
        %6430 = vmatmul.mubr.f32.gmra.mxu0 %v5790
        %v6431 = vpop.f32.mrf.mxu0
        %v6432 = vadd.f32 0.0, %v6431
        %v6433 = vpop.f32.mrf.mxu0
        %6434 = vmatprep.mubr.f32.mxu0 0.0
        %6435 = vmatmul.mubr.f32.gmra.mxu0 %v5793
        %v6436 = vpop.f32.mrf.mxu0
        %v6437 = vadd.f32 0.0, %v6436
        %v6438 = vpop.f32.mrf.mxu0
        %6439 = vmatprep.mubr.f32.mxu0 0.0
        %6440 = vmatmul.mubr.f32.gmra.mxu0 %v5796
        %v6441 = vpop.f32.mrf.mxu0
        %v6442 = vadd.f32 0.0, %v6441
        %v6443 = vpop.f32.mrf.mxu0
        %6444 = vmatprep.mubr.f32.mxu0 0.0
        %6445 = vmatmul.mubr.f32.gmra.mxu0 %v5799
        %v6446 = vpop.f32.mrf.mxu0
        %v6447 = vadd.f32 0.0, %v6446
        %v6448 = vpop.f32.mrf.mxu0
        %6449 = vdwg.mxu0
        %s6450 = scalar_lea.vmem %s95, 448
        %v6451 = vld [vmem:[%s6450] sm:$0xff]
        %v6452 = vld [vmem:[%s6450 + $0x8] sm:$0xff]
        %v6453 = vld [vmem:[%s6450 + $0x10] sm:$0xff]
        %v6454 = vld [vmem:[%s6450 + $0x18] sm:$0xff]
        %v6455 = vld [vmem:[%s6450 + $0x20] sm:$0xff]
        %v6456 = vld [vmem:[%s6450 + $0x28] sm:$0xff]
        %v6457 = vld [vmem:[%s6450 + $0x30] sm:$0xff]
        %v6458 = vld [vmem:[%s6450 + $0x38] sm:$0xff]
        %6459 = vmatprep.subr.mxu0 0.0
        %6460 = vmatpush1.msra.mxu0 0.0
        %6461 = vmatprep.subr.mxu0 0.0
        %6462 = vmatpush1.msra.mxu0 0.0
        %6463 = vmatprep.subr.mxu0 0.0
        %6464 = vmatpush1.msra.mxu0 0.0
        %6465 = vmatprep.subr.mxu0 0.0
        %6466 = vmatpush1.msra.mxu0 0.0
        %6467 = vmatprep.subr.mxu0 0.0
        %6468 = vmatpush1.msra.mxu0 0.0
        %6469 = vmatprep.subr.mxu0 0.0
        %6470 = vmatpush1.msra.mxu0 0.0
        %6471 = vmatprep.subr.mxu0 0.0
        %6472 = vmatpush1.msra.mxu0 0.0
        %6473 = vmatprep.subr.mxu0 0.0
        %6474 = vmatpush1.msra.mxu0 0.0
        %6475 = vmatprep.subr.mxu0 0.0
        %6476 = vmatpush1.msra.mxu0 %v6458
        %6477 = vmatprep.subr.mxu0 0.0
        %6478 = vmatpush1.msra.mxu0 %v6457
        %6479 = vmatprep.subr.mxu0 0.0
        %6480 = vmatpush1.msra.mxu0 %v6456
        %6481 = vmatprep.subr.mxu0 0.0
        %6482 = vmatpush1.msra.mxu0 %v6455
        %6483 = vmatprep.subr.mxu0 0.0
        %6484 = vmatpush1.msra.mxu0 %v6454
        %6485 = vmatprep.subr.mxu0 0.0
        %6486 = vmatpush1.msra.mxu0 %v6453
        %6487 = vmatprep.subr.mxu0 0.0
        %6488 = vmatpush1.msra.mxu0 %v6452
        %6489 = vmatprep.subr.mxu0 0.0
        %6490 = vmatpush1.msra.mxu0 %v6451
        %6491 = vmatprep.subr.mxu0 0.0
        %6492 = vmatpush2.msra.mxu0 0.0
        %6493 = vmatprep.subr.mxu0 0.0
        %6494 = vmatpush2.msra.mxu0 0.0
        %6495 = vmatprep.subr.mxu0 0.0
        %6496 = vmatpush2.msra.mxu0 0.0
        %6497 = vmatprep.subr.mxu0 0.0
        %6498 = vmatpush2.msra.mxu0 0.0
        %6499 = vmatprep.subr.mxu0 0.0
        %6500 = vmatpush2.msra.mxu0 0.0
        %6501 = vmatprep.subr.mxu0 0.0
        %6502 = vmatpush2.msra.mxu0 0.0
        %6503 = vmatprep.subr.mxu0 0.0
        %6504 = vmatpush2.msra.mxu0 0.0
        %6505 = vmatprep.subr.mxu0 0.0
        %6506 = vmatpush2.msra.mxu0 0.0
        %6507 = vmatprep.subr.mxu0 0.0
        %6508 = vmatpush2.msra.mxu0 0.0
        %6509 = vmatprep.subr.mxu0 0.0
        %6510 = vmatpush2.msra.mxu0 0.0
        %6511 = vmatprep.subr.mxu0 0.0
        %6512 = vmatpush2.msra.mxu0 0.0
        %6513 = vmatprep.subr.mxu0 0.0
        %6514 = vmatpush2.msra.mxu0 0.0
        %6515 = vmatprep.subr.mxu0 0.0
        %6516 = vmatpush2.msra.mxu0 0.0
        %6517 = vmatprep.subr.mxu0 0.0
        %6518 = vmatpush2.msra.mxu0 0.0
        %6519 = vmatprep.subr.mxu0 0.0
        %6520 = vmatpush2.msra.mxu0 0.0
        %6521 = vmatprep.subr.mxu0 0.0
        %6522 = vmatpush2.msra.mxu0 0.0
        %6523 = vmatprep.mubr.f32.mxu0 0.0
        %6524 = vmatmul.mubr.f32.gmra.mxu0 %v5790
        %v6525 = vpop.f32.mrf.mxu0
        %v6526 = vadd.f32 0.0, %v6525
        %v6527 = vpop.f32.mrf.mxu0
        %6528 = vmatprep.mubr.f32.mxu0 0.0
        %6529 = vmatmul.mubr.f32.gmra.mxu0 %v5793
        %v6530 = vpop.f32.mrf.mxu0
        %v6531 = vadd.f32 0.0, %v6530
        %v6532 = vpop.f32.mrf.mxu0
        %6533 = vmatprep.mubr.f32.mxu0 0.0
        %6534 = vmatmul.mubr.f32.gmra.mxu0 %v5796
        %v6535 = vpop.f32.mrf.mxu0
        %v6536 = vadd.f32 0.0, %v6535
        %v6537 = vpop.f32.mrf.mxu0
        %6538 = vmatprep.mubr.f32.mxu0 0.0
        %6539 = vmatmul.mubr.f32.gmra.mxu0 %v5799
        %v6540 = vpop.f32.mrf.mxu0
        %v6541 = vadd.f32 0.0, %v6540
        %v6542 = vpop.f32.mrf.mxu0
        %6543 = vdwg.mxu0
        %s6544 = scalar_lea.vmem %s95, 512
        %v6545 = vld [vmem:[%s6544] sm:$0xff]
        %v6546 = vld [vmem:[%s6544 + $0x8] sm:$0xff]
        %v6547 = vld [vmem:[%s6544 + $0x10] sm:$0xff]
        %v6548 = vld [vmem:[%s6544 + $0x18] sm:$0xff]
        %v6549 = vld [vmem:[%s6544 + $0x20] sm:$0xff]
        %v6550 = vld [vmem:[%s6544 + $0x28] sm:$0xff]
        %v6551 = vld [vmem:[%s6544 + $0x30] sm:$0xff]
        %v6552 = vld [vmem:[%s6544 + $0x38] sm:$0xff]
        %6553 = vmatprep.subr.mxu0 0.0
        %6554 = vmatpush1.msra.mxu0 0.0
        %6555 = vmatprep.subr.mxu0 0.0
        %6556 = vmatpush1.msra.mxu0 0.0
        %6557 = vmatprep.subr.mxu0 0.0
        %6558 = vmatpush1.msra.mxu0 0.0
        %6559 = vmatprep.subr.mxu0 0.0
        %6560 = vmatpush1.msra.mxu0 0.0
        %6561 = vmatprep.subr.mxu0 0.0
        %6562 = vmatpush1.msra.mxu0 0.0
        %6563 = vmatprep.subr.mxu0 0.0
        %6564 = vmatpush1.msra.mxu0 0.0
        %6565 = vmatprep.subr.mxu0 0.0
        %6566 = vmatpush1.msra.mxu0 0.0
        %6567 = vmatprep.subr.mxu0 0.0
        %6568 = vmatpush1.msra.mxu0 0.0
        %6569 = vmatprep.subr.mxu0 0.0
        %6570 = vmatpush1.msra.mxu0 %v6552
        %6571 = vmatprep.subr.mxu0 0.0
        %6572 = vmatpush1.msra.mxu0 %v6551
        %6573 = vmatprep.subr.mxu0 0.0
        %6574 = vmatpush1.msra.mxu0 %v6550
        %6575 = vmatprep.subr.mxu0 0.0
        %6576 = vmatpush1.msra.mxu0 %v6549
        %6577 = vmatprep.subr.mxu0 0.0
        %6578 = vmatpush1.msra.mxu0 %v6548
        %6579 = vmatprep.subr.mxu0 0.0
        %6580 = vmatpush1.msra.mxu0 %v6547
        %6581 = vmatprep.subr.mxu0 0.0
        %6582 = vmatpush1.msra.mxu0 %v6546
        %6583 = vmatprep.subr.mxu0 0.0
        %6584 = vmatpush1.msra.mxu0 %v6545
        %6585 = vmatprep.subr.mxu0 0.0
        %6586 = vmatpush2.msra.mxu0 0.0
        %6587 = vmatprep.subr.mxu0 0.0
        %6588 = vmatpush2.msra.mxu0 0.0
        %6589 = vmatprep.subr.mxu0 0.0
        %6590 = vmatpush2.msra.mxu0 0.0
        %6591 = vmatprep.subr.mxu0 0.0
        %6592 = vmatpush2.msra.mxu0 0.0
        %6593 = vmatprep.subr.mxu0 0.0
        %6594 = vmatpush2.msra.mxu0 0.0
        %6595 = vmatprep.subr.mxu0 0.0
        %6596 = vmatpush2.msra.mxu0 0.0
        %6597 = vmatprep.subr.mxu0 0.0
        %6598 = vmatpush2.msra.mxu0 0.0
        %6599 = vmatprep.subr.mxu0 0.0
        %6600 = vmatpush2.msra.mxu0 0.0
        %6601 = vmatprep.subr.mxu0 0.0
        %6602 = vmatpush2.msra.mxu0 0.0
        %6603 = vmatprep.subr.mxu0 0.0
        %6604 = vmatpush2.msra.mxu0 0.0
        %6605 = vmatprep.subr.mxu0 0.0
        %6606 = vmatpush2.msra.mxu0 0.0
        %6607 = vmatprep.subr.mxu0 0.0
        %6608 = vmatpush2.msra.mxu0 0.0
        %6609 = vmatprep.subr.mxu0 0.0
        %6610 = vmatpush2.msra.mxu0 0.0
        %6611 = vmatprep.subr.mxu0 0.0
        %6612 = vmatpush2.msra.mxu0 0.0
        %6613 = vmatprep.subr.mxu0 0.0
        %6614 = vmatpush2.msra.mxu0 0.0
        %6615 = vmatprep.subr.mxu0 0.0
        %6616 = vmatpush2.msra.mxu0 0.0
        %6617 = vmatprep.mubr.f32.mxu0 0.0
        %6618 = vmatmul.mubr.f32.gmra.mxu0 %v5790
        %v6619 = vpop.f32.mrf.mxu0
        %v6620 = vadd.f32 0.0, %v6619
        %v6621 = vpop.f32.mrf.mxu0
        %6622 = vmatprep.mubr.f32.mxu0 0.0
        %6623 = vmatmul.mubr.f32.gmra.mxu0 %v5793
        %v6624 = vpop.f32.mrf.mxu0
        %v6625 = vadd.f32 0.0, %v6624
        %v6626 = vpop.f32.mrf.mxu0
        %6627 = vmatprep.mubr.f32.mxu0 0.0
        %6628 = vmatmul.mubr.f32.gmra.mxu0 %v5796
        %v6629 = vpop.f32.mrf.mxu0
        %v6630 = vadd.f32 0.0, %v6629
        %v6631 = vpop.f32.mrf.mxu0
        %6632 = vmatprep.mubr.f32.mxu0 0.0
        %6633 = vmatmul.mubr.f32.gmra.mxu0 %v5799
        %v6634 = vpop.f32.mrf.mxu0
        %v6635 = vadd.f32 0.0, %v6634
        %v6636 = vpop.f32.mrf.mxu0
        %6637 = vdwg.mxu0
        %v6638 = vld [vmem:[%s97] sm:$0xff]
        %v6639 = vld [vmem:[%s97 + $0x8] sm:$0xff]
        %v6640 = vld [vmem:[%s97 + $0x10] sm:$0xff]
        %v6641 = vld [vmem:[%s97 + $0x18] sm:$0xff]
        %v6642 = vld [vmem:[%s97 + $0x20] sm:$0xff]
        %v6643 = vld [vmem:[%s97 + $0x28] sm:$0xff]
        %v6644 = vld [vmem:[%s97 + $0x30] sm:$0xff]
        %v6645 = vld [vmem:[%s97 + $0x38] sm:$0xff]
        %v6646 = vld [vmem:[%s97 + $0x40] sm:$0xff]
        %v6647 = vld [vmem:[%s97 + $0x48] sm:$0xff]
        %v6648 = vld [vmem:[%s97 + $0x50] sm:$0xff]
        %v6649 = vld [vmem:[%s97 + $0x58] sm:$0xff]
        %v6650 = vld [vmem:[%s99] sm:$0xff]
        %v6651 = vld [vmem:[%s99 + $0x8] sm:$0xff]
        %v6652 = vld [vmem:[%s99 + $0x10] sm:$0xff]
        %v6653 = vld [vmem:[%s99 + $0x18] sm:$0xff]
        %6655 = vset.pattern.permute.xlu0 0
        %6656 = vperm.xlu0 %6655, %v6650
        %v6657 = vpop.permute.xlu0 %6656
        %6660 = vset.pattern.permute.xlu0 0
        %6661 = vperm.xlu0 %6660, %v6651
        %v6662 = vpop.permute.xlu0 %6661
        %6665 = vset.pattern.permute.xlu0 0
        %6666 = vperm.xlu0 %6665, %v6652
        %v6667 = vpop.permute.xlu0 %6666
        %6670 = vset.pattern.permute.xlu0 0
        %6671 = vperm.xlu0 %6670, %v6653
        %v6672 = vpop.permute.xlu0 %6671
        %v6675 = vsel %vm2073, %v6640, 0
        %v6678 = vsel %vm2073, %v6643, 0
        %v6681 = vsel %vm2073, %v6646, 0
        %v6684 = vsel %vm2073, %v6649, 0
        %6686 = vmatprep.subr.mxu0 0.0
        %6687 = vmatpush1.msra.mxu0 %v6165
        %6688 = vmatprep.subr.mxu0 0.0
        %6689 = vmatpush1.msra.mxu0 %v6160
        %6690 = vmatprep.subr.mxu0 0.0
        %6691 = vmatpush1.msra.mxu0 %v6155
        %6692 = vmatprep.subr.mxu0 0.0
        %6693 = vmatpush1.msra.mxu0 %v6150
        %6694 = vmatprep.subr.mxu0 0.0
        %6695 = vmatpush1.msra.mxu0 %v6071
        %6696 = vmatprep.subr.mxu0 0.0
        %6697 = vmatpush1.msra.mxu0 %v6066
        %6698 = vmatprep.subr.mxu0 0.0
        %6699 = vmatpush1.msra.mxu0 %v6061
        %6700 = vmatprep.subr.mxu0 0.0
        %6701 = vmatpush1.msra.mxu0 %v6056
        %6702 = vmatprep.subr.mxu0 0.0
        %6703 = vmatpush1.msra.mxu0 %v5977
        %6704 = vmatprep.subr.mxu0 0.0
        %6705 = vmatpush1.msra.mxu0 %v5972
        %6706 = vmatprep.subr.mxu0 0.0
        %6707 = vmatpush1.msra.mxu0 %v5967
        %6708 = vmatprep.subr.mxu0 0.0
        %6709 = vmatpush1.msra.mxu0 %v5962
        %6710 = vmatprep.subr.mxu0 0.0
        %6711 = vmatpush1.msra.mxu0 %v5883
        %6712 = vmatprep.subr.mxu0 0.0
        %6713 = vmatpush1.msra.mxu0 %v5878
        %6714 = vmatprep.subr.mxu0 0.0
        %6715 = vmatpush1.msra.mxu0 %v5873
        %6716 = vmatprep.subr.mxu0 0.0
        %6717 = vmatpush1.msra.mxu0 %v5868
        %6718 = vmatprep.subr.mxu0 0.0
        %6719 = vmatpush2.msra.mxu0 %v6541
        %6720 = vmatprep.subr.mxu0 0.0
        %6721 = vmatpush2.msra.mxu0 %v6536
        %6722 = vmatprep.subr.mxu0 0.0
        %6723 = vmatpush2.msra.mxu0 %v6531
        %6724 = vmatprep.subr.mxu0 0.0
        %6725 = vmatpush2.msra.mxu0 %v6526
        %6726 = vmatprep.subr.mxu0 0.0
        %6727 = vmatpush2.msra.mxu0 %v6447
        %6728 = vmatprep.subr.mxu0 0.0
        %6729 = vmatpush2.msra.mxu0 %v6442
        %6730 = vmatprep.subr.mxu0 0.0
        %6731 = vmatpush2.msra.mxu0 %v6437
        %6732 = vmatprep.subr.mxu0 0.0
        %6733 = vmatpush2.msra.mxu0 %v6432
        %6734 = vmatprep.subr.mxu0 0.0
        %6735 = vmatpush2.msra.mxu0 %v6353
        %6736 = vmatprep.subr.mxu0 0.0
        %6737 = vmatpush2.msra.mxu0 %v6348
        %6738 = vmatprep.subr.mxu0 0.0
        %6739 = vmatpush2.msra.mxu0 %v6343
        %6740 = vmatprep.subr.mxu0 0.0
        %6741 = vmatpush2.msra.mxu0 %v6338
        %6742 = vmatprep.subr.mxu0 0.0
        %6743 = vmatpush2.msra.mxu0 %v6259
        %6744 = vmatprep.subr.mxu0 0.0
        %6745 = vmatpush2.msra.mxu0 %v6254
        %6746 = vmatprep.subr.mxu0 0.0
        %6747 = vmatpush2.msra.mxu0 %v6249
        %6748 = vmatprep.subr.mxu0 0.0
        %6749 = vmatpush2.msra.mxu0 %v6244
        %6750 = vmatprep.mubr.f32.mxu0 %v6639
        %6751 = vmatmul.mubr.f32.gmra.mxu0 %v6638
        %v6752 = vpop.f32.mrf.mxu0
        %v6753 = vadd.f32 %v6657, %v6752
        %v6754 = vpop.f32.mrf.mxu0
        %6755 = vmatprep.mubr.f32.mxu0 %v6642
        %6756 = vmatmul.mubr.f32.gmra.mxu0 %v6641
        %v6757 = vpop.f32.mrf.mxu0
        %v6758 = vadd.f32 %v6662, %v6757
        %v6759 = vpop.f32.mrf.mxu0
        %6760 = vmatprep.mubr.f32.mxu0 %v6645
        %6761 = vmatmul.mubr.f32.gmra.mxu0 %v6644
        %v6762 = vpop.f32.mrf.mxu0
        %v6763 = vadd.f32 %v6667, %v6762
        %v6764 = vpop.f32.mrf.mxu0
        %6765 = vmatprep.mubr.f32.mxu0 %v6648
        %6766 = vmatmul.mubr.f32.gmra.mxu0 %v6647
        %v6767 = vpop.f32.mrf.mxu0
        %v6768 = vadd.f32 %v6672, %v6767
        %v6769 = vpop.f32.mrf.mxu0
        %6770 = vdwg.mxu0
        %6771 = vmatprep.subr.mxu0 0.0
        %6772 = vmatpush1.msra.mxu0 0.0
        %6773 = vmatprep.subr.mxu0 0.0
        %6774 = vmatpush1.msra.mxu0 0.0
        %6775 = vmatprep.subr.mxu0 0.0
        %6776 = vmatpush1.msra.mxu0 0.0
        %6777 = vmatprep.subr.mxu0 0.0
        %6778 = vmatpush1.msra.mxu0 0.0
        %6779 = vmatprep.subr.mxu0 0.0
        %6780 = vmatpush1.msra.mxu0 0.0
        %6781 = vmatprep.subr.mxu0 0.0
        %6782 = vmatpush1.msra.mxu0 0.0
        %6783 = vmatprep.subr.mxu0 0.0
        %6784 = vmatpush1.msra.mxu0 0.0
        %6785 = vmatprep.subr.mxu0 0.0
        %6786 = vmatpush1.msra.mxu0 0.0
        %6787 = vmatprep.subr.mxu0 0.0
        %6788 = vmatpush1.msra.mxu0 0.0
        %6789 = vmatprep.subr.mxu0 0.0
        %6790 = vmatpush1.msra.mxu0 0.0
        %6791 = vmatprep.subr.mxu0 0.0
        %6792 = vmatpush1.msra.mxu0 0.0
        %6793 = vmatprep.subr.mxu0 0.0
        %6794 = vmatpush1.msra.mxu0 0.0
        %6795 = vmatprep.subr.mxu0 0.0
        %6796 = vmatpush1.msra.mxu0 %v6635
        %6797 = vmatprep.subr.mxu0 0.0
        %6798 = vmatpush1.msra.mxu0 %v6630
        %6799 = vmatprep.subr.mxu0 0.0
        %6800 = vmatpush1.msra.mxu0 %v6625
        %6801 = vmatprep.subr.mxu0 0.0
        %6802 = vmatpush1.msra.mxu0 %v6620
        %6803 = vmatprep.subr.mxu0 0.0
        %6804 = vmatpush2.msra.mxu0 0.0
        %6805 = vmatprep.subr.mxu0 0.0
        %6806 = vmatpush2.msra.mxu0 0.0
        %6807 = vmatprep.subr.mxu0 0.0
        %6808 = vmatpush2.msra.mxu0 0.0
        %6809 = vmatprep.subr.mxu0 0.0
        %6810 = vmatpush2.msra.mxu0 0.0
        %6811 = vmatprep.subr.mxu0 0.0
        %6812 = vmatpush2.msra.mxu0 0.0
        %6813 = vmatprep.subr.mxu0 0.0
        %6814 = vmatpush2.msra.mxu0 0.0
        %6815 = vmatprep.subr.mxu0 0.0
        %6816 = vmatpush2.msra.mxu0 0.0
        %6817 = vmatprep.subr.mxu0 0.0
        %6818 = vmatpush2.msra.mxu0 0.0
        %6819 = vmatprep.subr.mxu0 0.0
        %6820 = vmatpush2.msra.mxu0 0.0
        %6821 = vmatprep.subr.mxu0 0.0
        %6822 = vmatpush2.msra.mxu0 0.0
        %6823 = vmatprep.subr.mxu0 0.0
        %6824 = vmatpush2.msra.mxu0 0.0
        %6825 = vmatprep.subr.mxu0 0.0
        %6826 = vmatpush2.msra.mxu0 0.0
        %6827 = vmatprep.subr.mxu0 0.0
        %6828 = vmatpush2.msra.mxu0 0.0
        %6829 = vmatprep.subr.mxu0 0.0
        %6830 = vmatpush2.msra.mxu0 0.0
        %6831 = vmatprep.subr.mxu0 0.0
        %6832 = vmatpush2.msra.mxu0 0.0
        %6833 = vmatprep.subr.mxu0 0.0
        %6834 = vmatpush2.msra.mxu0 0.0
        %6835 = vmatprep.mubr.f32.mxu0 0.0
        %6836 = vmatmul.mubr.f32.gmra.mxu0 %v6675
        %v6837 = vpop.f32.mrf.mxu0
        %v6838 = vadd.f32 %v6753, %v6837
        %v6839 = vpop.f32.mrf.mxu0
        %6840 = vmatprep.mubr.f32.mxu0 0.0
        %6841 = vmatmul.mubr.f32.gmra.mxu0 %v6678
        %v6842 = vpop.f32.mrf.mxu0
        %v6843 = vadd.f32 %v6758, %v6842
        %v6844 = vpop.f32.mrf.mxu0
        %6845 = vmatprep.mubr.f32.mxu0 0.0
        %6846 = vmatmul.mubr.f32.gmra.mxu0 %v6681
        %v6847 = vpop.f32.mrf.mxu0
        %v6848 = vadd.f32 %v6763, %v6847
        %v6849 = vpop.f32.mrf.mxu0
        %6850 = vmatprep.mubr.f32.mxu0 0.0
        %6851 = vmatmul.mubr.f32.gmra.mxu0 %v6684
        %v6852 = vpop.f32.mrf.mxu0
        %v6853 = vadd.f32 %v6768, %v6852
        %v6854 = vpop.f32.mrf.mxu0
        %6855 = vdwg.mxu0
        %v6856 = vmax.f32 %v6838, 0.0
        %v6857 = vmax.f32 %v6843, 0.0
        %v6858 = vmax.f32 %v6848, 0.0
        %v6859 = vmax.f32 %v6853, 0.0
        %v6860 = vld [vmem:[%s101] sm:$0x3]
        %v6861 = vld [vmem:[%s103] sm:$0x3]
        %6863 = vset.pattern.permute.xlu0 0
        %6864 = vperm.xlu0 %6863, %v6861
        %v6865 = vpop.permute.xlu0 %6864
        %v6868 = vsel %vm2073, %v6860, 0
        %6870 = vmatprep.subr.mxu0 0.0
        %6871 = vmatpush1.msra.mxu0 0.0
        %6872 = vmatprep.subr.mxu0 0.0
        %6873 = vmatpush1.msra.mxu0 0.0
        %6874 = vmatprep.subr.mxu0 0.0
        %6875 = vmatpush1.msra.mxu0 0.0
        %6876 = vmatprep.subr.mxu0 0.0
        %6877 = vmatpush1.msra.mxu0 0.0
        %6878 = vmatprep.subr.mxu0 0.0
        %6879 = vmatpush1.msra.mxu0 0.0
        %6880 = vmatprep.subr.mxu0 0.0
        %6881 = vmatpush1.msra.mxu0 0.0
        %6882 = vmatprep.subr.mxu0 0.0
        %6883 = vmatpush1.msra.mxu0 0.0
        %6884 = vmatprep.subr.mxu0 0.0
        %6885 = vmatpush1.msra.mxu0 0.0
        %6886 = vmatprep.subr.mxu0 0.0
        %6887 = vmatpush1.msra.mxu0 0.0
        %6888 = vmatprep.subr.mxu0 0.0
        %6889 = vmatpush1.msra.mxu0 0.0
        %6890 = vmatprep.subr.mxu0 0.0
        %6891 = vmatpush1.msra.mxu0 0.0
        %6892 = vmatprep.subr.mxu0 0.0
        %6893 = vmatpush1.msra.mxu0 0.0
        %6894 = vmatprep.subr.mxu0 0.0
        %6895 = vmatpush1.msra.mxu0 %v6859
        %6896 = vmatprep.subr.mxu0 0.0
        %6897 = vmatpush1.msra.mxu0 %v6858
        %6898 = vmatprep.subr.mxu0 0.0
        %6899 = vmatpush1.msra.mxu0 %v6857
        %6900 = vmatprep.subr.mxu0 0.0
        %6901 = vmatpush1.msra.mxu0 %v6856
        %6902 = vmatprep.subr.mxu0 0.0
        %6903 = vmatpush2.msra.mxu0 0.0
        %6904 = vmatprep.subr.mxu0 0.0
        %6905 = vmatpush2.msra.mxu0 0.0
        %6906 = vmatprep.subr.mxu0 0.0
        %6907 = vmatpush2.msra.mxu0 0.0
        %6908 = vmatprep.subr.mxu0 0.0
        %6909 = vmatpush2.msra.mxu0 0.0
        %6910 = vmatprep.subr.mxu0 0.0
        %6911 = vmatpush2.msra.mxu0 0.0
        %6912 = vmatprep.subr.mxu0 0.0
        %6913 = vmatpush2.msra.mxu0 0.0
        %6914 = vmatprep.subr.mxu0 0.0
        %6915 = vmatpush2.msra.mxu0 0.0
        %6916 = vmatprep.subr.mxu0 0.0
        %6917 = vmatpush2.msra.mxu0 0.0
        %6918 = vmatprep.subr.mxu0 0.0
        %6919 = vmatpush2.msra.mxu0 0.0
        %6920 = vmatprep.subr.mxu0 0.0
        %6921 = vmatpush2.msra.mxu0 0.0
        %6922 = vmatprep.subr.mxu0 0.0
        %6923 = vmatpush2.msra.mxu0 0.0
        %6924 = vmatprep.subr.mxu0 0.0
        %6925 = vmatpush2.msra.mxu0 0.0
        %6926 = vmatprep.subr.mxu0 0.0
        %6927 = vmatpush2.msra.mxu0 0.0
        %6928 = vmatprep.subr.mxu0 0.0
        %6929 = vmatpush2.msra.mxu0 0.0
        %6930 = vmatprep.subr.mxu0 0.0
        %6931 = vmatpush2.msra.mxu0 0.0
        %6932 = vmatprep.subr.mxu0 0.0
        %6933 = vmatpush2.msra.mxu0 0.0
        %6934 = vmatprep.mubr.f32.mxu0 0.0
        %6935 = vmatmul.mubr.f32.gmra.mxu0 %v6868
        %v6936 = vpop.f32.mrf.mxu0
        %v6937 = vadd.f32 %v6865, %v6936
        %v6938 = vpop.f32.mrf.mxu0
        %6939 = vdwg.mxu0
        %vm6940 = vcmask 517120
        %v6941 = vsel %vm6940, %v6937, -inf
        %6942 = vmax.xlane.f32.xlu0 %v6941
        %v6943 = vpop.xlane.xlu0 %6942
        %v6944 = vsub.f32 %v6937, %v6943
        %v6945 = vmul.f32 %v6944, 1.442695
        %v6946 = vpow.pop %v6945
        %v6947 = vsel %vm6940, %v6946, 0.0
        %6948 = vadd.xlane.f32.xlu0 %v6947
        %v6949 = vpop.xlane.xlu0 %6948
        %v6950 = vadd.f32 %v6949, 1e-09
        %v6951 = vrcp.pop %v6950
        %v6952 = vmul.f32 %v6946, %v6951
        %v6953 = vld [vmem:[%s105] sm:$0xff]
        %v6954 = vld [vmem:[%s105 + $0x8] sm:$0xff]
        %v6955 = vld [vmem:[%s105 + $0x10] sm:$0xff]
        %v6956 = vld [vmem:[%s105 + $0x18] sm:$0xff]
        %v6957 = vld [vmem:[%s105 + $0x20] sm:$0xff]
        %v6958 = vld [vmem:[%s105 + $0x28] sm:$0xff]
        %v6959 = vld [vmem:[%s105 + $0x30] sm:$0xff]
        %v6960 = vld [vmem:[%s105 + $0x38] sm:$0xff]
        %v6962 = vsel %vm4330, %v6952, 0
        %6964 = vmatprep.subr.mxu0 0.0
        %6965 = vmatpush1.msra.mxu0 0.0
        %6966 = vmatprep.subr.mxu0 0.0
        %6967 = vmatpush1.msra.mxu0 0.0
        %6968 = vmatprep.subr.mxu0 0.0
        %6969 = vmatpush1.msra.mxu0 0.0
        %6970 = vmatprep.subr.mxu0 0.0
        %6971 = vmatpush1.msra.mxu0 0.0
        %6972 = vmatprep.subr.mxu0 0.0
        %6973 = vmatpush1.msra.mxu0 0.0
        %6974 = vmatprep.subr.mxu0 0.0
        %6975 = vmatpush1.msra.mxu0 0.0
        %6976 = vmatprep.subr.mxu0 0.0
        %6977 = vmatpush1.msra.mxu0 0.0
        %6978 = vmatprep.subr.mxu0 0.0
        %6979 = vmatpush1.msra.mxu0 0.0
        %6980 = vmatprep.subr.mxu0 0.0
        %6981 = vmatpush1.msra.mxu0 %v6960
        %6982 = vmatprep.subr.mxu0 0.0
        %6983 = vmatpush1.msra.mxu0 %v6959
        %6984 = vmatprep.subr.mxu0 0.0
        %6985 = vmatpush1.msra.mxu0 %v6958
        %6986 = vmatprep.subr.mxu0 0.0
        %6987 = vmatpush1.msra.mxu0 %v6957
        %6988 = vmatprep.subr.mxu0 0.0
        %6989 = vmatpush1.msra.mxu0 %v6956
        %6990 = vmatprep.subr.mxu0 0.0
        %6991 = vmatpush1.msra.mxu0 %v6955
        %6992 = vmatprep.subr.mxu0 0.0
        %6993 = vmatpush1.msra.mxu0 %v6954
        %6994 = vmatprep.subr.mxu0 0.0
        %6995 = vmatpush1.msra.mxu0 %v6953
        %6996 = vmatprep.subr.mxu0 0.0
        %6997 = vmatpush2.msra.mxu0 0.0
        %6998 = vmatprep.subr.mxu0 0.0
        %6999 = vmatpush2.msra.mxu0 0.0
        %7000 = vmatprep.subr.mxu0 0.0
        %7001 = vmatpush2.msra.mxu0 0.0
        %7002 = vmatprep.subr.mxu0 0.0
        %7003 = vmatpush2.msra.mxu0 0.0
        %7004 = vmatprep.subr.mxu0 0.0
        %7005 = vmatpush2.msra.mxu0 0.0
        %7006 = vmatprep.subr.mxu0 0.0
        %7007 = vmatpush2.msra.mxu0 0.0
        %7008 = vmatprep.subr.mxu0 0.0
        %7009 = vmatpush2.msra.mxu0 0.0
        %7010 = vmatprep.subr.mxu0 0.0
        %7011 = vmatpush2.msra.mxu0 0.0
        %7012 = vmatprep.subr.mxu0 0.0
        %7013 = vmatpush2.msra.mxu0 0.0
        %7014 = vmatprep.subr.mxu0 0.0
        %7015 = vmatpush2.msra.mxu0 0.0
        %7016 = vmatprep.subr.mxu0 0.0
        %7017 = vmatpush2.msra.mxu0 0.0
        %7018 = vmatprep.subr.mxu0 0.0
        %7019 = vmatpush2.msra.mxu0 0.0
        %7020 = vmatprep.subr.mxu0 0.0
        %7021 = vmatpush2.msra.mxu0 0.0
        %7022 = vmatprep.subr.mxu0 0.0
        %7023 = vmatpush2.msra.mxu0 0.0
        %7024 = vmatprep.subr.mxu0 0.0
        %7025 = vmatpush2.msra.mxu0 0.0
        %7026 = vmatprep.subr.mxu0 0.0
        %7027 = vmatpush2.msra.mxu0 0.0
        %7028 = vmatprep.mubr.f32.mxu0 0.0
        %7029 = vmatmul.mubr.f32.gmra.mxu0 %v6962
        %v7030 = vpop.f32.mrf.mxu0
        %v7031 = vadd.f32 0.0, %v7030
        %v7032 = vpop.f32.mrf.mxu0
        %7033 = vdwg.mxu0
        %vm7034 = vcmask 9216
        %7035 = vst.msk [vmem:[%s1739] sm:$0x3] %vm7034, %v7031
        %p7036 = scmp.lt.s32.totalorder %s123, 1
        %s7037 = scalar_select %p7036, %s123, 1
        %s7038 = smul.addr %s7037, 2
        %s7039 = scalar_lea.vmem %s107, %s7038
        // Predicated region
        $region269: #{stark_forward.1} parent=231 // pred_check
          %p7040 = pneg %p1274
        $region270: #{stark_forward.1} parent=231 // pred_check_branch
          %7042 = sbr.rel (%p7040) target = $region272
        $region271: #{stark_forward.1} parent=231 // pred_region
          _
        $region272: #{stark_forward.1} parent=231 // pred_fallthru
          _
      $region232: #{stark_forward.1} parent=5 // pred_fallthru
        _
      %p7043 = scmp.le.s32.totalorder 2, %s118
      // Predicated region
      $region273: #{stark_forward.1} parent=5 // pred_check
        %p7044 = pneg %p7043
      $region274: #{stark_forward.1} parent=5 // pred_check_branch
        %7046 = sbr.rel (%p7044) target = $region276
      $region275: #{stark_forward.1} parent=5 // pred_region
        %s7047 = ssub.s32 %s118, 2
        // Predicated region
        $region277: #{stark_forward.1} parent=275 // pred_check
          %p7048 = pneg %p1280
        $region278: #{stark_forward.1} parent=275 // pred_check_branch
          %7050 = sbr.rel (%p7048) target = $region280
        $region279: #{stark_forward.1} parent=275 // pred_region
          %p7051 = scmp.lt.s32.totalorder %s124, 1
          %s7052 = scalar_select %p7051, %s124, 1
          %s7053 = smul.addr %s7052, 2
          %s7054 = scalar_lea.vmem %s107, %s7053
        $region280: #{stark_forward.1} parent=275 // pred_fallthru
          _
      $region276: #{stark_forward.1} parent=5 // pred_fallthru
        _
    $region6: #{stark_forward.1} parent=1 // loop_footer
      %s122 = sadd.s32 1, %s118
    $region7: #{stark_forward.1} parent=1 // loop_footer_branch
      %117 = sbr.rel target = $region3
    $region8: #{stark_forward.1} parent=1 // loop_exit
      _
    %7055 = vsyncpa [#allocation3], 1
    %s7056 = scalar_lea.sflag [#allocation3], 1
    %7057 = vsyncpa %s7056, 1
    %7058 = vsyncpa [#allocation5], 1
    %7059 = vsyncpa [#allocation8], 1
    %7060 = vsyncpa [#allocation11], 1
    %7061 = vsyncpa [#allocation14], 1

</llo_original>
